<compile_context>
chip_gen: v7x
topology: tpu7x:2x2x1
jax: 0.10.0
libtpu: 0.0.40
codegen_flags: <defaults>
</compile_context>

<pallas_src>
import numpy as np
import jax
import jax.numpy as jnp
from jax import lax
from jax.experimental import pallas as pl
from jax.experimental.pallas import tpu as pltpu


# Static network dimensions implied by the PyTorch module (28x28x1 input).
H = 28            # input height / width
K = 5             # conv kernel size
C1 = 20           # conv1 out channels
C2 = 50           # conv2 out channels
HO1 = H - K + 1   # 24: conv1 output size
P1 = HO1 // 2     # 12: after pool1
HO2 = P1 - K + 1  # 8 : conv2 output size
P2 = HO2 // 2     # 4 : after pool2
DH = 500          # fc1 hidden
NC = 2            # classes

W1L = HO1 * C1    # 480: conv1 output lane width, lane = j*C1 + c
K2 = W1L - C1     # 460: pool1 width after shifted-pair max (conv2 contraction dim)
W2L = HO2 * C2    # 400: conv2 output lane width, lane = j2*C2 + co
K3 = W2L - C2     # 350: pool2 width after shifted-pair max (fc1 per-row contraction dim)

B_TILE = 8        # images per grid step (multiple of 8 = sublane tile)


# ----------------------------------------------------------------------------
# Fused kernel: whole forward pass for B_TILE images (everything stays in VMEM).
# Activation row layout throughout: row = spatial_row * B_TILE + image  (batch in sublanes).
# ----------------------------------------------------------------------------
def fused_forward_kernel(x_ref, s1_ref, b1_ref, s2_ref, b2_ref,
                         w1_ref, f1b_ref, w2_ref, f2b_ref, o_ref):
    BT = x_ref.shape[1]                                   # images per step
    x = x_ref[...]                                        # (28, BT, 28): (row, image, col)

    # ---- conv1: 5 banded MXU dots, batched over images via the row dim ------
    y1 = jnp.zeros((HO1 * BT, W1L), jnp.float32)          # rows=(i,b), lanes=(j,c1)
    for kh in range(K):                                   # leading-dim slice: tile-granular (free)
        xs = x[kh:kh + HO1].reshape(HO1 * BT, H)          # (192, 28)
        y1 = y1 + jnp.dot(xs, s1_ref[kh],
                          preferred_element_type=jnp.float32)
    y1 = jnp.maximum(y1 + b1_ref[...], 0.0)               # bias (pre-tiled) + ReLU

    # ---- 2x2/2 max-pool #1 ---------------------------------------------------
    # H direction: adjacent row-tiles, free pairing + vmax.
    y1h = jnp.max(y1.reshape(P1, 2, BT, W1L), axis=1).reshape(P1 * BT, W1L)   # (96, 480)
    # W direction: one shifted lane-slice + max; even-j selection is folded into s2 (zero rows).
    p1 = jnp.maximum(y1h[:, :K2], y1h[:, C1:]).reshape(P1, BT, K2)            # (12, BT, 460)
    # valid pooled value for (jp, c) sits at lane (2*jp)*C1 + c

    # ---- conv2: 5 banded dots, K=460 (odd-j lane groups have zero weights) ---
    y2 = jnp.zeros((HO2 * BT, W2L), jnp.float32)          # rows=(i2,b), lanes=(j2,c2)
    for kh in range(K):
        q = p1[kh:kh + HO2].reshape(HO2 * BT, K2)         # (64, 460), free slice/reshape
        y2 = y2 + jnp.dot(q, s2_ref[kh],
                          preferred_element_type=jnp.float32)
    y2 = jnp.maximum(y2 + b2_ref[...], 0.0)

    # ---- pool #2 --------------------------------------------------------------
    y2h = jnp.max(y2.reshape(P2, 2, BT, W2L), axis=1).reshape(P2 * BT, W2L)   # (32, 400)
    p2 = jnp.maximum(y2h[:, :K3], y2h[:, C2:]).reshape(P2, BT, K3)            # (4, BT, 350)
    # valid pooled value for (w, c) sits at lane (2*w)*C2 + c

    # ---- fc1: flatten order + even-column selection folded into w1; batched M=BT
    h1 = jnp.zeros((BT, DH), jnp.float32)
    for h in range(P2):                                   # 4 accumulating (8,350)x(350,500) dots
        h1 = h1 + jnp.dot(p2[h], w1_ref[h],
                          preferred_element_type=jnp.float32)
    h1 = jnp.maximum(h1 + f1b_ref[...], 0.0)              # ReLU   (BT, 500)

    # ---- fc2 + log_softmax ----------------------------------------------------
    logits = jnp.dot(h1, w2_ref[...],
                     preferred_element_type=jnp.float32) + f2b_ref[...]       # (BT, 2)
    m = jnp.max(logits, axis=-1, keepdims=True)
    lse = m + jnp.log(jnp.sum(jnp.exp(logits - m), axis=-1, keepdims=True))
    o_ref[...] = (logits - lse).astype(o_ref.dtype)


# ----------------------------------------------------------------------------
# One-time host-side parameter rearrangement:
#   * banded conv weights (kw and c_in folded into the contraction dim),
#   * pool "keep even column group" selection folded in as zero weight rows,
#   * fc1 rows pre-permuted to the kernel's per-h (w, c) layout (no runtime flatten-transpose),
#   * biases pre-tiled across spatial positions.
# ----------------------------------------------------------------------------
def prepare_params(conv1_w, conv1_b, conv2_w, conv2_b,
                   fc1_w, fc1_b, fc2_w, fc2_b):
    conv1_w = np.asarray(conv1_w, np.float32)   # (20, 1, 5, 5)  OIHW
    conv1_b = np.asarray(conv1_b, np.float32)   # (20,)
    conv2_w = np.asarray(conv2_w, np.float32)   # (50, 20, 5, 5) OIHW
    conv2_b = np.asarray(conv2_b, np.float32)   # (50,)
    fc1_w = np.asarray(fc1_w, np.float32)       # (500, 800) -- cols in torch CHW order
    fc1_b = np.asarray(fc1_b, np.float32)       # (500,)
    fc2_w = np.asarray(fc2_w, np.float32)       # (2, 500)
    fc2_b = np.asarray(fc2_b, np.float32)       # (2,)

    # conv1 banded weights: s1[kh, j+kw, j*C1 + o] = conv1_w[o, 0, kh, kw]
    s1 = np.zeros((K, H, W1L), np.float32)
    for kh in range(K):
        for j in range(HO1):
            for kw in range(K):
                s1[kh, j + kw, j * C1:(j + 1) * C1] = conv1_w[:, 0, kh, kw]
    b1 = np.tile(conv1_b, HO1)[None, :]                              # (1, 480)

    # conv2 banded weights over UNCOMPACTED pool1 lanes (only even-j groups nonzero):
    #   s2[kh, (2*(j2+kw))*C1 + ci, j2*C2 + co] = conv2_w[co, ci, kh, kw]
    s2 = np.zeros((K, K2, W2L), np.float32)
    for kh in range(K):
        for j2 in range(HO2):
            for kw in range(K):
                jin = 2 * (j2 + kw)
                s2[kh, jin * C1:(jin + 1) * C1, j2 * C2:(j2 + 1) * C2] = \
                    conv2_w[:, :, kh, kw].T
    b2 = np.tile(conv2_b, HO2)[None, :]                              # (1, 400)

    # fc1: w1[h, (2*w)*C2 + c, n] = fc1_w[n, c*16 + h*4 + w]; other rows zero.
    w1 = np.zeros((P2, K3, DH), np.float32)
    for h in range(P2):
        for w in range(P2):
            for c in range(C2):
                w1[h, (2 * w) * C2 + c, :] = fc1_w[:, c * P2 * P2 + h * P2 + w]
    f1b = fc1_b[None, :]                                             # (1, 500)

    w2 = fc2_w.T.copy()                                              # (500, 2)
    f2b = fc2_b[None, :]                                             # (1, 2)

    return tuple(jnp.asarray(a) for a in (s1, b1, s2, b2, w1, f1b, w2, f2b))


# ----------------------------------------------------------------------------
# Wrapper: pad batch to a multiple of B_TILE, put batch in the sublane dim,
# one fused pallas_call with B_TILE images per (parallel) grid step.
# ----------------------------------------------------------------------------
def two_layer_net(x_hw, params, block_b=B_TILE):
    """x_hw: (B, 28, 28) single-channel images; params from prepare_params()."""
    assert block_b % 8 == 0
    B = x_hw.shape[0]
    s1, b1, s2, b2, w1, f1b, w2, f2b = params

    B_pad = ((B + block_b - 1) // block_b) * block_b
    if B_pad != B:                                   # explicit tail handling
        x_hw = jnp.pad(x_hw, ((0, B_pad - B), (0, 0), (0, 0)))
    # Layout plumbing: batch -> sublanes so all in-kernel row ops are tile-granular.
    x_t = jnp.transpose(x_hw, (1, 0, 2))             # (28, B_pad, 28)

    out = pl.pallas_call(
        fused_forward_kernel,
        out_shape=jax.ShapeDtypeStruct((B_pad, NC), jnp.float32),
        grid=(B_pad // block_b,),
        in_specs=[
            pl.BlockSpec((H, block_b, H), lambda i: (0, i, 0)),
            pl.BlockSpec(s1.shape, lambda i: (0, 0, 0)),
            pl.BlockSpec(b1.shape, lambda i: (0, 0)),
            pl.BlockSpec(s2.shape, lambda i: (0, 0, 0)),
            pl.BlockSpec(b2.shape, lambda i: (0, 0)),
            pl.BlockSpec(w1.shape, lambda i: (0, 0, 0)),
            pl.BlockSpec(f1b.shape, lambda i: (0, 0)),
            pl.BlockSpec(w2.shape, lambda i: (0, 0)),
            pl.BlockSpec(f2b.shape, lambda i: (0, 0)),
        ],
        out_specs=pl.BlockSpec((block_b, NC), lambda i: (i, 0)),
        compiler_params=pltpu.CompilerParams(
            dimension_semantics=("parallel",)),
    )(x_t, s1, b1, s2, b2, w1, f1b, w2, f2b)
    return out[:B]


# ----------------------------------------------------------------------------
# Pure-JAX reference using the original PyTorch layouts (correctness check).
# ----------------------------------------------------------------------------
def reference_forward(x_nchw, conv1_w, conv1_b, conv2_w, conv2_b,
                      fc1_w, fc1_b, fc2_w, fc2_b):
    dn = ('NCHW', 'OIHW', 'NCHW')
    hi = lax.Precision.HIGHEST
    y = lax.conv_general_dilated(x_nchw, conv1_w, (1, 1), 'VALID',
                                 dimension_numbers=dn, precision=hi)
    y = jnp.maximum(y + conv1_b.reshape(1, -1, 1, 1), 0.0)
    y = lax.reduce_window(y, -jnp.inf, lax.max, (1, 1, 2, 2), (1, 1, 2, 2), 'VALID')
    y = lax.conv_general_dilated(y, conv2_w, (1, 1), 'VALID',
                                 dimension_numbers=dn, precision=hi)
    y = jnp.maximum(y + conv2_b.reshape(1, -1, 1, 1), 0.0)
    y = lax.reduce_window(y, -jnp.inf, lax.max, (1, 1, 2, 2), (1, 1, 2, 2), 'VALID')
    flat = y.reshape(y.shape[0], -1)                 # == torch x.view(-1, 4*4*50)
    h = jnp.maximum(jnp.dot(flat, fc1_w.T, precision=hi) + fc1_b, 0.0)
    logits = jnp.dot(h, fc2_w.T, precision=hi) + fc2_b
    return jax.nn.log_softmax(logits, axis=1)


if __name__ == "__main__":
    key = jax.random.PRNGKey(0)
    ks = jax.random.split(key, 9)
    B = 13   # deliberately NOT a multiple of B_TILE: wrapper pads to 16 -> grid=(2,), even

    # PyTorch-convention parameters and NCHW input.
    x_nchw = jax.random.normal(ks[0], (B, 1, H, H), jnp.float32)
    conv1_w = 0.10 * jax.random.normal(ks[1], (C1, 1, K, K), jnp.float32)
    conv1_b = 0.10 * jax.random.normal(ks[2], (C1,), jnp.float32)
    conv2_w = 0.05 * jax.random.normal(ks[3], (C2, C1, K, K), jnp.float32)
    conv2_b = 0.10 * jax.random.normal(ks[4], (C2,), jnp.float32)
    fc1_w = 0.05 * jax.random.normal(ks[5], (DH, P2 * P2 * C2), jnp.float32)
    fc1_b = 0.10 * jax.random.normal(ks[6], (DH,), jnp.float32)
    fc2_w = 0.05 * jax.random.normal(ks[7], (NC, DH), jnp.float32)
    fc2_b = 0.10 * jax.random.normal(ks[8], (NC,), jnp.float32)

    # One-time weight preprocessing (outside the jitted forward).
    params = prepare_params(conv1_w, conv1_b, conv2_w, conv2_b,
                            fc1_w, fc1_b, fc2_w, fc2_b)
    x_hw = x_nchw[:, 0, :, :]                        # (B, 28, 28), Cin == 1

    fwd = jax.jit(two_layer_net)
    out = jax.block_until_ready(fwd(x_hw, params))
    assert out.shape == (B, NC) and out.dtype == jnp.float32

    ref = reference_forward(x_nchw, conv1_w, conv1_b, conv2_w, conv2_b,
                            fc1_w, fc1_b, fc2_w, fc2_b)
    if not jnp.allclose(out, ref, atol=1e-4, rtol=1e-4):
        raise AssertionError(f"mismatch vs reference:\n{out}\n{ref}")

    print("KERNEL_OK")
</pallas_src>

<mosaic_0001>
module attributes {stable_mosaic.version = 11 : i64} {
  func.func @fused_forward_kernel(%arg0: i32, %arg1: memref<28x8x28xf32, #tpu.memory_space<vmem>>, %arg2: memref<5x28x480xf32, #tpu.memory_space<vmem>>, %arg3: memref<1x480xf32, #tpu.memory_space<vmem>>, %arg4: memref<5x460x400xf32, #tpu.memory_space<vmem>>, %arg5: memref<1x400xf32, #tpu.memory_space<vmem>>, %arg6: memref<4x350x500xf32, #tpu.memory_space<vmem>>, %arg7: memref<1x500xf32, #tpu.memory_space<vmem>>, %arg8: memref<500x2xf32, #tpu.memory_space<vmem>>, %arg9: memref<1x2xf32, #tpu.memory_space<vmem>>, %arg10: memref<8x2xf32, #tpu.memory_space<vmem>>) attributes {dimension_semantics = [#tpu.dimension_semantics<parallel>], iteration_bounds = array<i64: 2>, scalar_prefetch = 0 : i64, scratch_operands = 0 : i64, tpu.core_type = #tpu.core_type<tc>, window_params = [{transform_indices = @transform_0, window_bounds = array<i64: 28, 8, 28>}, {pipeline_mode = #tpu.pipeline_mode<synchronous>, transform_indices = @transform_1, window_bounds = array<i64: 5, 28, 480>}, {pipeline_mode = #tpu.pipeline_mode<synchronous>, transform_indices = @transform_2, window_bounds = array<i64: 1, 480>}, {pipeline_mode = #tpu.pipeline_mode<synchronous>, transform_indices = @transform_3, window_bounds = array<i64: 5, 460, 400>}, {pipeline_mode = #tpu.pipeline_mode<synchronous>, transform_indices = @transform_4, window_bounds = array<i64: 1, 400>}, {pipeline_mode = #tpu.pipeline_mode<synchronous>, transform_indices = @transform_5, window_bounds = array<i64: 4, 350, 500>}, {pipeline_mode = #tpu.pipeline_mode<synchronous>, transform_indices = @transform_6, window_bounds = array<i64: 1, 500>}, {pipeline_mode = #tpu.pipeline_mode<synchronous>, transform_indices = @transform_7, window_bounds = array<i64: 500, 2>}, {pipeline_mode = #tpu.pipeline_mode<synchronous>, transform_indices = @transform_8, window_bounds = array<i64: 1, 2>}, {transform_indices = @transform_9, window_bounds = array<i64: 8, 2>}]} {
    %c0 = arith.constant 0 : index
    %c0_0 = arith.constant 0 : index
    %c0_1 = arith.constant 0 : index
    %0 = vector.load %arg1[%c0, %c0_0, %c0_1] : memref<28x8x28xf32, #tpu.memory_space<vmem>>, vector<28x8x28xf32>
    %cst = arith.constant 0.000000e+00 : f32
    %1 = vector.broadcast %cst : f32 to vector<192x480xf32>
    %2 = vector.extract_strided_slice %0 {offsets = [0, 0, 0], sizes = [24, 8, 28], strides = [1, 1, 1]} : vector<28x8x28xf32> to vector<24x8x28xf32>
    %3 = vector.shape_cast %2 : vector<24x8x28xf32> to vector<192x28xf32>
    %c0_2 = arith.constant 0 : index
    %c0_3 = arith.constant 0 : index
    %c0_4 = arith.constant 0 : index
    %4 = vector.load %arg2[%c0_2, %c0_3, %c0_4] : memref<5x28x480xf32, #tpu.memory_space<vmem>>, vector<1x28x480xf32>
    %5 = vector.shape_cast %4 : vector<1x28x480xf32> to vector<28x480xf32>
    %cst_5 = arith.constant dense<0.000000e+00> : vector<192x480xf32>
    %6 = tpu.matmul %3, %5, %cst_5 {dimension_numbers = #tpu.dot_dimension_numbers<[1], [0], [0], [1], [0, 0, 1, 1], [], []>} : vector<192x28xf32>, vector<28x480xf32>, vector<192x480xf32> -> vector<192x480xf32>
    %7 = arith.addf %1, %6 : vector<192x480xf32>
    %8 = vector.extract_strided_slice %0 {offsets = [1, 0, 0], sizes = [24, 8, 28], strides = [1, 1, 1]} : vector<28x8x28xf32> to vector<24x8x28xf32>
    %9 = vector.shape_cast %8 : vector<24x8x28xf32> to vector<192x28xf32>
    %c1 = arith.constant 1 : index
    %c0_6 = arith.constant 0 : index
    %c0_7 = arith.constant 0 : index
    %10 = vector.load %arg2[%c1, %c0_6, %c0_7] : memref<5x28x480xf32, #tpu.memory_space<vmem>>, vector<1x28x480xf32>
    %11 = vector.shape_cast %10 : vector<1x28x480xf32> to vector<28x480xf32>
    %cst_8 = arith.constant dense<0.000000e+00> : vector<192x480xf32>
    %12 = tpu.matmul %9, %11, %cst_8 {dimension_numbers = #tpu.dot_dimension_numbers<[1], [0], [0], [1], [0, 0, 1, 1], [], []>} : vector<192x28xf32>, vector<28x480xf32>, vector<192x480xf32> -> vector<192x480xf32>
    %13 = arith.addf %7, %12 : vector<192x480xf32>
    %14 = vector.extract_strided_slice %0 {offsets = [2, 0, 0], sizes = [24, 8, 28], strides = [1, 1, 1]} : vector<28x8x28xf32> to vector<24x8x28xf32>
    %15 = vector.shape_cast %14 : vector<24x8x28xf32> to vector<192x28xf32>
    %c2 = arith.constant 2 : index
    %c0_9 = arith.constant 0 : index
    %c0_10 = arith.constant 0 : index
    %16 = vector.load %arg2[%c2, %c0_9, %c0_10] : memref<5x28x480xf32, #tpu.memory_space<vmem>>, vector<1x28x480xf32>
    %17 = vector.shape_cast %16 : vector<1x28x480xf32> to vector<28x480xf32>
    %cst_11 = arith.constant dense<0.000000e+00> : vector<192x480xf32>
    %18 = tpu.matmul %15, %17, %cst_11 {dimension_numbers = #tpu.dot_dimension_numbers<[1], [0], [0], [1], [0, 0, 1, 1], [], []>} : vector<192x28xf32>, vector<28x480xf32>, vector<192x480xf32> -> vector<192x480xf32>
    %19 = arith.addf %13, %18 : vector<192x480xf32>
    %20 = vector.extract_strided_slice %0 {offsets = [3, 0, 0], sizes = [24, 8, 28], strides = [1, 1, 1]} : vector<28x8x28xf32> to vector<24x8x28xf32>
    %21 = vector.shape_cast %20 : vector<24x8x28xf32> to vector<192x28xf32>
    %c3 = arith.constant 3 : index
    %c0_12 = arith.constant 0 : index
    %c0_13 = arith.constant 0 : index
    %22 = vector.load %arg2[%c3, %c0_12, %c0_13] : memref<5x28x480xf32, #tpu.memory_space<vmem>>, vector<1x28x480xf32>
    %23 = vector.shape_cast %22 : vector<1x28x480xf32> to vector<28x480xf32>
    %cst_14 = arith.constant dense<0.000000e+00> : vector<192x480xf32>
    %24 = tpu.matmul %21, %23, %cst_14 {dimension_numbers = #tpu.dot_dimension_numbers<[1], [0], [0], [1], [0, 0, 1, 1], [], []>} : vector<192x28xf32>, vector<28x480xf32>, vector<192x480xf32> -> vector<192x480xf32>
    %25 = arith.addf %19, %24 : vector<192x480xf32>
    %26 = vector.extract_strided_slice %0 {offsets = [4, 0, 0], sizes = [24, 8, 28], strides = [1, 1, 1]} : vector<28x8x28xf32> to vector<24x8x28xf32>
    %27 = vector.shape_cast %26 : vector<24x8x28xf32> to vector<192x28xf32>
    %c4 = arith.constant 4 : index
    %c0_15 = arith.constant 0 : index
    %c0_16 = arith.constant 0 : index
    %28 = vector.load %arg2[%c4, %c0_15, %c0_16] : memref<5x28x480xf32, #tpu.memory_space<vmem>>, vector<1x28x480xf32>
    %29 = vector.shape_cast %28 : vector<1x28x480xf32> to vector<28x480xf32>
    %cst_17 = arith.constant dense<0.000000e+00> : vector<192x480xf32>
    %30 = tpu.matmul %27, %29, %cst_17 {dimension_numbers = #tpu.dot_dimension_numbers<[1], [0], [0], [1], [0, 0, 1, 1], [], []>} : vector<192x28xf32>, vector<28x480xf32>, vector<192x480xf32> -> vector<192x480xf32>
    %31 = arith.addf %25, %30 : vector<192x480xf32>
    %c0_18 = arith.constant 0 : index
    %c0_19 = arith.constant 0 : index
    %32 = vector.load %arg3[%c0_18, %c0_19] : memref<1x480xf32, #tpu.memory_space<vmem>>, vector<1x480xf32>
    %33 = vector.broadcast %32 : vector<1x480xf32> to vector<192x480xf32>
    %34 = arith.addf %31, %33 : vector<192x480xf32>
    %cst_20 = arith.constant 0.000000e+00 : f32
    %35 = vector.broadcast %cst_20 : f32 to vector<192x480xf32>
    %36 = arith.maximumf %34, %35 : vector<192x480xf32>
    %37 = vector.shape_cast %36 : vector<192x480xf32> to vector<12x2x8x480xf32>
    %cst_21 = arith.constant dense<0xFF800000> : vector<12x8x480xf32>
    %38 = vector.multi_reduction <maximumf>, %37, %cst_21 [1] : vector<12x2x8x480xf32> to vector<12x8x480xf32>
    %39 = vector.shape_cast %38 : vector<12x8x480xf32> to vector<96x480xf32>
    %40 = vector.extract_strided_slice %39 {offsets = [0, 0], sizes = [96, 460], strides = [1, 1]} : vector<96x480xf32> to vector<96x460xf32>
    %41 = vector.extract_strided_slice %39 {offsets = [0, 20], sizes = [96, 460], strides = [1, 1]} : vector<96x480xf32> to vector<96x460xf32>
    %42 = arith.maximumf %40, %41 : vector<96x460xf32>
    %43 = vector.shape_cast %42 : vector<96x460xf32> to vector<12x8x460xf32>
    %cst_22 = arith.constant 0.000000e+00 : f32
    %44 = vector.broadcast %cst_22 : f32 to vector<64x400xf32>
    %45 = vector.extract_strided_slice %43 {offsets = [0, 0, 0], sizes = [8, 8, 460], strides = [1, 1, 1]} : vector<12x8x460xf32> to vector<8x8x460xf32>
    %46 = vector.shape_cast %45 : vector<8x8x460xf32> to vector<64x460xf32>
    %c0_23 = arith.constant 0 : index
    %c0_24 = arith.constant 0 : index
    %c0_25 = arith.constant 0 : index
    %47 = vector.load %arg4[%c0_23, %c0_24, %c0_25] : memref<5x460x400xf32, #tpu.memory_space<vmem>>, vector<1x460x400xf32>
    %48 = vector.shape_cast %47 : vector<1x460x400xf32> to vector<460x400xf32>
    %cst_26 = arith.constant dense<0.000000e+00> : vector<64x400xf32>
    %49 = tpu.matmul %46, %48, %cst_26 {dimension_numbers = #tpu.dot_dimension_numbers<[1], [0], [0], [1], [0, 0, 1, 1], [], []>} : vector<64x460xf32>, vector<460x400xf32>, vector<64x400xf32> -> vector<64x400xf32>
    %50 = arith.addf %44, %49 : vector<64x400xf32>
    %51 = vector.extract_strided_slice %43 {offsets = [1, 0, 0], sizes = [8, 8, 460], strides = [1, 1, 1]} : vector<12x8x460xf32> to vector<8x8x460xf32>
    %52 = vector.shape_cast %51 : vector<8x8x460xf32> to vector<64x460xf32>
    %c1_27 = arith.constant 1 : index
    %c0_28 = arith.constant 0 : index
    %c0_29 = arith.constant 0 : index
    %53 = vector.load %arg4[%c1_27, %c0_28, %c0_29] : memref<5x460x400xf32, #tpu.memory_space<vmem>>, vector<1x460x400xf32>
    %54 = vector.shape_cast %53 : vector<1x460x400xf32> to vector<460x400xf32>
    %cst_30 = arith.constant dense<0.000000e+00> : vector<64x400xf32>
    %55 = tpu.matmul %52, %54, %cst_30 {dimension_numbers = #tpu.dot_dimension_numbers<[1], [0], [0], [1], [0, 0, 1, 1], [], []>} : vector<64x460xf32>, vector<460x400xf32>, vector<64x400xf32> -> vector<64x400xf32>
    %56 = arith.addf %50, %55 : vector<64x400xf32>
    %57 = vector.extract_strided_slice %43 {offsets = [2, 0, 0], sizes = [8, 8, 460], strides = [1, 1, 1]} : vector<12x8x460xf32> to vector<8x8x460xf32>
    %58 = vector.shape_cast %57 : vector<8x8x460xf32> to vector<64x460xf32>
    %c2_31 = arith.constant 2 : index
    %c0_32 = arith.constant 0 : index
    %c0_33 = arith.constant 0 : index
    %59 = vector.load %arg4[%c2_31, %c0_32, %c0_33] : memref<5x460x400xf32, #tpu.memory_space<vmem>>, vector<1x460x400xf32>
    %60 = vector.shape_cast %59 : vector<1x460x400xf32> to vector<460x400xf32>
    %cst_34 = arith.constant dense<0.000000e+00> : vector<64x400xf32>
    %61 = tpu.matmul %58, %60, %cst_34 {dimension_numbers = #tpu.dot_dimension_numbers<[1], [0], [0], [1], [0, 0, 1, 1], [], []>} : vector<64x460xf32>, vector<460x400xf32>, vector<64x400xf32> -> vector<64x400xf32>
    %62 = arith.addf %56, %61 : vector<64x400xf32>
    %63 = vector.extract_strided_slice %43 {offsets = [3, 0, 0], sizes = [8, 8, 460], strides = [1, 1, 1]} : vector<12x8x460xf32> to vector<8x8x460xf32>
    %64 = vector.shape_cast %63 : vector<8x8x460xf32> to vector<64x460xf32>
    %c3_35 = arith.constant 3 : index
    %c0_36 = arith.constant 0 : index
    %c0_37 = arith.constant 0 : index
    %65 = vector.load %arg4[%c3_35, %c0_36, %c0_37] : memref<5x460x400xf32, #tpu.memory_space<vmem>>, vector<1x460x400xf32>
    %66 = vector.shape_cast %65 : vector<1x460x400xf32> to vector<460x400xf32>
    %cst_38 = arith.constant dense<0.000000e+00> : vector<64x400xf32>
    %67 = tpu.matmul %64, %66, %cst_38 {dimension_numbers = #tpu.dot_dimension_numbers<[1], [0], [0], [1], [0, 0, 1, 1], [], []>} : vector<64x460xf32>, vector<460x400xf32>, vector<64x400xf32> -> vector<64x400xf32>
    %68 = arith.addf %62, %67 : vector<64x400xf32>
    %69 = vector.extract_strided_slice %43 {offsets = [4, 0, 0], sizes = [8, 8, 460], strides = [1, 1, 1]} : vector<12x8x460xf32> to vector<8x8x460xf32>
    %70 = vector.shape_cast %69 : vector<8x8x460xf32> to vector<64x460xf32>
    %c4_39 = arith.constant 4 : index
    %c0_40 = arith.constant 0 : index
    %c0_41 = arith.constant 0 : index
    %71 = vector.load %arg4[%c4_39, %c0_40, %c0_41] : memref<5x460x400xf32, #tpu.memory_space<vmem>>, vector<1x460x400xf32>
    %72 = vector.shape_cast %71 : vector<1x460x400xf32> to vector<460x400xf32>
    %cst_42 = arith.constant dense<0.000000e+00> : vector<64x400xf32>
    %73 = tpu.matmul %70, %72, %cst_42 {dimension_numbers = #tpu.dot_dimension_numbers<[1], [0], [0], [1], [0, 0, 1, 1], [], []>} : vector<64x460xf32>, vector<460x400xf32>, vector<64x400xf32> -> vector<64x400xf32>
    %74 = arith.addf %68, %73 : vector<64x400xf32>
    %c0_43 = arith.constant 0 : index
    %c0_44 = arith.constant 0 : index
    %75 = vector.load %arg5[%c0_43, %c0_44] : memref<1x400xf32, #tpu.memory_space<vmem>>, vector<1x400xf32>
    %76 = vector.broadcast %75 : vector<1x400xf32> to vector<64x400xf32>
    %77 = arith.addf %74, %76 : vector<64x400xf32>
    %cst_45 = arith.constant 0.000000e+00 : f32
    %78 = vector.broadcast %cst_45 : f32 to vector<64x400xf32>
    %79 = arith.maximumf %77, %78 : vector<64x400xf32>
    %80 = vector.shape_cast %79 : vector<64x400xf32> to vector<4x2x8x400xf32>
    %cst_46 = arith.constant dense<0xFF800000> : vector<4x8x400xf32>
    %81 = vector.multi_reduction <maximumf>, %80, %cst_46 [1] : vector<4x2x8x400xf32> to vector<4x8x400xf32>
    %82 = vector.shape_cast %81 : vector<4x8x400xf32> to vector<32x400xf32>
    %83 = vector.extract_strided_slice %82 {offsets = [0, 0], sizes = [32, 350], strides = [1, 1]} : vector<32x400xf32> to vector<32x350xf32>
    %84 = vector.extract_strided_slice %82 {offsets = [0, 50], sizes = [32, 350], strides = [1, 1]} : vector<32x400xf32> to vector<32x350xf32>
    %85 = arith.maximumf %83, %84 : vector<32x350xf32>
    %86 = vector.shape_cast %85 : vector<32x350xf32> to vector<4x8x350xf32>
    %cst_47 = arith.constant 0.000000e+00 : f32
    %87 = vector.broadcast %cst_47 : f32 to vector<8x500xf32>
    %88 = vector.extract_strided_slice %86 {offsets = [0, 0, 0], sizes = [1, 8, 350], strides = [1, 1, 1]} : vector<4x8x350xf32> to vector<1x8x350xf32>
    %89 = vector.shape_cast %88 : vector<1x8x350xf32> to vector<8x350xf32>
    %c0_48 = arith.constant 0 : index
    %c0_49 = arith.constant 0 : index
    %c0_50 = arith.constant 0 : index
    %90 = vector.load %arg6[%c0_48, %c0_49, %c0_50] : memref<4x350x500xf32, #tpu.memory_space<vmem>>, vector<1x350x500xf32>
    %91 = vector.shape_cast %90 : vector<1x350x500xf32> to vector<350x500xf32>
    %cst_51 = arith.constant dense<0.000000e+00> : vector<8x500xf32>
    %92 = tpu.matmul %89, %91, %cst_51 {dimension_numbers = #tpu.dot_dimension_numbers<[1], [0], [0], [1], [0, 0, 1, 1], [], []>} : vector<8x350xf32>, vector<350x500xf32>, vector<8x500xf32> -> vector<8x500xf32>
    %93 = arith.addf %87, %92 : vector<8x500xf32>
    %94 = vector.extract_strided_slice %86 {offsets = [1, 0, 0], sizes = [1, 8, 350], strides = [1, 1, 1]} : vector<4x8x350xf32> to vector<1x8x350xf32>
    %95 = vector.shape_cast %94 : vector<1x8x350xf32> to vector<8x350xf32>
    %c1_52 = arith.constant 1 : index
    %c0_53 = arith.constant 0 : index
    %c0_54 = arith.constant 0 : index
    %96 = vector.load %arg6[%c1_52, %c0_53, %c0_54] : memref<4x350x500xf32, #tpu.memory_space<vmem>>, vector<1x350x500xf32>
    %97 = vector.shape_cast %96 : vector<1x350x500xf32> to vector<350x500xf32>
    %cst_55 = arith.constant dense<0.000000e+00> : vector<8x500xf32>
    %98 = tpu.matmul %95, %97, %cst_55 {dimension_numbers = #tpu.dot_dimension_numbers<[1], [0], [0], [1], [0, 0, 1, 1], [], []>} : vector<8x350xf32>, vector<350x500xf32>, vector<8x500xf32> -> vector<8x500xf32>
    %99 = arith.addf %93, %98 : vector<8x500xf32>
    %100 = vector.extract_strided_slice %86 {offsets = [2, 0, 0], sizes = [1, 8, 350], strides = [1, 1, 1]} : vector<4x8x350xf32> to vector<1x8x350xf32>
    %101 = vector.shape_cast %100 : vector<1x8x350xf32> to vector<8x350xf32>
    %c2_56 = arith.constant 2 : index
    %c0_57 = arith.constant 0 : index
    %c0_58 = arith.constant 0 : index
    %102 = vector.load %arg6[%c2_56, %c0_57, %c0_58] : memref<4x350x500xf32, #tpu.memory_space<vmem>>, vector<1x350x500xf32>
    %103 = vector.shape_cast %102 : vector<1x350x500xf32> to vector<350x500xf32>
    %cst_59 = arith.constant dense<0.000000e+00> : vector<8x500xf32>
    %104 = tpu.matmul %101, %103, %cst_59 {dimension_numbers = #tpu.dot_dimension_numbers<[1], [0], [0], [1], [0, 0, 1, 1], [], []>} : vector<8x350xf32>, vector<350x500xf32>, vector<8x500xf32> -> vector<8x500xf32>
    %105 = arith.addf %99, %104 : vector<8x500xf32>
    %106 = vector.extract_strided_slice %86 {offsets = [3, 0, 0], sizes = [1, 8, 350], strides = [1, 1, 1]} : vector<4x8x350xf32> to vector<1x8x350xf32>
    %107 = vector.shape_cast %106 : vector<1x8x350xf32> to vector<8x350xf32>
    %c3_60 = arith.constant 3 : index
    %c0_61 = arith.constant 0 : index
    %c0_62 = arith.constant 0 : index
    %108 = vector.load %arg6[%c3_60, %c0_61, %c0_62] : memref<4x350x500xf32, #tpu.memory_space<vmem>>, vector<1x350x500xf32>
    %109 = vector.shape_cast %108 : vector<1x350x500xf32> to vector<350x500xf32>
    %cst_63 = arith.constant dense<0.000000e+00> : vector<8x500xf32>
    %110 = tpu.matmul %107, %109, %cst_63 {dimension_numbers = #tpu.dot_dimension_numbers<[1], [0], [0], [1], [0, 0, 1, 1], [], []>} : vector<8x350xf32>, vector<350x500xf32>, vector<8x500xf32> -> vector<8x500xf32>
    %111 = arith.addf %105, %110 : vector<8x500xf32>
    %c0_64 = arith.constant 0 : index
    %c0_65 = arith.constant 0 : index
    %112 = vector.load %arg7[%c0_64, %c0_65] : memref<1x500xf32, #tpu.memory_space<vmem>>, vector<1x500xf32>
    %113 = vector.broadcast %112 : vector<1x500xf32> to vector<8x500xf32>
    %114 = arith.addf %111, %113 : vector<8x500xf32>
    %cst_66 = arith.constant 0.000000e+00 : f32
    %115 = vector.broadcast %cst_66 : f32 to vector<8x500xf32>
    %116 = arith.maximumf %114, %115 : vector<8x500xf32>
    %c0_67 = arith.constant 0 : index
    %c0_68 = arith.constant 0 : index
    %117 = vector.load %arg8[%c0_67, %c0_68] : memref<500x2xf32, #tpu.memory_space<vmem>>, vector<500x2xf32>
    %cst_69 = arith.constant dense<0.000000e+00> : vector<8x2xf32>
    %118 = tpu.matmul %116, %117, %cst_69 {dimension_numbers = #tpu.dot_dimension_numbers<[1], [0], [0], [1], [0, 0, 1, 1], [], []>} : vector<8x500xf32>, vector<500x2xf32>, vector<8x2xf32> -> vector<8x2xf32>
    %c0_70 = arith.constant 0 : index
    %c0_71 = arith.constant 0 : index
    %119 = vector.load %arg9[%c0_70, %c0_71] : memref<1x2xf32, #tpu.memory_space<vmem>>, vector<1x2xf32>
    %120 = vector.broadcast %119 : vector<1x2xf32> to vector<8x2xf32>
    %121 = arith.addf %118, %120 : vector<8x2xf32>
    %cst_72 = arith.constant dense<0xFF800000> : vector<8xf32>
    %122 = vector.multi_reduction <maximumf>, %121, %cst_72 [1] : vector<8x2xf32> to vector<8xf32>
    %123 = vector.shape_cast %122 : vector<8xf32> to vector<8x1xf32>
    %124 = vector.broadcast %123 : vector<8x1xf32> to vector<8x2xf32>
    %125 = arith.subf %121, %124 : vector<8x2xf32>
    %126 = math.exp %125 : vector<8x2xf32>
    %cst_73 = arith.constant dense<0.000000e+00> : vector<8xf32>
    %127 = vector.multi_reduction <add>, %126, %cst_73 [1] : vector<8x2xf32> to vector<8xf32>
    %128 = vector.shape_cast %127 : vector<8xf32> to vector<8x1xf32>
    %129 = math.log %128 : vector<8x1xf32>
    %130 = arith.addf %123, %129 : vector<8x1xf32>
    %131 = vector.broadcast %130 : vector<8x1xf32> to vector<8x2xf32>
    %132 = arith.subf %121, %131 : vector<8x2xf32>
    %c0_74 = arith.constant 0 : index
    %c0_75 = arith.constant 0 : index
    %133 = vector.load %arg10[%c0_74, %c0_75] : memref<8x2xf32, #tpu.memory_space<vmem>>, vector<8x2xf32>
    tpu.vector_store %arg10[%c0_74, %c0_75], %132 {strides = array<i32>} : memref<8x2xf32, #tpu.memory_space<vmem>>, vector<8x2xf32>,
    return
  }
  func.func @transform_0(%arg0: i32) -> (i32, i32, i32) {
    %c0_i32 = arith.constant 0 : i32
    %c0_i32_0 = arith.constant 0 : i32
    %c0_i32_1 = arith.constant 0 : i32
    return %c0_i32, %arg0, %c0_i32_0 : i32, i32, i32
  }
  func.func @transform_1(%arg0: i32) -> (i32, i32, i32) {
    %c0_i32 = arith.constant 0 : i32
    %c0_i32_0 = arith.constant 0 : i32
    %c0_i32_1 = arith.constant 0 : i32
    %c0_i32_2 = arith.constant 0 : i32
    return %c0_i32, %c0_i32_0, %c0_i32_1 : i32, i32, i32
  }
  func.func @transform_2(%arg0: i32) -> (i32, i32) {
    %c0_i32 = arith.constant 0 : i32
    %c0_i32_0 = arith.constant 0 : i32
    %c0_i32_1 = arith.constant 0 : i32
    return %c0_i32, %c0_i32_0 : i32, i32
  }
  func.func @transform_3(%arg0: i32) -> (i32, i32, i32) {
    %c0_i32 = arith.constant 0 : i32
    %c0_i32_0 = arith.constant 0 : i32
    %c0_i32_1 = arith.constant 0 : i32
    %c0_i32_2 = arith.constant 0 : i32
    return %c0_i32, %c0_i32_0, %c0_i32_1 : i32, i32, i32
  }
  func.func @transform_4(%arg0: i32) -> (i32, i32) {
    %c0_i32 = arith.constant 0 : i32
    %c0_i32_0 = arith.constant 0 : i32
    %c0_i32_1 = arith.constant 0 : i32
    return %c0_i32, %c0_i32_0 : i32, i32
  }
  func.func @transform_5(%arg0: i32) -> (i32, i32, i32) {
    %c0_i32 = arith.constant 0 : i32
    %c0_i32_0 = arith.constant 0 : i32
    %c0_i32_1 = arith.constant 0 : i32
    %c0_i32_2 = arith.constant 0 : i32
    return %c0_i32, %c0_i32_0, %c0_i32_1 : i32, i32, i32
  }
  func.func @transform_6(%arg0: i32) -> (i32, i32) {
    %c0_i32 = arith.constant 0 : i32
    %c0_i32_0 = arith.constant 0 : i32
    %c0_i32_1 = arith.constant 0 : i32
    return %c0_i32, %c0_i32_0 : i32, i32
  }
  func.func @transform_7(%arg0: i32) -> (i32, i32) {
    %c0_i32 = arith.constant 0 : i32
    %c0_i32_0 = arith.constant 0 : i32
    %c0_i32_1 = arith.constant 0 : i32
    return %c0_i32, %c0_i32_0 : i32, i32
  }
  func.func @transform_8(%arg0: i32) -> (i32, i32) {
    %c0_i32 = arith.constant 0 : i32
    %c0_i32_0 = arith.constant 0 : i32
    %c0_i32_1 = arith.constant 0 : i32
    return %c0_i32, %c0_i32_0 : i32, i32
  }
  func.func @transform_9(%arg0: i32) -> (i32, i32) {
    %c0_i32 = arith.constant 0 : i32
    %c0_i32_0 = arith.constant 0 : i32
    return %arg0, %c0_i32 : i32, i32
  }
}

</mosaic_0001>

<llo_original>
// kernel: two_layer_net.1
$region0: #{two_layer_net.1}
  #allocation0 [shape = 'u32[]', space=smem, size = 0x4, offset = 0x4, fixed_abs, tag = 'smem constant byte address 0x4 - core index']
  #allocation1 [shape = 'u32[144,128]{1,0:T(1,128)}', space=vmem, size = 0x12000, scoped, tag = 'internal scratch']
  %s0 = inlined_call_operand.vmem [shape: f32[28,16,28], index: 0, kind: input, shape index: {}]
  %s1 = inlined_call_operand.vmem [shape: f32[5,28,480], index: 1, kind: input, shape index: {}]
  %s2 = inlined_call_operand.vmem [shape: f32[1,480], index: 2, kind: input, shape index: {}]
  %s3 = inlined_call_operand.vmem [shape: f32[5,460,400], index: 3, kind: input, shape index: {}]
  %s4 = inlined_call_operand.vmem [shape: f32[1,400], index: 4, kind: input, shape index: {}]
  %s5 = inlined_call_operand.vmem [shape: f32[4,350,500], index: 5, kind: input, shape index: {}]
  %s6 = inlined_call_operand.vmem [shape: f32[1,500], index: 6, kind: input, shape index: {}]
  %s7 = inlined_call_operand.vmem [shape: f32[500,2], index: 7, kind: input, shape index: {}]
  %s8 = inlined_call_operand.vmem [shape: f32[1,2], index: 8, kind: input, shape index: {}]
  %s9 = inlined_call_operand.vmem [shape: f32[16,2], index: 9, kind: output, shape index: {}]
  %s10 = sld [smem:[#allocation0]]
  $region107: #{two_layer_net.1} parent=0
    _
  %s12 = ssub.s32 1, %s10
  %s13 = scalar_select 0, %s12, %s10
  $region1: #{two_layer_net.1} parent=0
    #allocation2 [shape = 'u8[229376]{0}', space=vmem, size = 0x38000, scoped, tag = 'input window, operand 0']
    loop: start=0, step=1, limit=4
    $region2: #{two_layer_net.1} parent=1 // loop_pre_header
      _
    $region3: #{two_layer_net.1} parent=1 // loop_header
      %s15 = sphi 0, %s19
      %p16 = scmp.ge.s32.totalorder %s15, 4
      %s25 = sphi 0, %s27
      %s28 = sphi 0, %s25
      %s29 = sphi 0, %s28
      %s45 = sphi 0, %s29
      %s49 = sphi 0, %s49
      %s51 = sphi 0, %s49
      %s52 = sphi 0, %s51
      %s66 = sphi 0, %s52
      %s70 = sphi 0, %s70
      %s72 = sphi 0, %s70
      %s73 = sphi 0, %s72
      %s87 = sphi 0, %s73
      %s91 = sphi 0, %s91
      %s93 = sphi 0, %s91
      %s94 = sphi 0, %s93
      %s108 = sphi 0, %s94
      %s112 = sphi 0, %s112
      %s114 = sphi 0, %s112
      %s115 = sphi 0, %s114
      %s129 = sphi 0, %s115
      %s133 = sphi 0, %s133
      %s135 = sphi 0, %s133
      %s136 = sphi 0, %s135
      %s150 = sphi 0, %s136
      %s154 = sphi 0, %s154
      %s156 = sphi 0, %s154
      %s157 = sphi 0, %s156
      %s171 = sphi 0, %s157
      %s175 = sphi 0, %s175
      %s177 = sphi 0, %s175
      %s178 = sphi 0, %s177
      %s192 = sphi 0, %s178
      %s196 = sphi 0, %s196
      %s198 = sphi 0, %s196
      %s199 = sphi 0, %s198
      %s213 = sphi 0, %s199
      %s219 = sphi 0, %s221
      %s222 = sphi 0, %s219
      %s223 = sphi 0, %s222
      %s239 = sphi 0, %s223
    $region4: #{two_layer_net.1} parent=1 // loop_header_branch
      %18 = sbr.rel (%p16) target = $region8
    $region5: #{two_layer_net.1} parent=1 // loop_body
      %s20 = ssub.s32 %s15, 1
      %s21 = ssub.s32 %s15, 2
      %s22 = sadd.s32 %s15, 1
      %s23 = ssub.s32 %s15, %s22
      %p24 = scmp.eq.s32.totalorder %s23, 0
      %s26 = sadd.s32 %s25, 1
      %s27 = scalar_select %p24, %s25, %s26
      %p30 = pneg %p24
      %p31 = scmp.eq.s32.totalorder %s15, 1
      %p32 = por %p30, %p31
      %p33 = scmp.ne.s32.totalorder %s25, %s28
      %p34 = scmp.eq.s32.totalorder %s15, 0
      %p35 = por %p33, %p34
      %p36 = scmp.ne.s32.totalorder %s25, %s28
      %p37 = scmp.eq.s32.totalorder %s20, 1
      %p38 = por %p36, %p37
      %p39 = scmp.ne.s32.totalorder %s28, %s29
      %p40 = scmp.eq.s32.totalorder %s20, 0
      %p41 = por %p39, %p40
      %p42 = scmp.ne.s32.totalorder %s28, %s29
      %p43 = scmp.eq.s32.totalorder %s21, 1
      %p44 = por %p42, %p43
      %p46 = scmp.ne.s32.totalorder %s29, %s45
      %p47 = scmp.eq.s32.totalorder %s21, 0
      %p48 = por %p46, %p47
      %s50 = sadd.s32 %s49, 1
      %p53 = scmp.eq.s32.totalorder %s15, 1
      %p54 = scmp.ne.s32.totalorder %s49, %s51
      %p55 = scmp.eq.s32.totalorder %s15, 0
      %p56 = por %p54, %p55
      %p57 = scmp.ne.s32.totalorder %s49, %s51
      %p58 = scmp.eq.s32.totalorder %s20, 1
      %p59 = por %p57, %p58
      %p60 = scmp.ne.s32.totalorder %s51, %s52
      %p61 = scmp.eq.s32.totalorder %s20, 0
      %p62 = por %p60, %p61
      %p63 = scmp.ne.s32.totalorder %s51, %s52
      %p64 = scmp.eq.s32.totalorder %s21, 1
      %p65 = por %p63, %p64
      %p67 = scmp.ne.s32.totalorder %s52, %s66
      %p68 = scmp.eq.s32.totalorder %s21, 0
      %p69 = por %p67, %p68
      %s71 = sadd.s32 %s70, 1
      %p74 = scmp.eq.s32.totalorder %s15, 1
      %p75 = scmp.ne.s32.totalorder %s70, %s72
      %p76 = scmp.eq.s32.totalorder %s15, 0
      %p77 = por %p75, %p76
      %p78 = scmp.ne.s32.totalorder %s70, %s72
      %p79 = scmp.eq.s32.totalorder %s20, 1
      %p80 = por %p78, %p79
      %p81 = scmp.ne.s32.totalorder %s72, %s73
      %p82 = scmp.eq.s32.totalorder %s20, 0
      %p83 = por %p81, %p82
      %p84 = scmp.ne.s32.totalorder %s72, %s73
      %p85 = scmp.eq.s32.totalorder %s21, 1
      %p86 = por %p84, %p85
      %p88 = scmp.ne.s32.totalorder %s73, %s87
      %p89 = scmp.eq.s32.totalorder %s21, 0
      %p90 = por %p88, %p89
      %s92 = sadd.s32 %s91, 1
      %p95 = scmp.eq.s32.totalorder %s15, 1
      %p96 = scmp.ne.s32.totalorder %s91, %s93
      %p97 = scmp.eq.s32.totalorder %s15, 0
      %p98 = por %p96, %p97
      %p99 = scmp.ne.s32.totalorder %s91, %s93
      %p100 = scmp.eq.s32.totalorder %s20, 1
      %p101 = por %p99, %p100
      %p102 = scmp.ne.s32.totalorder %s93, %s94
      %p103 = scmp.eq.s32.totalorder %s20, 0
      %p104 = por %p102, %p103
      %p105 = scmp.ne.s32.totalorder %s93, %s94
      %p106 = scmp.eq.s32.totalorder %s21, 1
      %p107 = por %p105, %p106
      %p109 = scmp.ne.s32.totalorder %s94, %s108
      %p110 = scmp.eq.s32.totalorder %s21, 0
      %p111 = por %p109, %p110
      %s113 = sadd.s32 %s112, 1
      %p116 = scmp.eq.s32.totalorder %s15, 1
      %p117 = scmp.ne.s32.totalorder %s112, %s114
      %p118 = scmp.eq.s32.totalorder %s15, 0
      %p119 = por %p117, %p118
      %p120 = scmp.ne.s32.totalorder %s112, %s114
      %p121 = scmp.eq.s32.totalorder %s20, 1
      %p122 = por %p120, %p121
      %p123 = scmp.ne.s32.totalorder %s114, %s115
      %p124 = scmp.eq.s32.totalorder %s20, 0
      %p125 = por %p123, %p124
      %p126 = scmp.ne.s32.totalorder %s114, %s115
      %p127 = scmp.eq.s32.totalorder %s21, 1
      %p128 = por %p126, %p127
      %p130 = scmp.ne.s32.totalorder %s115, %s129
      %p131 = scmp.eq.s32.totalorder %s21, 0
      %p132 = por %p130, %p131
      %s134 = sadd.s32 %s133, 1
      %p137 = scmp.eq.s32.totalorder %s15, 1
      %p138 = scmp.ne.s32.totalorder %s133, %s135
      %p139 = scmp.eq.s32.totalorder %s15, 0
      %p140 = por %p138, %p139
      %p141 = scmp.ne.s32.totalorder %s133, %s135
      %p142 = scmp.eq.s32.totalorder %s20, 1
      %p143 = por %p141, %p142
      %p144 = scmp.ne.s32.totalorder %s135, %s136
      %p145 = scmp.eq.s32.totalorder %s20, 0
      %p146 = por %p144, %p145
      %p147 = scmp.ne.s32.totalorder %s135, %s136
      %p148 = scmp.eq.s32.totalorder %s21, 1
      %p149 = por %p147, %p148
      %p151 = scmp.ne.s32.totalorder %s136, %s150
      %p152 = scmp.eq.s32.totalorder %s21, 0
      %p153 = por %p151, %p152
      %s155 = sadd.s32 %s154, 1
      %p158 = scmp.eq.s32.totalorder %s15, 1
      %p159 = scmp.ne.s32.totalorder %s154, %s156
      %p160 = scmp.eq.s32.totalorder %s15, 0
      %p161 = por %p159, %p160
      %p162 = scmp.ne.s32.totalorder %s154, %s156
      %p163 = scmp.eq.s32.totalorder %s20, 1
      %p164 = por %p162, %p163
      %p165 = scmp.ne.s32.totalorder %s156, %s157
      %p166 = scmp.eq.s32.totalorder %s20, 0
      %p167 = por %p165, %p166
      %p168 = scmp.ne.s32.totalorder %s156, %s157
      %p169 = scmp.eq.s32.totalorder %s21, 1
      %p170 = por %p168, %p169
      %p172 = scmp.ne.s32.totalorder %s157, %s171
      %p173 = scmp.eq.s32.totalorder %s21, 0
      %p174 = por %p172, %p173
      %s176 = sadd.s32 %s175, 1
      %p179 = scmp.eq.s32.totalorder %s15, 1
      %p180 = scmp.ne.s32.totalorder %s175, %s177
      %p181 = scmp.eq.s32.totalorder %s15, 0
      %p182 = por %p180, %p181
      %p183 = scmp.ne.s32.totalorder %s175, %s177
      %p184 = scmp.eq.s32.totalorder %s20, 1
      %p185 = por %p183, %p184
      %p186 = scmp.ne.s32.totalorder %s177, %s178
      %p187 = scmp.eq.s32.totalorder %s20, 0
      %p188 = por %p186, %p187
      %p189 = scmp.ne.s32.totalorder %s177, %s178
      %p190 = scmp.eq.s32.totalorder %s21, 1
      %p191 = por %p189, %p190
      %p193 = scmp.ne.s32.totalorder %s178, %s192
      %p194 = scmp.eq.s32.totalorder %s21, 0
      %p195 = por %p193, %p194
      %s197 = sadd.s32 %s196, 1
      %p200 = scmp.eq.s32.totalorder %s15, 1
      %p201 = scmp.ne.s32.totalorder %s196, %s198
      %p202 = scmp.eq.s32.totalorder %s15, 0
      %p203 = por %p201, %p202
      %p204 = scmp.ne.s32.totalorder %s196, %s198
      %p205 = scmp.eq.s32.totalorder %s20, 1
      %p206 = por %p204, %p205
      %p207 = scmp.ne.s32.totalorder %s198, %s199
      %p208 = scmp.eq.s32.totalorder %s20, 0
      %p209 = por %p207, %p208
      %p210 = scmp.ne.s32.totalorder %s198, %s199
      %p211 = scmp.eq.s32.totalorder %s21, 1
      %p212 = por %p210, %p211
      %p214 = scmp.ne.s32.totalorder %s199, %s213
      %p215 = scmp.eq.s32.totalorder %s21, 0
      %p216 = por %p214, %p215
      %s217 = ssub.s32 %s15, %s22
      %p218 = scmp.eq.s32.totalorder %s217, 0
      %s220 = sadd.s32 %s219, 1
      %s221 = scalar_select %p218, %s219, %s220
      %p224 = pneg %p218
      %p225 = scmp.eq.s32.totalorder %s15, 1
      %p226 = por %p224, %p225
      %p227 = scmp.ne.s32.totalorder %s219, %s222
      %p228 = scmp.eq.s32.totalorder %s15, 0
      %p229 = por %p227, %p228
      %p230 = scmp.ne.s32.totalorder %s219, %s222
      %p231 = scmp.eq.s32.totalorder %s20, 1
      %p232 = por %p230, %p231
      %p233 = scmp.ne.s32.totalorder %s222, %s223
      %p234 = scmp.eq.s32.totalorder %s20, 0
      %p235 = por %p233, %p234
      %p236 = scmp.ne.s32.totalorder %s222, %s223
      %p237 = scmp.eq.s32.totalorder %s21, 1
      %p238 = por %p236, %p237
      %p240 = scmp.ne.s32.totalorder %s223, %s239
      %p241 = scmp.eq.s32.totalorder %s21, 0
      %p242 = por %p240, %p241
      %p243 = scmp.le.s32.totalorder 1, %s15
      %p244 = scmp.lt.s32.totalorder %s15, 3
      %p245 = pnand %p243, %p244
      %p246 = pneg %p245
      // Predicated region
      $region9: #{two_layer_net.1} parent=5 // pred_check
        _
      $region10: #{two_layer_net.1} parent=5 // pred_check_branch
        %248 = sbr.rel (%p245) target = $region12
      $region11: #{two_layer_net.1} parent=5 // pred_region
        %s249 = ssub.s32 %s15, 1
        // Predicated region
        $region13: #{two_layer_net.1} parent=11 // pred_check
          %p250 = pneg %p62
        $region14: #{two_layer_net.1} parent=11 // pred_check_branch
          %252 = sbr.rel (%p250) target = $region16
        $region15: #{two_layer_net.1} parent=11 // pred_region
          _
        $region16: #{two_layer_net.1} parent=11 // pred_fallthru
          _
        // Predicated region
        $region17: #{two_layer_net.1} parent=11 // pred_check
          %p253 = pneg %p83
        $region18: #{two_layer_net.1} parent=11 // pred_check_branch
          %255 = sbr.rel (%p253) target = $region20
        $region19: #{two_layer_net.1} parent=11 // pred_region
          _
        $region20: #{two_layer_net.1} parent=11 // pred_fallthru
          _
        // Predicated region
        $region21: #{two_layer_net.1} parent=11 // pred_check
          %p256 = pneg %p104
        $region22: #{two_layer_net.1} parent=11 // pred_check_branch
          %258 = sbr.rel (%p256) target = $region24
        $region23: #{two_layer_net.1} parent=11 // pred_region
          _
        $region24: #{two_layer_net.1} parent=11 // pred_fallthru
          _
        // Predicated region
        $region25: #{two_layer_net.1} parent=11 // pred_check
          %p259 = pneg %p125
        $region26: #{two_layer_net.1} parent=11 // pred_check_branch
          %261 = sbr.rel (%p259) target = $region28
        $region27: #{two_layer_net.1} parent=11 // pred_region
          _
        $region28: #{two_layer_net.1} parent=11 // pred_fallthru
          _
        // Predicated region
        $region29: #{two_layer_net.1} parent=11 // pred_check
          %p262 = pneg %p146
        $region30: #{two_layer_net.1} parent=11 // pred_check_branch
          %264 = sbr.rel (%p262) target = $region32
        $region31: #{two_layer_net.1} parent=11 // pred_region
          _
        $region32: #{two_layer_net.1} parent=11 // pred_fallthru
          _
        // Predicated region
        $region33: #{two_layer_net.1} parent=11 // pred_check
          %p265 = pneg %p167
        $region34: #{two_layer_net.1} parent=11 // pred_check_branch
          %267 = sbr.rel (%p265) target = $region36
        $region35: #{two_layer_net.1} parent=11 // pred_region
          _
        $region36: #{two_layer_net.1} parent=11 // pred_fallthru
          _
        // Predicated region
        $region37: #{two_layer_net.1} parent=11 // pred_check
          %p268 = pneg %p188
        $region38: #{two_layer_net.1} parent=11 // pred_check_branch
          %270 = sbr.rel (%p268) target = $region40
        $region39: #{two_layer_net.1} parent=11 // pred_region
          _
        $region40: #{two_layer_net.1} parent=11 // pred_fallthru
          _
        // Predicated region
        $region41: #{two_layer_net.1} parent=11 // pred_check
          %p271 = pneg %p209
        $region42: #{two_layer_net.1} parent=11 // pred_check_branch
          %273 = sbr.rel (%p271) target = $region44
        $region43: #{two_layer_net.1} parent=11 // pred_region
          _
        $region44: #{two_layer_net.1} parent=11 // pred_fallthru
          _
      $region12: #{two_layer_net.1} parent=5 // pred_fallthru
        _
      %p274 = scmp.lt.s32.totalorder %s15, 2
      // Predicated region
      $region45: #{two_layer_net.1} parent=5 // pred_check
        %p275 = pneg %p274
      $region46: #{two_layer_net.1} parent=5 // pred_check_branch
        %277 = sbr.rel (%p275) target = $region48
      $region47: #{two_layer_net.1} parent=5 // pred_region
        // Predicated region
        $region49: #{two_layer_net.1} parent=47 // pred_check
          %p278 = pneg %p35
        $region50: #{two_layer_net.1} parent=47 // pred_check_branch
          %280 = sbr.rel (%p278) target = $region52
        $region51: #{two_layer_net.1} parent=47 // pred_region
          %s281 = sand.u32 %s25, 1
          %s282 = sand.u32 %s25, 1
          %s283 = smul.addr %s282, 224
          %s284 = scalar_lea.vmem [#allocation2], %s283
          %s285 = smul.addr %s15, 8
          %s286 = scalar_lea.vmem %s0, %s285
          // Predicated region
          $region53: #{two_layer_net.1} parent=51 // pred_check
            _
          $region54: #{two_layer_net.1} parent=51 // pred_check_branch
            %288 = sbr.rel (0) target = $region56
          $region55: #{two_layer_net.1} parent=51 // pred_region
            // Predicated region
            $region57: #{two_layer_net.1} parent=55 // pred_check
              _
            $region58: #{two_layer_net.1} parent=55 // pred_check_branch
              %290 = sbr.rel (0) target = $region60
            $region59: #{two_layer_net.1} parent=55 // pred_region
              // Predicated region
              $region72: #{two_layer_net.1} parent=59 // pred_check
                _
              $region73: #{two_layer_net.1} parent=59 // pred_check_branch
                %359 = sbr.rel (0) target = $region75
              $region74: #{two_layer_net.1} parent=59 // pred_region
                loop: start=0, step=1, limit=1
                $region76: #{two_layer_net.1} parent=74 // loop_pre_header
                  _
                $region77: #{two_layer_net.1} parent=74 // loop_header
                  %s361 = sphi 0, %s365
                  %p362 = scmp.ge.s32.totalorder %s361, 1
                  %s366 = sphi %s286, %s286
                  %s367 = sphi %s284, %s284
                $region78: #{two_layer_net.1} parent=74 // loop_header_branch
                  %364 = sbr.rel (%p362) target = $region82
                $region79: #{two_layer_net.1} parent=74 // loop_body
                  %v368 = vld [vmem:[%s366] sm:$0xff]
                  %369 = vst [vmem:[%s367] sm:$0xff] %v368
                  %v370 = vld [vmem:[%s366 + $0x10] sm:$0xff]
                  %371 = vst [vmem:[%s367 + $0x8] sm:$0xff] %v370
                  %v372 = vld [vmem:[%s366 + $0x20] sm:$0xff]
                  %373 = vst [vmem:[%s367 + $0x10] sm:$0xff] %v372
                  %v374 = vld [vmem:[%s366 + $0x30] sm:$0xff]
                  %375 = vst [vmem:[%s367 + $0x18] sm:$0xff] %v374
                  %v376 = vld [vmem:[%s366 + $0x40] sm:$0xff]
                  %377 = vst [vmem:[%s367 + $0x20] sm:$0xff] %v376
                  %v378 = vld [vmem:[%s366 + $0x50] sm:$0xff]
                  %379 = vst [vmem:[%s367 + $0x28] sm:$0xff] %v378
                  %v380 = vld [vmem:[%s366 + $0x60] sm:$0xff]
                  %381 = vst [vmem:[%s367 + $0x30] sm:$0xff] %v380
                  %v382 = vld [vmem:[%s366 + $0x70] sm:$0xff]
                  %383 = vst [vmem:[%s367 + $0x38] sm:$0xff] %v382
                  %v384 = vld [vmem:[%s366 + $0x80] sm:$0xff]
                  %385 = vst [vmem:[%s367 + $0x40] sm:$0xff] %v384
                  %v386 = vld [vmem:[%s366 + $0x90] sm:$0xff]
                  %387 = vst [vmem:[%s367 + $0x48] sm:$0xff] %v386
                  %v388 = vld [vmem:[%s366 + $0xa0] sm:$0xff]
                  %389 = vst [vmem:[%s367 + $0x50] sm:$0xff] %v388
                  %v390 = vld [vmem:[%s366 + $0xb0] sm:$0xff]
                  %391 = vst [vmem:[%s367 + $0x58] sm:$0xff] %v390
                  %v392 = vld [vmem:[%s366 + $0xc0] sm:$0xff]
                  %393 = vst [vmem:[%s367 + $0x60] sm:$0xff] %v392
                  %v394 = vld [vmem:[%s366 + $0xd0] sm:$0xff]
                  %395 = vst [vmem:[%s367 + $0x68] sm:$0xff] %v394
                  %v396 = vld [vmem:[%s366 + $0xe0] sm:$0xff]
                  %397 = vst [vmem:[%s367 + $0x70] sm:$0xff] %v396
                  %v398 = vld [vmem:[%s366 + $0xf0] sm:$0xff]
                  %399 = vst [vmem:[%s367 + $0x78] sm:$0xff] %v398
                  %v400 = vld [vmem:[%s366 + $0x100] sm:$0xff]
                  %401 = vst [vmem:[%s367 + $0x80] sm:$0xff] %v400
                  %v402 = vld [vmem:[%s366 + $0x110] sm:$0xff]
                  %403 = vst [vmem:[%s367 + $0x88] sm:$0xff] %v402
                  %v404 = vld [vmem:[%s366 + $0x120] sm:$0xff]
                  %405 = vst [vmem:[%s367 + $0x90] sm:$0xff] %v404
                  %v406 = vld [vmem:[%s366 + $0x130] sm:$0xff]
                  %407 = vst [vmem:[%s367 + $0x98] sm:$0xff] %v406
                  %v408 = vld [vmem:[%s366 + $0x140] sm:$0xff]
                  %409 = vst [vmem:[%s367 + $0xa0] sm:$0xff] %v408
                  %v410 = vld [vmem:[%s366 + $0x150] sm:$0xff]
                  %411 = vst [vmem:[%s367 + $0xa8] sm:$0xff] %v410
                  %v412 = vld [vmem:[%s366 + $0x160] sm:$0xff]
                  %413 = vst [vmem:[%s367 + $0xb0] sm:$0xff] %v412
                  %v414 = vld [vmem:[%s366 + $0x170] sm:$0xff]
                  %415 = vst [vmem:[%s367 + $0xb8] sm:$0xff] %v414
                  %v416 = vld [vmem:[%s366 + $0x180] sm:$0xff]
                  %417 = vst [vmem:[%s367 + $0xc0] sm:$0xff] %v416
                  %v418 = vld [vmem:[%s366 + $0x190] sm:$0xff]
                  %419 = vst [vmem:[%s367 + $0xc8] sm:$0xff] %v418
                  %v420 = vld [vmem:[%s366 + $0x1a0] sm:$0xff]
                  %421 = vst [vmem:[%s367 + $0xd0] sm:$0xff] %v420
                  %v422 = vld [vmem:[%s366 + $0x1b0] sm:$0xff]
                  %423 = vst [vmem:[%s367 + $0xd8] sm:$0xff] %v422
                $region80: #{two_layer_net.1} parent=74 // loop_footer
                  %s365 = sadd.s32 1, %s361
                $region81: #{two_layer_net.1} parent=74 // loop_footer_branch
                  %360 = sbr.rel target = $region77
                $region82: #{two_layer_net.1} parent=74 // loop_exit
                  _
              $region75: #{two_layer_net.1} parent=59 // pred_fallthru
                _
              // Predicated region
              $region83: #{two_layer_net.1} parent=59 // pred_check
                _
              $region84: #{two_layer_net.1} parent=59 // pred_check_branch
                %425 = sbr.rel target = $region86
              $region85: #{two_layer_net.1} parent=59 // pred_region
                _
              $region86: #{two_layer_net.1} parent=59 // pred_fallthru
                _
            $region60: #{two_layer_net.1} parent=55 // pred_fallthru
              _
            // Predicated region
            $region61: #{two_layer_net.1} parent=55 // pred_check
              _
            $region62: #{two_layer_net.1} parent=55 // pred_check_branch
              %292 = sbr.rel target = $region64
            $region63: #{two_layer_net.1} parent=55 // pred_region
              loop: start=0, step=1, limit=1
              $region65: #{two_layer_net.1} parent=63 // loop_pre_header
                _
              $region66: #{two_layer_net.1} parent=63 // loop_header
                %s295 = sphi 0, %s299
                %p296 = scmp.ge.s32.totalorder %s295, 1
                %s300 = sphi %s286, %s286
                %s301 = sphi %s284, %s284
              $region67: #{two_layer_net.1} parent=63 // loop_header_branch
                %298 = sbr.rel (%p296) target = $region71
              $region68: #{two_layer_net.1} parent=63 // loop_body
                %v302 = vld [vmem:[%s300] sm:$0xff]
                %303 = vst [vmem:[%s301] sm:$0xff] %v302
                %v304 = vld [vmem:[%s300 + $0x10] sm:$0xff]
                %305 = vst [vmem:[%s301 + $0x8] sm:$0xff] %v304
                %v306 = vld [vmem:[%s300 + $0x20] sm:$0xff]
                %307 = vst [vmem:[%s301 + $0x10] sm:$0xff] %v306
                %v308 = vld [vmem:[%s300 + $0x30] sm:$0xff]
                %309 = vst [vmem:[%s301 + $0x18] sm:$0xff] %v308
                %v310 = vld [vmem:[%s300 + $0x40] sm:$0xff]
                %311 = vst [vmem:[%s301 + $0x20] sm:$0xff] %v310
                %v312 = vld [vmem:[%s300 + $0x50] sm:$0xff]
                %313 = vst [vmem:[%s301 + $0x28] sm:$0xff] %v312
                %v314 = vld [vmem:[%s300 + $0x60] sm:$0xff]
                %315 = vst [vmem:[%s301 + $0x30] sm:$0xff] %v314
                %v316 = vld [vmem:[%s300 + $0x70] sm:$0xff]
                %317 = vst [vmem:[%s301 + $0x38] sm:$0xff] %v316
                %v318 = vld [vmem:[%s300 + $0x80] sm:$0xff]
                %319 = vst [vmem:[%s301 + $0x40] sm:$0xff] %v318
                %v320 = vld [vmem:[%s300 + $0x90] sm:$0xff]
                %321 = vst [vmem:[%s301 + $0x48] sm:$0xff] %v320
                %v322 = vld [vmem:[%s300 + $0xa0] sm:$0xff]
                %323 = vst [vmem:[%s301 + $0x50] sm:$0xff] %v322
                %v324 = vld [vmem:[%s300 + $0xb0] sm:$0xff]
                %325 = vst [vmem:[%s301 + $0x58] sm:$0xff] %v324
                %v326 = vld [vmem:[%s300 + $0xc0] sm:$0xff]
                %327 = vst [vmem:[%s301 + $0x60] sm:$0xff] %v326
                %v328 = vld [vmem:[%s300 + $0xd0] sm:$0xff]
                %329 = vst [vmem:[%s301 + $0x68] sm:$0xff] %v328
                %v330 = vld [vmem:[%s300 + $0xe0] sm:$0xff]
                %331 = vst [vmem:[%s301 + $0x70] sm:$0xff] %v330
                %v332 = vld [vmem:[%s300 + $0xf0] sm:$0xff]
                %333 = vst [vmem:[%s301 + $0x78] sm:$0xff] %v332
                %v334 = vld [vmem:[%s300 + $0x100] sm:$0xff]
                %335 = vst [vmem:[%s301 + $0x80] sm:$0xff] %v334
                %v336 = vld [vmem:[%s300 + $0x110] sm:$0xff]
                %337 = vst [vmem:[%s301 + $0x88] sm:$0xff] %v336
                %v338 = vld [vmem:[%s300 + $0x120] sm:$0xff]
                %339 = vst [vmem:[%s301 + $0x90] sm:$0xff] %v338
                %v340 = vld [vmem:[%s300 + $0x130] sm:$0xff]
                %341 = vst [vmem:[%s301 + $0x98] sm:$0xff] %v340
                %v342 = vld [vmem:[%s300 + $0x140] sm:$0xff]
                %343 = vst [vmem:[%s301 + $0xa0] sm:$0xff] %v342
                %v344 = vld [vmem:[%s300 + $0x150] sm:$0xff]
                %345 = vst [vmem:[%s301 + $0xa8] sm:$0xff] %v344
                %v346 = vld [vmem:[%s300 + $0x160] sm:$0xff]
                %347 = vst [vmem:[%s301 + $0xb0] sm:$0xff] %v346
                %v348 = vld [vmem:[%s300 + $0x170] sm:$0xff]
                %349 = vst [vmem:[%s301 + $0xb8] sm:$0xff] %v348
                %v350 = vld [vmem:[%s300 + $0x180] sm:$0xff]
                %351 = vst [vmem:[%s301 + $0xc0] sm:$0xff] %v350
                %v352 = vld [vmem:[%s300 + $0x190] sm:$0xff]
                %353 = vst [vmem:[%s301 + $0xc8] sm:$0xff] %v352
                %v354 = vld [vmem:[%s300 + $0x1a0] sm:$0xff]
                %355 = vst [vmem:[%s301 + $0xd0] sm:$0xff] %v354
                %v356 = vld [vmem:[%s300 + $0x1b0] sm:$0xff]
                %357 = vst [vmem:[%s301 + $0xd8] sm:$0xff] %v356
              $region69: #{two_layer_net.1} parent=63 // loop_footer
                %s299 = sadd.s32 1, %s295
              $region70: #{two_layer_net.1} parent=63 // loop_footer_branch
                %294 = sbr.rel target = $region66
              $region71: #{two_layer_net.1} parent=63 // loop_exit
                _
            $region64: #{two_layer_net.1} parent=55 // pred_fallthru
              _
          $region56: #{two_layer_net.1} parent=51 // pred_fallthru
            _
          %426 = vnop
        $region52: #{two_layer_net.1} parent=47 // pred_fallthru
          _
      $region48: #{two_layer_net.1} parent=5 // pred_fallthru
        _
      %p427 = scmp.le.s32.totalorder 1, %s15
      %p428 = scmp.lt.s32.totalorder %s15, 3
      %p429 = pnand %p427, %p428
      %p430 = pneg %p429
      // Predicated region
      $region87: #{two_layer_net.1} parent=5 // pred_check
        _
      $region88: #{two_layer_net.1} parent=5 // pred_check_branch
        %432 = sbr.rel (%p429) target = $region90
      $region89: #{two_layer_net.1} parent=5 // pred_region
        %s433 = ssub.s32 %s15, 1
        %s434 = sand.u32 %s28, 1
        %s435 = sand.u32 %s28, 1
        %s436 = smul.addr %s435, 224
        %s437 = scalar_lea.vmem [#allocation2], %s436
        // Predicated region
        $region91: #{two_layer_net.1} parent=89 // pred_check
          %p438 = pneg %p41
        $region92: #{two_layer_net.1} parent=89 // pred_check_branch
          %440 = sbr.rel (%p438) target = $region94
        $region93: #{two_layer_net.1} parent=89 // pred_region
          _
        $region94: #{two_layer_net.1} parent=89 // pred_fallthru
          _
        %s441 = sand.u32 %s28, 1
        %s442 = sand.u32 %s28, 1
        %s443 = smul.addr %s442, 224
        %s444 = scalar_lea.vmem [#allocation2], %s443
        %p445 = pneg %p41
        %p446 = pneg %p38
        %p447 = pneg %p62
        %p448 = pneg %p59
        %p449 = pneg %p83
        %p450 = pneg %p80
        %p451 = pneg %p104
        %p452 = pneg %p101
        %p453 = pneg %p125
        %p454 = pneg %p122
        %p455 = pneg %p146
        %p456 = pneg %p143
        %p457 = pneg %p167
        %p458 = pneg %p164
        %p459 = pneg %p188
        %p460 = pneg %p185
        %p461 = pneg %p209
        %p462 = pneg %p206
        %p463 = pneg %p235
        %p464 = pneg %p232
        %p465 = scmp.lt.s32.totalorder %s20, 1
        %s466 = scalar_select %p465, %s20, 1
        %s467 = smul.addr %s466, 8
        %s468 = scalar_lea.vmem %s9, %s467
        %p469 = scmp.lt.s32.totalorder %s20, 1
        %s470 = scalar_select %p469, %s20, 1
        %s471 = smul.addr %s470, 8
        %s472 = scalar_lea.vmem %s9, %s471
        %v473 = vld [vmem:[%s437] sm:$0xff]
        %v474 = vld [vmem:[%s437 + $0x8] sm:$0xff]
        %v475 = vld [vmem:[%s437 + $0x10] sm:$0xff]
        %v476 = vld [vmem:[%s437 + $0x18] sm:$0xff]
        %v477 = vld [vmem:[%s437 + $0x20] sm:$0xff]
        %v478 = vld [vmem:[%s437 + $0x28] sm:$0xff]
        %v479 = vld [vmem:[%s437 + $0x30] sm:$0xff]
        %v480 = vld [vmem:[%s437 + $0x38] sm:$0xff]
        %v481 = vld [vmem:[%s437 + $0x40] sm:$0xff]
        %v482 = vld [vmem:[%s437 + $0x48] sm:$0xff]
        %v483 = vld [vmem:[%s437 + $0x50] sm:$0xff]
        %v484 = vld [vmem:[%s437 + $0x58] sm:$0xff]
        %v485 = vld [vmem:[%s437 + $0x60] sm:$0xff]
        %v486 = vld [vmem:[%s437 + $0x68] sm:$0xff]
        %v487 = vld [vmem:[%s437 + $0x70] sm:$0xff]
        %v488 = vld [vmem:[%s437 + $0x78] sm:$0xff]
        %v489 = vld [vmem:[%s437 + $0x80] sm:$0xff]
        %v490 = vld [vmem:[%s437 + $0x88] sm:$0xff]
        %v491 = vld [vmem:[%s437 + $0x90] sm:$0xff]
        %v492 = vld [vmem:[%s437 + $0x98] sm:$0xff]
        %v493 = vld [vmem:[%s437 + $0xa0] sm:$0xff]
        %v494 = vld [vmem:[%s437 + $0xa8] sm:$0xff]
        %v495 = vld [vmem:[%s437 + $0xb0] sm:$0xff]
        %v496 = vld [vmem:[%s437 + $0xb8] sm:$0xff]
        %v497 = vld [vmem:[%s437 + $0xc0] sm:$0xff]
        %v498 = vld [vmem:[%s437 + $0xc8] sm:$0xff]
        %v499 = vld [vmem:[%s437 + $0xd0] sm:$0xff]
        %v500 = vld [vmem:[%s437 + $0xd8] sm:$0xff]
        %v501 = vld [vmem:[%s1] sm:$0xff]
        %v502 = vld [vmem:[%s1 + $0x8] sm:$0xff]
        %v503 = vld [vmem:[%s1 + $0x10] sm:$0xff]
        %v504 = vld [vmem:[%s1 + $0x18] sm:$0xff]
        %v505 = vld [vmem:[%s1 + $0x20] sm:$0xff]
        %v506 = vld [vmem:[%s1 + $0x28] sm:$0xff]
        %v507 = vld [vmem:[%s1 + $0x30] sm:$0xff]
        %v508 = vld [vmem:[%s1 + $0x38] sm:$0xff]
        %v509 = vld [vmem:[%s1 + $0x40] sm:$0xff]
        %v510 = vld [vmem:[%s1 + $0x48] sm:$0xff]
        %v511 = vld [vmem:[%s1 + $0x50] sm:$0xff]
        %v512 = vld [vmem:[%s1 + $0x58] sm:$0xff]
        %v513 = vld [vmem:[%s1 + $0x60] sm:$0xf]
        %v514 = vld [vmem:[%s1 + $0x68] sm:$0xf]
        %v515 = vld [vmem:[%s1 + $0x70] sm:$0xf]
        %v516 = vld [vmem:[%s1 + $0x78] sm:$0xf]
        %s517 = scalar_lea.vmem %s1, 128
        %v518 = vld [vmem:[%s517] sm:$0xff]
        %v519 = vld [vmem:[%s517 + $0x8] sm:$0xff]
        %v520 = vld [vmem:[%s517 + $0x10] sm:$0xff]
        %v521 = vld [vmem:[%s517 + $0x18] sm:$0xff]
        %v522 = vld [vmem:[%s517 + $0x20] sm:$0xff]
        %v523 = vld [vmem:[%s517 + $0x28] sm:$0xff]
        %v524 = vld [vmem:[%s517 + $0x30] sm:$0xff]
        %v525 = vld [vmem:[%s517 + $0x38] sm:$0xff]
        %v526 = vld [vmem:[%s517 + $0x40] sm:$0xff]
        %v527 = vld [vmem:[%s517 + $0x48] sm:$0xff]
        %v528 = vld [vmem:[%s517 + $0x50] sm:$0xff]
        %v529 = vld [vmem:[%s517 + $0x58] sm:$0xff]
        %v530 = vld [vmem:[%s517 + $0x60] sm:$0xf]
        %v531 = vld [vmem:[%s517 + $0x68] sm:$0xf]
        %v532 = vld [vmem:[%s517 + $0x70] sm:$0xf]
        %v533 = vld [vmem:[%s517 + $0x78] sm:$0xf]
        %vm534 = vcmask 228352
        %v536 = vsel %vm534, %v474, 0
        %v539 = vsel %vm534, %v475, 0
        %v542 = vsel %vm534, %v476, 0
        %v545 = vsel %vm534, %v477, 0
        %v548 = vsel %vm534, %v478, 0
        %v551 = vsel %vm534, %v479, 0
        %v554 = vsel %vm534, %v480, 0
        %v557 = vsel %vm534, %v481, 0
        %v560 = vsel %vm534, %v482, 0
        %v563 = vsel %vm534, %v483, 0
        %v566 = vsel %vm534, %v484, 0
        %v569 = vsel %vm534, %v485, 0
        %v572 = vsel %vm534, %v486, 0
        %v575 = vsel %vm534, %v487, 0
        %v578 = vsel %vm534, %v488, 0
        %v581 = vsel %vm534, %v489, 0
        %v584 = vsel %vm534, %v490, 0
        %v587 = vsel %vm534, %v491, 0
        %v590 = vsel %vm534, %v492, 0
        %v593 = vsel %vm534, %v493, 0
        %v596 = vsel %vm534, %v494, 0
        %v599 = vsel %vm534, %v495, 0
        %v602 = vsel %vm534, %v496, 0
        %v605 = vsel %vm534, %v497, 0
        %vm607 = vcmask 1043456
        %v609 = vsel %vm607, %v530, 0
        %v612 = vsel %vm607, %v531, 0
        %v615 = vsel %vm607, %v532, 0
        %v618 = vsel %vm607, %v533, 0
        %620 = vmatprep.subr.mxu0 %v519
        %621 = vmatpush1.msra.mxu0 %v518
        %622 = vmatprep.subr.mxu0 %v523
        %623 = vmatpush1.msra.mxu0 %v522
        %624 = vmatprep.subr.mxu0 %v527
        %625 = vmatpush1.msra.mxu0 %v526
        %626 = vmatprep.subr.mxu0 %v612
        %627 = vmatpush1.msra.mxu0 %v609
        %628 = vmatprep.subr.mxu0 0.0
        %629 = vmatpush1.msra.mxu0 0.0
        %630 = vmatprep.subr.mxu0 0.0
        %631 = vmatpush1.msra.mxu0 0.0
        %632 = vmatprep.subr.mxu0 0.0
        %633 = vmatpush1.msra.mxu0 0.0
        %634 = vmatprep.subr.mxu0 0.0
        %635 = vmatpush1.msra.mxu0 0.0
        %636 = vmatprep.subr.mxu0 0.0
        %637 = vmatpush1.msra.mxu0 0.0
        %638 = vmatprep.subr.mxu0 0.0
        %639 = vmatpush1.msra.mxu0 0.0
        %640 = vmatprep.subr.mxu0 0.0
        %641 = vmatpush1.msra.mxu0 0.0
        %642 = vmatprep.subr.mxu0 0.0
        %643 = vmatpush1.msra.mxu0 0.0
        %644 = vmatprep.subr.mxu0 0.0
        %645 = vmatpush1.msra.mxu0 0.0
        %646 = vmatprep.subr.mxu0 0.0
        %647 = vmatpush1.msra.mxu0 0.0
        %648 = vmatprep.subr.mxu0 0.0
        %649 = vmatpush1.msra.mxu0 0.0
        %650 = vmatprep.subr.mxu0 0.0
        %651 = vmatpush1.msra.mxu0 0.0
        %652 = vmatprep.subr.mxu0 0.0
        %653 = vmatpush1.msra.mxu0 0.0
        %654 = vmatprep.subr.mxu0 0.0
        %655 = vmatpush1.msra.mxu0 0.0
        %656 = vmatprep.subr.mxu0 0.0
        %657 = vmatpush1.msra.mxu0 0.0
        %658 = vmatprep.subr.mxu0 0.0
        %659 = vmatpush1.msra.mxu0 0.0
        %660 = vmatprep.subr.mxu0 0.0
        %661 = vmatpush1.msra.mxu0 0.0
        %662 = vmatprep.subr.mxu0 0.0
        %663 = vmatpush1.msra.mxu0 0.0
        %664 = vmatprep.subr.mxu0 0.0
        %665 = vmatpush1.msra.mxu0 0.0
        %666 = vmatprep.subr.mxu0 0.0
        %667 = vmatpush1.msra.mxu0 0.0
        %668 = vmatprep.subr.mxu0 0.0
        %669 = vmatpush1.msra.mxu0 0.0
        %670 = vmatprep.subr.mxu0 0.0
        %671 = vmatpush1.msra.mxu0 0.0
        %672 = vmatprep.subr.mxu0 0.0
        %673 = vmatpush1.msra.mxu0 0.0
        %674 = vmatprep.subr.mxu0 0.0
        %675 = vmatpush1.msra.mxu0 0.0
        %676 = vmatprep.subr.mxu0 0.0
        %677 = vmatpush1.msra.mxu0 0.0
        %678 = vmatprep.subr.mxu0 0.0
        %679 = vmatpush1.msra.mxu0 0.0
        %680 = vmatprep.subr.mxu0 0.0
        %681 = vmatpush1.msra.mxu0 0.0
        %682 = vmatprep.subr.mxu0 0.0
        %683 = vmatpush1.msra.mxu0 0.0
        %684 = vmatprep.mubr.f32.mxu0 0.0
        %685 = vmatmul.mubr.f32.gmra.mrb[0].mxu0 %v536
        %v686 = vpop.f32.mrb[0].mxu0
        %v687 = vadd.f32 0.0, %v686
        %v688 = vpop.f32.mrb[0].mxu0
        %v689 = vadd.f32 0.0, %v688
        %690 = vmatprep.mubr.f32.mxu0 0.0
        %691 = vmatmul.mubr.f32.gmra.mrb[0].mxu0 %v539
        %v692 = vpop.f32.mrb[0].mxu0
        %v693 = vadd.f32 0.0, %v692
        %v694 = vpop.f32.mrb[0].mxu0
        %v695 = vadd.f32 0.0, %v694
        %696 = vmatprep.mubr.f32.mxu0 0.0
        %697 = vmatmul.mubr.f32.gmra.mrb[0].mxu0 %v542
        %v698 = vpop.f32.mrb[0].mxu0
        %v699 = vadd.f32 0.0, %v698
        %v700 = vpop.f32.mrb[0].mxu0
        %v701 = vadd.f32 0.0, %v700
        %702 = vmatprep.mubr.f32.mxu0 0.0
        %703 = vmatmul.mubr.f32.gmra.mrb[0].mxu0 %v545
        %v704 = vpop.f32.mrb[0].mxu0
        %v705 = vadd.f32 0.0, %v704
        %v706 = vpop.f32.mrb[0].mxu0
        %v707 = vadd.f32 0.0, %v706
        %708 = vmatprep.mubr.f32.mxu0 0.0
        %709 = vmatmul.mubr.f32.gmra.mrb[0].mxu0 %v548
        %v710 = vpop.f32.mrb[0].mxu0
        %v711 = vadd.f32 0.0, %v710
        %v712 = vpop.f32.mrb[0].mxu0
        %v713 = vadd.f32 0.0, %v712
        %714 = vmatprep.mubr.f32.mxu0 0.0
        %715 = vmatmul.mubr.f32.gmra.mrb[0].mxu0 %v551
        %v716 = vpop.f32.mrb[0].mxu0
        %v717 = vadd.f32 0.0, %v716
        %v718 = vpop.f32.mrb[0].mxu0
        %v719 = vadd.f32 0.0, %v718
        %720 = vmatprep.mubr.f32.mxu0 0.0
        %721 = vmatmul.mubr.f32.gmra.mrb[0].mxu0 %v554
        %v722 = vpop.f32.mrb[0].mxu0
        %v723 = vadd.f32 0.0, %v722
        %v724 = vpop.f32.mrb[0].mxu0
        %v725 = vadd.f32 0.0, %v724
        %726 = vmatprep.mubr.f32.mxu0 0.0
        %727 = vmatmul.mubr.f32.gmra.mrb[0].mxu0 %v557
        %v728 = vpop.f32.mrb[0].mxu0
        %v729 = vadd.f32 0.0, %v728
        %v730 = vpop.f32.mrb[0].mxu0
        %v731 = vadd.f32 0.0, %v730
        %732 = vmatprep.mubr.f32.mxu0 0.0
        %733 = vmatmul.mubr.f32.gmra.mrb[0].mxu0 %v560
        %v734 = vpop.f32.mrb[0].mxu0
        %v735 = vadd.f32 0.0, %v734
        %v736 = vpop.f32.mrb[0].mxu0
        %v737 = vadd.f32 0.0, %v736
        %738 = vmatprep.mubr.f32.mxu0 0.0
        %739 = vmatmul.mubr.f32.gmra.mrb[0].mxu0 %v563
        %v740 = vpop.f32.mrb[0].mxu0
        %v741 = vadd.f32 0.0, %v740
        %v742 = vpop.f32.mrb[0].mxu0
        %v743 = vadd.f32 0.0, %v742
        %744 = vmatprep.mubr.f32.mxu0 0.0
        %745 = vmatmul.mubr.f32.gmra.mrb[0].mxu0 %v566
        %v746 = vpop.f32.mrb[0].mxu0
        %v747 = vadd.f32 0.0, %v746
        %v748 = vpop.f32.mrb[0].mxu0
        %v749 = vadd.f32 0.0, %v748
        %750 = vmatprep.mubr.f32.mxu0 0.0
        %751 = vmatmul.mubr.f32.gmra.mrb[0].mxu0 %v569
        %v752 = vpop.f32.mrb[0].mxu0
        %v753 = vadd.f32 0.0, %v752
        %v754 = vpop.f32.mrb[0].mxu0
        %v755 = vadd.f32 0.0, %v754
        %756 = vmatprep.mubr.f32.mxu0 0.0
        %757 = vmatmul.mubr.f32.gmra.mrb[0].mxu0 %v572
        %v758 = vpop.f32.mrb[0].mxu0
        %v759 = vadd.f32 0.0, %v758
        %v760 = vpop.f32.mrb[0].mxu0
        %v761 = vadd.f32 0.0, %v760
        %762 = vmatprep.mubr.f32.mxu0 0.0
        %763 = vmatmul.mubr.f32.gmra.mrb[0].mxu0 %v575
        %v764 = vpop.f32.mrb[0].mxu0
        %v765 = vadd.f32 0.0, %v764
        %v766 = vpop.f32.mrb[0].mxu0
        %v767 = vadd.f32 0.0, %v766
        %768 = vmatprep.mubr.f32.mxu0 0.0
        %769 = vmatmul.mubr.f32.gmra.mrb[0].mxu0 %v578
        %v770 = vpop.f32.mrb[0].mxu0
        %v771 = vadd.f32 0.0, %v770
        %v772 = vpop.f32.mrb[0].mxu0
        %v773 = vadd.f32 0.0, %v772
        %774 = vmatprep.mubr.f32.mxu0 0.0
        %775 = vmatmul.mubr.f32.gmra.mrb[0].mxu0 %v581
        %v776 = vpop.f32.mrb[0].mxu0
        %v777 = vadd.f32 0.0, %v776
        %v778 = vpop.f32.mrb[0].mxu0
        %v779 = vadd.f32 0.0, %v778
        %780 = vmatprep.mubr.f32.mxu0 0.0
        %781 = vmatmul.mubr.f32.gmra.mrb[0].mxu0 %v584
        %v782 = vpop.f32.mrb[0].mxu0
        %v783 = vadd.f32 0.0, %v782
        %v784 = vpop.f32.mrb[0].mxu0
        %v785 = vadd.f32 0.0, %v784
        %786 = vmatprep.mubr.f32.mxu0 0.0
        %787 = vmatmul.mubr.f32.gmra.mrb[0].mxu0 %v587
        %v788 = vpop.f32.mrb[0].mxu0
        %v789 = vadd.f32 0.0, %v788
        %v790 = vpop.f32.mrb[0].mxu0
        %v791 = vadd.f32 0.0, %v790
        %792 = vmatprep.mubr.f32.mxu0 0.0
        %793 = vmatmul.mubr.f32.gmra.mrb[0].mxu0 %v590
        %v794 = vpop.f32.mrb[0].mxu0
        %v795 = vadd.f32 0.0, %v794
        %v796 = vpop.f32.mrb[0].mxu0
        %v797 = vadd.f32 0.0, %v796
        %798 = vmatprep.mubr.f32.mxu0 0.0
        %799 = vmatmul.mubr.f32.gmra.mrb[0].mxu0 %v593
        %v800 = vpop.f32.mrb[0].mxu0
        %v801 = vadd.f32 0.0, %v800
        %v802 = vpop.f32.mrb[0].mxu0
        %v803 = vadd.f32 0.0, %v802
        %804 = vmatprep.mubr.f32.mxu0 0.0
        %805 = vmatmul.mubr.f32.gmra.mrb[0].mxu0 %v596
        %v806 = vpop.f32.mrb[0].mxu0
        %v807 = vadd.f32 0.0, %v806
        %v808 = vpop.f32.mrb[0].mxu0
        %v809 = vadd.f32 0.0, %v808
        %810 = vmatprep.mubr.f32.mxu0 0.0
        %811 = vmatmul.mubr.f32.gmra.mrb[0].mxu0 %v599
        %v812 = vpop.f32.mrb[0].mxu0
        %v813 = vadd.f32 0.0, %v812
        %v814 = vpop.f32.mrb[0].mxu0
        %v815 = vadd.f32 0.0, %v814
        %816 = vmatprep.mubr.f32.mxu0 0.0
        %817 = vmatmul.mubr.f32.gmra.mrb[0].mxu0 %v602
        %v818 = vpop.f32.mrb[0].mxu0
        %v819 = vadd.f32 0.0, %v818
        %v820 = vpop.f32.mrb[0].mxu0
        %v821 = vadd.f32 0.0, %v820
        %822 = vmatprep.mubr.f32.mxu0 0.0
        %823 = vmatmul.mubr.f32.gmra.mrb[0].mxu0 %v605
        %v824 = vpop.f32.mrb[0].mxu0
        %v825 = vadd.f32 0.0, %v824
        %v826 = vpop.f32.mrb[0].mxu0
        %v827 = vadd.f32 0.0, %v826
        %828 = vdwg.mxu0
        %829 = vmatprep.subr.mxu0 %v521
        %830 = vmatpush1.msra.mxu0 %v520
        %831 = vmatprep.subr.mxu0 %v525
        %832 = vmatpush1.msra.mxu0 %v524
        %833 = vmatprep.subr.mxu0 %v529
        %834 = vmatpush1.msra.mxu0 %v528
        %835 = vmatprep.subr.mxu0 %v618
        %836 = vmatpush1.msra.mxu0 %v615
        %837 = vmatprep.subr.mxu0 0.0
        %838 = vmatpush1.msra.mxu0 0.0
        %839 = vmatprep.subr.mxu0 0.0
        %840 = vmatpush1.msra.mxu0 0.0
        %841 = vmatprep.subr.mxu0 0.0
        %842 = vmatpush1.msra.mxu0 0.0
        %843 = vmatprep.subr.mxu0 0.0
        %844 = vmatpush1.msra.mxu0 0.0
        %845 = vmatprep.subr.mxu0 0.0
        %846 = vmatpush1.msra.mxu0 0.0
        %847 = vmatprep.subr.mxu0 0.0
        %848 = vmatpush1.msra.mxu0 0.0
        %849 = vmatprep.subr.mxu0 0.0
        %850 = vmatpush1.msra.mxu0 0.0
        %851 = vmatprep.subr.mxu0 0.0
        %852 = vmatpush1.msra.mxu0 0.0
        %853 = vmatprep.subr.mxu0 0.0
        %854 = vmatpush1.msra.mxu0 0.0
        %855 = vmatprep.subr.mxu0 0.0
        %856 = vmatpush1.msra.mxu0 0.0
        %857 = vmatprep.subr.mxu0 0.0
        %858 = vmatpush1.msra.mxu0 0.0
        %859 = vmatprep.subr.mxu0 0.0
        %860 = vmatpush1.msra.mxu0 0.0
        %861 = vmatprep.subr.mxu0 0.0
        %862 = vmatpush1.msra.mxu0 0.0
        %863 = vmatprep.subr.mxu0 0.0
        %864 = vmatpush1.msra.mxu0 0.0
        %865 = vmatprep.subr.mxu0 0.0
        %866 = vmatpush1.msra.mxu0 0.0
        %867 = vmatprep.subr.mxu0 0.0
        %868 = vmatpush1.msra.mxu0 0.0
        %869 = vmatprep.subr.mxu0 0.0
        %870 = vmatpush1.msra.mxu0 0.0
        %871 = vmatprep.subr.mxu0 0.0
        %872 = vmatpush1.msra.mxu0 0.0
        %873 = vmatprep.subr.mxu0 0.0
        %874 = vmatpush1.msra.mxu0 0.0
        %875 = vmatprep.subr.mxu0 0.0
        %876 = vmatpush1.msra.mxu0 0.0
        %877 = vmatprep.subr.mxu0 0.0
        %878 = vmatpush1.msra.mxu0 0.0
        %879 = vmatprep.subr.mxu0 0.0
        %880 = vmatpush1.msra.mxu0 0.0
        %881 = vmatprep.subr.mxu0 0.0
        %882 = vmatpush1.msra.mxu0 0.0
        %883 = vmatprep.subr.mxu0 0.0
        %884 = vmatpush1.msra.mxu0 0.0
        %885 = vmatprep.subr.mxu0 0.0
        %886 = vmatpush1.msra.mxu0 0.0
        %887 = vmatprep.subr.mxu0 0.0
        %888 = vmatpush1.msra.mxu0 0.0
        %889 = vmatprep.subr.mxu0 0.0
        %890 = vmatpush1.msra.mxu0 0.0
        %891 = vmatprep.subr.mxu0 0.0
        %892 = vmatpush1.msra.mxu0 0.0
        %893 = vmatprep.mubr.f32.mxu0 0.0
        %894 = vmatmul.mubr.f32.gmra.mrb[0].mxu0 %v536
        %v895 = vpop.f32.mrb[0].mxu0
        %v896 = vadd.f32 0.0, %v895
        %v897 = vpop.f32.mrb[0].mxu0
        %v898 = vadd.f32 0.0, %v897
        %899 = vmatprep.mubr.f32.mxu0 0.0
        %900 = vmatmul.mubr.f32.gmra.mrb[0].mxu0 %v539
        %v901 = vpop.f32.mrb[0].mxu0
        %v902 = vadd.f32 0.0, %v901
        %v903 = vpop.f32.mrb[0].mxu0
        %v904 = vadd.f32 0.0, %v903
        %905 = vmatprep.mubr.f32.mxu0 0.0
        %906 = vmatmul.mubr.f32.gmra.mrb[0].mxu0 %v542
        %v907 = vpop.f32.mrb[0].mxu0
        %v908 = vadd.f32 0.0, %v907
        %v909 = vpop.f32.mrb[0].mxu0
        %v910 = vadd.f32 0.0, %v909
        %911 = vmatprep.mubr.f32.mxu0 0.0
        %912 = vmatmul.mubr.f32.gmra.mrb[0].mxu0 %v545
        %v913 = vpop.f32.mrb[0].mxu0
        %v914 = vadd.f32 0.0, %v913
        %v915 = vpop.f32.mrb[0].mxu0
        %v916 = vadd.f32 0.0, %v915
        %917 = vmatprep.mubr.f32.mxu0 0.0
        %918 = vmatmul.mubr.f32.gmra.mrb[0].mxu0 %v548
        %v919 = vpop.f32.mrb[0].mxu0
        %v920 = vadd.f32 0.0, %v919
        %v921 = vpop.f32.mrb[0].mxu0
        %v922 = vadd.f32 0.0, %v921
        %923 = vmatprep.mubr.f32.mxu0 0.0
        %924 = vmatmul.mubr.f32.gmra.mrb[0].mxu0 %v551
        %v925 = vpop.f32.mrb[0].mxu0
        %v926 = vadd.f32 0.0, %v925
        %v927 = vpop.f32.mrb[0].mxu0
        %v928 = vadd.f32 0.0, %v927
        %929 = vmatprep.mubr.f32.mxu0 0.0
        %930 = vmatmul.mubr.f32.gmra.mrb[0].mxu0 %v554
        %v931 = vpop.f32.mrb[0].mxu0
        %v932 = vadd.f32 0.0, %v931
        %v933 = vpop.f32.mrb[0].mxu0
        %v934 = vadd.f32 0.0, %v933
        %935 = vmatprep.mubr.f32.mxu0 0.0
        %936 = vmatmul.mubr.f32.gmra.mrb[0].mxu0 %v557
        %v937 = vpop.f32.mrb[0].mxu0
        %v938 = vadd.f32 0.0, %v937
        %v939 = vpop.f32.mrb[0].mxu0
        %v940 = vadd.f32 0.0, %v939
        %941 = vmatprep.mubr.f32.mxu0 0.0
        %942 = vmatmul.mubr.f32.gmra.mrb[0].mxu0 %v560
        %v943 = vpop.f32.mrb[0].mxu0
        %v944 = vadd.f32 0.0, %v943
        %v945 = vpop.f32.mrb[0].mxu0
        %v946 = vadd.f32 0.0, %v945
        %947 = vmatprep.mubr.f32.mxu0 0.0
        %948 = vmatmul.mubr.f32.gmra.mrb[0].mxu0 %v563
        %v949 = vpop.f32.mrb[0].mxu0
        %v950 = vadd.f32 0.0, %v949
        %v951 = vpop.f32.mrb[0].mxu0
        %v952 = vadd.f32 0.0, %v951
        %953 = vmatprep.mubr.f32.mxu0 0.0
        %954 = vmatmul.mubr.f32.gmra.mrb[0].mxu0 %v566
        %v955 = vpop.f32.mrb[0].mxu0
        %v956 = vadd.f32 0.0, %v955
        %v957 = vpop.f32.mrb[0].mxu0
        %v958 = vadd.f32 0.0, %v957
        %959 = vmatprep.mubr.f32.mxu0 0.0
        %960 = vmatmul.mubr.f32.gmra.mrb[0].mxu0 %v569
        %v961 = vpop.f32.mrb[0].mxu0
        %v962 = vadd.f32 0.0, %v961
        %v963 = vpop.f32.mrb[0].mxu0
        %v964 = vadd.f32 0.0, %v963
        %965 = vmatprep.mubr.f32.mxu0 0.0
        %966 = vmatmul.mubr.f32.gmra.mrb[0].mxu0 %v572
        %v967 = vpop.f32.mrb[0].mxu0
        %v968 = vadd.f32 0.0, %v967
        %v969 = vpop.f32.mrb[0].mxu0
        %v970 = vadd.f32 0.0, %v969
        %971 = vmatprep.mubr.f32.mxu0 0.0
        %972 = vmatmul.mubr.f32.gmra.mrb[0].mxu0 %v575
        %v973 = vpop.f32.mrb[0].mxu0
        %v974 = vadd.f32 0.0, %v973
        %v975 = vpop.f32.mrb[0].mxu0
        %v976 = vadd.f32 0.0, %v975
        %977 = vmatprep.mubr.f32.mxu0 0.0
        %978 = vmatmul.mubr.f32.gmra.mrb[0].mxu0 %v578
        %v979 = vpop.f32.mrb[0].mxu0
        %v980 = vadd.f32 0.0, %v979
        %v981 = vpop.f32.mrb[0].mxu0
        %v982 = vadd.f32 0.0, %v981
        %983 = vmatprep.mubr.f32.mxu0 0.0
        %984 = vmatmul.mubr.f32.gmra.mrb[0].mxu0 %v581
        %v985 = vpop.f32.mrb[0].mxu0
        %v986 = vadd.f32 0.0, %v985
        %v987 = vpop.f32.mrb[0].mxu0
        %v988 = vadd.f32 0.0, %v987
        %989 = vmatprep.mubr.f32.mxu0 0.0
        %990 = vmatmul.mubr.f32.gmra.mrb[0].mxu0 %v584
        %v991 = vpop.f32.mrb[0].mxu0
        %v992 = vadd.f32 0.0, %v991
        %v993 = vpop.f32.mrb[0].mxu0
        %v994 = vadd.f32 0.0, %v993
        %995 = vmatprep.mubr.f32.mxu0 0.0
        %996 = vmatmul.mubr.f32.gmra.mrb[0].mxu0 %v587
        %v997 = vpop.f32.mrb[0].mxu0
        %v998 = vadd.f32 0.0, %v997
        %v999 = vpop.f32.mrb[0].mxu0
        %v1000 = vadd.f32 0.0, %v999
        %1001 = vmatprep.mubr.f32.mxu0 0.0
        %1002 = vmatmul.mubr.f32.gmra.mrb[0].mxu0 %v590
        %v1003 = vpop.f32.mrb[0].mxu0
        %v1004 = vadd.f32 0.0, %v1003
        %v1005 = vpop.f32.mrb[0].mxu0
        %v1006 = vadd.f32 0.0, %v1005
        %1007 = vmatprep.mubr.f32.mxu0 0.0
        %1008 = vmatmul.mubr.f32.gmra.mrb[0].mxu0 %v593
        %v1009 = vpop.f32.mrb[0].mxu0
        %v1010 = vadd.f32 0.0, %v1009
        %v1011 = vpop.f32.mrb[0].mxu0
        %v1012 = vadd.f32 0.0, %v1011
        %1013 = vmatprep.mubr.f32.mxu0 0.0
        %1014 = vmatmul.mubr.f32.gmra.mrb[0].mxu0 %v596
        %v1015 = vpop.f32.mrb[0].mxu0
        %v1016 = vadd.f32 0.0, %v1015
        %v1017 = vpop.f32.mrb[0].mxu0
        %v1018 = vadd.f32 0.0, %v1017
        %1019 = vmatprep.mubr.f32.mxu0 0.0
        %1020 = vmatmul.mubr.f32.gmra.mrb[0].mxu0 %v599
        %v1021 = vpop.f32.mrb[0].mxu0
        %v1022 = vadd.f32 0.0, %v1021
        %v1023 = vpop.f32.mrb[0].mxu0
        %v1024 = vadd.f32 0.0, %v1023
        %1025 = vmatprep.mubr.f32.mxu0 0.0
        %1026 = vmatmul.mubr.f32.gmra.mrb[0].mxu0 %v602
        %v1027 = vpop.f32.mrb[0].mxu0
        %v1028 = vadd.f32 0.0, %v1027
        %v1029 = vpop.f32.mrb[0].mxu0
        %v1030 = vadd.f32 0.0, %v1029
        %1031 = vmatprep.mubr.f32.mxu0 0.0
        %1032 = vmatmul.mubr.f32.gmra.mrb[0].mxu0 %v605
        %v1033 = vpop.f32.mrb[0].mxu0
        %v1034 = vadd.f32 0.0, %v1033
        %v1035 = vpop.f32.mrb[0].mxu0
        %v1036 = vadd.f32 0.0, %v1035
        %1037 = vdwg.mxu0
        %v1039 = vsel %vm534, %v473, 0
        %v1042 = vsel %vm607, %v513, 0
        %v1045 = vsel %vm607, %v514, 0
        %v1048 = vsel %vm607, %v515, 0
        %v1051 = vsel %vm607, %v516, 0
        %1053 = vmatprep.subr.mxu0 %v502
        %1054 = vmatpush1.msra.mxu0 %v501
        %1055 = vmatprep.subr.mxu0 %v506
        %1056 = vmatpush1.msra.mxu0 %v505
        %1057 = vmatprep.subr.mxu0 %v510
        %1058 = vmatpush1.msra.mxu0 %v509
        %1059 = vmatprep.subr.mxu0 %v1045
        %1060 = vmatpush1.msra.mxu0 %v1042
        %1061 = vmatprep.subr.mxu0 0.0
        %1062 = vmatpush1.msra.mxu0 0.0
        %1063 = vmatprep.subr.mxu0 0.0
        %1064 = vmatpush1.msra.mxu0 0.0
        %1065 = vmatprep.subr.mxu0 0.0
        %1066 = vmatpush1.msra.mxu0 0.0
        %1067 = vmatprep.subr.mxu0 0.0
        %1068 = vmatpush1.msra.mxu0 0.0
        %1069 = vmatprep.subr.mxu0 0.0
        %1070 = vmatpush1.msra.mxu0 0.0
        %1071 = vmatprep.subr.mxu0 0.0
        %1072 = vmatpush1.msra.mxu0 0.0
        %1073 = vmatprep.subr.mxu0 0.0
        %1074 = vmatpush1.msra.mxu0 0.0
        %1075 = vmatprep.subr.mxu0 0.0
        %1076 = vmatpush1.msra.mxu0 0.0
        %1077 = vmatprep.subr.mxu0 0.0
        %1078 = vmatpush1.msra.mxu0 0.0
        %1079 = vmatprep.subr.mxu0 0.0
        %1080 = vmatpush1.msra.mxu0 0.0
        %1081 = vmatprep.subr.mxu0 0.0
        %1082 = vmatpush1.msra.mxu0 0.0
        %1083 = vmatprep.subr.mxu0 0.0
        %1084 = vmatpush1.msra.mxu0 0.0
        %1085 = vmatprep.subr.mxu0 0.0
        %1086 = vmatpush1.msra.mxu0 0.0
        %1087 = vmatprep.subr.mxu0 0.0
        %1088 = vmatpush1.msra.mxu0 0.0
        %1089 = vmatprep.subr.mxu0 0.0
        %1090 = vmatpush1.msra.mxu0 0.0
        %1091 = vmatprep.subr.mxu0 0.0
        %1092 = vmatpush1.msra.mxu0 0.0
        %1093 = vmatprep.subr.mxu0 0.0
        %1094 = vmatpush1.msra.mxu0 0.0
        %1095 = vmatprep.subr.mxu0 0.0
        %1096 = vmatpush1.msra.mxu0 0.0
        %1097 = vmatprep.subr.mxu0 0.0
        %1098 = vmatpush1.msra.mxu0 0.0
        %1099 = vmatprep.subr.mxu0 0.0
        %1100 = vmatpush1.msra.mxu0 0.0
        %1101 = vmatprep.subr.mxu0 0.0
        %1102 = vmatpush1.msra.mxu0 0.0
        %1103 = vmatprep.subr.mxu0 0.0
        %1104 = vmatpush1.msra.mxu0 0.0
        %1105 = vmatprep.subr.mxu0 0.0
        %1106 = vmatpush1.msra.mxu0 0.0
        %1107 = vmatprep.subr.mxu0 0.0
        %1108 = vmatpush1.msra.mxu0 0.0
        %1109 = vmatprep.subr.mxu0 0.0
        %1110 = vmatpush1.msra.mxu0 0.0
        %1111 = vmatprep.subr.mxu0 0.0
        %1112 = vmatpush1.msra.mxu0 0.0
        %1113 = vmatprep.subr.mxu0 0.0
        %1114 = vmatpush1.msra.mxu0 0.0
        %1115 = vmatprep.subr.mxu0 0.0
        %1116 = vmatpush1.msra.mxu0 0.0
        %1117 = vmatprep.mubr.f32.mxu0 0.0
        %1118 = vmatmul.mubr.f32.gmra.mrb[0].mxu0 %v1039
        %v1119 = vpop.f32.mrb[0].mxu0
        %v1120 = vadd.f32 %v687, %v1119
        %v1121 = vpop.f32.mrb[0].mxu0
        %v1122 = vadd.f32 %v689, %v1121
        %1123 = vmatprep.mubr.f32.mxu0 0.0
        %1124 = vmatmul.mubr.f32.gmra.mrb[0].mxu0 %v536
        %v1125 = vpop.f32.mrb[0].mxu0
        %v1126 = vadd.f32 %v693, %v1125
        %v1127 = vpop.f32.mrb[0].mxu0
        %v1128 = vadd.f32 %v695, %v1127
        %1129 = vmatprep.mubr.f32.mxu0 0.0
        %1130 = vmatmul.mubr.f32.gmra.mrb[0].mxu0 %v539
        %v1131 = vpop.f32.mrb[0].mxu0
        %v1132 = vadd.f32 %v699, %v1131
        %v1133 = vpop.f32.mrb[0].mxu0
        %v1134 = vadd.f32 %v701, %v1133
        %1135 = vmatprep.mubr.f32.mxu0 0.0
        %1136 = vmatmul.mubr.f32.gmra.mrb[0].mxu0 %v542
        %v1137 = vpop.f32.mrb[0].mxu0
        %v1138 = vadd.f32 %v705, %v1137
        %v1139 = vpop.f32.mrb[0].mxu0
        %v1140 = vadd.f32 %v707, %v1139
        %1141 = vmatprep.mubr.f32.mxu0 0.0
        %1142 = vmatmul.mubr.f32.gmra.mrb[0].mxu0 %v545
        %v1143 = vpop.f32.mrb[0].mxu0
        %v1144 = vadd.f32 %v711, %v1143
        %v1145 = vpop.f32.mrb[0].mxu0
        %v1146 = vadd.f32 %v713, %v1145
        %1147 = vmatprep.mubr.f32.mxu0 0.0
        %1148 = vmatmul.mubr.f32.gmra.mrb[0].mxu0 %v548
        %v1149 = vpop.f32.mrb[0].mxu0
        %v1150 = vadd.f32 %v717, %v1149
        %v1151 = vpop.f32.mrb[0].mxu0
        %v1152 = vadd.f32 %v719, %v1151
        %1153 = vmatprep.mubr.f32.mxu0 0.0
        %1154 = vmatmul.mubr.f32.gmra.mrb[0].mxu0 %v551
        %v1155 = vpop.f32.mrb[0].mxu0
        %v1156 = vadd.f32 %v723, %v1155
        %v1157 = vpop.f32.mrb[0].mxu0
        %v1158 = vadd.f32 %v725, %v1157
        %1159 = vmatprep.mubr.f32.mxu0 0.0
        %1160 = vmatmul.mubr.f32.gmra.mrb[0].mxu0 %v554
        %v1161 = vpop.f32.mrb[0].mxu0
        %v1162 = vadd.f32 %v729, %v1161
        %v1163 = vpop.f32.mrb[0].mxu0
        %v1164 = vadd.f32 %v731, %v1163
        %1165 = vmatprep.mubr.f32.mxu0 0.0
        %1166 = vmatmul.mubr.f32.gmra.mrb[0].mxu0 %v557
        %v1167 = vpop.f32.mrb[0].mxu0
        %v1168 = vadd.f32 %v735, %v1167
        %v1169 = vpop.f32.mrb[0].mxu0
        %v1170 = vadd.f32 %v737, %v1169
        %1171 = vmatprep.mubr.f32.mxu0 0.0
        %1172 = vmatmul.mubr.f32.gmra.mrb[0].mxu0 %v560
        %v1173 = vpop.f32.mrb[0].mxu0
        %v1174 = vadd.f32 %v741, %v1173
        %v1175 = vpop.f32.mrb[0].mxu0
        %v1176 = vadd.f32 %v743, %v1175
        %1177 = vmatprep.mubr.f32.mxu0 0.0
        %1178 = vmatmul.mubr.f32.gmra.mrb[0].mxu0 %v563
        %v1179 = vpop.f32.mrb[0].mxu0
        %v1180 = vadd.f32 %v747, %v1179
        %v1181 = vpop.f32.mrb[0].mxu0
        %v1182 = vadd.f32 %v749, %v1181
        %1183 = vmatprep.mubr.f32.mxu0 0.0
        %1184 = vmatmul.mubr.f32.gmra.mrb[0].mxu0 %v566
        %v1185 = vpop.f32.mrb[0].mxu0
        %v1186 = vadd.f32 %v753, %v1185
        %v1187 = vpop.f32.mrb[0].mxu0
        %v1188 = vadd.f32 %v755, %v1187
        %1189 = vmatprep.mubr.f32.mxu0 0.0
        %1190 = vmatmul.mubr.f32.gmra.mrb[0].mxu0 %v569
        %v1191 = vpop.f32.mrb[0].mxu0
        %v1192 = vadd.f32 %v759, %v1191
        %v1193 = vpop.f32.mrb[0].mxu0
        %v1194 = vadd.f32 %v761, %v1193
        %1195 = vmatprep.mubr.f32.mxu0 0.0
        %1196 = vmatmul.mubr.f32.gmra.mrb[0].mxu0 %v572
        %v1197 = vpop.f32.mrb[0].mxu0
        %v1198 = vadd.f32 %v765, %v1197
        %v1199 = vpop.f32.mrb[0].mxu0
        %v1200 = vadd.f32 %v767, %v1199
        %1201 = vmatprep.mubr.f32.mxu0 0.0
        %1202 = vmatmul.mubr.f32.gmra.mrb[0].mxu0 %v575
        %v1203 = vpop.f32.mrb[0].mxu0
        %v1204 = vadd.f32 %v771, %v1203
        %v1205 = vpop.f32.mrb[0].mxu0
        %v1206 = vadd.f32 %v773, %v1205
        %1207 = vmatprep.mubr.f32.mxu0 0.0
        %1208 = vmatmul.mubr.f32.gmra.mrb[0].mxu0 %v578
        %v1209 = vpop.f32.mrb[0].mxu0
        %v1210 = vadd.f32 %v777, %v1209
        %v1211 = vpop.f32.mrb[0].mxu0
        %v1212 = vadd.f32 %v779, %v1211
        %1213 = vmatprep.mubr.f32.mxu0 0.0
        %1214 = vmatmul.mubr.f32.gmra.mrb[0].mxu0 %v581
        %v1215 = vpop.f32.mrb[0].mxu0
        %v1216 = vadd.f32 %v783, %v1215
        %v1217 = vpop.f32.mrb[0].mxu0
        %v1218 = vadd.f32 %v785, %v1217
        %1219 = vmatprep.mubr.f32.mxu0 0.0
        %1220 = vmatmul.mubr.f32.gmra.mrb[0].mxu0 %v584
        %v1221 = vpop.f32.mrb[0].mxu0
        %v1222 = vadd.f32 %v789, %v1221
        %v1223 = vpop.f32.mrb[0].mxu0
        %v1224 = vadd.f32 %v791, %v1223
        %1225 = vmatprep.mubr.f32.mxu0 0.0
        %1226 = vmatmul.mubr.f32.gmra.mrb[0].mxu0 %v587
        %v1227 = vpop.f32.mrb[0].mxu0
        %v1228 = vadd.f32 %v795, %v1227
        %v1229 = vpop.f32.mrb[0].mxu0
        %v1230 = vadd.f32 %v797, %v1229
        %1231 = vmatprep.mubr.f32.mxu0 0.0
        %1232 = vmatmul.mubr.f32.gmra.mrb[0].mxu0 %v590
        %v1233 = vpop.f32.mrb[0].mxu0
        %v1234 = vadd.f32 %v801, %v1233
        %v1235 = vpop.f32.mrb[0].mxu0
        %v1236 = vadd.f32 %v803, %v1235
        %1237 = vmatprep.mubr.f32.mxu0 0.0
        %1238 = vmatmul.mubr.f32.gmra.mrb[0].mxu0 %v593
        %v1239 = vpop.f32.mrb[0].mxu0
        %v1240 = vadd.f32 %v807, %v1239
        %v1241 = vpop.f32.mrb[0].mxu0
        %v1242 = vadd.f32 %v809, %v1241
        %1243 = vmatprep.mubr.f32.mxu0 0.0
        %1244 = vmatmul.mubr.f32.gmra.mrb[0].mxu0 %v596
        %v1245 = vpop.f32.mrb[0].mxu0
        %v1246 = vadd.f32 %v813, %v1245
        %v1247 = vpop.f32.mrb[0].mxu0
        %v1248 = vadd.f32 %v815, %v1247
        %1249 = vmatprep.mubr.f32.mxu0 0.0
        %1250 = vmatmul.mubr.f32.gmra.mrb[0].mxu0 %v599
        %v1251 = vpop.f32.mrb[0].mxu0
        %v1252 = vadd.f32 %v819, %v1251
        %v1253 = vpop.f32.mrb[0].mxu0
        %v1254 = vadd.f32 %v821, %v1253
        %1255 = vmatprep.mubr.f32.mxu0 0.0
        %1256 = vmatmul.mubr.f32.gmra.mrb[0].mxu0 %v602
        %v1257 = vpop.f32.mrb[0].mxu0
        %v1258 = vadd.f32 %v825, %v1257
        %v1259 = vpop.f32.mrb[0].mxu0
        %v1260 = vadd.f32 %v827, %v1259
        %1261 = vdwg.mxu0
        %1262 = vmatprep.subr.mxu0 %v504
        %1263 = vmatpush1.msra.mxu0 %v503
        %1264 = vmatprep.subr.mxu0 %v508
        %1265 = vmatpush1.msra.mxu0 %v507
        %1266 = vmatprep.subr.mxu0 %v512
        %1267 = vmatpush1.msra.mxu0 %v511
        %1268 = vmatprep.subr.mxu0 %v1051
        %1269 = vmatpush1.msra.mxu0 %v1048
        %1270 = vmatprep.subr.mxu0 0.0
        %1271 = vmatpush1.msra.mxu0 0.0
        %1272 = vmatprep.subr.mxu0 0.0
        %1273 = vmatpush1.msra.mxu0 0.0
        %1274 = vmatprep.subr.mxu0 0.0
        %1275 = vmatpush1.msra.mxu0 0.0
        %1276 = vmatprep.subr.mxu0 0.0
        %1277 = vmatpush1.msra.mxu0 0.0
        %1278 = vmatprep.subr.mxu0 0.0
        %1279 = vmatpush1.msra.mxu0 0.0
        %1280 = vmatprep.subr.mxu0 0.0
        %1281 = vmatpush1.msra.mxu0 0.0
        %1282 = vmatprep.subr.mxu0 0.0
        %1283 = vmatpush1.msra.mxu0 0.0
        %1284 = vmatprep.subr.mxu0 0.0
        %1285 = vmatpush1.msra.mxu0 0.0
        %1286 = vmatprep.subr.mxu0 0.0
        %1287 = vmatpush1.msra.mxu0 0.0
        %1288 = vmatprep.subr.mxu0 0.0
        %1289 = vmatpush1.msra.mxu0 0.0
        %1290 = vmatprep.subr.mxu0 0.0
        %1291 = vmatpush1.msra.mxu0 0.0
        %1292 = vmatprep.subr.mxu0 0.0
        %1293 = vmatpush1.msra.mxu0 0.0
        %1294 = vmatprep.subr.mxu0 0.0
        %1295 = vmatpush1.msra.mxu0 0.0
        %1296 = vmatprep.subr.mxu0 0.0
        %1297 = vmatpush1.msra.mxu0 0.0
        %1298 = vmatprep.subr.mxu0 0.0
        %1299 = vmatpush1.msra.mxu0 0.0
        %1300 = vmatprep.subr.mxu0 0.0
        %1301 = vmatpush1.msra.mxu0 0.0
        %1302 = vmatprep.subr.mxu0 0.0
        %1303 = vmatpush1.msra.mxu0 0.0
        %1304 = vmatprep.subr.mxu0 0.0
        %1305 = vmatpush1.msra.mxu0 0.0
        %1306 = vmatprep.subr.mxu0 0.0
        %1307 = vmatpush1.msra.mxu0 0.0
        %1308 = vmatprep.subr.mxu0 0.0
        %1309 = vmatpush1.msra.mxu0 0.0
        %1310 = vmatprep.subr.mxu0 0.0
        %1311 = vmatpush1.msra.mxu0 0.0
        %1312 = vmatprep.subr.mxu0 0.0
        %1313 = vmatpush1.msra.mxu0 0.0
        %1314 = vmatprep.subr.mxu0 0.0
        %1315 = vmatpush1.msra.mxu0 0.0
        %1316 = vmatprep.subr.mxu0 0.0
        %1317 = vmatpush1.msra.mxu0 0.0
        %1318 = vmatprep.subr.mxu0 0.0
        %1319 = vmatpush1.msra.mxu0 0.0
        %1320 = vmatprep.subr.mxu0 0.0
        %1321 = vmatpush1.msra.mxu0 0.0
        %1322 = vmatprep.subr.mxu0 0.0
        %1323 = vmatpush1.msra.mxu0 0.0
        %1324 = vmatprep.subr.mxu0 0.0
        %1325 = vmatpush1.msra.mxu0 0.0
        %1326 = vmatprep.mubr.f32.mxu0 0.0
        %1327 = vmatmul.mubr.f32.gmra.mrb[0].mxu0 %v1039
        %v1328 = vpop.f32.mrb[0].mxu0
        %v1329 = vadd.f32 %v896, %v1328
        %v1330 = vpop.f32.mrb[0].mxu0
        %v1331 = vadd.f32 %v898, %v1330
        %1332 = vmatprep.mubr.f32.mxu0 0.0
        %1333 = vmatmul.mubr.f32.gmra.mrb[0].mxu0 %v536
        %v1334 = vpop.f32.mrb[0].mxu0
        %v1335 = vadd.f32 %v902, %v1334
        %v1336 = vpop.f32.mrb[0].mxu0
        %v1337 = vadd.f32 %v904, %v1336
        %1338 = vmatprep.mubr.f32.mxu0 0.0
        %1339 = vmatmul.mubr.f32.gmra.mrb[0].mxu0 %v539
        %v1340 = vpop.f32.mrb[0].mxu0
        %v1341 = vadd.f32 %v908, %v1340
        %v1342 = vpop.f32.mrb[0].mxu0
        %v1343 = vadd.f32 %v910, %v1342
        %1344 = vmatprep.mubr.f32.mxu0 0.0
        %1345 = vmatmul.mubr.f32.gmra.mrb[0].mxu0 %v542
        %v1346 = vpop.f32.mrb[0].mxu0
        %v1347 = vadd.f32 %v914, %v1346
        %v1348 = vpop.f32.mrb[0].mxu0
        %v1349 = vadd.f32 %v916, %v1348
        %1350 = vmatprep.mubr.f32.mxu0 0.0
        %1351 = vmatmul.mubr.f32.gmra.mrb[0].mxu0 %v545
        %v1352 = vpop.f32.mrb[0].mxu0
        %v1353 = vadd.f32 %v920, %v1352
        %v1354 = vpop.f32.mrb[0].mxu0
        %v1355 = vadd.f32 %v922, %v1354
        %1356 = vmatprep.mubr.f32.mxu0 0.0
        %1357 = vmatmul.mubr.f32.gmra.mrb[0].mxu0 %v548
        %v1358 = vpop.f32.mrb[0].mxu0
        %v1359 = vadd.f32 %v926, %v1358
        %v1360 = vpop.f32.mrb[0].mxu0
        %v1361 = vadd.f32 %v928, %v1360
        %1362 = vmatprep.mubr.f32.mxu0 0.0
        %1363 = vmatmul.mubr.f32.gmra.mrb[0].mxu0 %v551
        %v1364 = vpop.f32.mrb[0].mxu0
        %v1365 = vadd.f32 %v932, %v1364
        %v1366 = vpop.f32.mrb[0].mxu0
        %v1367 = vadd.f32 %v934, %v1366
        %1368 = vmatprep.mubr.f32.mxu0 0.0
        %1369 = vmatmul.mubr.f32.gmra.mrb[0].mxu0 %v554
        %v1370 = vpop.f32.mrb[0].mxu0
        %v1371 = vadd.f32 %v938, %v1370
        %v1372 = vpop.f32.mrb[0].mxu0
        %v1373 = vadd.f32 %v940, %v1372
        %1374 = vmatprep.mubr.f32.mxu0 0.0
        %1375 = vmatmul.mubr.f32.gmra.mrb[0].mxu0 %v557
        %v1376 = vpop.f32.mrb[0].mxu0
        %v1377 = vadd.f32 %v944, %v1376
        %v1378 = vpop.f32.mrb[0].mxu0
        %v1379 = vadd.f32 %v946, %v1378
        %1380 = vmatprep.mubr.f32.mxu0 0.0
        %1381 = vmatmul.mubr.f32.gmra.mrb[0].mxu0 %v560
        %v1382 = vpop.f32.mrb[0].mxu0
        %v1383 = vadd.f32 %v950, %v1382
        %v1384 = vpop.f32.mrb[0].mxu0
        %v1385 = vadd.f32 %v952, %v1384
        %1386 = vmatprep.mubr.f32.mxu0 0.0
        %1387 = vmatmul.mubr.f32.gmra.mrb[0].mxu0 %v563
        %v1388 = vpop.f32.mrb[0].mxu0
        %v1389 = vadd.f32 %v956, %v1388
        %v1390 = vpop.f32.mrb[0].mxu0
        %v1391 = vadd.f32 %v958, %v1390
        %1392 = vmatprep.mubr.f32.mxu0 0.0
        %1393 = vmatmul.mubr.f32.gmra.mrb[0].mxu0 %v566
        %v1394 = vpop.f32.mrb[0].mxu0
        %v1395 = vadd.f32 %v962, %v1394
        %v1396 = vpop.f32.mrb[0].mxu0
        %v1397 = vadd.f32 %v964, %v1396
        %1398 = vmatprep.mubr.f32.mxu0 0.0
        %1399 = vmatmul.mubr.f32.gmra.mrb[0].mxu0 %v569
        %v1400 = vpop.f32.mrb[0].mxu0
        %v1401 = vadd.f32 %v968, %v1400
        %v1402 = vpop.f32.mrb[0].mxu0
        %v1403 = vadd.f32 %v970, %v1402
        %1404 = vmatprep.mubr.f32.mxu0 0.0
        %1405 = vmatmul.mubr.f32.gmra.mrb[0].mxu0 %v572
        %v1406 = vpop.f32.mrb[0].mxu0
        %v1407 = vadd.f32 %v974, %v1406
        %v1408 = vpop.f32.mrb[0].mxu0
        %v1409 = vadd.f32 %v976, %v1408
        %1410 = vmatprep.mubr.f32.mxu0 0.0
        %1411 = vmatmul.mubr.f32.gmra.mrb[0].mxu0 %v575
        %v1412 = vpop.f32.mrb[0].mxu0
        %v1413 = vadd.f32 %v980, %v1412
        %v1414 = vpop.f32.mrb[0].mxu0
        %v1415 = vadd.f32 %v982, %v1414
        %1416 = vmatprep.mubr.f32.mxu0 0.0
        %1417 = vmatmul.mubr.f32.gmra.mrb[0].mxu0 %v578
        %v1418 = vpop.f32.mrb[0].mxu0
        %v1419 = vadd.f32 %v986, %v1418
        %v1420 = vpop.f32.mrb[0].mxu0
        %v1421 = vadd.f32 %v988, %v1420
        %1422 = vmatprep.mubr.f32.mxu0 0.0
        %1423 = vmatmul.mubr.f32.gmra.mrb[0].mxu0 %v581
        %v1424 = vpop.f32.mrb[0].mxu0
        %v1425 = vadd.f32 %v992, %v1424
        %v1426 = vpop.f32.mrb[0].mxu0
        %v1427 = vadd.f32 %v994, %v1426
        %1428 = vmatprep.mubr.f32.mxu0 0.0
        %1429 = vmatmul.mubr.f32.gmra.mrb[0].mxu0 %v584
        %v1430 = vpop.f32.mrb[0].mxu0
        %v1431 = vadd.f32 %v998, %v1430
        %v1432 = vpop.f32.mrb[0].mxu0
        %v1433 = vadd.f32 %v1000, %v1432
        %1434 = vmatprep.mubr.f32.mxu0 0.0
        %1435 = vmatmul.mubr.f32.gmra.mrb[0].mxu0 %v587
        %v1436 = vpop.f32.mrb[0].mxu0
        %v1437 = vadd.f32 %v1004, %v1436
        %v1438 = vpop.f32.mrb[0].mxu0
        %v1439 = vadd.f32 %v1006, %v1438
        %1440 = vmatprep.mubr.f32.mxu0 0.0
        %1441 = vmatmul.mubr.f32.gmra.mrb[0].mxu0 %v590
        %v1442 = vpop.f32.mrb[0].mxu0
        %v1443 = vadd.f32 %v1010, %v1442
        %v1444 = vpop.f32.mrb[0].mxu0
        %v1445 = vadd.f32 %v1012, %v1444
        %1446 = vmatprep.mubr.f32.mxu0 0.0
        %1447 = vmatmul.mubr.f32.gmra.mrb[0].mxu0 %v593
        %v1448 = vpop.f32.mrb[0].mxu0
        %v1449 = vadd.f32 %v1016, %v1448
        %v1450 = vpop.f32.mrb[0].mxu0
        %v1451 = vadd.f32 %v1018, %v1450
        %1452 = vmatprep.mubr.f32.mxu0 0.0
        %1453 = vmatmul.mubr.f32.gmra.mrb[0].mxu0 %v596
        %v1454 = vpop.f32.mrb[0].mxu0
        %v1455 = vadd.f32 %v1022, %v1454
        %v1456 = vpop.f32.mrb[0].mxu0
        %v1457 = vadd.f32 %v1024, %v1456
        %1458 = vmatprep.mubr.f32.mxu0 0.0
        %1459 = vmatmul.mubr.f32.gmra.mrb[0].mxu0 %v599
        %v1460 = vpop.f32.mrb[0].mxu0
        %v1461 = vadd.f32 %v1028, %v1460
        %v1462 = vpop.f32.mrb[0].mxu0
        %v1463 = vadd.f32 %v1030, %v1462
        %1464 = vmatprep.mubr.f32.mxu0 0.0
        %1465 = vmatmul.mubr.f32.gmra.mrb[0].mxu0 %v602
        %v1466 = vpop.f32.mrb[0].mxu0
        %v1467 = vadd.f32 %v1034, %v1466
        %v1468 = vpop.f32.mrb[0].mxu0
        %v1469 = vadd.f32 %v1036, %v1468
        %1470 = vdwg.mxu0
        %s1471 = scalar_lea.vmem %s1, 256
        %v1472 = vld [vmem:[%s1471] sm:$0xff]
        %v1473 = vld [vmem:[%s1471 + $0x8] sm:$0xff]
        %v1474 = vld [vmem:[%s1471 + $0x10] sm:$0xff]
        %v1475 = vld [vmem:[%s1471 + $0x18] sm:$0xff]
        %v1476 = vld [vmem:[%s1471 + $0x20] sm:$0xff]
        %v1477 = vld [vmem:[%s1471 + $0x28] sm:$0xff]
        %v1478 = vld [vmem:[%s1471 + $0x30] sm:$0xff]
        %v1479 = vld [vmem:[%s1471 + $0x38] sm:$0xff]
        %v1480 = vld [vmem:[%s1471 + $0x40] sm:$0xff]
        %v1481 = vld [vmem:[%s1471 + $0x48] sm:$0xff]
        %v1482 = vld [vmem:[%s1471 + $0x50] sm:$0xff]
        %v1483 = vld [vmem:[%s1471 + $0x58] sm:$0xff]
        %v1484 = vld [vmem:[%s1471 + $0x60] sm:$0xf]
        %v1485 = vld [vmem:[%s1471 + $0x68] sm:$0xf]
        %v1486 = vld [vmem:[%s1471 + $0x70] sm:$0xf]
        %v1487 = vld [vmem:[%s1471 + $0x78] sm:$0xf]
        %v1489 = vsel %vm534, %v498, 0
        %v1492 = vsel %vm607, %v1484, 0
        %v1495 = vsel %vm607, %v1485, 0
        %v1498 = vsel %vm607, %v1486, 0
        %v1501 = vsel %vm607, %v1487, 0
        %1503 = vmatprep.subr.mxu0 %v1473
        %1504 = vmatpush1.msra.mxu0 %v1472
        %1505 = vmatprep.subr.mxu0 %v1477
        %1506 = vmatpush1.msra.mxu0 %v1476
        %1507 = vmatprep.subr.mxu0 %v1481
        %1508 = vmatpush1.msra.mxu0 %v1480
        %1509 = vmatprep.subr.mxu0 %v1495
        %1510 = vmatpush1.msra.mxu0 %v1492
        %1511 = vmatprep.subr.mxu0 0.0
        %1512 = vmatpush1.msra.mxu0 0.0
        %1513 = vmatprep.subr.mxu0 0.0
        %1514 = vmatpush1.msra.mxu0 0.0
        %1515 = vmatprep.subr.mxu0 0.0
        %1516 = vmatpush1.msra.mxu0 0.0
        %1517 = vmatprep.subr.mxu0 0.0
        %1518 = vmatpush1.msra.mxu0 0.0
        %1519 = vmatprep.subr.mxu0 0.0
        %1520 = vmatpush1.msra.mxu0 0.0
        %1521 = vmatprep.subr.mxu0 0.0
        %1522 = vmatpush1.msra.mxu0 0.0
        %1523 = vmatprep.subr.mxu0 0.0
        %1524 = vmatpush1.msra.mxu0 0.0
        %1525 = vmatprep.subr.mxu0 0.0
        %1526 = vmatpush1.msra.mxu0 0.0
        %1527 = vmatprep.subr.mxu0 0.0
        %1528 = vmatpush1.msra.mxu0 0.0
        %1529 = vmatprep.subr.mxu0 0.0
        %1530 = vmatpush1.msra.mxu0 0.0
        %1531 = vmatprep.subr.mxu0 0.0
        %1532 = vmatpush1.msra.mxu0 0.0
        %1533 = vmatprep.subr.mxu0 0.0
        %1534 = vmatpush1.msra.mxu0 0.0
        %1535 = vmatprep.subr.mxu0 0.0
        %1536 = vmatpush1.msra.mxu0 0.0
        %1537 = vmatprep.subr.mxu0 0.0
        %1538 = vmatpush1.msra.mxu0 0.0
        %1539 = vmatprep.subr.mxu0 0.0
        %1540 = vmatpush1.msra.mxu0 0.0
        %1541 = vmatprep.subr.mxu0 0.0
        %1542 = vmatpush1.msra.mxu0 0.0
        %1543 = vmatprep.subr.mxu0 0.0
        %1544 = vmatpush1.msra.mxu0 0.0
        %1545 = vmatprep.subr.mxu0 0.0
        %1546 = vmatpush1.msra.mxu0 0.0
        %1547 = vmatprep.subr.mxu0 0.0
        %1548 = vmatpush1.msra.mxu0 0.0
        %1549 = vmatprep.subr.mxu0 0.0
        %1550 = vmatpush1.msra.mxu0 0.0
        %1551 = vmatprep.subr.mxu0 0.0
        %1552 = vmatpush1.msra.mxu0 0.0
        %1553 = vmatprep.subr.mxu0 0.0
        %1554 = vmatpush1.msra.mxu0 0.0
        %1555 = vmatprep.subr.mxu0 0.0
        %1556 = vmatpush1.msra.mxu0 0.0
        %1557 = vmatprep.subr.mxu0 0.0
        %1558 = vmatpush1.msra.mxu0 0.0
        %1559 = vmatprep.subr.mxu0 0.0
        %1560 = vmatpush1.msra.mxu0 0.0
        %1561 = vmatprep.subr.mxu0 0.0
        %1562 = vmatpush1.msra.mxu0 0.0
        %1563 = vmatprep.subr.mxu0 0.0
        %1564 = vmatpush1.msra.mxu0 0.0
        %1565 = vmatprep.subr.mxu0 0.0
        %1566 = vmatpush1.msra.mxu0 0.0
        %1567 = vmatprep.mubr.f32.mxu0 0.0
        %1568 = vmatmul.mubr.f32.gmra.mrb[0].mxu0 %v539
        %v1569 = vpop.f32.mrb[0].mxu0
        %v1570 = vadd.f32 0.0, %v1569
        %v1571 = vpop.f32.mrb[0].mxu0
        %v1572 = vadd.f32 0.0, %v1571
        %1573 = vmatprep.mubr.f32.mxu0 0.0
        %1574 = vmatmul.mubr.f32.gmra.mrb[0].mxu0 %v542
        %v1575 = vpop.f32.mrb[0].mxu0
        %v1576 = vadd.f32 0.0, %v1575
        %v1577 = vpop.f32.mrb[0].mxu0
        %v1578 = vadd.f32 0.0, %v1577
        %1579 = vmatprep.mubr.f32.mxu0 0.0
        %1580 = vmatmul.mubr.f32.gmra.mrb[0].mxu0 %v545
        %v1581 = vpop.f32.mrb[0].mxu0
        %v1582 = vadd.f32 0.0, %v1581
        %v1583 = vpop.f32.mrb[0].mxu0
        %v1584 = vadd.f32 0.0, %v1583
        %1585 = vmatprep.mubr.f32.mxu0 0.0
        %1586 = vmatmul.mubr.f32.gmra.mrb[0].mxu0 %v548
        %v1587 = vpop.f32.mrb[0].mxu0
        %v1588 = vadd.f32 0.0, %v1587
        %v1589 = vpop.f32.mrb[0].mxu0
        %v1590 = vadd.f32 0.0, %v1589
        %1591 = vmatprep.mubr.f32.mxu0 0.0
        %1592 = vmatmul.mubr.f32.gmra.mrb[0].mxu0 %v551
        %v1593 = vpop.f32.mrb[0].mxu0
        %v1594 = vadd.f32 0.0, %v1593
        %v1595 = vpop.f32.mrb[0].mxu0
        %v1596 = vadd.f32 0.0, %v1595
        %1597 = vmatprep.mubr.f32.mxu0 0.0
        %1598 = vmatmul.mubr.f32.gmra.mrb[0].mxu0 %v554
        %v1599 = vpop.f32.mrb[0].mxu0
        %v1600 = vadd.f32 0.0, %v1599
        %v1601 = vpop.f32.mrb[0].mxu0
        %v1602 = vadd.f32 0.0, %v1601
        %1603 = vmatprep.mubr.f32.mxu0 0.0
        %1604 = vmatmul.mubr.f32.gmra.mrb[0].mxu0 %v557
        %v1605 = vpop.f32.mrb[0].mxu0
        %v1606 = vadd.f32 0.0, %v1605
        %v1607 = vpop.f32.mrb[0].mxu0
        %v1608 = vadd.f32 0.0, %v1607
        %1609 = vmatprep.mubr.f32.mxu0 0.0
        %1610 = vmatmul.mubr.f32.gmra.mrb[0].mxu0 %v560
        %v1611 = vpop.f32.mrb[0].mxu0
        %v1612 = vadd.f32 0.0, %v1611
        %v1613 = vpop.f32.mrb[0].mxu0
        %v1614 = vadd.f32 0.0, %v1613
        %1615 = vmatprep.mubr.f32.mxu0 0.0
        %1616 = vmatmul.mubr.f32.gmra.mrb[0].mxu0 %v563
        %v1617 = vpop.f32.mrb[0].mxu0
        %v1618 = vadd.f32 0.0, %v1617
        %v1619 = vpop.f32.mrb[0].mxu0
        %v1620 = vadd.f32 0.0, %v1619
        %1621 = vmatprep.mubr.f32.mxu0 0.0
        %1622 = vmatmul.mubr.f32.gmra.mrb[0].mxu0 %v566
        %v1623 = vpop.f32.mrb[0].mxu0
        %v1624 = vadd.f32 0.0, %v1623
        %v1625 = vpop.f32.mrb[0].mxu0
        %v1626 = vadd.f32 0.0, %v1625
        %1627 = vmatprep.mubr.f32.mxu0 0.0
        %1628 = vmatmul.mubr.f32.gmra.mrb[0].mxu0 %v569
        %v1629 = vpop.f32.mrb[0].mxu0
        %v1630 = vadd.f32 0.0, %v1629
        %v1631 = vpop.f32.mrb[0].mxu0
        %v1632 = vadd.f32 0.0, %v1631
        %1633 = vmatprep.mubr.f32.mxu0 0.0
        %1634 = vmatmul.mubr.f32.gmra.mrb[0].mxu0 %v572
        %v1635 = vpop.f32.mrb[0].mxu0
        %v1636 = vadd.f32 0.0, %v1635
        %v1637 = vpop.f32.mrb[0].mxu0
        %v1638 = vadd.f32 0.0, %v1637
        %1639 = vmatprep.mubr.f32.mxu0 0.0
        %1640 = vmatmul.mubr.f32.gmra.mrb[0].mxu0 %v575
        %v1641 = vpop.f32.mrb[0].mxu0
        %v1642 = vadd.f32 0.0, %v1641
        %v1643 = vpop.f32.mrb[0].mxu0
        %v1644 = vadd.f32 0.0, %v1643
        %1645 = vmatprep.mubr.f32.mxu0 0.0
        %1646 = vmatmul.mubr.f32.gmra.mrb[0].mxu0 %v578
        %v1647 = vpop.f32.mrb[0].mxu0
        %v1648 = vadd.f32 0.0, %v1647
        %v1649 = vpop.f32.mrb[0].mxu0
        %v1650 = vadd.f32 0.0, %v1649
        %1651 = vmatprep.mubr.f32.mxu0 0.0
        %1652 = vmatmul.mubr.f32.gmra.mrb[0].mxu0 %v581
        %v1653 = vpop.f32.mrb[0].mxu0
        %v1654 = vadd.f32 0.0, %v1653
        %v1655 = vpop.f32.mrb[0].mxu0
        %v1656 = vadd.f32 0.0, %v1655
        %1657 = vmatprep.mubr.f32.mxu0 0.0
        %1658 = vmatmul.mubr.f32.gmra.mrb[0].mxu0 %v584
        %v1659 = vpop.f32.mrb[0].mxu0
        %v1660 = vadd.f32 0.0, %v1659
        %v1661 = vpop.f32.mrb[0].mxu0
        %v1662 = vadd.f32 0.0, %v1661
        %1663 = vmatprep.mubr.f32.mxu0 0.0
        %1664 = vmatmul.mubr.f32.gmra.mrb[0].mxu0 %v587
        %v1665 = vpop.f32.mrb[0].mxu0
        %v1666 = vadd.f32 0.0, %v1665
        %v1667 = vpop.f32.mrb[0].mxu0
        %v1668 = vadd.f32 0.0, %v1667
        %1669 = vmatprep.mubr.f32.mxu0 0.0
        %1670 = vmatmul.mubr.f32.gmra.mrb[0].mxu0 %v590
        %v1671 = vpop.f32.mrb[0].mxu0
        %v1672 = vadd.f32 0.0, %v1671
        %v1673 = vpop.f32.mrb[0].mxu0
        %v1674 = vadd.f32 0.0, %v1673
        %1675 = vmatprep.mubr.f32.mxu0 0.0
        %1676 = vmatmul.mubr.f32.gmra.mrb[0].mxu0 %v593
        %v1677 = vpop.f32.mrb[0].mxu0
        %v1678 = vadd.f32 0.0, %v1677
        %v1679 = vpop.f32.mrb[0].mxu0
        %v1680 = vadd.f32 0.0, %v1679
        %1681 = vmatprep.mubr.f32.mxu0 0.0
        %1682 = vmatmul.mubr.f32.gmra.mrb[0].mxu0 %v596
        %v1683 = vpop.f32.mrb[0].mxu0
        %v1684 = vadd.f32 0.0, %v1683
        %v1685 = vpop.f32.mrb[0].mxu0
        %v1686 = vadd.f32 0.0, %v1685
        %1687 = vmatprep.mubr.f32.mxu0 0.0
        %1688 = vmatmul.mubr.f32.gmra.mrb[0].mxu0 %v599
        %v1689 = vpop.f32.mrb[0].mxu0
        %v1690 = vadd.f32 0.0, %v1689
        %v1691 = vpop.f32.mrb[0].mxu0
        %v1692 = vadd.f32 0.0, %v1691
        %1693 = vmatprep.mubr.f32.mxu0 0.0
        %1694 = vmatmul.mubr.f32.gmra.mrb[0].mxu0 %v602
        %v1695 = vpop.f32.mrb[0].mxu0
        %v1696 = vadd.f32 0.0, %v1695
        %v1697 = vpop.f32.mrb[0].mxu0
        %v1698 = vadd.f32 0.0, %v1697
        %1699 = vmatprep.mubr.f32.mxu0 0.0
        %1700 = vmatmul.mubr.f32.gmra.mrb[0].mxu0 %v605
        %v1701 = vpop.f32.mrb[0].mxu0
        %v1702 = vadd.f32 0.0, %v1701
        %v1703 = vpop.f32.mrb[0].mxu0
        %v1704 = vadd.f32 0.0, %v1703
        %1705 = vmatprep.mubr.f32.mxu0 0.0
        %1706 = vmatmul.mubr.f32.gmra.mrb[0].mxu0 %v1489
        %v1707 = vpop.f32.mrb[0].mxu0
        %v1708 = vadd.f32 0.0, %v1707
        %v1709 = vpop.f32.mrb[0].mxu0
        %v1710 = vadd.f32 0.0, %v1709
        %1711 = vdwg.mxu0
        %1712 = vmatprep.subr.mxu0 %v1475
        %1713 = vmatpush1.msra.mxu0 %v1474
        %1714 = vmatprep.subr.mxu0 %v1479
        %1715 = vmatpush1.msra.mxu0 %v1478
        %1716 = vmatprep.subr.mxu0 %v1483
        %1717 = vmatpush1.msra.mxu0 %v1482
        %1718 = vmatprep.subr.mxu0 %v1501
        %1719 = vmatpush1.msra.mxu0 %v1498
        %1720 = vmatprep.subr.mxu0 0.0
        %1721 = vmatpush1.msra.mxu0 0.0
        %1722 = vmatprep.subr.mxu0 0.0
        %1723 = vmatpush1.msra.mxu0 0.0
        %1724 = vmatprep.subr.mxu0 0.0
        %1725 = vmatpush1.msra.mxu0 0.0
        %1726 = vmatprep.subr.mxu0 0.0
        %1727 = vmatpush1.msra.mxu0 0.0
        %1728 = vmatprep.subr.mxu0 0.0
        %1729 = vmatpush1.msra.mxu0 0.0
        %1730 = vmatprep.subr.mxu0 0.0
        %1731 = vmatpush1.msra.mxu0 0.0
        %1732 = vmatprep.subr.mxu0 0.0
        %1733 = vmatpush1.msra.mxu0 0.0
        %1734 = vmatprep.subr.mxu0 0.0
        %1735 = vmatpush1.msra.mxu0 0.0
        %1736 = vmatprep.subr.mxu0 0.0
        %1737 = vmatpush1.msra.mxu0 0.0
        %1738 = vmatprep.subr.mxu0 0.0
        %1739 = vmatpush1.msra.mxu0 0.0
        %1740 = vmatprep.subr.mxu0 0.0
        %1741 = vmatpush1.msra.mxu0 0.0
        %1742 = vmatprep.subr.mxu0 0.0
        %1743 = vmatpush1.msra.mxu0 0.0
        %1744 = vmatprep.subr.mxu0 0.0
        %1745 = vmatpush1.msra.mxu0 0.0
        %1746 = vmatprep.subr.mxu0 0.0
        %1747 = vmatpush1.msra.mxu0 0.0
        %1748 = vmatprep.subr.mxu0 0.0
        %1749 = vmatpush1.msra.mxu0 0.0
        %1750 = vmatprep.subr.mxu0 0.0
        %1751 = vmatpush1.msra.mxu0 0.0
        %1752 = vmatprep.subr.mxu0 0.0
        %1753 = vmatpush1.msra.mxu0 0.0
        %1754 = vmatprep.subr.mxu0 0.0
        %1755 = vmatpush1.msra.mxu0 0.0
        %1756 = vmatprep.subr.mxu0 0.0
        %1757 = vmatpush1.msra.mxu0 0.0
        %1758 = vmatprep.subr.mxu0 0.0
        %1759 = vmatpush1.msra.mxu0 0.0
        %1760 = vmatprep.subr.mxu0 0.0
        %1761 = vmatpush1.msra.mxu0 0.0
        %1762 = vmatprep.subr.mxu0 0.0
        %1763 = vmatpush1.msra.mxu0 0.0
        %1764 = vmatprep.subr.mxu0 0.0
        %1765 = vmatpush1.msra.mxu0 0.0
        %1766 = vmatprep.subr.mxu0 0.0
        %1767 = vmatpush1.msra.mxu0 0.0
        %1768 = vmatprep.subr.mxu0 0.0
        %1769 = vmatpush1.msra.mxu0 0.0
        %1770 = vmatprep.subr.mxu0 0.0
        %1771 = vmatpush1.msra.mxu0 0.0
        %1772 = vmatprep.subr.mxu0 0.0
        %1773 = vmatpush1.msra.mxu0 0.0
        %1774 = vmatprep.subr.mxu0 0.0
        %1775 = vmatpush1.msra.mxu0 0.0
        %1776 = vmatprep.mubr.f32.mxu0 0.0
        %1777 = vmatmul.mubr.f32.gmra.mrb[0].mxu0 %v539
        %v1778 = vpop.f32.mrb[0].mxu0
        %v1779 = vadd.f32 0.0, %v1778
        %v1780 = vpop.f32.mrb[0].mxu0
        %v1781 = vadd.f32 0.0, %v1780
        %1782 = vmatprep.mubr.f32.mxu0 0.0
        %1783 = vmatmul.mubr.f32.gmra.mrb[0].mxu0 %v542
        %v1784 = vpop.f32.mrb[0].mxu0
        %v1785 = vadd.f32 0.0, %v1784
        %v1786 = vpop.f32.mrb[0].mxu0
        %v1787 = vadd.f32 0.0, %v1786
        %1788 = vmatprep.mubr.f32.mxu0 0.0
        %1789 = vmatmul.mubr.f32.gmra.mrb[0].mxu0 %v545
        %v1790 = vpop.f32.mrb[0].mxu0
        %v1791 = vadd.f32 0.0, %v1790
        %v1792 = vpop.f32.mrb[0].mxu0
        %v1793 = vadd.f32 0.0, %v1792
        %1794 = vmatprep.mubr.f32.mxu0 0.0
        %1795 = vmatmul.mubr.f32.gmra.mrb[0].mxu0 %v548
        %v1796 = vpop.f32.mrb[0].mxu0
        %v1797 = vadd.f32 0.0, %v1796
        %v1798 = vpop.f32.mrb[0].mxu0
        %v1799 = vadd.f32 0.0, %v1798
        %1800 = vmatprep.mubr.f32.mxu0 0.0
        %1801 = vmatmul.mubr.f32.gmra.mrb[0].mxu0 %v551
        %v1802 = vpop.f32.mrb[0].mxu0
        %v1803 = vadd.f32 0.0, %v1802
        %v1804 = vpop.f32.mrb[0].mxu0
        %v1805 = vadd.f32 0.0, %v1804
        %1806 = vmatprep.mubr.f32.mxu0 0.0
        %1807 = vmatmul.mubr.f32.gmra.mrb[0].mxu0 %v554
        %v1808 = vpop.f32.mrb[0].mxu0
        %v1809 = vadd.f32 0.0, %v1808
        %v1810 = vpop.f32.mrb[0].mxu0
        %v1811 = vadd.f32 0.0, %v1810
        %1812 = vmatprep.mubr.f32.mxu0 0.0
        %1813 = vmatmul.mubr.f32.gmra.mrb[0].mxu0 %v557
        %v1814 = vpop.f32.mrb[0].mxu0
        %v1815 = vadd.f32 0.0, %v1814
        %v1816 = vpop.f32.mrb[0].mxu0
        %v1817 = vadd.f32 0.0, %v1816
        %1818 = vmatprep.mubr.f32.mxu0 0.0
        %1819 = vmatmul.mubr.f32.gmra.mrb[0].mxu0 %v560
        %v1820 = vpop.f32.mrb[0].mxu0
        %v1821 = vadd.f32 0.0, %v1820
        %v1822 = vpop.f32.mrb[0].mxu0
        %v1823 = vadd.f32 0.0, %v1822
        %1824 = vmatprep.mubr.f32.mxu0 0.0
        %1825 = vmatmul.mubr.f32.gmra.mrb[0].mxu0 %v563
        %v1826 = vpop.f32.mrb[0].mxu0
        %v1827 = vadd.f32 0.0, %v1826
        %v1828 = vpop.f32.mrb[0].mxu0
        %v1829 = vadd.f32 0.0, %v1828
        %1830 = vmatprep.mubr.f32.mxu0 0.0
        %1831 = vmatmul.mubr.f32.gmra.mrb[0].mxu0 %v566
        %v1832 = vpop.f32.mrb[0].mxu0
        %v1833 = vadd.f32 0.0, %v1832
        %v1834 = vpop.f32.mrb[0].mxu0
        %v1835 = vadd.f32 0.0, %v1834
        %1836 = vmatprep.mubr.f32.mxu0 0.0
        %1837 = vmatmul.mubr.f32.gmra.mrb[0].mxu0 %v569
        %v1838 = vpop.f32.mrb[0].mxu0
        %v1839 = vadd.f32 0.0, %v1838
        %v1840 = vpop.f32.mrb[0].mxu0
        %v1841 = vadd.f32 0.0, %v1840
        %1842 = vmatprep.mubr.f32.mxu0 0.0
        %1843 = vmatmul.mubr.f32.gmra.mrb[0].mxu0 %v572
        %v1844 = vpop.f32.mrb[0].mxu0
        %v1845 = vadd.f32 0.0, %v1844
        %v1846 = vpop.f32.mrb[0].mxu0
        %v1847 = vadd.f32 0.0, %v1846
        %1848 = vmatprep.mubr.f32.mxu0 0.0
        %1849 = vmatmul.mubr.f32.gmra.mrb[0].mxu0 %v575
        %v1850 = vpop.f32.mrb[0].mxu0
        %v1851 = vadd.f32 0.0, %v1850
        %v1852 = vpop.f32.mrb[0].mxu0
        %v1853 = vadd.f32 0.0, %v1852
        %1854 = vmatprep.mubr.f32.mxu0 0.0
        %1855 = vmatmul.mubr.f32.gmra.mrb[0].mxu0 %v578
        %v1856 = vpop.f32.mrb[0].mxu0
        %v1857 = vadd.f32 0.0, %v1856
        %v1858 = vpop.f32.mrb[0].mxu0
        %v1859 = vadd.f32 0.0, %v1858
        %1860 = vmatprep.mubr.f32.mxu0 0.0
        %1861 = vmatmul.mubr.f32.gmra.mrb[0].mxu0 %v581
        %v1862 = vpop.f32.mrb[0].mxu0
        %v1863 = vadd.f32 0.0, %v1862
        %v1864 = vpop.f32.mrb[0].mxu0
        %v1865 = vadd.f32 0.0, %v1864
        %1866 = vmatprep.mubr.f32.mxu0 0.0
        %1867 = vmatmul.mubr.f32.gmra.mrb[0].mxu0 %v584
        %v1868 = vpop.f32.mrb[0].mxu0
        %v1869 = vadd.f32 0.0, %v1868
        %v1870 = vpop.f32.mrb[0].mxu0
        %v1871 = vadd.f32 0.0, %v1870
        %1872 = vmatprep.mubr.f32.mxu0 0.0
        %1873 = vmatmul.mubr.f32.gmra.mrb[0].mxu0 %v587
        %v1874 = vpop.f32.mrb[0].mxu0
        %v1875 = vadd.f32 0.0, %v1874
        %v1876 = vpop.f32.mrb[0].mxu0
        %v1877 = vadd.f32 0.0, %v1876
        %1878 = vmatprep.mubr.f32.mxu0 0.0
        %1879 = vmatmul.mubr.f32.gmra.mrb[0].mxu0 %v590
        %v1880 = vpop.f32.mrb[0].mxu0
        %v1881 = vadd.f32 0.0, %v1880
        %v1882 = vpop.f32.mrb[0].mxu0
        %v1883 = vadd.f32 0.0, %v1882
        %1884 = vmatprep.mubr.f32.mxu0 0.0
        %1885 = vmatmul.mubr.f32.gmra.mrb[0].mxu0 %v593
        %v1886 = vpop.f32.mrb[0].mxu0
        %v1887 = vadd.f32 0.0, %v1886
        %v1888 = vpop.f32.mrb[0].mxu0
        %v1889 = vadd.f32 0.0, %v1888
        %1890 = vmatprep.mubr.f32.mxu0 0.0
        %1891 = vmatmul.mubr.f32.gmra.mrb[0].mxu0 %v596
        %v1892 = vpop.f32.mrb[0].mxu0
        %v1893 = vadd.f32 0.0, %v1892
        %v1894 = vpop.f32.mrb[0].mxu0
        %v1895 = vadd.f32 0.0, %v1894
        %1896 = vmatprep.mubr.f32.mxu0 0.0
        %1897 = vmatmul.mubr.f32.gmra.mrb[0].mxu0 %v599
        %v1898 = vpop.f32.mrb[0].mxu0
        %v1899 = vadd.f32 0.0, %v1898
        %v1900 = vpop.f32.mrb[0].mxu0
        %v1901 = vadd.f32 0.0, %v1900
        %1902 = vmatprep.mubr.f32.mxu0 0.0
        %1903 = vmatmul.mubr.f32.gmra.mrb[0].mxu0 %v602
        %v1904 = vpop.f32.mrb[0].mxu0
        %v1905 = vadd.f32 0.0, %v1904
        %v1906 = vpop.f32.mrb[0].mxu0
        %v1907 = vadd.f32 0.0, %v1906
        %1908 = vmatprep.mubr.f32.mxu0 0.0
        %1909 = vmatmul.mubr.f32.gmra.mrb[0].mxu0 %v605
        %v1910 = vpop.f32.mrb[0].mxu0
        %v1911 = vadd.f32 0.0, %v1910
        %v1912 = vpop.f32.mrb[0].mxu0
        %v1913 = vadd.f32 0.0, %v1912
        %1914 = vmatprep.mubr.f32.mxu0 0.0
        %1915 = vmatmul.mubr.f32.gmra.mrb[0].mxu0 %v1489
        %v1916 = vpop.f32.mrb[0].mxu0
        %v1917 = vadd.f32 0.0, %v1916
        %v1918 = vpop.f32.mrb[0].mxu0
        %v1919 = vadd.f32 0.0, %v1918
        %1920 = vdwg.mxu0
        %v1921 = vadd.f32 %v1120, %v1570
        %v1922 = vadd.f32 %v1122, %v1572
        %v1923 = vadd.f32 %v1329, %v1779
        %v1924 = vadd.f32 %v1331, %v1781
        %v1925 = vadd.f32 %v1126, %v1576
        %v1926 = vadd.f32 %v1128, %v1578
        %v1927 = vadd.f32 %v1335, %v1785
        %v1928 = vadd.f32 %v1337, %v1787
        %v1929 = vadd.f32 %v1132, %v1582
        %v1930 = vadd.f32 %v1134, %v1584
        %v1931 = vadd.f32 %v1341, %v1791
        %v1932 = vadd.f32 %v1343, %v1793
        %v1933 = vadd.f32 %v1138, %v1588
        %v1934 = vadd.f32 %v1140, %v1590
        %v1935 = vadd.f32 %v1347, %v1797
        %v1936 = vadd.f32 %v1349, %v1799
        %v1937 = vadd.f32 %v1144, %v1594
        %v1938 = vadd.f32 %v1146, %v1596
        %v1939 = vadd.f32 %v1353, %v1803
        %v1940 = vadd.f32 %v1355, %v1805
        %v1941 = vadd.f32 %v1150, %v1600
        %v1942 = vadd.f32 %v1152, %v1602
        %v1943 = vadd.f32 %v1359, %v1809
        %v1944 = vadd.f32 %v1361, %v1811
        %v1945 = vadd.f32 %v1156, %v1606
        %v1946 = vadd.f32 %v1158, %v1608
        %v1947 = vadd.f32 %v1365, %v1815
        %v1948 = vadd.f32 %v1367, %v1817
        %v1949 = vadd.f32 %v1162, %v1612
        %v1950 = vadd.f32 %v1164, %v1614
        %v1951 = vadd.f32 %v1371, %v1821
        %v1952 = vadd.f32 %v1373, %v1823
        %v1953 = vadd.f32 %v1168, %v1618
        %v1954 = vadd.f32 %v1170, %v1620
        %v1955 = vadd.f32 %v1377, %v1827
        %v1956 = vadd.f32 %v1379, %v1829
        %v1957 = vadd.f32 %v1174, %v1624
        %v1958 = vadd.f32 %v1176, %v1626
        %v1959 = vadd.f32 %v1383, %v1833
        %v1960 = vadd.f32 %v1385, %v1835
        %v1961 = vadd.f32 %v1180, %v1630
        %v1962 = vadd.f32 %v1182, %v1632
        %v1963 = vadd.f32 %v1389, %v1839
        %v1964 = vadd.f32 %v1391, %v1841
        %v1965 = vadd.f32 %v1186, %v1636
        %v1966 = vadd.f32 %v1188, %v1638
        %v1967 = vadd.f32 %v1395, %v1845
        %v1968 = vadd.f32 %v1397, %v1847
        %v1969 = vadd.f32 %v1192, %v1642
        %v1970 = vadd.f32 %v1194, %v1644
        %v1971 = vadd.f32 %v1401, %v1851
        %v1972 = vadd.f32 %v1403, %v1853
        %v1973 = vadd.f32 %v1198, %v1648
        %v1974 = vadd.f32 %v1200, %v1650
        %v1975 = vadd.f32 %v1407, %v1857
        %v1976 = vadd.f32 %v1409, %v1859
        %v1977 = vadd.f32 %v1204, %v1654
        %v1978 = vadd.f32 %v1206, %v1656
        %v1979 = vadd.f32 %v1413, %v1863
        %v1980 = vadd.f32 %v1415, %v1865
        %v1981 = vadd.f32 %v1210, %v1660
        %v1982 = vadd.f32 %v1212, %v1662
        %v1983 = vadd.f32 %v1419, %v1869
        %v1984 = vadd.f32 %v1421, %v1871
        %v1985 = vadd.f32 %v1216, %v1666
        %v1986 = vadd.f32 %v1218, %v1668
        %v1987 = vadd.f32 %v1425, %v1875
        %v1988 = vadd.f32 %v1427, %v1877
        %v1989 = vadd.f32 %v1222, %v1672
        %v1990 = vadd.f32 %v1224, %v1674
        %v1991 = vadd.f32 %v1431, %v1881
        %v1992 = vadd.f32 %v1433, %v1883
        %v1993 = vadd.f32 %v1228, %v1678
        %v1994 = vadd.f32 %v1230, %v1680
        %v1995 = vadd.f32 %v1437, %v1887
        %v1996 = vadd.f32 %v1439, %v1889
        %v1997 = vadd.f32 %v1234, %v1684
        %v1998 = vadd.f32 %v1236, %v1686
        %v1999 = vadd.f32 %v1443, %v1893
        %v2000 = vadd.f32 %v1445, %v1895
        %v2001 = vadd.f32 %v1240, %v1690
        %v2002 = vadd.f32 %v1242, %v1692
        %v2003 = vadd.f32 %v1449, %v1899
        %v2004 = vadd.f32 %v1451, %v1901
        %v2005 = vadd.f32 %v1246, %v1696
        %v2006 = vadd.f32 %v1248, %v1698
        %v2007 = vadd.f32 %v1455, %v1905
        %v2008 = vadd.f32 %v1457, %v1907
        %v2009 = vadd.f32 %v1252, %v1702
        %v2010 = vadd.f32 %v1254, %v1704
        %v2011 = vadd.f32 %v1461, %v1911
        %v2012 = vadd.f32 %v1463, %v1913
        %v2013 = vadd.f32 %v1258, %v1708
        %v2014 = vadd.f32 %v1260, %v1710
        %v2015 = vadd.f32 %v1467, %v1917
        %v2016 = vadd.f32 %v1469, %v1919
        %s2017 = scalar_lea.vmem %s1, 384
        %v2018 = vld [vmem:[%s2017] sm:$0xff]
        %v2019 = vld [vmem:[%s2017 + $0x8] sm:$0xff]
        %v2020 = vld [vmem:[%s2017 + $0x10] sm:$0xff]
        %v2021 = vld [vmem:[%s2017 + $0x18] sm:$0xff]
        %v2022 = vld [vmem:[%s2017 + $0x20] sm:$0xff]
        %v2023 = vld [vmem:[%s2017 + $0x28] sm:$0xff]
        %v2024 = vld [vmem:[%s2017 + $0x30] sm:$0xff]
        %v2025 = vld [vmem:[%s2017 + $0x38] sm:$0xff]
        %v2026 = vld [vmem:[%s2017 + $0x40] sm:$0xff]
        %v2027 = vld [vmem:[%s2017 + $0x48] sm:$0xff]
        %v2028 = vld [vmem:[%s2017 + $0x50] sm:$0xff]
        %v2029 = vld [vmem:[%s2017 + $0x58] sm:$0xff]
        %v2030 = vld [vmem:[%s2017 + $0x60] sm:$0xf]
        %v2031 = vld [vmem:[%s2017 + $0x68] sm:$0xf]
        %v2032 = vld [vmem:[%s2017 + $0x70] sm:$0xf]
        %v2033 = vld [vmem:[%s2017 + $0x78] sm:$0xf]
        %v2035 = vsel %vm534, %v499, 0
        %v2038 = vsel %vm607, %v2030, 0
        %v2041 = vsel %vm607, %v2031, 0
        %v2044 = vsel %vm607, %v2032, 0
        %v2047 = vsel %vm607, %v2033, 0
        %2049 = vmatprep.subr.mxu0 %v2019
        %2050 = vmatpush1.msra.mxu0 %v2018
        %2051 = vmatprep.subr.mxu0 %v2023
        %2052 = vmatpush1.msra.mxu0 %v2022
        %2053 = vmatprep.subr.mxu0 %v2027
        %2054 = vmatpush1.msra.mxu0 %v2026
        %2055 = vmatprep.subr.mxu0 %v2041
        %2056 = vmatpush1.msra.mxu0 %v2038
        %2057 = vmatprep.subr.mxu0 0.0
        %2058 = vmatpush1.msra.mxu0 0.0
        %2059 = vmatprep.subr.mxu0 0.0
        %2060 = vmatpush1.msra.mxu0 0.0
        %2061 = vmatprep.subr.mxu0 0.0
        %2062 = vmatpush1.msra.mxu0 0.0
        %2063 = vmatprep.subr.mxu0 0.0
        %2064 = vmatpush1.msra.mxu0 0.0
        %2065 = vmatprep.subr.mxu0 0.0
        %2066 = vmatpush1.msra.mxu0 0.0
        %2067 = vmatprep.subr.mxu0 0.0
        %2068 = vmatpush1.msra.mxu0 0.0
        %2069 = vmatprep.subr.mxu0 0.0
        %2070 = vmatpush1.msra.mxu0 0.0
        %2071 = vmatprep.subr.mxu0 0.0
        %2072 = vmatpush1.msra.mxu0 0.0
        %2073 = vmatprep.subr.mxu0 0.0
        %2074 = vmatpush1.msra.mxu0 0.0
        %2075 = vmatprep.subr.mxu0 0.0
        %2076 = vmatpush1.msra.mxu0 0.0
        %2077 = vmatprep.subr.mxu0 0.0
        %2078 = vmatpush1.msra.mxu0 0.0
        %2079 = vmatprep.subr.mxu0 0.0
        %2080 = vmatpush1.msra.mxu0 0.0
        %2081 = vmatprep.subr.mxu0 0.0
        %2082 = vmatpush1.msra.mxu0 0.0
        %2083 = vmatprep.subr.mxu0 0.0
        %2084 = vmatpush1.msra.mxu0 0.0
        %2085 = vmatprep.subr.mxu0 0.0
        %2086 = vmatpush1.msra.mxu0 0.0
        %2087 = vmatprep.subr.mxu0 0.0
        %2088 = vmatpush1.msra.mxu0 0.0
        %2089 = vmatprep.subr.mxu0 0.0
        %2090 = vmatpush1.msra.mxu0 0.0
        %2091 = vmatprep.subr.mxu0 0.0
        %2092 = vmatpush1.msra.mxu0 0.0
        %2093 = vmatprep.subr.mxu0 0.0
        %2094 = vmatpush1.msra.mxu0 0.0
        %2095 = vmatprep.subr.mxu0 0.0
        %2096 = vmatpush1.msra.mxu0 0.0
        %2097 = vmatprep.subr.mxu0 0.0
        %2098 = vmatpush1.msra.mxu0 0.0
        %2099 = vmatprep.subr.mxu0 0.0
        %2100 = vmatpush1.msra.mxu0 0.0
        %2101 = vmatprep.subr.mxu0 0.0
        %2102 = vmatpush1.msra.mxu0 0.0
        %2103 = vmatprep.subr.mxu0 0.0
        %2104 = vmatpush1.msra.mxu0 0.0
        %2105 = vmatprep.subr.mxu0 0.0
        %2106 = vmatpush1.msra.mxu0 0.0
        %2107 = vmatprep.subr.mxu0 0.0
        %2108 = vmatpush1.msra.mxu0 0.0
        %2109 = vmatprep.subr.mxu0 0.0
        %2110 = vmatpush1.msra.mxu0 0.0
        %2111 = vmatprep.subr.mxu0 0.0
        %2112 = vmatpush1.msra.mxu0 0.0
        %2113 = vmatprep.mubr.f32.mxu0 0.0
        %2114 = vmatmul.mubr.f32.gmra.mrb[0].mxu0 %v542
        %v2115 = vpop.f32.mrb[0].mxu0
        %v2116 = vadd.f32 0.0, %v2115
        %v2117 = vpop.f32.mrb[0].mxu0
        %v2118 = vadd.f32 0.0, %v2117
        %2119 = vmatprep.mubr.f32.mxu0 0.0
        %2120 = vmatmul.mubr.f32.gmra.mrb[0].mxu0 %v545
        %v2121 = vpop.f32.mrb[0].mxu0
        %v2122 = vadd.f32 0.0, %v2121
        %v2123 = vpop.f32.mrb[0].mxu0
        %v2124 = vadd.f32 0.0, %v2123
        %2125 = vmatprep.mubr.f32.mxu0 0.0
        %2126 = vmatmul.mubr.f32.gmra.mrb[0].mxu0 %v548
        %v2127 = vpop.f32.mrb[0].mxu0
        %v2128 = vadd.f32 0.0, %v2127
        %v2129 = vpop.f32.mrb[0].mxu0
        %v2130 = vadd.f32 0.0, %v2129
        %2131 = vmatprep.mubr.f32.mxu0 0.0
        %2132 = vmatmul.mubr.f32.gmra.mrb[0].mxu0 %v551
        %v2133 = vpop.f32.mrb[0].mxu0
        %v2134 = vadd.f32 0.0, %v2133
        %v2135 = vpop.f32.mrb[0].mxu0
        %v2136 = vadd.f32 0.0, %v2135
        %2137 = vmatprep.mubr.f32.mxu0 0.0
        %2138 = vmatmul.mubr.f32.gmra.mrb[0].mxu0 %v554
        %v2139 = vpop.f32.mrb[0].mxu0
        %v2140 = vadd.f32 0.0, %v2139
        %v2141 = vpop.f32.mrb[0].mxu0
        %v2142 = vadd.f32 0.0, %v2141
        %2143 = vmatprep.mubr.f32.mxu0 0.0
        %2144 = vmatmul.mubr.f32.gmra.mrb[0].mxu0 %v557
        %v2145 = vpop.f32.mrb[0].mxu0
        %v2146 = vadd.f32 0.0, %v2145
        %v2147 = vpop.f32.mrb[0].mxu0
        %v2148 = vadd.f32 0.0, %v2147
        %2149 = vmatprep.mubr.f32.mxu0 0.0
        %2150 = vmatmul.mubr.f32.gmra.mrb[0].mxu0 %v560
        %v2151 = vpop.f32.mrb[0].mxu0
        %v2152 = vadd.f32 0.0, %v2151
        %v2153 = vpop.f32.mrb[0].mxu0
        %v2154 = vadd.f32 0.0, %v2153
        %2155 = vmatprep.mubr.f32.mxu0 0.0
        %2156 = vmatmul.mubr.f32.gmra.mrb[0].mxu0 %v563
        %v2157 = vpop.f32.mrb[0].mxu0
        %v2158 = vadd.f32 0.0, %v2157
        %v2159 = vpop.f32.mrb[0].mxu0
        %v2160 = vadd.f32 0.0, %v2159
        %2161 = vmatprep.mubr.f32.mxu0 0.0
        %2162 = vmatmul.mubr.f32.gmra.mrb[0].mxu0 %v566
        %v2163 = vpop.f32.mrb[0].mxu0
        %v2164 = vadd.f32 0.0, %v2163
        %v2165 = vpop.f32.mrb[0].mxu0
        %v2166 = vadd.f32 0.0, %v2165
        %2167 = vmatprep.mubr.f32.mxu0 0.0
        %2168 = vmatmul.mubr.f32.gmra.mrb[0].mxu0 %v569
        %v2169 = vpop.f32.mrb[0].mxu0
        %v2170 = vadd.f32 0.0, %v2169
        %v2171 = vpop.f32.mrb[0].mxu0
        %v2172 = vadd.f32 0.0, %v2171
        %2173 = vmatprep.mubr.f32.mxu0 0.0
        %2174 = vmatmul.mubr.f32.gmra.mrb[0].mxu0 %v572
        %v2175 = vpop.f32.mrb[0].mxu0
        %v2176 = vadd.f32 0.0, %v2175
        %v2177 = vpop.f32.mrb[0].mxu0
        %v2178 = vadd.f32 0.0, %v2177
        %2179 = vmatprep.mubr.f32.mxu0 0.0
        %2180 = vmatmul.mubr.f32.gmra.mrb[0].mxu0 %v575
        %v2181 = vpop.f32.mrb[0].mxu0
        %v2182 = vadd.f32 0.0, %v2181
        %v2183 = vpop.f32.mrb[0].mxu0
        %v2184 = vadd.f32 0.0, %v2183
        %2185 = vmatprep.mubr.f32.mxu0 0.0
        %2186 = vmatmul.mubr.f32.gmra.mrb[0].mxu0 %v578
        %v2187 = vpop.f32.mrb[0].mxu0
        %v2188 = vadd.f32 0.0, %v2187
        %v2189 = vpop.f32.mrb[0].mxu0
        %v2190 = vadd.f32 0.0, %v2189
        %2191 = vmatprep.mubr.f32.mxu0 0.0
        %2192 = vmatmul.mubr.f32.gmra.mrb[0].mxu0 %v581
        %v2193 = vpop.f32.mrb[0].mxu0
        %v2194 = vadd.f32 0.0, %v2193
        %v2195 = vpop.f32.mrb[0].mxu0
        %v2196 = vadd.f32 0.0, %v2195
        %2197 = vmatprep.mubr.f32.mxu0 0.0
        %2198 = vmatmul.mubr.f32.gmra.mrb[0].mxu0 %v584
        %v2199 = vpop.f32.mrb[0].mxu0
        %v2200 = vadd.f32 0.0, %v2199
        %v2201 = vpop.f32.mrb[0].mxu0
        %v2202 = vadd.f32 0.0, %v2201
        %2203 = vmatprep.mubr.f32.mxu0 0.0
        %2204 = vmatmul.mubr.f32.gmra.mrb[0].mxu0 %v587
        %v2205 = vpop.f32.mrb[0].mxu0
        %v2206 = vadd.f32 0.0, %v2205
        %v2207 = vpop.f32.mrb[0].mxu0
        %v2208 = vadd.f32 0.0, %v2207
        %2209 = vmatprep.mubr.f32.mxu0 0.0
        %2210 = vmatmul.mubr.f32.gmra.mrb[0].mxu0 %v590
        %v2211 = vpop.f32.mrb[0].mxu0
        %v2212 = vadd.f32 0.0, %v2211
        %v2213 = vpop.f32.mrb[0].mxu0
        %v2214 = vadd.f32 0.0, %v2213
        %2215 = vmatprep.mubr.f32.mxu0 0.0
        %2216 = vmatmul.mubr.f32.gmra.mrb[0].mxu0 %v593
        %v2217 = vpop.f32.mrb[0].mxu0
        %v2218 = vadd.f32 0.0, %v2217
        %v2219 = vpop.f32.mrb[0].mxu0
        %v2220 = vadd.f32 0.0, %v2219
        %2221 = vmatprep.mubr.f32.mxu0 0.0
        %2222 = vmatmul.mubr.f32.gmra.mrb[0].mxu0 %v596
        %v2223 = vpop.f32.mrb[0].mxu0
        %v2224 = vadd.f32 0.0, %v2223
        %v2225 = vpop.f32.mrb[0].mxu0
        %v2226 = vadd.f32 0.0, %v2225
        %2227 = vmatprep.mubr.f32.mxu0 0.0
        %2228 = vmatmul.mubr.f32.gmra.mrb[0].mxu0 %v599
        %v2229 = vpop.f32.mrb[0].mxu0
        %v2230 = vadd.f32 0.0, %v2229
        %v2231 = vpop.f32.mrb[0].mxu0
        %v2232 = vadd.f32 0.0, %v2231
        %2233 = vmatprep.mubr.f32.mxu0 0.0
        %2234 = vmatmul.mubr.f32.gmra.mrb[0].mxu0 %v602
        %v2235 = vpop.f32.mrb[0].mxu0
        %v2236 = vadd.f32 0.0, %v2235
        %v2237 = vpop.f32.mrb[0].mxu0
        %v2238 = vadd.f32 0.0, %v2237
        %2239 = vmatprep.mubr.f32.mxu0 0.0
        %2240 = vmatmul.mubr.f32.gmra.mrb[0].mxu0 %v605
        %v2241 = vpop.f32.mrb[0].mxu0
        %v2242 = vadd.f32 0.0, %v2241
        %v2243 = vpop.f32.mrb[0].mxu0
        %v2244 = vadd.f32 0.0, %v2243
        %2245 = vmatprep.mubr.f32.mxu0 0.0
        %2246 = vmatmul.mubr.f32.gmra.mrb[0].mxu0 %v1489
        %v2247 = vpop.f32.mrb[0].mxu0
        %v2248 = vadd.f32 0.0, %v2247
        %v2249 = vpop.f32.mrb[0].mxu0
        %v2250 = vadd.f32 0.0, %v2249
        %2251 = vmatprep.mubr.f32.mxu0 0.0
        %2252 = vmatmul.mubr.f32.gmra.mrb[0].mxu0 %v2035
        %v2253 = vpop.f32.mrb[0].mxu0
        %v2254 = vadd.f32 0.0, %v2253
        %v2255 = vpop.f32.mrb[0].mxu0
        %v2256 = vadd.f32 0.0, %v2255
        %2257 = vdwg.mxu0
        %2258 = vmatprep.subr.mxu0 %v2021
        %2259 = vmatpush1.msra.mxu0 %v2020
        %2260 = vmatprep.subr.mxu0 %v2025
        %2261 = vmatpush1.msra.mxu0 %v2024
        %2262 = vmatprep.subr.mxu0 %v2029
        %2263 = vmatpush1.msra.mxu0 %v2028
        %2264 = vmatprep.subr.mxu0 %v2047
        %2265 = vmatpush1.msra.mxu0 %v2044
        %2266 = vmatprep.subr.mxu0 0.0
        %2267 = vmatpush1.msra.mxu0 0.0
        %2268 = vmatprep.subr.mxu0 0.0
        %2269 = vmatpush1.msra.mxu0 0.0
        %2270 = vmatprep.subr.mxu0 0.0
        %2271 = vmatpush1.msra.mxu0 0.0
        %2272 = vmatprep.subr.mxu0 0.0
        %2273 = vmatpush1.msra.mxu0 0.0
        %2274 = vmatprep.subr.mxu0 0.0
        %2275 = vmatpush1.msra.mxu0 0.0
        %2276 = vmatprep.subr.mxu0 0.0
        %2277 = vmatpush1.msra.mxu0 0.0
        %2278 = vmatprep.subr.mxu0 0.0
        %2279 = vmatpush1.msra.mxu0 0.0
        %2280 = vmatprep.subr.mxu0 0.0
        %2281 = vmatpush1.msra.mxu0 0.0
        %2282 = vmatprep.subr.mxu0 0.0
        %2283 = vmatpush1.msra.mxu0 0.0
        %2284 = vmatprep.subr.mxu0 0.0
        %2285 = vmatpush1.msra.mxu0 0.0
        %2286 = vmatprep.subr.mxu0 0.0
        %2287 = vmatpush1.msra.mxu0 0.0
        %2288 = vmatprep.subr.mxu0 0.0
        %2289 = vmatpush1.msra.mxu0 0.0
        %2290 = vmatprep.subr.mxu0 0.0
        %2291 = vmatpush1.msra.mxu0 0.0
        %2292 = vmatprep.subr.mxu0 0.0
        %2293 = vmatpush1.msra.mxu0 0.0
        %2294 = vmatprep.subr.mxu0 0.0
        %2295 = vmatpush1.msra.mxu0 0.0
        %2296 = vmatprep.subr.mxu0 0.0
        %2297 = vmatpush1.msra.mxu0 0.0
        %2298 = vmatprep.subr.mxu0 0.0
        %2299 = vmatpush1.msra.mxu0 0.0
        %2300 = vmatprep.subr.mxu0 0.0
        %2301 = vmatpush1.msra.mxu0 0.0
        %2302 = vmatprep.subr.mxu0 0.0
        %2303 = vmatpush1.msra.mxu0 0.0
        %2304 = vmatprep.subr.mxu0 0.0
        %2305 = vmatpush1.msra.mxu0 0.0
        %2306 = vmatprep.subr.mxu0 0.0
        %2307 = vmatpush1.msra.mxu0 0.0
        %2308 = vmatprep.subr.mxu0 0.0
        %2309 = vmatpush1.msra.mxu0 0.0
        %2310 = vmatprep.subr.mxu0 0.0
        %2311 = vmatpush1.msra.mxu0 0.0
        %2312 = vmatprep.subr.mxu0 0.0
        %2313 = vmatpush1.msra.mxu0 0.0
        %2314 = vmatprep.subr.mxu0 0.0
        %2315 = vmatpush1.msra.mxu0 0.0
        %2316 = vmatprep.subr.mxu0 0.0
        %2317 = vmatpush1.msra.mxu0 0.0
        %2318 = vmatprep.subr.mxu0 0.0
        %2319 = vmatpush1.msra.mxu0 0.0
        %2320 = vmatprep.subr.mxu0 0.0
        %2321 = vmatpush1.msra.mxu0 0.0
        %2322 = vmatprep.mubr.f32.mxu0 0.0
        %2323 = vmatmul.mubr.f32.gmra.mrb[0].mxu0 %v542
        %v2324 = vpop.f32.mrb[0].mxu0
        %v2325 = vadd.f32 0.0, %v2324
        %v2326 = vpop.f32.mrb[0].mxu0
        %v2327 = vadd.f32 0.0, %v2326
        %2328 = vmatprep.mubr.f32.mxu0 0.0
        %2329 = vmatmul.mubr.f32.gmra.mrb[0].mxu0 %v545
        %v2330 = vpop.f32.mrb[0].mxu0
        %v2331 = vadd.f32 0.0, %v2330
        %v2332 = vpop.f32.mrb[0].mxu0
        %v2333 = vadd.f32 0.0, %v2332
        %2334 = vmatprep.mubr.f32.mxu0 0.0
        %2335 = vmatmul.mubr.f32.gmra.mrb[0].mxu0 %v548
        %v2336 = vpop.f32.mrb[0].mxu0
        %v2337 = vadd.f32 0.0, %v2336
        %v2338 = vpop.f32.mrb[0].mxu0
        %v2339 = vadd.f32 0.0, %v2338
        %2340 = vmatprep.mubr.f32.mxu0 0.0
        %2341 = vmatmul.mubr.f32.gmra.mrb[0].mxu0 %v551
        %v2342 = vpop.f32.mrb[0].mxu0
        %v2343 = vadd.f32 0.0, %v2342
        %v2344 = vpop.f32.mrb[0].mxu0
        %v2345 = vadd.f32 0.0, %v2344
        %2346 = vmatprep.mubr.f32.mxu0 0.0
        %2347 = vmatmul.mubr.f32.gmra.mrb[0].mxu0 %v554
        %v2348 = vpop.f32.mrb[0].mxu0
        %v2349 = vadd.f32 0.0, %v2348
        %v2350 = vpop.f32.mrb[0].mxu0
        %v2351 = vadd.f32 0.0, %v2350
        %2352 = vmatprep.mubr.f32.mxu0 0.0
        %2353 = vmatmul.mubr.f32.gmra.mrb[0].mxu0 %v557
        %v2354 = vpop.f32.mrb[0].mxu0
        %v2355 = vadd.f32 0.0, %v2354
        %v2356 = vpop.f32.mrb[0].mxu0
        %v2357 = vadd.f32 0.0, %v2356
        %2358 = vmatprep.mubr.f32.mxu0 0.0
        %2359 = vmatmul.mubr.f32.gmra.mrb[0].mxu0 %v560
        %v2360 = vpop.f32.mrb[0].mxu0
        %v2361 = vadd.f32 0.0, %v2360
        %v2362 = vpop.f32.mrb[0].mxu0
        %v2363 = vadd.f32 0.0, %v2362
        %2364 = vmatprep.mubr.f32.mxu0 0.0
        %2365 = vmatmul.mubr.f32.gmra.mrb[0].mxu0 %v563
        %v2366 = vpop.f32.mrb[0].mxu0
        %v2367 = vadd.f32 0.0, %v2366
        %v2368 = vpop.f32.mrb[0].mxu0
        %v2369 = vadd.f32 0.0, %v2368
        %2370 = vmatprep.mubr.f32.mxu0 0.0
        %2371 = vmatmul.mubr.f32.gmra.mrb[0].mxu0 %v566
        %v2372 = vpop.f32.mrb[0].mxu0
        %v2373 = vadd.f32 0.0, %v2372
        %v2374 = vpop.f32.mrb[0].mxu0
        %v2375 = vadd.f32 0.0, %v2374
        %2376 = vmatprep.mubr.f32.mxu0 0.0
        %2377 = vmatmul.mubr.f32.gmra.mrb[0].mxu0 %v569
        %v2378 = vpop.f32.mrb[0].mxu0
        %v2379 = vadd.f32 0.0, %v2378
        %v2380 = vpop.f32.mrb[0].mxu0
        %v2381 = vadd.f32 0.0, %v2380
        %2382 = vmatprep.mubr.f32.mxu0 0.0
        %2383 = vmatmul.mubr.f32.gmra.mrb[0].mxu0 %v572
        %v2384 = vpop.f32.mrb[0].mxu0
        %v2385 = vadd.f32 0.0, %v2384
        %v2386 = vpop.f32.mrb[0].mxu0
        %v2387 = vadd.f32 0.0, %v2386
        %2388 = vmatprep.mubr.f32.mxu0 0.0
        %2389 = vmatmul.mubr.f32.gmra.mrb[0].mxu0 %v575
        %v2390 = vpop.f32.mrb[0].mxu0
        %v2391 = vadd.f32 0.0, %v2390
        %v2392 = vpop.f32.mrb[0].mxu0
        %v2393 = vadd.f32 0.0, %v2392
        %2394 = vmatprep.mubr.f32.mxu0 0.0
        %2395 = vmatmul.mubr.f32.gmra.mrb[0].mxu0 %v578
        %v2396 = vpop.f32.mrb[0].mxu0
        %v2397 = vadd.f32 0.0, %v2396
        %v2398 = vpop.f32.mrb[0].mxu0
        %v2399 = vadd.f32 0.0, %v2398
        %2400 = vmatprep.mubr.f32.mxu0 0.0
        %2401 = vmatmul.mubr.f32.gmra.mrb[0].mxu0 %v581
        %v2402 = vpop.f32.mrb[0].mxu0
        %v2403 = vadd.f32 0.0, %v2402
        %v2404 = vpop.f32.mrb[0].mxu0
        %v2405 = vadd.f32 0.0, %v2404
        %2406 = vmatprep.mubr.f32.mxu0 0.0
        %2407 = vmatmul.mubr.f32.gmra.mrb[0].mxu0 %v584
        %v2408 = vpop.f32.mrb[0].mxu0
        %v2409 = vadd.f32 0.0, %v2408
        %v2410 = vpop.f32.mrb[0].mxu0
        %v2411 = vadd.f32 0.0, %v2410
        %2412 = vmatprep.mubr.f32.mxu0 0.0
        %2413 = vmatmul.mubr.f32.gmra.mrb[0].mxu0 %v587
        %v2414 = vpop.f32.mrb[0].mxu0
        %v2415 = vadd.f32 0.0, %v2414
        %v2416 = vpop.f32.mrb[0].mxu0
        %v2417 = vadd.f32 0.0, %v2416
        %2418 = vmatprep.mubr.f32.mxu0 0.0
        %2419 = vmatmul.mubr.f32.gmra.mrb[0].mxu0 %v590
        %v2420 = vpop.f32.mrb[0].mxu0
        %v2421 = vadd.f32 0.0, %v2420
        %v2422 = vpop.f32.mrb[0].mxu0
        %v2423 = vadd.f32 0.0, %v2422
        %2424 = vmatprep.mubr.f32.mxu0 0.0
        %2425 = vmatmul.mubr.f32.gmra.mrb[0].mxu0 %v593
        %v2426 = vpop.f32.mrb[0].mxu0
        %v2427 = vadd.f32 0.0, %v2426
        %v2428 = vpop.f32.mrb[0].mxu0
        %v2429 = vadd.f32 0.0, %v2428
        %2430 = vmatprep.mubr.f32.mxu0 0.0
        %2431 = vmatmul.mubr.f32.gmra.mrb[0].mxu0 %v596
        %v2432 = vpop.f32.mrb[0].mxu0
        %v2433 = vadd.f32 0.0, %v2432
        %v2434 = vpop.f32.mrb[0].mxu0
        %v2435 = vadd.f32 0.0, %v2434
        %2436 = vmatprep.mubr.f32.mxu0 0.0
        %2437 = vmatmul.mubr.f32.gmra.mrb[0].mxu0 %v599
        %v2438 = vpop.f32.mrb[0].mxu0
        %v2439 = vadd.f32 0.0, %v2438
        %v2440 = vpop.f32.mrb[0].mxu0
        %v2441 = vadd.f32 0.0, %v2440
        %2442 = vmatprep.mubr.f32.mxu0 0.0
        %2443 = vmatmul.mubr.f32.gmra.mrb[0].mxu0 %v602
        %v2444 = vpop.f32.mrb[0].mxu0
        %v2445 = vadd.f32 0.0, %v2444
        %v2446 = vpop.f32.mrb[0].mxu0
        %v2447 = vadd.f32 0.0, %v2446
        %2448 = vmatprep.mubr.f32.mxu0 0.0
        %2449 = vmatmul.mubr.f32.gmra.mrb[0].mxu0 %v605
        %v2450 = vpop.f32.mrb[0].mxu0
        %v2451 = vadd.f32 0.0, %v2450
        %v2452 = vpop.f32.mrb[0].mxu0
        %v2453 = vadd.f32 0.0, %v2452
        %2454 = vmatprep.mubr.f32.mxu0 0.0
        %2455 = vmatmul.mubr.f32.gmra.mrb[0].mxu0 %v1489
        %v2456 = vpop.f32.mrb[0].mxu0
        %v2457 = vadd.f32 0.0, %v2456
        %v2458 = vpop.f32.mrb[0].mxu0
        %v2459 = vadd.f32 0.0, %v2458
        %2460 = vmatprep.mubr.f32.mxu0 0.0
        %2461 = vmatmul.mubr.f32.gmra.mrb[0].mxu0 %v2035
        %v2462 = vpop.f32.mrb[0].mxu0
        %v2463 = vadd.f32 0.0, %v2462
        %v2464 = vpop.f32.mrb[0].mxu0
        %v2465 = vadd.f32 0.0, %v2464
        %2466 = vdwg.mxu0
        %v2467 = vadd.f32 %v1921, %v2116
        %v2468 = vadd.f32 %v1922, %v2118
        %v2469 = vadd.f32 %v1923, %v2325
        %v2470 = vadd.f32 %v1924, %v2327
        %v2471 = vadd.f32 %v1925, %v2122
        %v2472 = vadd.f32 %v1926, %v2124
        %v2473 = vadd.f32 %v1927, %v2331
        %v2474 = vadd.f32 %v1928, %v2333
        %v2475 = vadd.f32 %v1929, %v2128
        %v2476 = vadd.f32 %v1930, %v2130
        %v2477 = vadd.f32 %v1931, %v2337
        %v2478 = vadd.f32 %v1932, %v2339
        %v2479 = vadd.f32 %v1933, %v2134
        %v2480 = vadd.f32 %v1934, %v2136
        %v2481 = vadd.f32 %v1935, %v2343
        %v2482 = vadd.f32 %v1936, %v2345
        %v2483 = vadd.f32 %v1937, %v2140
        %v2484 = vadd.f32 %v1938, %v2142
        %v2485 = vadd.f32 %v1939, %v2349
        %v2486 = vadd.f32 %v1940, %v2351
        %v2487 = vadd.f32 %v1941, %v2146
        %v2488 = vadd.f32 %v1942, %v2148
        %v2489 = vadd.f32 %v1943, %v2355
        %v2490 = vadd.f32 %v1944, %v2357
        %v2491 = vadd.f32 %v1945, %v2152
        %v2492 = vadd.f32 %v1946, %v2154
        %v2493 = vadd.f32 %v1947, %v2361
        %v2494 = vadd.f32 %v1948, %v2363
        %v2495 = vadd.f32 %v1949, %v2158
        %v2496 = vadd.f32 %v1950, %v2160
        %v2497 = vadd.f32 %v1951, %v2367
        %v2498 = vadd.f32 %v1952, %v2369
        %v2499 = vadd.f32 %v1953, %v2164
        %v2500 = vadd.f32 %v1954, %v2166
        %v2501 = vadd.f32 %v1955, %v2373
        %v2502 = vadd.f32 %v1956, %v2375
        %v2503 = vadd.f32 %v1957, %v2170
        %v2504 = vadd.f32 %v1958, %v2172
        %v2505 = vadd.f32 %v1959, %v2379
        %v2506 = vadd.f32 %v1960, %v2381
        %v2507 = vadd.f32 %v1961, %v2176
        %v2508 = vadd.f32 %v1962, %v2178
        %v2509 = vadd.f32 %v1963, %v2385
        %v2510 = vadd.f32 %v1964, %v2387
        %v2511 = vadd.f32 %v1965, %v2182
        %v2512 = vadd.f32 %v1966, %v2184
        %v2513 = vadd.f32 %v1967, %v2391
        %v2514 = vadd.f32 %v1968, %v2393
        %v2515 = vadd.f32 %v1969, %v2188
        %v2516 = vadd.f32 %v1970, %v2190
        %v2517 = vadd.f32 %v1971, %v2397
        %v2518 = vadd.f32 %v1972, %v2399
        %v2519 = vadd.f32 %v1973, %v2194
        %v2520 = vadd.f32 %v1974, %v2196
        %v2521 = vadd.f32 %v1975, %v2403
        %v2522 = vadd.f32 %v1976, %v2405
        %v2523 = vadd.f32 %v1977, %v2200
        %v2524 = vadd.f32 %v1978, %v2202
        %v2525 = vadd.f32 %v1979, %v2409
        %v2526 = vadd.f32 %v1980, %v2411
        %v2527 = vadd.f32 %v1981, %v2206
        %v2528 = vadd.f32 %v1982, %v2208
        %v2529 = vadd.f32 %v1983, %v2415
        %v2530 = vadd.f32 %v1984, %v2417
        %v2531 = vadd.f32 %v1985, %v2212
        %v2532 = vadd.f32 %v1986, %v2214
        %v2533 = vadd.f32 %v1987, %v2421
        %v2534 = vadd.f32 %v1988, %v2423
        %v2535 = vadd.f32 %v1989, %v2218
        %v2536 = vadd.f32 %v1990, %v2220
        %v2537 = vadd.f32 %v1991, %v2427
        %v2538 = vadd.f32 %v1992, %v2429
        %v2539 = vadd.f32 %v1993, %v2224
        %v2540 = vadd.f32 %v1994, %v2226
        %v2541 = vadd.f32 %v1995, %v2433
        %v2542 = vadd.f32 %v1996, %v2435
        %v2543 = vadd.f32 %v1997, %v2230
        %v2544 = vadd.f32 %v1998, %v2232
        %v2545 = vadd.f32 %v1999, %v2439
        %v2546 = vadd.f32 %v2000, %v2441
        %v2547 = vadd.f32 %v2001, %v2236
        %v2548 = vadd.f32 %v2002, %v2238
        %v2549 = vadd.f32 %v2003, %v2445
        %v2550 = vadd.f32 %v2004, %v2447
        %v2551 = vadd.f32 %v2005, %v2242
        %v2552 = vadd.f32 %v2006, %v2244
        %v2553 = vadd.f32 %v2007, %v2451
        %v2554 = vadd.f32 %v2008, %v2453
        %v2555 = vadd.f32 %v2009, %v2248
        %v2556 = vadd.f32 %v2010, %v2250
        %v2557 = vadd.f32 %v2011, %v2457
        %v2558 = vadd.f32 %v2012, %v2459
        %v2559 = vadd.f32 %v2013, %v2254
        %v2560 = vadd.f32 %v2014, %v2256
        %v2561 = vadd.f32 %v2015, %v2463
        %v2562 = vadd.f32 %v2016, %v2465
        %s2563 = scalar_lea.vmem %s1, 512
        %v2564 = vld [vmem:[%s2563] sm:$0xff]
        %v2565 = vld [vmem:[%s2563 + $0x8] sm:$0xff]
        %v2566 = vld [vmem:[%s2563 + $0x10] sm:$0xff]
        %v2567 = vld [vmem:[%s2563 + $0x18] sm:$0xff]
        %v2568 = vld [vmem:[%s2563 + $0x20] sm:$0xff]
        %v2569 = vld [vmem:[%s2563 + $0x28] sm:$0xff]
        %v2570 = vld [vmem:[%s2563 + $0x30] sm:$0xff]
        %v2571 = vld [vmem:[%s2563 + $0x38] sm:$0xff]
        %v2572 = vld [vmem:[%s2563 + $0x40] sm:$0xff]
        %v2573 = vld [vmem:[%s2563 + $0x48] sm:$0xff]
        %v2574 = vld [vmem:[%s2563 + $0x50] sm:$0xff]
        %v2575 = vld [vmem:[%s2563 + $0x58] sm:$0xff]
        %v2576 = vld [vmem:[%s2563 + $0x60] sm:$0xf]
        %v2577 = vld [vmem:[%s2563 + $0x68] sm:$0xf]
        %v2578 = vld [vmem:[%s2563 + $0x70] sm:$0xf]
        %v2579 = vld [vmem:[%s2563 + $0x78] sm:$0xf]
        %v2581 = vsel %vm534, %v500, 0
        %v2584 = vsel %vm607, %v2576, 0
        %v2587 = vsel %vm607, %v2577, 0
        %v2590 = vsel %vm607, %v2578, 0
        %v2593 = vsel %vm607, %v2579, 0
        %2595 = vmatprep.subr.mxu0 %v2565
        %2596 = vmatpush1.msra.mxu0 %v2564
        %2597 = vmatprep.subr.mxu0 %v2569
        %2598 = vmatpush1.msra.mxu0 %v2568
        %2599 = vmatprep.subr.mxu0 %v2573
        %2600 = vmatpush1.msra.mxu0 %v2572
        %2601 = vmatprep.subr.mxu0 %v2587
        %2602 = vmatpush1.msra.mxu0 %v2584
        %2603 = vmatprep.subr.mxu0 0.0
        %2604 = vmatpush1.msra.mxu0 0.0
        %2605 = vmatprep.subr.mxu0 0.0
        %2606 = vmatpush1.msra.mxu0 0.0
        %2607 = vmatprep.subr.mxu0 0.0
        %2608 = vmatpush1.msra.mxu0 0.0
        %2609 = vmatprep.subr.mxu0 0.0
        %2610 = vmatpush1.msra.mxu0 0.0
        %2611 = vmatprep.subr.mxu0 0.0
        %2612 = vmatpush1.msra.mxu0 0.0
        %2613 = vmatprep.subr.mxu0 0.0
        %2614 = vmatpush1.msra.mxu0 0.0
        %2615 = vmatprep.subr.mxu0 0.0
        %2616 = vmatpush1.msra.mxu0 0.0
        %2617 = vmatprep.subr.mxu0 0.0
        %2618 = vmatpush1.msra.mxu0 0.0
        %2619 = vmatprep.subr.mxu0 0.0
        %2620 = vmatpush1.msra.mxu0 0.0
        %2621 = vmatprep.subr.mxu0 0.0
        %2622 = vmatpush1.msra.mxu0 0.0
        %2623 = vmatprep.subr.mxu0 0.0
        %2624 = vmatpush1.msra.mxu0 0.0
        %2625 = vmatprep.subr.mxu0 0.0
        %2626 = vmatpush1.msra.mxu0 0.0
        %2627 = vmatprep.subr.mxu0 0.0
        %2628 = vmatpush1.msra.mxu0 0.0
        %2629 = vmatprep.subr.mxu0 0.0
        %2630 = vmatpush1.msra.mxu0 0.0
        %2631 = vmatprep.subr.mxu0 0.0
        %2632 = vmatpush1.msra.mxu0 0.0
        %2633 = vmatprep.subr.mxu0 0.0
        %2634 = vmatpush1.msra.mxu0 0.0
        %2635 = vmatprep.subr.mxu0 0.0
        %2636 = vmatpush1.msra.mxu0 0.0
        %2637 = vmatprep.subr.mxu0 0.0
        %2638 = vmatpush1.msra.mxu0 0.0
        %2639 = vmatprep.subr.mxu0 0.0
        %2640 = vmatpush1.msra.mxu0 0.0
        %2641 = vmatprep.subr.mxu0 0.0
        %2642 = vmatpush1.msra.mxu0 0.0
        %2643 = vmatprep.subr.mxu0 0.0
        %2644 = vmatpush1.msra.mxu0 0.0
        %2645 = vmatprep.subr.mxu0 0.0
        %2646 = vmatpush1.msra.mxu0 0.0
        %2647 = vmatprep.subr.mxu0 0.0
        %2648 = vmatpush1.msra.mxu0 0.0
        %2649 = vmatprep.subr.mxu0 0.0
        %2650 = vmatpush1.msra.mxu0 0.0
        %2651 = vmatprep.subr.mxu0 0.0
        %2652 = vmatpush1.msra.mxu0 0.0
        %2653 = vmatprep.subr.mxu0 0.0
        %2654 = vmatpush1.msra.mxu0 0.0
        %2655 = vmatprep.subr.mxu0 0.0
        %2656 = vmatpush1.msra.mxu0 0.0
        %2657 = vmatprep.subr.mxu0 0.0
        %2658 = vmatpush1.msra.mxu0 0.0
        %2659 = vmatprep.mubr.f32.mxu0 0.0
        %2660 = vmatmul.mubr.f32.gmra.mrb[0].mxu0 %v545
        %v2661 = vpop.f32.mrb[0].mxu0
        %v2662 = vadd.f32 0.0, %v2661
        %v2663 = vpop.f32.mrb[0].mxu0
        %v2664 = vadd.f32 0.0, %v2663
        %2665 = vmatprep.mubr.f32.mxu0 0.0
        %2666 = vmatmul.mubr.f32.gmra.mrb[0].mxu0 %v548
        %v2667 = vpop.f32.mrb[0].mxu0
        %v2668 = vadd.f32 0.0, %v2667
        %v2669 = vpop.f32.mrb[0].mxu0
        %v2670 = vadd.f32 0.0, %v2669
        %2671 = vmatprep.mubr.f32.mxu0 0.0
        %2672 = vmatmul.mubr.f32.gmra.mrb[0].mxu0 %v551
        %v2673 = vpop.f32.mrb[0].mxu0
        %v2674 = vadd.f32 0.0, %v2673
        %v2675 = vpop.f32.mrb[0].mxu0
        %v2676 = vadd.f32 0.0, %v2675
        %2677 = vmatprep.mubr.f32.mxu0 0.0
        %2678 = vmatmul.mubr.f32.gmra.mrb[0].mxu0 %v554
        %v2679 = vpop.f32.mrb[0].mxu0
        %v2680 = vadd.f32 0.0, %v2679
        %v2681 = vpop.f32.mrb[0].mxu0
        %v2682 = vadd.f32 0.0, %v2681
        %2683 = vmatprep.mubr.f32.mxu0 0.0
        %2684 = vmatmul.mubr.f32.gmra.mrb[0].mxu0 %v557
        %v2685 = vpop.f32.mrb[0].mxu0
        %v2686 = vadd.f32 0.0, %v2685
        %v2687 = vpop.f32.mrb[0].mxu0
        %v2688 = vadd.f32 0.0, %v2687
        %2689 = vmatprep.mubr.f32.mxu0 0.0
        %2690 = vmatmul.mubr.f32.gmra.mrb[0].mxu0 %v560
        %v2691 = vpop.f32.mrb[0].mxu0
        %v2692 = vadd.f32 0.0, %v2691
        %v2693 = vpop.f32.mrb[0].mxu0
        %v2694 = vadd.f32 0.0, %v2693
        %2695 = vmatprep.mubr.f32.mxu0 0.0
        %2696 = vmatmul.mubr.f32.gmra.mrb[0].mxu0 %v563
        %v2697 = vpop.f32.mrb[0].mxu0
        %v2698 = vadd.f32 0.0, %v2697
        %v2699 = vpop.f32.mrb[0].mxu0
        %v2700 = vadd.f32 0.0, %v2699
        %2701 = vmatprep.mubr.f32.mxu0 0.0
        %2702 = vmatmul.mubr.f32.gmra.mrb[0].mxu0 %v566
        %v2703 = vpop.f32.mrb[0].mxu0
        %v2704 = vadd.f32 0.0, %v2703
        %v2705 = vpop.f32.mrb[0].mxu0
        %v2706 = vadd.f32 0.0, %v2705
        %2707 = vmatprep.mubr.f32.mxu0 0.0
        %2708 = vmatmul.mubr.f32.gmra.mrb[0].mxu0 %v569
        %v2709 = vpop.f32.mrb[0].mxu0
        %v2710 = vadd.f32 0.0, %v2709
        %v2711 = vpop.f32.mrb[0].mxu0
        %v2712 = vadd.f32 0.0, %v2711
        %2713 = vmatprep.mubr.f32.mxu0 0.0
        %2714 = vmatmul.mubr.f32.gmra.mrb[0].mxu0 %v572
        %v2715 = vpop.f32.mrb[0].mxu0
        %v2716 = vadd.f32 0.0, %v2715
        %v2717 = vpop.f32.mrb[0].mxu0
        %v2718 = vadd.f32 0.0, %v2717
        %2719 = vmatprep.mubr.f32.mxu0 0.0
        %2720 = vmatmul.mubr.f32.gmra.mrb[0].mxu0 %v575
        %v2721 = vpop.f32.mrb[0].mxu0
        %v2722 = vadd.f32 0.0, %v2721
        %v2723 = vpop.f32.mrb[0].mxu0
        %v2724 = vadd.f32 0.0, %v2723
        %2725 = vmatprep.mubr.f32.mxu0 0.0
        %2726 = vmatmul.mubr.f32.gmra.mrb[0].mxu0 %v578
        %v2727 = vpop.f32.mrb[0].mxu0
        %v2728 = vadd.f32 0.0, %v2727
        %v2729 = vpop.f32.mrb[0].mxu0
        %v2730 = vadd.f32 0.0, %v2729
        %2731 = vmatprep.mubr.f32.mxu0 0.0
        %2732 = vmatmul.mubr.f32.gmra.mrb[0].mxu0 %v581
        %v2733 = vpop.f32.mrb[0].mxu0
        %v2734 = vadd.f32 0.0, %v2733
        %v2735 = vpop.f32.mrb[0].mxu0
        %v2736 = vadd.f32 0.0, %v2735
        %2737 = vmatprep.mubr.f32.mxu0 0.0
        %2738 = vmatmul.mubr.f32.gmra.mrb[0].mxu0 %v584
        %v2739 = vpop.f32.mrb[0].mxu0
        %v2740 = vadd.f32 0.0, %v2739
        %v2741 = vpop.f32.mrb[0].mxu0
        %v2742 = vadd.f32 0.0, %v2741
        %2743 = vmatprep.mubr.f32.mxu0 0.0
        %2744 = vmatmul.mubr.f32.gmra.mrb[0].mxu0 %v587
        %v2745 = vpop.f32.mrb[0].mxu0
        %v2746 = vadd.f32 0.0, %v2745
        %v2747 = vpop.f32.mrb[0].mxu0
        %v2748 = vadd.f32 0.0, %v2747
        %2749 = vmatprep.mubr.f32.mxu0 0.0
        %2750 = vmatmul.mubr.f32.gmra.mrb[0].mxu0 %v590
        %v2751 = vpop.f32.mrb[0].mxu0
        %v2752 = vadd.f32 0.0, %v2751
        %v2753 = vpop.f32.mrb[0].mxu0
        %v2754 = vadd.f32 0.0, %v2753
        %2755 = vmatprep.mubr.f32.mxu0 0.0
        %2756 = vmatmul.mubr.f32.gmra.mrb[0].mxu0 %v593
        %v2757 = vpop.f32.mrb[0].mxu0
        %v2758 = vadd.f32 0.0, %v2757
        %v2759 = vpop.f32.mrb[0].mxu0
        %v2760 = vadd.f32 0.0, %v2759
        %2761 = vmatprep.mubr.f32.mxu0 0.0
        %2762 = vmatmul.mubr.f32.gmra.mrb[0].mxu0 %v596
        %v2763 = vpop.f32.mrb[0].mxu0
        %v2764 = vadd.f32 0.0, %v2763
        %v2765 = vpop.f32.mrb[0].mxu0
        %v2766 = vadd.f32 0.0, %v2765
        %2767 = vmatprep.mubr.f32.mxu0 0.0
        %2768 = vmatmul.mubr.f32.gmra.mrb[0].mxu0 %v599
        %v2769 = vpop.f32.mrb[0].mxu0
        %v2770 = vadd.f32 0.0, %v2769
        %v2771 = vpop.f32.mrb[0].mxu0
        %v2772 = vadd.f32 0.0, %v2771
        %2773 = vmatprep.mubr.f32.mxu0 0.0
        %2774 = vmatmul.mubr.f32.gmra.mrb[0].mxu0 %v602
        %v2775 = vpop.f32.mrb[0].mxu0
        %v2776 = vadd.f32 0.0, %v2775
        %v2777 = vpop.f32.mrb[0].mxu0
        %v2778 = vadd.f32 0.0, %v2777
        %2779 = vmatprep.mubr.f32.mxu0 0.0
        %2780 = vmatmul.mubr.f32.gmra.mrb[0].mxu0 %v605
        %v2781 = vpop.f32.mrb[0].mxu0
        %v2782 = vadd.f32 0.0, %v2781
        %v2783 = vpop.f32.mrb[0].mxu0
        %v2784 = vadd.f32 0.0, %v2783
        %2785 = vmatprep.mubr.f32.mxu0 0.0
        %2786 = vmatmul.mubr.f32.gmra.mrb[0].mxu0 %v1489
        %v2787 = vpop.f32.mrb[0].mxu0
        %v2788 = vadd.f32 0.0, %v2787
        %v2789 = vpop.f32.mrb[0].mxu0
        %v2790 = vadd.f32 0.0, %v2789
        %2791 = vmatprep.mubr.f32.mxu0 0.0
        %2792 = vmatmul.mubr.f32.gmra.mrb[0].mxu0 %v2035
        %v2793 = vpop.f32.mrb[0].mxu0
        %v2794 = vadd.f32 0.0, %v2793
        %v2795 = vpop.f32.mrb[0].mxu0
        %v2796 = vadd.f32 0.0, %v2795
        %2797 = vmatprep.mubr.f32.mxu0 0.0
        %2798 = vmatmul.mubr.f32.gmra.mrb[0].mxu0 %v2581
        %v2799 = vpop.f32.mrb[0].mxu0
        %v2800 = vadd.f32 0.0, %v2799
        %v2801 = vpop.f32.mrb[0].mxu0
        %v2802 = vadd.f32 0.0, %v2801
        %2803 = vdwg.mxu0
        %2804 = vmatprep.subr.mxu0 %v2567
        %2805 = vmatpush1.msra.mxu0 %v2566
        %2806 = vmatprep.subr.mxu0 %v2571
        %2807 = vmatpush1.msra.mxu0 %v2570
        %2808 = vmatprep.subr.mxu0 %v2575
        %2809 = vmatpush1.msra.mxu0 %v2574
        %2810 = vmatprep.subr.mxu0 %v2593
        %2811 = vmatpush1.msra.mxu0 %v2590
        %2812 = vmatprep.subr.mxu0 0.0
        %2813 = vmatpush1.msra.mxu0 0.0
        %2814 = vmatprep.subr.mxu0 0.0
        %2815 = vmatpush1.msra.mxu0 0.0
        %2816 = vmatprep.subr.mxu0 0.0
        %2817 = vmatpush1.msra.mxu0 0.0
        %2818 = vmatprep.subr.mxu0 0.0
        %2819 = vmatpush1.msra.mxu0 0.0
        %2820 = vmatprep.subr.mxu0 0.0
        %2821 = vmatpush1.msra.mxu0 0.0
        %2822 = vmatprep.subr.mxu0 0.0
        %2823 = vmatpush1.msra.mxu0 0.0
        %2824 = vmatprep.subr.mxu0 0.0
        %2825 = vmatpush1.msra.mxu0 0.0
        %2826 = vmatprep.subr.mxu0 0.0
        %2827 = vmatpush1.msra.mxu0 0.0
        %2828 = vmatprep.subr.mxu0 0.0
        %2829 = vmatpush1.msra.mxu0 0.0
        %2830 = vmatprep.subr.mxu0 0.0
        %2831 = vmatpush1.msra.mxu0 0.0
        %2832 = vmatprep.subr.mxu0 0.0
        %2833 = vmatpush1.msra.mxu0 0.0
        %2834 = vmatprep.subr.mxu0 0.0
        %2835 = vmatpush1.msra.mxu0 0.0
        %2836 = vmatprep.subr.mxu0 0.0
        %2837 = vmatpush1.msra.mxu0 0.0
        %2838 = vmatprep.subr.mxu0 0.0
        %2839 = vmatpush1.msra.mxu0 0.0
        %2840 = vmatprep.subr.mxu0 0.0
        %2841 = vmatpush1.msra.mxu0 0.0
        %2842 = vmatprep.subr.mxu0 0.0
        %2843 = vmatpush1.msra.mxu0 0.0
        %2844 = vmatprep.subr.mxu0 0.0
        %2845 = vmatpush1.msra.mxu0 0.0
        %2846 = vmatprep.subr.mxu0 0.0
        %2847 = vmatpush1.msra.mxu0 0.0
        %2848 = vmatprep.subr.mxu0 0.0
        %2849 = vmatpush1.msra.mxu0 0.0
        %2850 = vmatprep.subr.mxu0 0.0
        %2851 = vmatpush1.msra.mxu0 0.0
        %2852 = vmatprep.subr.mxu0 0.0
        %2853 = vmatpush1.msra.mxu0 0.0
        %2854 = vmatprep.subr.mxu0 0.0
        %2855 = vmatpush1.msra.mxu0 0.0
        %2856 = vmatprep.subr.mxu0 0.0
        %2857 = vmatpush1.msra.mxu0 0.0
        %2858 = vmatprep.subr.mxu0 0.0
        %2859 = vmatpush1.msra.mxu0 0.0
        %2860 = vmatprep.subr.mxu0 0.0
        %2861 = vmatpush1.msra.mxu0 0.0
        %2862 = vmatprep.subr.mxu0 0.0
        %2863 = vmatpush1.msra.mxu0 0.0
        %2864 = vmatprep.subr.mxu0 0.0
        %2865 = vmatpush1.msra.mxu0 0.0
        %2866 = vmatprep.subr.mxu0 0.0
        %2867 = vmatpush1.msra.mxu0 0.0
        %2868 = vmatprep.mubr.f32.mxu0 0.0
        %2869 = vmatmul.mubr.f32.gmra.mrb[0].mxu0 %v545
        %v2870 = vpop.f32.mrb[0].mxu0
        %v2871 = vadd.f32 0.0, %v2870
        %v2872 = vpop.f32.mrb[0].mxu0
        %v2873 = vadd.f32 0.0, %v2872
        %2874 = vmatprep.mubr.f32.mxu0 0.0
        %2875 = vmatmul.mubr.f32.gmra.mrb[0].mxu0 %v548
        %v2876 = vpop.f32.mrb[0].mxu0
        %v2877 = vadd.f32 0.0, %v2876
        %v2878 = vpop.f32.mrb[0].mxu0
        %v2879 = vadd.f32 0.0, %v2878
        %2880 = vmatprep.mubr.f32.mxu0 0.0
        %2881 = vmatmul.mubr.f32.gmra.mrb[0].mxu0 %v551
        %v2882 = vpop.f32.mrb[0].mxu0
        %v2883 = vadd.f32 0.0, %v2882
        %v2884 = vpop.f32.mrb[0].mxu0
        %v2885 = vadd.f32 0.0, %v2884
        %2886 = vmatprep.mubr.f32.mxu0 0.0
        %2887 = vmatmul.mubr.f32.gmra.mrb[0].mxu0 %v554
        %v2888 = vpop.f32.mrb[0].mxu0
        %v2889 = vadd.f32 0.0, %v2888
        %v2890 = vpop.f32.mrb[0].mxu0
        %v2891 = vadd.f32 0.0, %v2890
        %2892 = vmatprep.mubr.f32.mxu0 0.0
        %2893 = vmatmul.mubr.f32.gmra.mrb[0].mxu0 %v557
        %v2894 = vpop.f32.mrb[0].mxu0
        %v2895 = vadd.f32 0.0, %v2894
        %v2896 = vpop.f32.mrb[0].mxu0
        %v2897 = vadd.f32 0.0, %v2896
        %2898 = vmatprep.mubr.f32.mxu0 0.0
        %2899 = vmatmul.mubr.f32.gmra.mrb[0].mxu0 %v560
        %v2900 = vpop.f32.mrb[0].mxu0
        %v2901 = vadd.f32 0.0, %v2900
        %v2902 = vpop.f32.mrb[0].mxu0
        %v2903 = vadd.f32 0.0, %v2902
        %2904 = vmatprep.mubr.f32.mxu0 0.0
        %2905 = vmatmul.mubr.f32.gmra.mrb[0].mxu0 %v563
        %v2906 = vpop.f32.mrb[0].mxu0
        %v2907 = vadd.f32 0.0, %v2906
        %v2908 = vpop.f32.mrb[0].mxu0
        %v2909 = vadd.f32 0.0, %v2908
        %2910 = vmatprep.mubr.f32.mxu0 0.0
        %2911 = vmatmul.mubr.f32.gmra.mrb[0].mxu0 %v566
        %v2912 = vpop.f32.mrb[0].mxu0
        %v2913 = vadd.f32 0.0, %v2912
        %v2914 = vpop.f32.mrb[0].mxu0
        %v2915 = vadd.f32 0.0, %v2914
        %2916 = vmatprep.mubr.f32.mxu0 0.0
        %2917 = vmatmul.mubr.f32.gmra.mrb[0].mxu0 %v569
        %v2918 = vpop.f32.mrb[0].mxu0
        %v2919 = vadd.f32 0.0, %v2918
        %v2920 = vpop.f32.mrb[0].mxu0
        %v2921 = vadd.f32 0.0, %v2920
        %2922 = vmatprep.mubr.f32.mxu0 0.0
        %2923 = vmatmul.mubr.f32.gmra.mrb[0].mxu0 %v572
        %v2924 = vpop.f32.mrb[0].mxu0
        %v2925 = vadd.f32 0.0, %v2924
        %v2926 = vpop.f32.mrb[0].mxu0
        %v2927 = vadd.f32 0.0, %v2926
        %2928 = vmatprep.mubr.f32.mxu0 0.0
        %2929 = vmatmul.mubr.f32.gmra.mrb[0].mxu0 %v575
        %v2930 = vpop.f32.mrb[0].mxu0
        %v2931 = vadd.f32 0.0, %v2930
        %v2932 = vpop.f32.mrb[0].mxu0
        %v2933 = vadd.f32 0.0, %v2932
        %2934 = vmatprep.mubr.f32.mxu0 0.0
        %2935 = vmatmul.mubr.f32.gmra.mrb[0].mxu0 %v578
        %v2936 = vpop.f32.mrb[0].mxu0
        %v2937 = vadd.f32 0.0, %v2936
        %v2938 = vpop.f32.mrb[0].mxu0
        %v2939 = vadd.f32 0.0, %v2938
        %2940 = vmatprep.mubr.f32.mxu0 0.0
        %2941 = vmatmul.mubr.f32.gmra.mrb[0].mxu0 %v581
        %v2942 = vpop.f32.mrb[0].mxu0
        %v2943 = vadd.f32 0.0, %v2942
        %v2944 = vpop.f32.mrb[0].mxu0
        %v2945 = vadd.f32 0.0, %v2944
        %2946 = vmatprep.mubr.f32.mxu0 0.0
        %2947 = vmatmul.mubr.f32.gmra.mrb[0].mxu0 %v584
        %v2948 = vpop.f32.mrb[0].mxu0
        %v2949 = vadd.f32 0.0, %v2948
        %v2950 = vpop.f32.mrb[0].mxu0
        %v2951 = vadd.f32 0.0, %v2950
        %2952 = vmatprep.mubr.f32.mxu0 0.0
        %2953 = vmatmul.mubr.f32.gmra.mrb[0].mxu0 %v587
        %v2954 = vpop.f32.mrb[0].mxu0
        %v2955 = vadd.f32 0.0, %v2954
        %v2956 = vpop.f32.mrb[0].mxu0
        %v2957 = vadd.f32 0.0, %v2956
        %2958 = vmatprep.mubr.f32.mxu0 0.0
        %2959 = vmatmul.mubr.f32.gmra.mrb[0].mxu0 %v590
        %v2960 = vpop.f32.mrb[0].mxu0
        %v2961 = vadd.f32 0.0, %v2960
        %v2962 = vpop.f32.mrb[0].mxu0
        %v2963 = vadd.f32 0.0, %v2962
        %2964 = vmatprep.mubr.f32.mxu0 0.0
        %2965 = vmatmul.mubr.f32.gmra.mrb[0].mxu0 %v593
        %v2966 = vpop.f32.mrb[0].mxu0
        %v2967 = vadd.f32 0.0, %v2966
        %v2968 = vpop.f32.mrb[0].mxu0
        %v2969 = vadd.f32 0.0, %v2968
        %2970 = vmatprep.mubr.f32.mxu0 0.0
        %2971 = vmatmul.mubr.f32.gmra.mrb[0].mxu0 %v596
        %v2972 = vpop.f32.mrb[0].mxu0
        %v2973 = vadd.f32 0.0, %v2972
        %v2974 = vpop.f32.mrb[0].mxu0
        %v2975 = vadd.f32 0.0, %v2974
        %2976 = vmatprep.mubr.f32.mxu0 0.0
        %2977 = vmatmul.mubr.f32.gmra.mrb[0].mxu0 %v599
        %v2978 = vpop.f32.mrb[0].mxu0
        %v2979 = vadd.f32 0.0, %v2978
        %v2980 = vpop.f32.mrb[0].mxu0
        %v2981 = vadd.f32 0.0, %v2980
        %2982 = vmatprep.mubr.f32.mxu0 0.0
        %2983 = vmatmul.mubr.f32.gmra.mrb[0].mxu0 %v602
        %v2984 = vpop.f32.mrb[0].mxu0
        %v2985 = vadd.f32 0.0, %v2984
        %v2986 = vpop.f32.mrb[0].mxu0
        %v2987 = vadd.f32 0.0, %v2986
        %2988 = vmatprep.mubr.f32.mxu0 0.0
        %2989 = vmatmul.mubr.f32.gmra.mrb[0].mxu0 %v605
        %v2990 = vpop.f32.mrb[0].mxu0
        %v2991 = vadd.f32 0.0, %v2990
        %v2992 = vpop.f32.mrb[0].mxu0
        %v2993 = vadd.f32 0.0, %v2992
        %2994 = vmatprep.mubr.f32.mxu0 0.0
        %2995 = vmatmul.mubr.f32.gmra.mrb[0].mxu0 %v1489
        %v2996 = vpop.f32.mrb[0].mxu0
        %v2997 = vadd.f32 0.0, %v2996
        %v2998 = vpop.f32.mrb[0].mxu0
        %v2999 = vadd.f32 0.0, %v2998
        %3000 = vmatprep.mubr.f32.mxu0 0.0
        %3001 = vmatmul.mubr.f32.gmra.mrb[0].mxu0 %v2035
        %v3002 = vpop.f32.mrb[0].mxu0
        %v3003 = vadd.f32 0.0, %v3002
        %v3004 = vpop.f32.mrb[0].mxu0
        %v3005 = vadd.f32 0.0, %v3004
        %3006 = vmatprep.mubr.f32.mxu0 0.0
        %3007 = vmatmul.mubr.f32.gmra.mrb[0].mxu0 %v2581
        %v3008 = vpop.f32.mrb[0].mxu0
        %v3009 = vadd.f32 0.0, %v3008
        %v3010 = vpop.f32.mrb[0].mxu0
        %v3011 = vadd.f32 0.0, %v3010
        %3012 = vdwg.mxu0
        %v3013 = vadd.f32 %v2467, %v2662
        %v3014 = vadd.f32 %v2468, %v2664
        %v3015 = vadd.f32 %v2469, %v2871
        %v3016 = vadd.f32 %v2470, %v2873
        %v3017 = vadd.f32 %v2471, %v2668
        %v3018 = vadd.f32 %v2472, %v2670
        %v3019 = vadd.f32 %v2473, %v2877
        %v3020 = vadd.f32 %v2474, %v2879
        %v3021 = vadd.f32 %v2475, %v2674
        %v3022 = vadd.f32 %v2476, %v2676
        %v3023 = vadd.f32 %v2477, %v2883
        %v3024 = vadd.f32 %v2478, %v2885
        %v3025 = vadd.f32 %v2479, %v2680
        %v3026 = vadd.f32 %v2480, %v2682
        %v3027 = vadd.f32 %v2481, %v2889
        %v3028 = vadd.f32 %v2482, %v2891
        %v3029 = vadd.f32 %v2483, %v2686
        %v3030 = vadd.f32 %v2484, %v2688
        %v3031 = vadd.f32 %v2485, %v2895
        %v3032 = vadd.f32 %v2486, %v2897
        %v3033 = vadd.f32 %v2487, %v2692
        %v3034 = vadd.f32 %v2488, %v2694
        %v3035 = vadd.f32 %v2489, %v2901
        %v3036 = vadd.f32 %v2490, %v2903
        %v3037 = vadd.f32 %v2491, %v2698
        %v3038 = vadd.f32 %v2492, %v2700
        %v3039 = vadd.f32 %v2493, %v2907
        %v3040 = vadd.f32 %v2494, %v2909
        %v3041 = vadd.f32 %v2495, %v2704
        %v3042 = vadd.f32 %v2496, %v2706
        %v3043 = vadd.f32 %v2497, %v2913
        %v3044 = vadd.f32 %v2498, %v2915
        %v3045 = vadd.f32 %v2499, %v2710
        %v3046 = vadd.f32 %v2500, %v2712
        %v3047 = vadd.f32 %v2501, %v2919
        %v3048 = vadd.f32 %v2502, %v2921
        %v3049 = vadd.f32 %v2503, %v2716
        %v3050 = vadd.f32 %v2504, %v2718
        %v3051 = vadd.f32 %v2505, %v2925
        %v3052 = vadd.f32 %v2506, %v2927
        %v3053 = vadd.f32 %v2507, %v2722
        %v3054 = vadd.f32 %v2508, %v2724
        %v3055 = vadd.f32 %v2509, %v2931
        %v3056 = vadd.f32 %v2510, %v2933
        %v3057 = vadd.f32 %v2511, %v2728
        %v3058 = vadd.f32 %v2512, %v2730
        %v3059 = vadd.f32 %v2513, %v2937
        %v3060 = vadd.f32 %v2514, %v2939
        %v3061 = vadd.f32 %v2515, %v2734
        %v3062 = vadd.f32 %v2516, %v2736
        %v3063 = vadd.f32 %v2517, %v2943
        %v3064 = vadd.f32 %v2518, %v2945
        %v3065 = vadd.f32 %v2519, %v2740
        %v3066 = vadd.f32 %v2520, %v2742
        %v3067 = vadd.f32 %v2521, %v2949
        %v3068 = vadd.f32 %v2522, %v2951
        %v3069 = vadd.f32 %v2523, %v2746
        %v3070 = vadd.f32 %v2524, %v2748
        %v3071 = vadd.f32 %v2525, %v2955
        %v3072 = vadd.f32 %v2526, %v2957
        %v3073 = vadd.f32 %v2527, %v2752
        %v3074 = vadd.f32 %v2528, %v2754
        %v3075 = vadd.f32 %v2529, %v2961
        %v3076 = vadd.f32 %v2530, %v2963
        %v3077 = vadd.f32 %v2531, %v2758
        %v3078 = vadd.f32 %v2532, %v2760
        %v3079 = vadd.f32 %v2533, %v2967
        %v3080 = vadd.f32 %v2534, %v2969
        %v3081 = vadd.f32 %v2535, %v2764
        %v3082 = vadd.f32 %v2536, %v2766
        %v3083 = vadd.f32 %v2537, %v2973
        %v3084 = vadd.f32 %v2538, %v2975
        %v3085 = vadd.f32 %v2539, %v2770
        %v3086 = vadd.f32 %v2540, %v2772
        %v3087 = vadd.f32 %v2541, %v2979
        %v3088 = vadd.f32 %v2542, %v2981
        %v3089 = vadd.f32 %v2543, %v2776
        %v3090 = vadd.f32 %v2544, %v2778
        %v3091 = vadd.f32 %v2545, %v2985
        %v3092 = vadd.f32 %v2546, %v2987
        %v3093 = vadd.f32 %v2547, %v2782
        %v3094 = vadd.f32 %v2548, %v2784
        %v3095 = vadd.f32 %v2549, %v2991
        %v3096 = vadd.f32 %v2550, %v2993
        %v3097 = vadd.f32 %v2551, %v2788
        %v3098 = vadd.f32 %v2552, %v2790
        %v3099 = vadd.f32 %v2553, %v2997
        %v3100 = vadd.f32 %v2554, %v2999
        %v3101 = vadd.f32 %v2555, %v2794
        %v3102 = vadd.f32 %v2556, %v2796
        %v3103 = vadd.f32 %v2557, %v3003
        %v3104 = vadd.f32 %v2558, %v3005
        %v3105 = vadd.f32 %v2559, %v2800
        %v3106 = vadd.f32 %v2560, %v2802
        %v3107 = vadd.f32 %v2561, %v3009
        %v3108 = vadd.f32 %v2562, %v3011
        %v3109 = vld [vmem:[%s2] sm:$0xf]
        %v3111 = vlaneseq
        %v3112 = vshrl.u32 %v3111, 7
        %v3113 = vsub.s32 0, %v3112
        %v3114 = vrot.slane %v3109, %v3113
        %v3115 = vlaneseq
        %v3116 = vshrl.u32 %v3115, 7
        %v3117 = vsub.s32 1, %v3116
        %v3118 = vrot.slane %v3109, %v3117
        %v3119 = vlaneseq
        %v3120 = vshrl.u32 %v3119, 7
        %v3121 = vsub.s32 2, %v3120
        %v3122 = vrot.slane %v3109, %v3121
        %v3123 = vlaneseq
        %v3124 = vshrl.u32 %v3123, 7
        %v3125 = vsub.s32 3, %v3124
        %v3126 = vrot.slane %v3109, %v3125
        %v3131 = vadd.f32 %v3013, %v3114
        %v3132 = vadd.f32 %v3014, %v3118
        %v3133 = vadd.f32 %v3015, %v3122
        %v3134 = vadd.f32 %v3016, %v3126
        %v3135 = vadd.f32 %v3017, %v3114
        %v3136 = vadd.f32 %v3018, %v3118
        %v3137 = vadd.f32 %v3019, %v3122
        %v3138 = vadd.f32 %v3020, %v3126
        %v3139 = vadd.f32 %v3021, %v3114
        %v3140 = vadd.f32 %v3022, %v3118
        %v3141 = vadd.f32 %v3023, %v3122
        %v3142 = vadd.f32 %v3024, %v3126
        %v3143 = vadd.f32 %v3025, %v3114
        %v3144 = vadd.f32 %v3026, %v3118
        %v3145 = vadd.f32 %v3027, %v3122
        %v3146 = vadd.f32 %v3028, %v3126
        %v3147 = vadd.f32 %v3029, %v3114
        %v3148 = vadd.f32 %v3030, %v3118
        %v3149 = vadd.f32 %v3031, %v3122
        %v3150 = vadd.f32 %v3032, %v3126
        %v3151 = vadd.f32 %v3033, %v3114
        %v3152 = vadd.f32 %v3034, %v3118
        %v3153 = vadd.f32 %v3035, %v3122
        %v3154 = vadd.f32 %v3036, %v3126
        %v3155 = vadd.f32 %v3037, %v3114
        %v3156 = vadd.f32 %v3038, %v3118
        %v3157 = vadd.f32 %v3039, %v3122
        %v3158 = vadd.f32 %v3040, %v3126
        %v3159 = vadd.f32 %v3041, %v3114
        %v3160 = vadd.f32 %v3042, %v3118
        %v3161 = vadd.f32 %v3043, %v3122
        %v3162 = vadd.f32 %v3044, %v3126
        %v3163 = vadd.f32 %v3045, %v3114
        %v3164 = vadd.f32 %v3046, %v3118
        %v3165 = vadd.f32 %v3047, %v3122
        %v3166 = vadd.f32 %v3048, %v3126
        %v3167 = vadd.f32 %v3049, %v3114
        %v3168 = vadd.f32 %v3050, %v3118
        %v3169 = vadd.f32 %v3051, %v3122
        %v3170 = vadd.f32 %v3052, %v3126
        %v3171 = vadd.f32 %v3053, %v3114
        %v3172 = vadd.f32 %v3054, %v3118
        %v3173 = vadd.f32 %v3055, %v3122
        %v3174 = vadd.f32 %v3056, %v3126
        %v3175 = vadd.f32 %v3057, %v3114
        %v3176 = vadd.f32 %v3058, %v3118
        %v3177 = vadd.f32 %v3059, %v3122
        %v3178 = vadd.f32 %v3060, %v3126
        %v3179 = vadd.f32 %v3061, %v3114
        %v3180 = vadd.f32 %v3062, %v3118
        %v3181 = vadd.f32 %v3063, %v3122
        %v3182 = vadd.f32 %v3064, %v3126
        %v3183 = vadd.f32 %v3065, %v3114
        %v3184 = vadd.f32 %v3066, %v3118
        %v3185 = vadd.f32 %v3067, %v3122
        %v3186 = vadd.f32 %v3068, %v3126
        %v3187 = vadd.f32 %v3069, %v3114
        %v3188 = vadd.f32 %v3070, %v3118
        %v3189 = vadd.f32 %v3071, %v3122
        %v3190 = vadd.f32 %v3072, %v3126
        %v3191 = vadd.f32 %v3073, %v3114
        %v3192 = vadd.f32 %v3074, %v3118
        %v3193 = vadd.f32 %v3075, %v3122
        %v3194 = vadd.f32 %v3076, %v3126
        %v3195 = vadd.f32 %v3077, %v3114
        %v3196 = vadd.f32 %v3078, %v3118
        %v3197 = vadd.f32 %v3079, %v3122
        %v3198 = vadd.f32 %v3080, %v3126
        %v3199 = vadd.f32 %v3081, %v3114
        %v3200 = vadd.f32 %v3082, %v3118
        %v3201 = vadd.f32 %v3083, %v3122
        %v3202 = vadd.f32 %v3084, %v3126
        %v3203 = vadd.f32 %v3085, %v3114
        %v3204 = vadd.f32 %v3086, %v3118
        %v3205 = vadd.f32 %v3087, %v3122
        %v3206 = vadd.f32 %v3088, %v3126
        %v3207 = vadd.f32 %v3089, %v3114
        %v3208 = vadd.f32 %v3090, %v3118
        %v3209 = vadd.f32 %v3091, %v3122
        %v3210 = vadd.f32 %v3092, %v3126
        %v3211 = vadd.f32 %v3093, %v3114
        %v3212 = vadd.f32 %v3094, %v3118
        %v3213 = vadd.f32 %v3095, %v3122
        %v3214 = vadd.f32 %v3096, %v3126
        %v3215 = vadd.f32 %v3097, %v3114
        %v3216 = vadd.f32 %v3098, %v3118
        %v3217 = vadd.f32 %v3099, %v3122
        %v3218 = vadd.f32 %v3100, %v3126
        %v3219 = vadd.f32 %v3101, %v3114
        %v3220 = vadd.f32 %v3102, %v3118
        %v3221 = vadd.f32 %v3103, %v3122
        %v3222 = vadd.f32 %v3104, %v3126
        %v3223 = vadd.f32 %v3105, %v3114
        %v3224 = vadd.f32 %v3106, %v3118
        %v3225 = vadd.f32 %v3107, %v3122
        %v3226 = vadd.f32 %v3108, %v3126
        %v3227 = vmax.f32 %v3131, 0.0
        %v3228 = vmax.f32 %v3132, 0.0
        %v3229 = vmax.f32 %v3133, 0.0
        %v3230 = vmax.f32 %v3134, 0.0
        %v3231 = vmax.f32 %v3135, 0.0
        %v3232 = vmax.f32 %v3136, 0.0
        %v3233 = vmax.f32 %v3137, 0.0
        %v3234 = vmax.f32 %v3138, 0.0
        %v3235 = vmax.f32 %v3139, 0.0
        %v3236 = vmax.f32 %v3140, 0.0
        %v3237 = vmax.f32 %v3141, 0.0
        %v3238 = vmax.f32 %v3142, 0.0
        %v3239 = vmax.f32 %v3143, 0.0
        %v3240 = vmax.f32 %v3144, 0.0
        %v3241 = vmax.f32 %v3145, 0.0
        %v3242 = vmax.f32 %v3146, 0.0
        %v3243 = vmax.f32 %v3147, 0.0
        %v3244 = vmax.f32 %v3148, 0.0
        %v3245 = vmax.f32 %v3149, 0.0
        %v3246 = vmax.f32 %v3150, 0.0
        %v3247 = vmax.f32 %v3151, 0.0
        %v3248 = vmax.f32 %v3152, 0.0
        %v3249 = vmax.f32 %v3153, 0.0
        %v3250 = vmax.f32 %v3154, 0.0
        %v3251 = vmax.f32 %v3155, 0.0
        %v3252 = vmax.f32 %v3156, 0.0
        %v3253 = vmax.f32 %v3157, 0.0
        %v3254 = vmax.f32 %v3158, 0.0
        %v3255 = vmax.f32 %v3159, 0.0
        %v3256 = vmax.f32 %v3160, 0.0
        %v3257 = vmax.f32 %v3161, 0.0
        %v3258 = vmax.f32 %v3162, 0.0
        %v3259 = vmax.f32 %v3163, 0.0
        %v3260 = vmax.f32 %v3164, 0.0
        %v3261 = vmax.f32 %v3165, 0.0
        %v3262 = vmax.f32 %v3166, 0.0
        %v3263 = vmax.f32 %v3167, 0.0
        %v3264 = vmax.f32 %v3168, 0.0
        %v3265 = vmax.f32 %v3169, 0.0
        %v3266 = vmax.f32 %v3170, 0.0
        %v3267 = vmax.f32 %v3171, 0.0
        %v3268 = vmax.f32 %v3172, 0.0
        %v3269 = vmax.f32 %v3173, 0.0
        %v3270 = vmax.f32 %v3174, 0.0
        %v3271 = vmax.f32 %v3175, 0.0
        %v3272 = vmax.f32 %v3176, 0.0
        %v3273 = vmax.f32 %v3177, 0.0
        %v3274 = vmax.f32 %v3178, 0.0
        %v3275 = vmax.f32 %v3179, 0.0
        %v3276 = vmax.f32 %v3180, 0.0
        %v3277 = vmax.f32 %v3181, 0.0
        %v3278 = vmax.f32 %v3182, 0.0
        %v3279 = vmax.f32 %v3183, 0.0
        %v3280 = vmax.f32 %v3184, 0.0
        %v3281 = vmax.f32 %v3185, 0.0
        %v3282 = vmax.f32 %v3186, 0.0
        %v3283 = vmax.f32 %v3187, 0.0
        %v3284 = vmax.f32 %v3188, 0.0
        %v3285 = vmax.f32 %v3189, 0.0
        %v3286 = vmax.f32 %v3190, 0.0
        %v3287 = vmax.f32 %v3191, 0.0
        %v3288 = vmax.f32 %v3192, 0.0
        %v3289 = vmax.f32 %v3193, 0.0
        %v3290 = vmax.f32 %v3194, 0.0
        %v3291 = vmax.f32 %v3195, 0.0
        %v3292 = vmax.f32 %v3196, 0.0
        %v3293 = vmax.f32 %v3197, 0.0
        %v3294 = vmax.f32 %v3198, 0.0
        %v3295 = vmax.f32 %v3199, 0.0
        %v3296 = vmax.f32 %v3200, 0.0
        %v3297 = vmax.f32 %v3201, 0.0
        %v3298 = vmax.f32 %v3202, 0.0
        %v3299 = vmax.f32 %v3203, 0.0
        %v3300 = vmax.f32 %v3204, 0.0
        %v3301 = vmax.f32 %v3205, 0.0
        %v3302 = vmax.f32 %v3206, 0.0
        %v3303 = vmax.f32 %v3207, 0.0
        %v3304 = vmax.f32 %v3208, 0.0
        %v3305 = vmax.f32 %v3209, 0.0
        %v3306 = vmax.f32 %v3210, 0.0
        %v3307 = vmax.f32 %v3211, 0.0
        %v3308 = vmax.f32 %v3212, 0.0
        %v3309 = vmax.f32 %v3213, 0.0
        %v3310 = vmax.f32 %v3214, 0.0
        %v3311 = vmax.f32 %v3215, 0.0
        %v3312 = vmax.f32 %v3216, 0.0
        %v3313 = vmax.f32 %v3217, 0.0
        %v3314 = vmax.f32 %v3218, 0.0
        %v3315 = vmax.f32 %v3219, 0.0
        %v3316 = vmax.f32 %v3220, 0.0
        %v3317 = vmax.f32 %v3221, 0.0
        %v3318 = vmax.f32 %v3222, 0.0
        %v3319 = vmax.f32 %v3223, 0.0
        %v3320 = vmax.f32 %v3224, 0.0
        %v3321 = vmax.f32 %v3225, 0.0
        %v3322 = vmax.f32 %v3226, 0.0
        %v3323 = vmax.f32 %v3227, %v3231
        %v3324 = vmax.f32 %v3228, %v3232
        %v3325 = vmax.f32 %v3229, %v3233
        %vm3326 = vcmask 785408
        %v3327 = vsel %vm3326, %v3230, -inf
        %v3328 = vsel %vm3326, %v3234, -inf
        %v3329 = vmax.f32 %v3327, %v3328
        %v3330 = vmax.f32 %v3235, %v3239
        %v3331 = vmax.f32 %v3236, %v3240
        %v3332 = vmax.f32 %v3237, %v3241
        %v3333 = vsel %vm3326, %v3238, -inf
        %v3334 = vsel %vm3326, %v3242, -inf
        %v3335 = vmax.f32 %v3333, %v3334
        %v3336 = vmax.f32 %v3243, %v3247
        %v3337 = vmax.f32 %v3244, %v3248
        %v3338 = vmax.f32 %v3245, %v3249
        %v3339 = vsel %vm3326, %v3246, -inf
        %v3340 = vsel %vm3326, %v3250, -inf
        %v3341 = vmax.f32 %v3339, %v3340
        %v3342 = vmax.f32 %v3251, %v3255
        %v3343 = vmax.f32 %v3252, %v3256
        %v3344 = vmax.f32 %v3253, %v3257
        %v3345 = vsel %vm3326, %v3254, -inf
        %v3346 = vsel %vm3326, %v3258, -inf
        %v3347 = vmax.f32 %v3345, %v3346
        %v3348 = vmax.f32 %v3259, %v3263
        %v3349 = vmax.f32 %v3260, %v3264
        %v3350 = vmax.f32 %v3261, %v3265
        %v3351 = vsel %vm3326, %v3262, -inf
        %v3352 = vsel %vm3326, %v3266, -inf
        %v3353 = vmax.f32 %v3351, %v3352
        %v3354 = vmax.f32 %v3267, %v3271
        %v3355 = vmax.f32 %v3268, %v3272
        %v3356 = vmax.f32 %v3269, %v3273
        %v3357 = vsel %vm3326, %v3270, -inf
        %v3358 = vsel %vm3326, %v3274, -inf
        %v3359 = vmax.f32 %v3357, %v3358
        %v3360 = vmax.f32 %v3275, %v3279
        %v3361 = vmax.f32 %v3276, %v3280
        %v3362 = vmax.f32 %v3277, %v3281
        %v3363 = vsel %vm3326, %v3278, -inf
        %v3364 = vsel %vm3326, %v3282, -inf
        %v3365 = vmax.f32 %v3363, %v3364
        %v3366 = vmax.f32 %v3283, %v3287
        %v3367 = vmax.f32 %v3284, %v3288
        %v3368 = vmax.f32 %v3285, %v3289
        %v3369 = vsel %vm3326, %v3286, -inf
        %v3370 = vsel %vm3326, %v3290, -inf
        %v3371 = vmax.f32 %v3369, %v3370
        %v3372 = vmax.f32 %v3291, %v3295
        %v3373 = vmax.f32 %v3292, %v3296
        %v3374 = vmax.f32 %v3293, %v3297
        %v3375 = vsel %vm3326, %v3294, -inf
        %v3376 = vsel %vm3326, %v3298, -inf
        %v3377 = vmax.f32 %v3375, %v3376
        %v3378 = vmax.f32 %v3299, %v3303
        %v3379 = vmax.f32 %v3300, %v3304
        %v3380 = vmax.f32 %v3301, %v3305
        %v3381 = vsel %vm3326, %v3302, -inf
        %v3382 = vsel %vm3326, %v3306, -inf
        %v3383 = vmax.f32 %v3381, %v3382
        %v3384 = vmax.f32 %v3307, %v3311
        %v3385 = vmax.f32 %v3308, %v3312
        %v3386 = vmax.f32 %v3309, %v3313
        %v3387 = vsel %vm3326, %v3310, -inf
        %v3388 = vsel %vm3326, %v3314, -inf
        %v3389 = vmax.f32 %v3387, %v3388
        %v3390 = vmax.f32 %v3315, %v3319
        %v3391 = vmax.f32 %v3316, %v3320
        %v3392 = vmax.f32 %v3317, %v3321
        %v3393 = vsel %vm3326, %v3318, -inf
        %v3394 = vsel %vm3326, %v3322, -inf
        %v3395 = vmax.f32 %v3393, %v3394
        %3444 = vrot.lane.b32.xlu0 %v3323, 108
        %v3445 = vpop.permute.xlu0 %3444
        %3446 = vrot.lane.b32.xlu0 %v3324, 108
        %v3447 = vpop.permute.xlu0 %3446
        %3448 = vrot.lane.b32.xlu0 %v3325, 108
        %v3449 = vpop.permute.xlu0 %3448
        %3450 = vrot.lane.b32.xlu0 %v3329, 108
        %v3451 = vpop.permute.xlu0 %3450
        %3452 = vrot.lane.b32.xlu0 %v3330, 108
        %v3453 = vpop.permute.xlu0 %3452
        %3454 = vrot.lane.b32.xlu0 %v3331, 108
        %v3455 = vpop.permute.xlu0 %3454
        %3456 = vrot.lane.b32.xlu0 %v3332, 108
        %v3457 = vpop.permute.xlu0 %3456
        %3458 = vrot.lane.b32.xlu0 %v3335, 108
        %v3459 = vpop.permute.xlu0 %3458
        %3460 = vrot.lane.b32.xlu0 %v3336, 108
        %v3461 = vpop.permute.xlu0 %3460
        %3462 = vrot.lane.b32.xlu0 %v3337, 108
        %v3463 = vpop.permute.xlu0 %3462
        %3464 = vrot.lane.b32.xlu0 %v3338, 108
        %v3465 = vpop.permute.xlu0 %3464
        %3466 = vrot.lane.b32.xlu0 %v3341, 108
        %v3467 = vpop.permute.xlu0 %3466
        %3468 = vrot.lane.b32.xlu0 %v3342, 108
        %v3469 = vpop.permute.xlu0 %3468
        %3470 = vrot.lane.b32.xlu0 %v3343, 108
        %v3471 = vpop.permute.xlu0 %3470
        %3472 = vrot.lane.b32.xlu0 %v3344, 108
        %v3473 = vpop.permute.xlu0 %3472
        %3474 = vrot.lane.b32.xlu0 %v3347, 108
        %v3475 = vpop.permute.xlu0 %3474
        %3476 = vrot.lane.b32.xlu0 %v3348, 108
        %v3477 = vpop.permute.xlu0 %3476
        %3478 = vrot.lane.b32.xlu0 %v3349, 108
        %v3479 = vpop.permute.xlu0 %3478
        %3480 = vrot.lane.b32.xlu0 %v3350, 108
        %v3481 = vpop.permute.xlu0 %3480
        %3482 = vrot.lane.b32.xlu0 %v3353, 108
        %v3483 = vpop.permute.xlu0 %3482
        %3484 = vrot.lane.b32.xlu0 %v3354, 108
        %v3485 = vpop.permute.xlu0 %3484
        %3486 = vrot.lane.b32.xlu0 %v3355, 108
        %v3487 = vpop.permute.xlu0 %3486
        %3488 = vrot.lane.b32.xlu0 %v3356, 108
        %v3489 = vpop.permute.xlu0 %3488
        %3490 = vrot.lane.b32.xlu0 %v3359, 108
        %v3491 = vpop.permute.xlu0 %3490
        %3492 = vrot.lane.b32.xlu0 %v3360, 108
        %v3493 = vpop.permute.xlu0 %3492
        %3494 = vrot.lane.b32.xlu0 %v3361, 108
        %v3495 = vpop.permute.xlu0 %3494
        %3496 = vrot.lane.b32.xlu0 %v3362, 108
        %v3497 = vpop.permute.xlu0 %3496
        %3498 = vrot.lane.b32.xlu0 %v3365, 108
        %v3499 = vpop.permute.xlu0 %3498
        %3500 = vrot.lane.b32.xlu0 %v3366, 108
        %v3501 = vpop.permute.xlu0 %3500
        %3502 = vrot.lane.b32.xlu0 %v3367, 108
        %v3503 = vpop.permute.xlu0 %3502
        %3504 = vrot.lane.b32.xlu0 %v3368, 108
        %v3505 = vpop.permute.xlu0 %3504
        %3506 = vrot.lane.b32.xlu0 %v3371, 108
        %v3507 = vpop.permute.xlu0 %3506
        %3508 = vrot.lane.b32.xlu0 %v3372, 108
        %v3509 = vpop.permute.xlu0 %3508
        %3510 = vrot.lane.b32.xlu0 %v3373, 108
        %v3511 = vpop.permute.xlu0 %3510
        %3512 = vrot.lane.b32.xlu0 %v3374, 108
        %v3513 = vpop.permute.xlu0 %3512
        %3514 = vrot.lane.b32.xlu0 %v3377, 108
        %v3515 = vpop.permute.xlu0 %3514
        %3516 = vrot.lane.b32.xlu0 %v3378, 108
        %v3517 = vpop.permute.xlu0 %3516
        %3518 = vrot.lane.b32.xlu0 %v3379, 108
        %v3519 = vpop.permute.xlu0 %3518
        %3520 = vrot.lane.b32.xlu0 %v3380, 108
        %v3521 = vpop.permute.xlu0 %3520
        %3522 = vrot.lane.b32.xlu0 %v3383, 108
        %v3523 = vpop.permute.xlu0 %3522
        %3524 = vrot.lane.b32.xlu0 %v3384, 108
        %v3525 = vpop.permute.xlu0 %3524
        %3526 = vrot.lane.b32.xlu0 %v3385, 108
        %v3527 = vpop.permute.xlu0 %3526
        %3528 = vrot.lane.b32.xlu0 %v3386, 108
        %v3529 = vpop.permute.xlu0 %3528
        %3530 = vrot.lane.b32.xlu0 %v3389, 108
        %v3531 = vpop.permute.xlu0 %3530
        %3532 = vrot.lane.b32.xlu0 %v3390, 108
        %v3533 = vpop.permute.xlu0 %3532
        %3534 = vrot.lane.b32.xlu0 %v3391, 108
        %v3535 = vpop.permute.xlu0 %3534
        %3536 = vrot.lane.b32.xlu0 %v3392, 108
        %v3537 = vpop.permute.xlu0 %3536
        %3538 = vrot.lane.b32.xlu0 %v3395, 108
        %v3539 = vpop.permute.xlu0 %3538
        %vm3540 = vcmask 883712
        %v3541 = vsel %vm3540, %v3445, %v3447
        %v3542 = vsel %vm3540, %v3447, %v3449
        %v3543 = vsel %vm3540, %v3449, %v3451
        %v3544 = vsel %vm3540, %v3453, %v3455
        %v3545 = vsel %vm3540, %v3455, %v3457
        %v3546 = vsel %vm3540, %v3457, %v3459
        %v3547 = vsel %vm3540, %v3461, %v3463
        %v3548 = vsel %vm3540, %v3463, %v3465
        %v3549 = vsel %vm3540, %v3465, %v3467
        %v3550 = vsel %vm3540, %v3469, %v3471
        %v3551 = vsel %vm3540, %v3471, %v3473
        %v3552 = vsel %vm3540, %v3473, %v3475
        %v3553 = vsel %vm3540, %v3477, %v3479
        %v3554 = vsel %vm3540, %v3479, %v3481
        %v3555 = vsel %vm3540, %v3481, %v3483
        %v3556 = vsel %vm3540, %v3485, %v3487
        %v3557 = vsel %vm3540, %v3487, %v3489
        %v3558 = vsel %vm3540, %v3489, %v3491
        %v3559 = vsel %vm3540, %v3493, %v3495
        %v3560 = vsel %vm3540, %v3495, %v3497
        %v3561 = vsel %vm3540, %v3497, %v3499
        %v3562 = vsel %vm3540, %v3501, %v3503
        %v3563 = vsel %vm3540, %v3503, %v3505
        %v3564 = vsel %vm3540, %v3505, %v3507
        %v3565 = vsel %vm3540, %v3509, %v3511
        %v3566 = vsel %vm3540, %v3511, %v3513
        %v3567 = vsel %vm3540, %v3513, %v3515
        %v3568 = vsel %vm3540, %v3517, %v3519
        %v3569 = vsel %vm3540, %v3519, %v3521
        %v3570 = vsel %vm3540, %v3521, %v3523
        %v3571 = vsel %vm3540, %v3525, %v3527
        %v3572 = vsel %vm3540, %v3527, %v3529
        %v3573 = vsel %vm3540, %v3529, %v3531
        %v3574 = vsel %vm3540, %v3533, %v3535
        %v3575 = vsel %vm3540, %v3535, %v3537
        %v3576 = vsel %vm3540, %v3537, %v3539
        %v3625 = vmax.f32 %v3323, %v3541
        %v3626 = vmax.f32 %v3324, %v3542
        %v3627 = vmax.f32 %v3325, %v3543
        %v3628 = vmax.f32 %v3329, %v3451
        %v3629 = vmax.f32 %v3330, %v3544
        %v3630 = vmax.f32 %v3331, %v3545
        %v3631 = vmax.f32 %v3332, %v3546
        %v3632 = vmax.f32 %v3335, %v3459
        %v3633 = vmax.f32 %v3336, %v3547
        %v3634 = vmax.f32 %v3337, %v3548
        %v3635 = vmax.f32 %v3338, %v3549
        %v3636 = vmax.f32 %v3341, %v3467
        %v3637 = vmax.f32 %v3342, %v3550
        %v3638 = vmax.f32 %v3343, %v3551
        %v3639 = vmax.f32 %v3344, %v3552
        %v3640 = vmax.f32 %v3347, %v3475
        %v3641 = vmax.f32 %v3348, %v3553
        %v3642 = vmax.f32 %v3349, %v3554
        %v3643 = vmax.f32 %v3350, %v3555
        %v3644 = vmax.f32 %v3353, %v3483
        %v3645 = vmax.f32 %v3354, %v3556
        %v3646 = vmax.f32 %v3355, %v3557
        %v3647 = vmax.f32 %v3356, %v3558
        %v3648 = vmax.f32 %v3359, %v3491
        %v3649 = vmax.f32 %v3360, %v3559
        %v3650 = vmax.f32 %v3361, %v3560
        %v3651 = vmax.f32 %v3362, %v3561
        %v3652 = vmax.f32 %v3365, %v3499
        %v3653 = vmax.f32 %v3366, %v3562
        %v3654 = vmax.f32 %v3367, %v3563
        %v3655 = vmax.f32 %v3368, %v3564
        %v3656 = vmax.f32 %v3371, %v3507
        %v3657 = vmax.f32 %v3372, %v3565
        %v3658 = vmax.f32 %v3373, %v3566
        %v3659 = vmax.f32 %v3374, %v3567
        %v3660 = vmax.f32 %v3377, %v3515
        %v3661 = vmax.f32 %v3378, %v3568
        %v3662 = vmax.f32 %v3379, %v3569
        %v3663 = vmax.f32 %v3380, %v3570
        %v3664 = vmax.f32 %v3383, %v3523
        %v3665 = vmax.f32 %v3384, %v3571
        %v3666 = vmax.f32 %v3385, %v3572
        %v3667 = vmax.f32 %v3386, %v3573
        %v3668 = vmax.f32 %v3389, %v3531
        %v3669 = vmax.f32 %v3390, %v3574
        %v3670 = vmax.f32 %v3391, %v3575
        %v3671 = vmax.f32 %v3392, %v3576
        %v3672 = vmax.f32 %v3395, %v3539
        %v3673 = vld [vmem:[%s3] sm:$0xff]
        %v3674 = vld [vmem:[%s3 + $0x8] sm:$0xff]
        %v3675 = vld [vmem:[%s3 + $0x10] sm:$0xff]
        %v3676 = vld [vmem:[%s3 + $0x18] sm:$0xff]
        %v3677 = vld [vmem:[%s3 + $0x20] sm:$0xff]
        %v3678 = vld [vmem:[%s3 + $0x28] sm:$0xff]
        %v3679 = vld [vmem:[%s3 + $0x30] sm:$0xff]
        %v3680 = vld [vmem:[%s3 + $0x38] sm:$0xff]
        %v3681 = vld [vmem:[%s3 + $0x40] sm:$0xff]
        %v3682 = vld [vmem:[%s3 + $0x48] sm:$0xff]
        %v3683 = vld [vmem:[%s3 + $0x50] sm:$0xff]
        %v3684 = vld [vmem:[%s3 + $0x58] sm:$0xff]
        %v3685 = vld [vmem:[%s3 + $0x60] sm:$0xff]
        %v3686 = vld [vmem:[%s3 + $0x68] sm:$0xff]
        %v3687 = vld [vmem:[%s3 + $0x70] sm:$0xff]
        %v3688 = vld [vmem:[%s3 + $0x78] sm:$0xff]
        %v3689 = vld [vmem:[%s3 + $0x80] sm:$0xff]
        %v3690 = vld [vmem:[%s3 + $0x88] sm:$0xff]
        %v3691 = vld [vmem:[%s3 + $0x90] sm:$0xff]
        %v3692 = vld [vmem:[%s3 + $0x98] sm:$0xff]
        %v3693 = vld [vmem:[%s3 + $0xa0] sm:$0xff]
        %v3694 = vld [vmem:[%s3 + $0xa8] sm:$0xff]
        %v3695 = vld [vmem:[%s3 + $0xb0] sm:$0xff]
        %v3696 = vld [vmem:[%s3 + $0xb8] sm:$0xff]
        %v3697 = vld [vmem:[%s3 + $0xc0] sm:$0xff]
        %v3698 = vld [vmem:[%s3 + $0xc8] sm:$0xff]
        %v3699 = vld [vmem:[%s3 + $0xd0] sm:$0xff]
        %v3700 = vld [vmem:[%s3 + $0xd8] sm:$0xff]
        %v3701 = vld [vmem:[%s3 + $0xe0] sm:$0xff]
        %v3702 = vld [vmem:[%s3 + $0xe8] sm:$0xff]
        %v3703 = vld [vmem:[%s3 + $0xf0] sm:$0xff]
        %v3704 = vld [vmem:[%s3 + $0xf8] sm:$0xff]
        %v3705 = vld [vmem:[%s3 + $0x100] sm:$0xff]
        %v3706 = vld [vmem:[%s3 + $0x108] sm:$0xff]
        %v3707 = vld [vmem:[%s3 + $0x110] sm:$0xff]
        %v3708 = vld [vmem:[%s3 + $0x118] sm:$0xff]
        %v3709 = vld [vmem:[%s3 + $0x120] sm:$0xff]
        %v3710 = vld [vmem:[%s3 + $0x128] sm:$0xff]
        %v3711 = vld [vmem:[%s3 + $0x130] sm:$0xff]
        %v3712 = vld [vmem:[%s3 + $0x138] sm:$0xff]
        %v3713 = vld [vmem:[%s3 + $0x140] sm:$0xff]
        %v3714 = vld [vmem:[%s3 + $0x148] sm:$0xff]
        %v3715 = vld [vmem:[%s3 + $0x150] sm:$0xff]
        %v3716 = vld [vmem:[%s3 + $0x158] sm:$0xff]
        %v3717 = vld [vmem:[%s3 + $0x160] sm:$0xff]
        %v3718 = vld [vmem:[%s3 + $0x168] sm:$0xff]
        %v3719 = vld [vmem:[%s3 + $0x170] sm:$0xff]
        %v3720 = vld [vmem:[%s3 + $0x178] sm:$0xff]
        %v3721 = vld [vmem:[%s3 + $0x180] sm:$0xff]
        %v3722 = vld [vmem:[%s3 + $0x188] sm:$0xff]
        %v3723 = vld [vmem:[%s3 + $0x190] sm:$0xff]
        %v3724 = vld [vmem:[%s3 + $0x198] sm:$0xff]
        %v3725 = vld [vmem:[%s3 + $0x1a0] sm:$0xff]
        %v3726 = vld [vmem:[%s3 + $0x1a8] sm:$0xff]
        %v3727 = vld [vmem:[%s3 + $0x1b0] sm:$0xff]
        %v3728 = vld [vmem:[%s3 + $0x1b8] sm:$0xff]
        %v3729 = vld [vmem:[%s3 + $0x1c0] sm:$0xff]
        %v3730 = vld [vmem:[%s3 + $0x1c8] sm:$0xff]
        %v3731 = vld [vmem:[%s3 + $0x1d0] sm:$0xff]
        %v3732 = vld [vmem:[%s3 + $0x1d8] sm:$0xff]
        %v3733 = vld [vmem:[%s3 + $0x1e0] sm:$0xff]
        %v3734 = vld [vmem:[%s3 + $0x1e8] sm:$0xff]
        %v3735 = vld [vmem:[%s3 + $0x1f0] sm:$0xff]
        %v3736 = vld [vmem:[%s3 + $0x1f8] sm:$0xff]
        %v3737 = vld [vmem:[%s3 + $0x200] sm:$0xff]
        %v3738 = vld [vmem:[%s3 + $0x208] sm:$0xff]
        %v3739 = vld [vmem:[%s3 + $0x210] sm:$0xff]
        %v3740 = vld [vmem:[%s3 + $0x218] sm:$0xff]
        %v3741 = vld [vmem:[%s3 + $0x220] sm:$0xff]
        %v3742 = vld [vmem:[%s3 + $0x228] sm:$0xff]
        %v3743 = vld [vmem:[%s3 + $0x230] sm:$0xff]
        %v3744 = vld [vmem:[%s3 + $0x238] sm:$0xff]
        %v3745 = vld [vmem:[%s3 + $0x240] sm:$0xff]
        %v3746 = vld [vmem:[%s3 + $0x248] sm:$0xff]
        %v3747 = vld [vmem:[%s3 + $0x250] sm:$0xff]
        %v3748 = vld [vmem:[%s3 + $0x258] sm:$0xff]
        %v3749 = vld [vmem:[%s3 + $0x260] sm:$0xff]
        %v3750 = vld [vmem:[%s3 + $0x268] sm:$0xff]
        %v3751 = vld [vmem:[%s3 + $0x270] sm:$0xff]
        %v3752 = vld [vmem:[%s3 + $0x278] sm:$0xff]
        %v3753 = vld [vmem:[%s3 + $0x280] sm:$0xff]
        %v3754 = vld [vmem:[%s3 + $0x288] sm:$0xff]
        %v3755 = vld [vmem:[%s3 + $0x290] sm:$0xff]
        %v3756 = vld [vmem:[%s3 + $0x298] sm:$0xff]
        %v3757 = vld [vmem:[%s3 + $0x2a0] sm:$0xff]
        %v3758 = vld [vmem:[%s3 + $0x2a8] sm:$0xff]
        %v3759 = vld [vmem:[%s3 + $0x2b0] sm:$0xff]
        %v3760 = vld [vmem:[%s3 + $0x2b8] sm:$0xff]
        %v3761 = vld [vmem:[%s3 + $0x2c0] sm:$0xff]
        %v3762 = vld [vmem:[%s3 + $0x2c8] sm:$0xff]
        %v3763 = vld [vmem:[%s3 + $0x2d0] sm:$0xff]
        %v3764 = vld [vmem:[%s3 + $0x2d8] sm:$0xff]
        %v3765 = vld [vmem:[%s3 + $0x2e0] sm:$0xff]
        %v3766 = vld [vmem:[%s3 + $0x2e8] sm:$0xff]
        %v3767 = vld [vmem:[%s3 + $0x2f0] sm:$0xff]
        %v3768 = vld [vmem:[%s3 + $0x2f8] sm:$0xff]
        %v3769 = vld [vmem:[%s3 + $0x300] sm:$0xff]
        %v3770 = vld [vmem:[%s3 + $0x308] sm:$0xff]
        %v3771 = vld [vmem:[%s3 + $0x310] sm:$0xff]
        %v3772 = vld [vmem:[%s3 + $0x318] sm:$0xff]
        %v3773 = vld [vmem:[%s3 + $0x320] sm:$0xff]
        %v3774 = vld [vmem:[%s3 + $0x328] sm:$0xff]
        %v3775 = vld [vmem:[%s3 + $0x330] sm:$0xff]
        %v3776 = vld [vmem:[%s3 + $0x338] sm:$0xff]
        %v3777 = vld [vmem:[%s3 + $0x340] sm:$0xff]
        %v3778 = vld [vmem:[%s3 + $0x348] sm:$0xff]
        %v3779 = vld [vmem:[%s3 + $0x350] sm:$0xff]
        %v3780 = vld [vmem:[%s3 + $0x358] sm:$0xff]
        %v3781 = vld [vmem:[%s3 + $0x360] sm:$0xff]
        %v3782 = vld [vmem:[%s3 + $0x368] sm:$0xff]
        %v3783 = vld [vmem:[%s3 + $0x370] sm:$0xff]
        %v3784 = vld [vmem:[%s3 + $0x378] sm:$0xff]
        %v3785 = vld [vmem:[%s3 + $0x380] sm:$0xff]
        %v3786 = vld [vmem:[%s3 + $0x388] sm:$0xff]
        %v3787 = vld [vmem:[%s3 + $0x390] sm:$0xff]
        %v3788 = vld [vmem:[%s3 + $0x398] sm:$0xff]
        %v3789 = vld [vmem:[%s3 + $0x3a0] sm:$0xff]
        %v3790 = vld [vmem:[%s3 + $0x3a8] sm:$0xff]
        %v3791 = vld [vmem:[%s3 + $0x3b0] sm:$0xff]
        %v3792 = vld [vmem:[%s3 + $0x3b8] sm:$0xff]
        %v3793 = vld [vmem:[%s3 + $0x3c0] sm:$0xff]
        %v3794 = vld [vmem:[%s3 + $0x3c8] sm:$0xff]
        %v3795 = vld [vmem:[%s3 + $0x3d0] sm:$0xff]
        %v3796 = vld [vmem:[%s3 + $0x3d8] sm:$0xff]
        %v3797 = vld [vmem:[%s3 + $0x3e0] sm:$0xff]
        %v3798 = vld [vmem:[%s3 + $0x3e8] sm:$0xff]
        %v3799 = vld [vmem:[%s3 + $0x3f0] sm:$0xff]
        %v3800 = vld [vmem:[%s3 + $0x3f8] sm:$0xff]
        %v3801 = vld [vmem:[%s3 + $0x400] sm:$0xff]
        %v3802 = vld [vmem:[%s3 + $0x408] sm:$0xff]
        %v3803 = vld [vmem:[%s3 + $0x410] sm:$0xff]
        %v3804 = vld [vmem:[%s3 + $0x418] sm:$0xff]
        %v3805 = vld [vmem:[%s3 + $0x420] sm:$0xff]
        %v3806 = vld [vmem:[%s3 + $0x428] sm:$0xff]
        %v3807 = vld [vmem:[%s3 + $0x430] sm:$0xff]
        %v3808 = vld [vmem:[%s3 + $0x438] sm:$0xff]
        %v3809 = vld [vmem:[%s3 + $0x440] sm:$0xff]
        %v3810 = vld [vmem:[%s3 + $0x448] sm:$0xff]
        %v3811 = vld [vmem:[%s3 + $0x450] sm:$0xff]
        %v3812 = vld [vmem:[%s3 + $0x458] sm:$0xff]
        %v3813 = vld [vmem:[%s3 + $0x460] sm:$0xff]
        %v3814 = vld [vmem:[%s3 + $0x468] sm:$0xff]
        %v3815 = vld [vmem:[%s3 + $0x470] sm:$0xff]
        %v3816 = vld [vmem:[%s3 + $0x478] sm:$0xff]
        %v3817 = vld [vmem:[%s3 + $0x480] sm:$0xff]
        %v3818 = vld [vmem:[%s3 + $0x488] sm:$0xff]
        %v3819 = vld [vmem:[%s3 + $0x490] sm:$0xff]
        %v3820 = vld [vmem:[%s3 + $0x498] sm:$0xff]
        %v3821 = vld [vmem:[%s3 + $0x4a0] sm:$0xff]
        %v3822 = vld [vmem:[%s3 + $0x4a8] sm:$0xff]
        %v3823 = vld [vmem:[%s3 + $0x4b0] sm:$0xff]
        %v3824 = vld [vmem:[%s3 + $0x4b8] sm:$0xff]
        %v3825 = vld [vmem:[%s3 + $0x4c0] sm:$0xff]
        %v3826 = vld [vmem:[%s3 + $0x4c8] sm:$0xff]
        %v3827 = vld [vmem:[%s3 + $0x4d0] sm:$0xff]
        %v3828 = vld [vmem:[%s3 + $0x4d8] sm:$0xff]
        %v3829 = vld [vmem:[%s3 + $0x4e0] sm:$0xff]
        %v3830 = vld [vmem:[%s3 + $0x4e8] sm:$0xff]
        %v3831 = vld [vmem:[%s3 + $0x4f0] sm:$0xff]
        %v3832 = vld [vmem:[%s3 + $0x4f8] sm:$0xff]
        %v3833 = vld [vmem:[%s3 + $0x500] sm:$0xff]
        %v3834 = vld [vmem:[%s3 + $0x508] sm:$0xff]
        %v3835 = vld [vmem:[%s3 + $0x510] sm:$0xff]
        %v3836 = vld [vmem:[%s3 + $0x518] sm:$0xff]
        %v3837 = vld [vmem:[%s3 + $0x520] sm:$0xff]
        %v3838 = vld [vmem:[%s3 + $0x528] sm:$0xff]
        %v3839 = vld [vmem:[%s3 + $0x530] sm:$0xff]
        %v3840 = vld [vmem:[%s3 + $0x538] sm:$0xff]
        %v3841 = vld [vmem:[%s3 + $0x540] sm:$0xff]
        %v3842 = vld [vmem:[%s3 + $0x548] sm:$0xff]
        %v3843 = vld [vmem:[%s3 + $0x550] sm:$0xff]
        %v3844 = vld [vmem:[%s3 + $0x558] sm:$0xff]
        %v3845 = vld [vmem:[%s3 + $0x560] sm:$0xff]
        %v3846 = vld [vmem:[%s3 + $0x568] sm:$0xff]
        %v3847 = vld [vmem:[%s3 + $0x570] sm:$0xff]
        %v3848 = vld [vmem:[%s3 + $0x578] sm:$0xff]
        %v3849 = vld [vmem:[%s3 + $0x580] sm:$0xff]
        %v3850 = vld [vmem:[%s3 + $0x588] sm:$0xff]
        %v3851 = vld [vmem:[%s3 + $0x590] sm:$0xff]
        %v3852 = vld [vmem:[%s3 + $0x598] sm:$0xff]
        %v3853 = vld [vmem:[%s3 + $0x5a0] sm:$0xff]
        %v3854 = vld [vmem:[%s3 + $0x5a8] sm:$0xff]
        %v3855 = vld [vmem:[%s3 + $0x5b0] sm:$0xff]
        %v3856 = vld [vmem:[%s3 + $0x5b8] sm:$0xff]
        %v3857 = vld [vmem:[%s3 + $0x5c0] sm:$0xff]
        %v3858 = vld [vmem:[%s3 + $0x5c8] sm:$0xff]
        %v3859 = vld [vmem:[%s3 + $0x5d0] sm:$0xff]
        %v3860 = vld [vmem:[%s3 + $0x5d8] sm:$0xff]
        %v3861 = vld [vmem:[%s3 + $0x5e0] sm:$0xff]
        %v3862 = vld [vmem:[%s3 + $0x5e8] sm:$0xff]
        %v3863 = vld [vmem:[%s3 + $0x5f0] sm:$0xff]
        %v3864 = vld [vmem:[%s3 + $0x5f8] sm:$0xff]
        %v3865 = vld [vmem:[%s3 + $0x600] sm:$0xff]
        %v3866 = vld [vmem:[%s3 + $0x608] sm:$0xff]
        %v3867 = vld [vmem:[%s3 + $0x610] sm:$0xff]
        %v3868 = vld [vmem:[%s3 + $0x618] sm:$0xff]
        %v3869 = vld [vmem:[%s3 + $0x620] sm:$0xff]
        %v3870 = vld [vmem:[%s3 + $0x628] sm:$0xff]
        %v3871 = vld [vmem:[%s3 + $0x630] sm:$0xff]
        %v3872 = vld [vmem:[%s3 + $0x638] sm:$0xff]
        %v3873 = vld [vmem:[%s3 + $0x640] sm:$0xff]
        %v3874 = vld [vmem:[%s3 + $0x648] sm:$0xff]
        %v3875 = vld [vmem:[%s3 + $0x650] sm:$0xff]
        %v3876 = vld [vmem:[%s3 + $0x658] sm:$0xff]
        %v3877 = vld [vmem:[%s3 + $0x660] sm:$0xff]
        %v3878 = vld [vmem:[%s3 + $0x668] sm:$0xff]
        %v3879 = vld [vmem:[%s3 + $0x670] sm:$0xff]
        %v3880 = vld [vmem:[%s3 + $0x678] sm:$0xff]
        %v3881 = vld [vmem:[%s3 + $0x680] sm:$0xff]
        %v3882 = vld [vmem:[%s3 + $0x688] sm:$0xff]
        %v3883 = vld [vmem:[%s3 + $0x690] sm:$0xff]
        %v3884 = vld [vmem:[%s3 + $0x698] sm:$0xff]
        %v3885 = vld [vmem:[%s3 + $0x6a0] sm:$0xff]
        %v3886 = vld [vmem:[%s3 + $0x6a8] sm:$0xff]
        %v3887 = vld [vmem:[%s3 + $0x6b0] sm:$0xff]
        %v3888 = vld [vmem:[%s3 + $0x6b8] sm:$0xff]
        %v3889 = vld [vmem:[%s3 + $0x6c0] sm:$0xff]
        %v3890 = vld [vmem:[%s3 + $0x6c8] sm:$0xff]
        %v3891 = vld [vmem:[%s3 + $0x6d0] sm:$0xff]
        %v3892 = vld [vmem:[%s3 + $0x6d8] sm:$0xff]
        %v3893 = vld [vmem:[%s3 + $0x6e0] sm:$0xff]
        %v3894 = vld [vmem:[%s3 + $0x6e8] sm:$0xff]
        %v3895 = vld [vmem:[%s3 + $0x6f0] sm:$0xff]
        %v3896 = vld [vmem:[%s3 + $0x6f8] sm:$0xff]
        %v3897 = vld [vmem:[%s3 + $0x700] sm:$0xff]
        %v3898 = vld [vmem:[%s3 + $0x708] sm:$0xff]
        %v3899 = vld [vmem:[%s3 + $0x710] sm:$0xff]
        %v3900 = vld [vmem:[%s3 + $0x718] sm:$0xff]
        %v3901 = vld [vmem:[%s3 + $0x720] sm:$0xf]
        %v3902 = vld [vmem:[%s3 + $0x728] sm:$0xf]
        %v3903 = vld [vmem:[%s3 + $0x730] sm:$0xf]
        %v3904 = vld [vmem:[%s3 + $0x738] sm:$0xf]
        %s3905 = scalar_lea.vmem %s3, 1856
        %v3906 = vld [vmem:[%s3905] sm:$0xff]
        %v3907 = vld [vmem:[%s3905 + $0x8] sm:$0xff]
        %v3908 = vld [vmem:[%s3905 + $0x10] sm:$0xff]
        %v3909 = vld [vmem:[%s3905 + $0x18] sm:$0xff]
        %v3910 = vld [vmem:[%s3905 + $0x20] sm:$0xff]
        %v3911 = vld [vmem:[%s3905 + $0x28] sm:$0xff]
        %v3912 = vld [vmem:[%s3905 + $0x30] sm:$0xff]
        %v3913 = vld [vmem:[%s3905 + $0x38] sm:$0xff]
        %v3914 = vld [vmem:[%s3905 + $0x40] sm:$0xff]
        %v3915 = vld [vmem:[%s3905 + $0x48] sm:$0xff]
        %v3916 = vld [vmem:[%s3905 + $0x50] sm:$0xff]
        %v3917 = vld [vmem:[%s3905 + $0x58] sm:$0xff]
        %v3918 = vld [vmem:[%s3905 + $0x60] sm:$0xff]
        %v3919 = vld [vmem:[%s3905 + $0x68] sm:$0xff]
        %v3920 = vld [vmem:[%s3905 + $0x70] sm:$0xff]
        %v3921 = vld [vmem:[%s3905 + $0x78] sm:$0xff]
        %v3922 = vld [vmem:[%s3905 + $0x80] sm:$0xff]
        %v3923 = vld [vmem:[%s3905 + $0x88] sm:$0xff]
        %v3924 = vld [vmem:[%s3905 + $0x90] sm:$0xff]
        %v3925 = vld [vmem:[%s3905 + $0x98] sm:$0xff]
        %v3926 = vld [vmem:[%s3905 + $0xa0] sm:$0xff]
        %v3927 = vld [vmem:[%s3905 + $0xa8] sm:$0xff]
        %v3928 = vld [vmem:[%s3905 + $0xb0] sm:$0xff]
        %v3929 = vld [vmem:[%s3905 + $0xb8] sm:$0xff]
        %v3930 = vld [vmem:[%s3905 + $0xc0] sm:$0xff]
        %v3931 = vld [vmem:[%s3905 + $0xc8] sm:$0xff]
        %v3932 = vld [vmem:[%s3905 + $0xd0] sm:$0xff]
        %v3933 = vld [vmem:[%s3905 + $0xd8] sm:$0xff]
        %v3934 = vld [vmem:[%s3905 + $0xe0] sm:$0xff]
        %v3935 = vld [vmem:[%s3905 + $0xe8] sm:$0xff]
        %v3936 = vld [vmem:[%s3905 + $0xf0] sm:$0xff]
        %v3937 = vld [vmem:[%s3905 + $0xf8] sm:$0xff]
        %v3938 = vld [vmem:[%s3905 + $0x100] sm:$0xff]
        %v3939 = vld [vmem:[%s3905 + $0x108] sm:$0xff]
        %v3940 = vld [vmem:[%s3905 + $0x110] sm:$0xff]
        %v3941 = vld [vmem:[%s3905 + $0x118] sm:$0xff]
        %v3942 = vld [vmem:[%s3905 + $0x120] sm:$0xff]
        %v3943 = vld [vmem:[%s3905 + $0x128] sm:$0xff]
        %v3944 = vld [vmem:[%s3905 + $0x130] sm:$0xff]
        %v3945 = vld [vmem:[%s3905 + $0x138] sm:$0xff]
        %v3946 = vld [vmem:[%s3905 + $0x140] sm:$0xff]
        %v3947 = vld [vmem:[%s3905 + $0x148] sm:$0xff]
        %v3948 = vld [vmem:[%s3905 + $0x150] sm:$0xff]
        %v3949 = vld [vmem:[%s3905 + $0x158] sm:$0xff]
        %v3950 = vld [vmem:[%s3905 + $0x160] sm:$0xff]
        %v3951 = vld [vmem:[%s3905 + $0x168] sm:$0xff]
        %v3952 = vld [vmem:[%s3905 + $0x170] sm:$0xff]
        %v3953 = vld [vmem:[%s3905 + $0x178] sm:$0xff]
        %v3954 = vld [vmem:[%s3905 + $0x180] sm:$0xff]
        %v3955 = vld [vmem:[%s3905 + $0x188] sm:$0xff]
        %v3956 = vld [vmem:[%s3905 + $0x190] sm:$0xff]
        %v3957 = vld [vmem:[%s3905 + $0x198] sm:$0xff]
        %v3958 = vld [vmem:[%s3905 + $0x1a0] sm:$0xff]
        %v3959 = vld [vmem:[%s3905 + $0x1a8] sm:$0xff]
        %v3960 = vld [vmem:[%s3905 + $0x1b0] sm:$0xff]
        %v3961 = vld [vmem:[%s3905 + $0x1b8] sm:$0xff]
        %v3962 = vld [vmem:[%s3905 + $0x1c0] sm:$0xff]
        %v3963 = vld [vmem:[%s3905 + $0x1c8] sm:$0xff]
        %v3964 = vld [vmem:[%s3905 + $0x1d0] sm:$0xff]
        %v3965 = vld [vmem:[%s3905 + $0x1d8] sm:$0xff]
        %v3966 = vld [vmem:[%s3905 + $0x1e0] sm:$0xff]
        %v3967 = vld [vmem:[%s3905 + $0x1e8] sm:$0xff]
        %v3968 = vld [vmem:[%s3905 + $0x1f0] sm:$0xff]
        %v3969 = vld [vmem:[%s3905 + $0x1f8] sm:$0xff]
        %v3970 = vld [vmem:[%s3905 + $0x200] sm:$0xff]
        %v3971 = vld [vmem:[%s3905 + $0x208] sm:$0xff]
        %v3972 = vld [vmem:[%s3905 + $0x210] sm:$0xff]
        %v3973 = vld [vmem:[%s3905 + $0x218] sm:$0xff]
        %v3974 = vld [vmem:[%s3905 + $0x220] sm:$0xff]
        %v3975 = vld [vmem:[%s3905 + $0x228] sm:$0xff]
        %v3976 = vld [vmem:[%s3905 + $0x230] sm:$0xff]
        %v3977 = vld [vmem:[%s3905 + $0x238] sm:$0xff]
        %v3978 = vld [vmem:[%s3905 + $0x240] sm:$0xff]
        %v3979 = vld [vmem:[%s3905 + $0x248] sm:$0xff]
        %v3980 = vld [vmem:[%s3905 + $0x250] sm:$0xff]
        %v3981 = vld [vmem:[%s3905 + $0x258] sm:$0xff]
        %v3982 = vld [vmem:[%s3905 + $0x260] sm:$0xff]
        %v3983 = vld [vmem:[%s3905 + $0x268] sm:$0xff]
        %v3984 = vld [vmem:[%s3905 + $0x270] sm:$0xff]
        %v3985 = vld [vmem:[%s3905 + $0x278] sm:$0xff]
        %v3986 = vld [vmem:[%s3905 + $0x280] sm:$0xff]
        %v3987 = vld [vmem:[%s3905 + $0x288] sm:$0xff]
        %v3988 = vld [vmem:[%s3905 + $0x290] sm:$0xff]
        %v3989 = vld [vmem:[%s3905 + $0x298] sm:$0xff]
        %v3990 = vld [vmem:[%s3905 + $0x2a0] sm:$0xff]
        %v3991 = vld [vmem:[%s3905 + $0x2a8] sm:$0xff]
        %v3992 = vld [vmem:[%s3905 + $0x2b0] sm:$0xff]
        %v3993 = vld [vmem:[%s3905 + $0x2b8] sm:$0xff]
        %v3994 = vld [vmem:[%s3905 + $0x2c0] sm:$0xff]
        %v3995 = vld [vmem:[%s3905 + $0x2c8] sm:$0xff]
        %v3996 = vld [vmem:[%s3905 + $0x2d0] sm:$0xff]
        %v3997 = vld [vmem:[%s3905 + $0x2d8] sm:$0xff]
        %v3998 = vld [vmem:[%s3905 + $0x2e0] sm:$0xff]
        %v3999 = vld [vmem:[%s3905 + $0x2e8] sm:$0xff]
        %v4000 = vld [vmem:[%s3905 + $0x2f0] sm:$0xff]
        %v4001 = vld [vmem:[%s3905 + $0x2f8] sm:$0xff]
        %v4002 = vld [vmem:[%s3905 + $0x300] sm:$0xff]
        %v4003 = vld [vmem:[%s3905 + $0x308] sm:$0xff]
        %v4004 = vld [vmem:[%s3905 + $0x310] sm:$0xff]
        %v4005 = vld [vmem:[%s3905 + $0x318] sm:$0xff]
        %v4006 = vld [vmem:[%s3905 + $0x320] sm:$0xff]
        %v4007 = vld [vmem:[%s3905 + $0x328] sm:$0xff]
        %v4008 = vld [vmem:[%s3905 + $0x330] sm:$0xff]
        %v4009 = vld [vmem:[%s3905 + $0x338] sm:$0xff]
        %v4010 = vld [vmem:[%s3905 + $0x340] sm:$0xff]
        %v4011 = vld [vmem:[%s3905 + $0x348] sm:$0xff]
        %v4012 = vld [vmem:[%s3905 + $0x350] sm:$0xff]
        %v4013 = vld [vmem:[%s3905 + $0x358] sm:$0xff]
        %v4014 = vld [vmem:[%s3905 + $0x360] sm:$0xff]
        %v4015 = vld [vmem:[%s3905 + $0x368] sm:$0xff]
        %v4016 = vld [vmem:[%s3905 + $0x370] sm:$0xff]
        %v4017 = vld [vmem:[%s3905 + $0x378] sm:$0xff]
        %v4018 = vld [vmem:[%s3905 + $0x380] sm:$0xff]
        %v4019 = vld [vmem:[%s3905 + $0x388] sm:$0xff]
        %v4020 = vld [vmem:[%s3905 + $0x390] sm:$0xff]
        %v4021 = vld [vmem:[%s3905 + $0x398] sm:$0xff]
        %v4022 = vld [vmem:[%s3905 + $0x3a0] sm:$0xff]
        %v4023 = vld [vmem:[%s3905 + $0x3a8] sm:$0xff]
        %v4024 = vld [vmem:[%s3905 + $0x3b0] sm:$0xff]
        %v4025 = vld [vmem:[%s3905 + $0x3b8] sm:$0xff]
        %v4026 = vld [vmem:[%s3905 + $0x3c0] sm:$0xff]
        %v4027 = vld [vmem:[%s3905 + $0x3c8] sm:$0xff]
        %v4028 = vld [vmem:[%s3905 + $0x3d0] sm:$0xff]
        %v4029 = vld [vmem:[%s3905 + $0x3d8] sm:$0xff]
        %v4030 = vld [vmem:[%s3905 + $0x3e0] sm:$0xff]
        %v4031 = vld [vmem:[%s3905 + $0x3e8] sm:$0xff]
        %v4032 = vld [vmem:[%s3905 + $0x3f0] sm:$0xff]
        %v4033 = vld [vmem:[%s3905 + $0x3f8] sm:$0xff]
        %v4034 = vld [vmem:[%s3905 + $0x400] sm:$0xff]
        %v4035 = vld [vmem:[%s3905 + $0x408] sm:$0xff]
        %v4036 = vld [vmem:[%s3905 + $0x410] sm:$0xff]
        %v4037 = vld [vmem:[%s3905 + $0x418] sm:$0xff]
        %v4038 = vld [vmem:[%s3905 + $0x420] sm:$0xff]
        %v4039 = vld [vmem:[%s3905 + $0x428] sm:$0xff]
        %v4040 = vld [vmem:[%s3905 + $0x430] sm:$0xff]
        %v4041 = vld [vmem:[%s3905 + $0x438] sm:$0xff]
        %v4042 = vld [vmem:[%s3905 + $0x440] sm:$0xff]
        %v4043 = vld [vmem:[%s3905 + $0x448] sm:$0xff]
        %v4044 = vld [vmem:[%s3905 + $0x450] sm:$0xff]
        %v4045 = vld [vmem:[%s3905 + $0x458] sm:$0xff]
        %v4046 = vld [vmem:[%s3905 + $0x460] sm:$0xff]
        %v4047 = vld [vmem:[%s3905 + $0x468] sm:$0xff]
        %v4048 = vld [vmem:[%s3905 + $0x470] sm:$0xff]
        %v4049 = vld [vmem:[%s3905 + $0x478] sm:$0xff]
        %v4050 = vld [vmem:[%s3905 + $0x480] sm:$0xff]
        %v4051 = vld [vmem:[%s3905 + $0x488] sm:$0xff]
        %v4052 = vld [vmem:[%s3905 + $0x490] sm:$0xff]
        %v4053 = vld [vmem:[%s3905 + $0x498] sm:$0xff]
        %v4054 = vld [vmem:[%s3905 + $0x4a0] sm:$0xff]
        %v4055 = vld [vmem:[%s3905 + $0x4a8] sm:$0xff]
        %v4056 = vld [vmem:[%s3905 + $0x4b0] sm:$0xff]
        %v4057 = vld [vmem:[%s3905 + $0x4b8] sm:$0xff]
        %v4058 = vld [vmem:[%s3905 + $0x4c0] sm:$0xff]
        %v4059 = vld [vmem:[%s3905 + $0x4c8] sm:$0xff]
        %v4060 = vld [vmem:[%s3905 + $0x4d0] sm:$0xff]
        %v4061 = vld [vmem:[%s3905 + $0x4d8] sm:$0xff]
        %v4062 = vld [vmem:[%s3905 + $0x4e0] sm:$0xff]
        %v4063 = vld [vmem:[%s3905 + $0x4e8] sm:$0xff]
        %v4064 = vld [vmem:[%s3905 + $0x4f0] sm:$0xff]
        %v4065 = vld [vmem:[%s3905 + $0x4f8] sm:$0xff]
        %v4066 = vld [vmem:[%s3905 + $0x500] sm:$0xff]
        %v4067 = vld [vmem:[%s3905 + $0x508] sm:$0xff]
        %v4068 = vld [vmem:[%s3905 + $0x510] sm:$0xff]
        %v4069 = vld [vmem:[%s3905 + $0x518] sm:$0xff]
        %v4070 = vld [vmem:[%s3905 + $0x520] sm:$0xff]
        %v4071 = vld [vmem:[%s3905 + $0x528] sm:$0xff]
        %v4072 = vld [vmem:[%s3905 + $0x530] sm:$0xff]
        %v4073 = vld [vmem:[%s3905 + $0x538] sm:$0xff]
        %v4074 = vld [vmem:[%s3905 + $0x540] sm:$0xff]
        %v4075 = vld [vmem:[%s3905 + $0x548] sm:$0xff]
        %v4076 = vld [vmem:[%s3905 + $0x550] sm:$0xff]
        %v4077 = vld [vmem:[%s3905 + $0x558] sm:$0xff]
        %v4078 = vld [vmem:[%s3905 + $0x560] sm:$0xff]
        %v4079 = vld [vmem:[%s3905 + $0x568] sm:$0xff]
        %v4080 = vld [vmem:[%s3905 + $0x570] sm:$0xff]
        %v4081 = vld [vmem:[%s3905 + $0x578] sm:$0xff]
        %v4082 = vld [vmem:[%s3905 + $0x580] sm:$0xff]
        %v4083 = vld [vmem:[%s3905 + $0x588] sm:$0xff]
        %v4084 = vld [vmem:[%s3905 + $0x590] sm:$0xff]
        %v4085 = vld [vmem:[%s3905 + $0x598] sm:$0xff]
        %v4086 = vld [vmem:[%s3905 + $0x5a0] sm:$0xff]
        %v4087 = vld [vmem:[%s3905 + $0x5a8] sm:$0xff]
        %v4088 = vld [vmem:[%s3905 + $0x5b0] sm:$0xff]
        %v4089 = vld [vmem:[%s3905 + $0x5b8] sm:$0xff]
        %v4090 = vld [vmem:[%s3905 + $0x5c0] sm:$0xff]
        %v4091 = vld [vmem:[%s3905 + $0x5c8] sm:$0xff]
        %v4092 = vld [vmem:[%s3905 + $0x5d0] sm:$0xff]
        %v4093 = vld [vmem:[%s3905 + $0x5d8] sm:$0xff]
        %v4094 = vld [vmem:[%s3905 + $0x5e0] sm:$0xff]
        %v4095 = vld [vmem:[%s3905 + $0x5e8] sm:$0xff]
        %v4096 = vld [vmem:[%s3905 + $0x5f0] sm:$0xff]
        %v4097 = vld [vmem:[%s3905 + $0x5f8] sm:$0xff]
        %v4098 = vld [vmem:[%s3905 + $0x600] sm:$0xff]
        %v4099 = vld [vmem:[%s3905 + $0x608] sm:$0xff]
        %v4100 = vld [vmem:[%s3905 + $0x610] sm:$0xff]
        %v4101 = vld [vmem:[%s3905 + $0x618] sm:$0xff]
        %v4102 = vld [vmem:[%s3905 + $0x620] sm:$0xff]
        %v4103 = vld [vmem:[%s3905 + $0x628] sm:$0xff]
        %v4104 = vld [vmem:[%s3905 + $0x630] sm:$0xff]
        %v4105 = vld [vmem:[%s3905 + $0x638] sm:$0xff]
        %v4106 = vld [vmem:[%s3905 + $0x640] sm:$0xff]
        %v4107 = vld [vmem:[%s3905 + $0x648] sm:$0xff]
        %v4108 = vld [vmem:[%s3905 + $0x650] sm:$0xff]
        %v4109 = vld [vmem:[%s3905 + $0x658] sm:$0xff]
        %v4110 = vld [vmem:[%s3905 + $0x660] sm:$0xff]
        %v4111 = vld [vmem:[%s3905 + $0x668] sm:$0xff]
        %v4112 = vld [vmem:[%s3905 + $0x670] sm:$0xff]
        %v4113 = vld [vmem:[%s3905 + $0x678] sm:$0xff]
        %v4114 = vld [vmem:[%s3905 + $0x680] sm:$0xff]
        %v4115 = vld [vmem:[%s3905 + $0x688] sm:$0xff]
        %v4116 = vld [vmem:[%s3905 + $0x690] sm:$0xff]
        %v4117 = vld [vmem:[%s3905 + $0x698] sm:$0xff]
        %v4118 = vld [vmem:[%s3905 + $0x6a0] sm:$0xff]
        %v4119 = vld [vmem:[%s3905 + $0x6a8] sm:$0xff]
        %v4120 = vld [vmem:[%s3905 + $0x6b0] sm:$0xff]
        %v4121 = vld [vmem:[%s3905 + $0x6b8] sm:$0xff]
        %v4122 = vld [vmem:[%s3905 + $0x6c0] sm:$0xff]
        %v4123 = vld [vmem:[%s3905 + $0x6c8] sm:$0xff]
        %v4124 = vld [vmem:[%s3905 + $0x6d0] sm:$0xff]
        %v4125 = vld [vmem:[%s3905 + $0x6d8] sm:$0xff]
        %v4126 = vld [vmem:[%s3905 + $0x6e0] sm:$0xff]
        %v4127 = vld [vmem:[%s3905 + $0x6e8] sm:$0xff]
        %v4128 = vld [vmem:[%s3905 + $0x6f0] sm:$0xff]
        %v4129 = vld [vmem:[%s3905 + $0x6f8] sm:$0xff]
        %v4130 = vld [vmem:[%s3905 + $0x700] sm:$0xff]
        %v4131 = vld [vmem:[%s3905 + $0x708] sm:$0xff]
        %v4132 = vld [vmem:[%s3905 + $0x710] sm:$0xff]
        %v4133 = vld [vmem:[%s3905 + $0x718] sm:$0xff]
        %v4134 = vld [vmem:[%s3905 + $0x720] sm:$0xf]
        %v4135 = vld [vmem:[%s3905 + $0x728] sm:$0xf]
        %v4136 = vld [vmem:[%s3905 + $0x730] sm:$0xf]
        %v4137 = vld [vmem:[%s3905 + $0x738] sm:$0xf]
        %vm4138 = vcmask 621568
        %v4140 = vsel %vm4138, %v3632, 0
        %v4143 = vsel %vm4138, %v3636, 0
        %v4146 = vsel %vm4138, %v3640, 0
        %v4149 = vsel %vm4138, %v3644, 0
        %v4152 = vsel %vm4138, %v3648, 0
        %v4155 = vsel %vm4138, %v3652, 0
        %v4158 = vsel %vm4138, %v3656, 0
        %v4161 = vsel %vm4138, %v3660, 0
        %v4164 = vsel %vm607, %v4134, 0
        %v4167 = vsel %vm607, %v4135, 0
        %v4170 = vsel %vm607, %v4136, 0
        %v4173 = vsel %vm607, %v4137, 0
        %4175 = vmatprep.subr.mxu0 %v3907
        %4176 = vmatpush1.msra.mxu0 %v3906
        %4177 = vmatprep.subr.mxu0 %v3911
        %4178 = vmatpush1.msra.mxu0 %v3910
        %4179 = vmatprep.subr.mxu0 %v3915
        %4180 = vmatpush1.msra.mxu0 %v3914
        %4181 = vmatprep.subr.mxu0 %v3919
        %4182 = vmatpush1.msra.mxu0 %v3918
        %4183 = vmatprep.subr.mxu0 %v3923
        %4184 = vmatpush1.msra.mxu0 %v3922
        %4185 = vmatprep.subr.mxu0 %v3927
        %4186 = vmatpush1.msra.mxu0 %v3926
        %4187 = vmatprep.subr.mxu0 %v3931
        %4188 = vmatpush1.msra.mxu0 %v3930
        %4189 = vmatprep.subr.mxu0 %v3935
        %4190 = vmatpush1.msra.mxu0 %v3934
        %4191 = vmatprep.subr.mxu0 %v3939
        %4192 = vmatpush1.msra.mxu0 %v3938
        %4193 = vmatprep.subr.mxu0 %v3943
        %4194 = vmatpush1.msra.mxu0 %v3942
        %4195 = vmatprep.subr.mxu0 %v3947
        %4196 = vmatpush1.msra.mxu0 %v3946
        %4197 = vmatprep.subr.mxu0 %v3951
        %4198 = vmatpush1.msra.mxu0 %v3950
        %4199 = vmatprep.subr.mxu0 %v3955
        %4200 = vmatpush1.msra.mxu0 %v3954
        %4201 = vmatprep.subr.mxu0 %v3959
        %4202 = vmatpush1.msra.mxu0 %v3958
        %4203 = vmatprep.subr.mxu0 %v3963
        %4204 = vmatpush1.msra.mxu0 %v3962
        %4205 = vmatprep.subr.mxu0 %v3967
        %4206 = vmatpush1.msra.mxu0 %v3966
        %4207 = vmatprep.subr.mxu0 %v3971
        %4208 = vmatpush1.msra.mxu0 %v3970
        %4209 = vmatprep.subr.mxu0 %v3975
        %4210 = vmatpush1.msra.mxu0 %v3974
        %4211 = vmatprep.subr.mxu0 %v3979
        %4212 = vmatpush1.msra.mxu0 %v3978
        %4213 = vmatprep.subr.mxu0 %v3983
        %4214 = vmatpush1.msra.mxu0 %v3982
        %4215 = vmatprep.subr.mxu0 %v3987
        %4216 = vmatpush1.msra.mxu0 %v3986
        %4217 = vmatprep.subr.mxu0 %v3991
        %4218 = vmatpush1.msra.mxu0 %v3990
        %4219 = vmatprep.subr.mxu0 %v3995
        %4220 = vmatpush1.msra.mxu0 %v3994
        %4221 = vmatprep.subr.mxu0 %v3999
        %4222 = vmatpush1.msra.mxu0 %v3998
        %4223 = vmatprep.subr.mxu0 %v4003
        %4224 = vmatpush1.msra.mxu0 %v4002
        %4225 = vmatprep.subr.mxu0 %v4007
        %4226 = vmatpush1.msra.mxu0 %v4006
        %4227 = vmatprep.subr.mxu0 %v4011
        %4228 = vmatpush1.msra.mxu0 %v4010
        %4229 = vmatprep.subr.mxu0 %v4015
        %4230 = vmatpush1.msra.mxu0 %v4014
        %4231 = vmatprep.subr.mxu0 %v4019
        %4232 = vmatpush1.msra.mxu0 %v4018
        %4233 = vmatprep.subr.mxu0 %v4023
        %4234 = vmatpush1.msra.mxu0 %v4022
        %4235 = vmatprep.subr.mxu0 %v4027
        %4236 = vmatpush1.msra.mxu0 %v4026
        %4237 = vmatprep.subr.mxu0 %v4031
        %4238 = vmatpush1.msra.mxu0 %v4030
        %4239 = vmatprep.mubr.f32.mxu0 %v3630
        %4240 = vmatmul.mubr.f32.gmra.mrb[0].mxu0 %v3629
        %v4241 = vpop.f32.mrb[0].mxu0
        %v4242 = vadd.f32 0.0, %v4241
        %v4243 = vpop.f32.mrb[0].mxu0
        %v4244 = vadd.f32 0.0, %v4243
        %4245 = vmatprep.mubr.f32.mxu0 %v3634
        %4246 = vmatmul.mubr.f32.gmra.mrb[0].mxu0 %v3633
        %v4247 = vpop.f32.mrb[0].mxu0
        %v4248 = vadd.f32 0.0, %v4247
        %v4249 = vpop.f32.mrb[0].mxu0
        %v4250 = vadd.f32 0.0, %v4249
        %4251 = vmatprep.mubr.f32.mxu0 %v3638
        %4252 = vmatmul.mubr.f32.gmra.mrb[0].mxu0 %v3637
        %v4253 = vpop.f32.mrb[0].mxu0
        %v4254 = vadd.f32 0.0, %v4253
        %v4255 = vpop.f32.mrb[0].mxu0
        %v4256 = vadd.f32 0.0, %v4255
        %4257 = vmatprep.mubr.f32.mxu0 %v3642
        %4258 = vmatmul.mubr.f32.gmra.mrb[0].mxu0 %v3641
        %v4259 = vpop.f32.mrb[0].mxu0
        %v4260 = vadd.f32 0.0, %v4259
        %v4261 = vpop.f32.mrb[0].mxu0
        %v4262 = vadd.f32 0.0, %v4261
        %4263 = vmatprep.mubr.f32.mxu0 %v3646
        %4264 = vmatmul.mubr.f32.gmra.mrb[0].mxu0 %v3645
        %v4265 = vpop.f32.mrb[0].mxu0
        %v4266 = vadd.f32 0.0, %v4265
        %v4267 = vpop.f32.mrb[0].mxu0
        %v4268 = vadd.f32 0.0, %v4267
        %4269 = vmatprep.mubr.f32.mxu0 %v3650
        %4270 = vmatmul.mubr.f32.gmra.mrb[0].mxu0 %v3649
        %v4271 = vpop.f32.mrb[0].mxu0
        %v4272 = vadd.f32 0.0, %v4271
        %v4273 = vpop.f32.mrb[0].mxu0
        %v4274 = vadd.f32 0.0, %v4273
        %4275 = vmatprep.mubr.f32.mxu0 %v3654
        %4276 = vmatmul.mubr.f32.gmra.mrb[0].mxu0 %v3653
        %v4277 = vpop.f32.mrb[0].mxu0
        %v4278 = vadd.f32 0.0, %v4277
        %v4279 = vpop.f32.mrb[0].mxu0
        %v4280 = vadd.f32 0.0, %v4279
        %4281 = vmatprep.mubr.f32.mxu0 %v3658
        %4282 = vmatmul.mubr.f32.gmra.mrb[0].mxu0 %v3657
        %v4283 = vpop.f32.mrb[0].mxu0
        %v4284 = vadd.f32 0.0, %v4283
        %v4285 = vpop.f32.mrb[0].mxu0
        %v4286 = vadd.f32 0.0, %v4285
        %4287 = vdwg.mxu0
        %4288 = vmatprep.subr.mxu0 %v4035
        %4289 = vmatpush1.msra.mxu0 %v4034
        %4290 = vmatprep.subr.mxu0 %v4039
        %4291 = vmatpush1.msra.mxu0 %v4038
        %4292 = vmatprep.subr.mxu0 %v4043
        %4293 = vmatpush1.msra.mxu0 %v4042
        %4294 = vmatprep.subr.mxu0 %v4047
        %4295 = vmatpush1.msra.mxu0 %v4046
        %4296 = vmatprep.subr.mxu0 %v4051
        %4297 = vmatpush1.msra.mxu0 %v4050
        %4298 = vmatprep.subr.mxu0 %v4055
        %4299 = vmatpush1.msra.mxu0 %v4054
        %4300 = vmatprep.subr.mxu0 %v4059
        %4301 = vmatpush1.msra.mxu0 %v4058
        %4302 = vmatprep.subr.mxu0 %v4063
        %4303 = vmatpush1.msra.mxu0 %v4062
        %4304 = vmatprep.subr.mxu0 %v4067
        %4305 = vmatpush1.msra.mxu0 %v4066
        %4306 = vmatprep.subr.mxu0 %v4071
        %4307 = vmatpush1.msra.mxu0 %v4070
        %4308 = vmatprep.subr.mxu0 %v4075
        %4309 = vmatpush1.msra.mxu0 %v4074
        %4310 = vmatprep.subr.mxu0 %v4079
        %4311 = vmatpush1.msra.mxu0 %v4078
        %4312 = vmatprep.subr.mxu0 %v4083
        %4313 = vmatpush1.msra.mxu0 %v4082
        %4314 = vmatprep.subr.mxu0 %v4087
        %4315 = vmatpush1.msra.mxu0 %v4086
        %4316 = vmatprep.subr.mxu0 %v4091
        %4317 = vmatpush1.msra.mxu0 %v4090
        %4318 = vmatprep.subr.mxu0 %v4095
        %4319 = vmatpush1.msra.mxu0 %v4094
        %4320 = vmatprep.subr.mxu0 %v4099
        %4321 = vmatpush1.msra.mxu0 %v4098
        %4322 = vmatprep.subr.mxu0 %v4103
        %4323 = vmatpush1.msra.mxu0 %v4102
        %4324 = vmatprep.subr.mxu0 %v4107
        %4325 = vmatpush1.msra.mxu0 %v4106
        %4326 = vmatprep.subr.mxu0 %v4111
        %4327 = vmatpush1.msra.mxu0 %v4110
        %4328 = vmatprep.subr.mxu0 %v4115
        %4329 = vmatpush1.msra.mxu0 %v4114
        %4330 = vmatprep.subr.mxu0 %v4119
        %4331 = vmatpush1.msra.mxu0 %v4118
        %4332 = vmatprep.subr.mxu0 %v4123
        %4333 = vmatpush1.msra.mxu0 %v4122
        %4334 = vmatprep.subr.mxu0 %v4127
        %4335 = vmatpush1.msra.mxu0 %v4126
        %4336 = vmatprep.subr.mxu0 %v4131
        %4337 = vmatpush1.msra.mxu0 %v4130
        %4338 = vmatprep.subr.mxu0 %v4167
        %4339 = vmatpush1.msra.mxu0 %v4164
        %4340 = vmatprep.subr.mxu0 0.0
        %4341 = vmatpush1.msra.mxu0 0.0
        %4342 = vmatprep.subr.mxu0 0.0
        %4343 = vmatpush1.msra.mxu0 0.0
        %4344 = vmatprep.subr.mxu0 0.0
        %4345 = vmatpush1.msra.mxu0 0.0
        %4346 = vmatprep.subr.mxu0 0.0
        %4347 = vmatpush1.msra.mxu0 0.0
        %4348 = vmatprep.subr.mxu0 0.0
        %4349 = vmatpush1.msra.mxu0 0.0
        %4350 = vmatprep.subr.mxu0 0.0
        %4351 = vmatpush1.msra.mxu0 0.0
        %4352 = vmatprep.mubr.f32.mxu0 %v4140
        %4353 = vmatmul.mubr.f32.gmra.mrb[0].mxu0 %v3631
        %v4354 = vpop.f32.mrb[0].mxu0
        %v4355 = vadd.f32 %v4242, %v4354
        %v4356 = vpop.f32.mrb[0].mxu0
        %v4357 = vadd.f32 %v4244, %v4356
        %4358 = vmatprep.mubr.f32.mxu0 %v4143
        %4359 = vmatmul.mubr.f32.gmra.mrb[0].mxu0 %v3635
        %v4360 = vpop.f32.mrb[0].mxu0
        %v4361 = vadd.f32 %v4248, %v4360
        %v4362 = vpop.f32.mrb[0].mxu0
        %v4363 = vadd.f32 %v4250, %v4362
        %4364 = vmatprep.mubr.f32.mxu0 %v4146
        %4365 = vmatmul.mubr.f32.gmra.mrb[0].mxu0 %v3639
        %v4366 = vpop.f32.mrb[0].mxu0
        %v4367 = vadd.f32 %v4254, %v4366
        %v4368 = vpop.f32.mrb[0].mxu0
        %v4369 = vadd.f32 %v4256, %v4368
        %4370 = vmatprep.mubr.f32.mxu0 %v4149
        %4371 = vmatmul.mubr.f32.gmra.mrb[0].mxu0 %v3643
        %v4372 = vpop.f32.mrb[0].mxu0
        %v4373 = vadd.f32 %v4260, %v4372
        %v4374 = vpop.f32.mrb[0].mxu0
        %v4375 = vadd.f32 %v4262, %v4374
        %4376 = vmatprep.mubr.f32.mxu0 %v4152
        %4377 = vmatmul.mubr.f32.gmra.mrb[0].mxu0 %v3647
        %v4378 = vpop.f32.mrb[0].mxu0
        %v4379 = vadd.f32 %v4266, %v4378
        %v4380 = vpop.f32.mrb[0].mxu0
        %v4381 = vadd.f32 %v4268, %v4380
        %4382 = vmatprep.mubr.f32.mxu0 %v4155
        %4383 = vmatmul.mubr.f32.gmra.mrb[0].mxu0 %v3651
        %v4384 = vpop.f32.mrb[0].mxu0
        %v4385 = vadd.f32 %v4272, %v4384
        %v4386 = vpop.f32.mrb[0].mxu0
        %v4387 = vadd.f32 %v4274, %v4386
        %4388 = vmatprep.mubr.f32.mxu0 %v4158
        %4389 = vmatmul.mubr.f32.gmra.mrb[0].mxu0 %v3655
        %v4390 = vpop.f32.mrb[0].mxu0
        %v4391 = vadd.f32 %v4278, %v4390
        %v4392 = vpop.f32.mrb[0].mxu0
        %v4393 = vadd.f32 %v4280, %v4392
        %4394 = vmatprep.mubr.f32.mxu0 %v4161
        %4395 = vmatmul.mubr.f32.gmra.mrb[0].mxu0 %v3659
        %v4396 = vpop.f32.mrb[0].mxu0
        %v4397 = vadd.f32 %v4284, %v4396
        %v4398 = vpop.f32.mrb[0].mxu0
        %v4399 = vadd.f32 %v4286, %v4398
        %4400 = vdwg.mxu0
        %4401 = vmatprep.subr.mxu0 %v3909
        %4402 = vmatpush1.msra.mxu0 %v3908
        %4403 = vmatprep.subr.mxu0 %v3913
        %4404 = vmatpush1.msra.mxu0 %v3912
        %4405 = vmatprep.subr.mxu0 %v3917
        %4406 = vmatpush1.msra.mxu0 %v3916
        %4407 = vmatprep.subr.mxu0 %v3921
        %4408 = vmatpush1.msra.mxu0 %v3920
        %4409 = vmatprep.subr.mxu0 %v3925
        %4410 = vmatpush1.msra.mxu0 %v3924
        %4411 = vmatprep.subr.mxu0 %v3929
        %4412 = vmatpush1.msra.mxu0 %v3928
        %4413 = vmatprep.subr.mxu0 %v3933
        %4414 = vmatpush1.msra.mxu0 %v3932
        %4415 = vmatprep.subr.mxu0 %v3937
        %4416 = vmatpush1.msra.mxu0 %v3936
        %4417 = vmatprep.subr.mxu0 %v3941
        %4418 = vmatpush1.msra.mxu0 %v3940
        %4419 = vmatprep.subr.mxu0 %v3945
        %4420 = vmatpush1.msra.mxu0 %v3944
        %4421 = vmatprep.subr.mxu0 %v3949
        %4422 = vmatpush1.msra.mxu0 %v3948
        %4423 = vmatprep.subr.mxu0 %v3953
        %4424 = vmatpush1.msra.mxu0 %v3952
        %4425 = vmatprep.subr.mxu0 %v3957
        %4426 = vmatpush1.msra.mxu0 %v3956
        %4427 = vmatprep.subr.mxu0 %v3961
        %4428 = vmatpush1.msra.mxu0 %v3960
        %4429 = vmatprep.subr.mxu0 %v3965
        %4430 = vmatpush1.msra.mxu0 %v3964
        %4431 = vmatprep.subr.mxu0 %v3969
        %4432 = vmatpush1.msra.mxu0 %v3968
        %4433 = vmatprep.subr.mxu0 %v3973
        %4434 = vmatpush1.msra.mxu0 %v3972
        %4435 = vmatprep.subr.mxu0 %v3977
        %4436 = vmatpush1.msra.mxu0 %v3976
        %4437 = vmatprep.subr.mxu0 %v3981
        %4438 = vmatpush1.msra.mxu0 %v3980
        %4439 = vmatprep.subr.mxu0 %v3985
        %4440 = vmatpush1.msra.mxu0 %v3984
        %4441 = vmatprep.subr.mxu0 %v3989
        %4442 = vmatpush1.msra.mxu0 %v3988
        %4443 = vmatprep.subr.mxu0 %v3993
        %4444 = vmatpush1.msra.mxu0 %v3992
        %4445 = vmatprep.subr.mxu0 %v3997
        %4446 = vmatpush1.msra.mxu0 %v3996
        %4447 = vmatprep.subr.mxu0 %v4001
        %4448 = vmatpush1.msra.mxu0 %v4000
        %4449 = vmatprep.subr.mxu0 %v4005
        %4450 = vmatpush1.msra.mxu0 %v4004
        %4451 = vmatprep.subr.mxu0 %v4009
        %4452 = vmatpush1.msra.mxu0 %v4008
        %4453 = vmatprep.subr.mxu0 %v4013
        %4454 = vmatpush1.msra.mxu0 %v4012
        %4455 = vmatprep.subr.mxu0 %v4017
        %4456 = vmatpush1.msra.mxu0 %v4016
        %4457 = vmatprep.subr.mxu0 %v4021
        %4458 = vmatpush1.msra.mxu0 %v4020
        %4459 = vmatprep.subr.mxu0 %v4025
        %4460 = vmatpush1.msra.mxu0 %v4024
        %4461 = vmatprep.subr.mxu0 %v4029
        %4462 = vmatpush1.msra.mxu0 %v4028
        %4463 = vmatprep.subr.mxu0 %v4033
        %4464 = vmatpush1.msra.mxu0 %v4032
        %4465 = vmatprep.mubr.f32.mxu0 %v3630
        %4466 = vmatmul.mubr.f32.gmra.mrb[0].mxu0 %v3629
        %v4467 = vpop.f32.mrb[0].mxu0
        %v4468 = vadd.f32 0.0, %v4467
        %v4469 = vpop.f32.mrb[0].mxu0
        %v4470 = vadd.f32 0.0, %v4469
        %4471 = vmatprep.mubr.f32.mxu0 %v3634
        %4472 = vmatmul.mubr.f32.gmra.mrb[0].mxu0 %v3633
        %v4473 = vpop.f32.mrb[0].mxu0
        %v4474 = vadd.f32 0.0, %v4473
        %v4475 = vpop.f32.mrb[0].mxu0
        %v4476 = vadd.f32 0.0, %v4475
        %4477 = vmatprep.mubr.f32.mxu0 %v3638
        %4478 = vmatmul.mubr.f32.gmra.mrb[0].mxu0 %v3637
        %v4479 = vpop.f32.mrb[0].mxu0
        %v4480 = vadd.f32 0.0, %v4479
        %v4481 = vpop.f32.mrb[0].mxu0
        %v4482 = vadd.f32 0.0, %v4481
        %4483 = vmatprep.mubr.f32.mxu0 %v3642
        %4484 = vmatmul.mubr.f32.gmra.mrb[0].mxu0 %v3641
        %v4485 = vpop.f32.mrb[0].mxu0
        %v4486 = vadd.f32 0.0, %v4485
        %v4487 = vpop.f32.mrb[0].mxu0
        %v4488 = vadd.f32 0.0, %v4487
        %4489 = vmatprep.mubr.f32.mxu0 %v3646
        %4490 = vmatmul.mubr.f32.gmra.mrb[0].mxu0 %v3645
        %v4491 = vpop.f32.mrb[0].mxu0
        %v4492 = vadd.f32 0.0, %v4491
        %v4493 = vpop.f32.mrb[0].mxu0
        %v4494 = vadd.f32 0.0, %v4493
        %4495 = vmatprep.mubr.f32.mxu0 %v3650
        %4496 = vmatmul.mubr.f32.gmra.mrb[0].mxu0 %v3649
        %v4497 = vpop.f32.mrb[0].mxu0
        %v4498 = vadd.f32 0.0, %v4497
        %v4499 = vpop.f32.mrb[0].mxu0
        %v4500 = vadd.f32 0.0, %v4499
        %4501 = vmatprep.mubr.f32.mxu0 %v3654
        %4502 = vmatmul.mubr.f32.gmra.mrb[0].mxu0 %v3653
        %v4503 = vpop.f32.mrb[0].mxu0
        %v4504 = vadd.f32 0.0, %v4503
        %v4505 = vpop.f32.mrb[0].mxu0
        %v4506 = vadd.f32 0.0, %v4505
        %4507 = vmatprep.mubr.f32.mxu0 %v3658
        %4508 = vmatmul.mubr.f32.gmra.mrb[0].mxu0 %v3657
        %v4509 = vpop.f32.mrb[0].mxu0
        %v4510 = vadd.f32 0.0, %v4509
        %v4511 = vpop.f32.mrb[0].mxu0
        %v4512 = vadd.f32 0.0, %v4511
        %4513 = vdwg.mxu0
        %4514 = vmatprep.subr.mxu0 %v4037
        %4515 = vmatpush1.msra.mxu0 %v4036
        %4516 = vmatprep.subr.mxu0 %v4041
        %4517 = vmatpush1.msra.mxu0 %v4040
        %4518 = vmatprep.subr.mxu0 %v4045
        %4519 = vmatpush1.msra.mxu0 %v4044
        %4520 = vmatprep.subr.mxu0 %v4049
        %4521 = vmatpush1.msra.mxu0 %v4048
        %4522 = vmatprep.subr.mxu0 %v4053
        %4523 = vmatpush1.msra.mxu0 %v4052
        %4524 = vmatprep.subr.mxu0 %v4057
        %4525 = vmatpush1.msra.mxu0 %v4056
        %4526 = vmatprep.subr.mxu0 %v4061
        %4527 = vmatpush1.msra.mxu0 %v4060
        %4528 = vmatprep.subr.mxu0 %v4065
        %4529 = vmatpush1.msra.mxu0 %v4064
        %4530 = vmatprep.subr.mxu0 %v4069
        %4531 = vmatpush1.msra.mxu0 %v4068
        %4532 = vmatprep.subr.mxu0 %v4073
        %4533 = vmatpush1.msra.mxu0 %v4072
        %4534 = vmatprep.subr.mxu0 %v4077
        %4535 = vmatpush1.msra.mxu0 %v4076
        %4536 = vmatprep.subr.mxu0 %v4081
        %4537 = vmatpush1.msra.mxu0 %v4080
        %4538 = vmatprep.subr.mxu0 %v4085
        %4539 = vmatpush1.msra.mxu0 %v4084
        %4540 = vmatprep.subr.mxu0 %v4089
        %4541 = vmatpush1.msra.mxu0 %v4088
        %4542 = vmatprep.subr.mxu0 %v4093
        %4543 = vmatpush1.msra.mxu0 %v4092
        %4544 = vmatprep.subr.mxu0 %v4097
        %4545 = vmatpush1.msra.mxu0 %v4096
        %4546 = vmatprep.subr.mxu0 %v4101
        %4547 = vmatpush1.msra.mxu0 %v4100
        %4548 = vmatprep.subr.mxu0 %v4105
        %4549 = vmatpush1.msra.mxu0 %v4104
        %4550 = vmatprep.subr.mxu0 %v4109
        %4551 = vmatpush1.msra.mxu0 %v4108
        %4552 = vmatprep.subr.mxu0 %v4113
        %4553 = vmatpush1.msra.mxu0 %v4112
        %4554 = vmatprep.subr.mxu0 %v4117
        %4555 = vmatpush1.msra.mxu0 %v4116
        %4556 = vmatprep.subr.mxu0 %v4121
        %4557 = vmatpush1.msra.mxu0 %v4120
        %4558 = vmatprep.subr.mxu0 %v4125
        %4559 = vmatpush1.msra.mxu0 %v4124
        %4560 = vmatprep.subr.mxu0 %v4129
        %4561 = vmatpush1.msra.mxu0 %v4128
        %4562 = vmatprep.subr.mxu0 %v4133
        %4563 = vmatpush1.msra.mxu0 %v4132
        %4564 = vmatprep.subr.mxu0 %v4173
        %4565 = vmatpush1.msra.mxu0 %v4170
        %4566 = vmatprep.subr.mxu0 0.0
        %4567 = vmatpush1.msra.mxu0 0.0
        %4568 = vmatprep.subr.mxu0 0.0
        %4569 = vmatpush1.msra.mxu0 0.0
        %4570 = vmatprep.subr.mxu0 0.0
        %4571 = vmatpush1.msra.mxu0 0.0
        %4572 = vmatprep.subr.mxu0 0.0
        %4573 = vmatpush1.msra.mxu0 0.0
        %4574 = vmatprep.subr.mxu0 0.0
        %4575 = vmatpush1.msra.mxu0 0.0
        %4576 = vmatprep.subr.mxu0 0.0
        %4577 = vmatpush1.msra.mxu0 0.0
        %4578 = vmatprep.mubr.f32.mxu0 %v4140
        %4579 = vmatmul.mubr.f32.gmra.mrb[0].mxu0 %v3631
        %v4580 = vpop.f32.mrb[0].mxu0
        %v4581 = vadd.f32 %v4468, %v4580
        %v4582 = vpop.f32.mrb[0].mxu0
        %v4583 = vadd.f32 %v4470, %v4582
        %4584 = vmatprep.mubr.f32.mxu0 %v4143
        %4585 = vmatmul.mubr.f32.gmra.mrb[0].mxu0 %v3635
        %v4586 = vpop.f32.mrb[0].mxu0
        %v4587 = vadd.f32 %v4474, %v4586
        %v4588 = vpop.f32.mrb[0].mxu0
        %v4589 = vadd.f32 %v4476, %v4588
        %4590 = vmatprep.mubr.f32.mxu0 %v4146
        %4591 = vmatmul.mubr.f32.gmra.mrb[0].mxu0 %v3639
        %v4592 = vpop.f32.mrb[0].mxu0
        %v4593 = vadd.f32 %v4480, %v4592
        %v4594 = vpop.f32.mrb[0].mxu0
        %v4595 = vadd.f32 %v4482, %v4594
        %4596 = vmatprep.mubr.f32.mxu0 %v4149
        %4597 = vmatmul.mubr.f32.gmra.mrb[0].mxu0 %v3643
        %v4598 = vpop.f32.mrb[0].mxu0
        %v4599 = vadd.f32 %v4486, %v4598
        %v4600 = vpop.f32.mrb[0].mxu0
        %v4601 = vadd.f32 %v4488, %v4600
        %4602 = vmatprep.mubr.f32.mxu0 %v4152
        %4603 = vmatmul.mubr.f32.gmra.mrb[0].mxu0 %v3647
        %v4604 = vpop.f32.mrb[0].mxu0
        %v4605 = vadd.f32 %v4492, %v4604
        %v4606 = vpop.f32.mrb[0].mxu0
        %v4607 = vadd.f32 %v4494, %v4606
        %4608 = vmatprep.mubr.f32.mxu0 %v4155
        %4609 = vmatmul.mubr.f32.gmra.mrb[0].mxu0 %v3651
        %v4610 = vpop.f32.mrb[0].mxu0
        %v4611 = vadd.f32 %v4498, %v4610
        %v4612 = vpop.f32.mrb[0].mxu0
        %v4613 = vadd.f32 %v4500, %v4612
        %4614 = vmatprep.mubr.f32.mxu0 %v4158
        %4615 = vmatmul.mubr.f32.gmra.mrb[0].mxu0 %v3655
        %v4616 = vpop.f32.mrb[0].mxu0
        %v4617 = vadd.f32 %v4504, %v4616
        %v4618 = vpop.f32.mrb[0].mxu0
        %v4619 = vadd.f32 %v4506, %v4618
        %4620 = vmatprep.mubr.f32.mxu0 %v4161
        %4621 = vmatmul.mubr.f32.gmra.mrb[0].mxu0 %v3659
        %v4622 = vpop.f32.mrb[0].mxu0
        %v4623 = vadd.f32 %v4510, %v4622
        %v4624 = vpop.f32.mrb[0].mxu0
        %v4625 = vadd.f32 %v4512, %v4624
        %4626 = vdwg.mxu0
        %v4628 = vsel %vm4138, %v3628, 0
        %v4631 = vsel %vm607, %v3901, 0
        %v4634 = vsel %vm607, %v3902, 0
        %v4637 = vsel %vm607, %v3903, 0
        %v4640 = vsel %vm607, %v3904, 0
        %4642 = vmatprep.subr.mxu0 %v3674
        %4643 = vmatpush1.msra.mxu0 %v3673
        %4644 = vmatprep.subr.mxu0 %v3678
        %4645 = vmatpush1.msra.mxu0 %v3677
        %4646 = vmatprep.subr.mxu0 %v3682
        %4647 = vmatpush1.msra.mxu0 %v3681
        %4648 = vmatprep.subr.mxu0 %v3686
        %4649 = vmatpush1.msra.mxu0 %v3685
        %4650 = vmatprep.subr.mxu0 %v3690
        %4651 = vmatpush1.msra.mxu0 %v3689
        %4652 = vmatprep.subr.mxu0 %v3694
        %4653 = vmatpush1.msra.mxu0 %v3693
        %4654 = vmatprep.subr.mxu0 %v3698
        %4655 = vmatpush1.msra.mxu0 %v3697
        %4656 = vmatprep.subr.mxu0 %v3702
        %4657 = vmatpush1.msra.mxu0 %v3701
        %4658 = vmatprep.subr.mxu0 %v3706
        %4659 = vmatpush1.msra.mxu0 %v3705
        %4660 = vmatprep.subr.mxu0 %v3710
        %4661 = vmatpush1.msra.mxu0 %v3709
        %4662 = vmatprep.subr.mxu0 %v3714
        %4663 = vmatpush1.msra.mxu0 %v3713
        %4664 = vmatprep.subr.mxu0 %v3718
        %4665 = vmatpush1.msra.mxu0 %v3717
        %4666 = vmatprep.subr.mxu0 %v3722
        %4667 = vmatpush1.msra.mxu0 %v3721
        %4668 = vmatprep.subr.mxu0 %v3726
        %4669 = vmatpush1.msra.mxu0 %v3725
        %4670 = vmatprep.subr.mxu0 %v3730
        %4671 = vmatpush1.msra.mxu0 %v3729
        %4672 = vmatprep.subr.mxu0 %v3734
        %4673 = vmatpush1.msra.mxu0 %v3733
        %4674 = vmatprep.subr.mxu0 %v3738
        %4675 = vmatpush1.msra.mxu0 %v3737
        %4676 = vmatprep.subr.mxu0 %v3742
        %4677 = vmatpush1.msra.mxu0 %v3741
        %4678 = vmatprep.subr.mxu0 %v3746
        %4679 = vmatpush1.msra.mxu0 %v3745
        %4680 = vmatprep.subr.mxu0 %v3750
        %4681 = vmatpush1.msra.mxu0 %v3749
        %4682 = vmatprep.subr.mxu0 %v3754
        %4683 = vmatpush1.msra.mxu0 %v3753
        %4684 = vmatprep.subr.mxu0 %v3758
        %4685 = vmatpush1.msra.mxu0 %v3757
        %4686 = vmatprep.subr.mxu0 %v3762
        %4687 = vmatpush1.msra.mxu0 %v3761
        %4688 = vmatprep.subr.mxu0 %v3766
        %4689 = vmatpush1.msra.mxu0 %v3765
        %4690 = vmatprep.subr.mxu0 %v3770
        %4691 = vmatpush1.msra.mxu0 %v3769
        %4692 = vmatprep.subr.mxu0 %v3774
        %4693 = vmatpush1.msra.mxu0 %v3773
        %4694 = vmatprep.subr.mxu0 %v3778
        %4695 = vmatpush1.msra.mxu0 %v3777
        %4696 = vmatprep.subr.mxu0 %v3782
        %4697 = vmatpush1.msra.mxu0 %v3781
        %4698 = vmatprep.subr.mxu0 %v3786
        %4699 = vmatpush1.msra.mxu0 %v3785
        %4700 = vmatprep.subr.mxu0 %v3790
        %4701 = vmatpush1.msra.mxu0 %v3789
        %4702 = vmatprep.subr.mxu0 %v3794
        %4703 = vmatpush1.msra.mxu0 %v3793
        %4704 = vmatprep.subr.mxu0 %v3798
        %4705 = vmatpush1.msra.mxu0 %v3797
        %4706 = vmatprep.mubr.f32.mxu0 %v3626
        %4707 = vmatmul.mubr.f32.gmra.mrb[0].mxu0 %v3625
        %v4708 = vpop.f32.mrb[0].mxu0
        %v4709 = vadd.f32 %v4355, %v4708
        %v4710 = vpop.f32.mrb[0].mxu0
        %v4711 = vadd.f32 %v4357, %v4710
        %4712 = vmatprep.mubr.f32.mxu0 %v3630
        %4713 = vmatmul.mubr.f32.gmra.mrb[0].mxu0 %v3629
        %v4714 = vpop.f32.mrb[0].mxu0
        %v4715 = vadd.f32 %v4361, %v4714
        %v4716 = vpop.f32.mrb[0].mxu0
        %v4717 = vadd.f32 %v4363, %v4716
        %4718 = vmatprep.mubr.f32.mxu0 %v3634
        %4719 = vmatmul.mubr.f32.gmra.mrb[0].mxu0 %v3633
        %v4720 = vpop.f32.mrb[0].mxu0
        %v4721 = vadd.f32 %v4367, %v4720
        %v4722 = vpop.f32.mrb[0].mxu0
        %v4723 = vadd.f32 %v4369, %v4722
        %4724 = vmatprep.mubr.f32.mxu0 %v3638
        %4725 = vmatmul.mubr.f32.gmra.mrb[0].mxu0 %v3637
        %v4726 = vpop.f32.mrb[0].mxu0
        %v4727 = vadd.f32 %v4373, %v4726
        %v4728 = vpop.f32.mrb[0].mxu0
        %v4729 = vadd.f32 %v4375, %v4728
        %4730 = vmatprep.mubr.f32.mxu0 %v3642
        %4731 = vmatmul.mubr.f32.gmra.mrb[0].mxu0 %v3641
        %v4732 = vpop.f32.mrb[0].mxu0
        %v4733 = vadd.f32 %v4379, %v4732
        %v4734 = vpop.f32.mrb[0].mxu0
        %v4735 = vadd.f32 %v4381, %v4734
        %4736 = vmatprep.mubr.f32.mxu0 %v3646
        %4737 = vmatmul.mubr.f32.gmra.mrb[0].mxu0 %v3645
        %v4738 = vpop.f32.mrb[0].mxu0
        %v4739 = vadd.f32 %v4385, %v4738
        %v4740 = vpop.f32.mrb[0].mxu0
        %v4741 = vadd.f32 %v4387, %v4740
        %4742 = vmatprep.mubr.f32.mxu0 %v3650
        %4743 = vmatmul.mubr.f32.gmra.mrb[0].mxu0 %v3649
        %v4744 = vpop.f32.mrb[0].mxu0
        %v4745 = vadd.f32 %v4391, %v4744
        %v4746 = vpop.f32.mrb[0].mxu0
        %v4747 = vadd.f32 %v4393, %v4746
        %4748 = vmatprep.mubr.f32.mxu0 %v3654
        %4749 = vmatmul.mubr.f32.gmra.mrb[0].mxu0 %v3653
        %v4750 = vpop.f32.mrb[0].mxu0
        %v4751 = vadd.f32 %v4397, %v4750
        %v4752 = vpop.f32.mrb[0].mxu0
        %v4753 = vadd.f32 %v4399, %v4752
        %4754 = vdwg.mxu0
        %4755 = vmatprep.subr.mxu0 %v3802
        %4756 = vmatpush1.msra.mxu0 %v3801
        %4757 = vmatprep.subr.mxu0 %v3806
        %4758 = vmatpush1.msra.mxu0 %v3805
        %4759 = vmatprep.subr.mxu0 %v3810
        %4760 = vmatpush1.msra.mxu0 %v3809
        %4761 = vmatprep.subr.mxu0 %v3814
        %4762 = vmatpush1.msra.mxu0 %v3813
        %4763 = vmatprep.subr.mxu0 %v3818
        %4764 = vmatpush1.msra.mxu0 %v3817
        %4765 = vmatprep.subr.mxu0 %v3822
        %4766 = vmatpush1.msra.mxu0 %v3821
        %4767 = vmatprep.subr.mxu0 %v3826
        %4768 = vmatpush1.msra.mxu0 %v3825
        %4769 = vmatprep.subr.mxu0 %v3830
        %4770 = vmatpush1.msra.mxu0 %v3829
        %4771 = vmatprep.subr.mxu0 %v3834
        %4772 = vmatpush1.msra.mxu0 %v3833
        %4773 = vmatprep.subr.mxu0 %v3838
        %4774 = vmatpush1.msra.mxu0 %v3837
        %4775 = vmatprep.subr.mxu0 %v3842
        %4776 = vmatpush1.msra.mxu0 %v3841
        %4777 = vmatprep.subr.mxu0 %v3846
        %4778 = vmatpush1.msra.mxu0 %v3845
        %4779 = vmatprep.subr.mxu0 %v3850
        %4780 = vmatpush1.msra.mxu0 %v3849
        %4781 = vmatprep.subr.mxu0 %v3854
        %4782 = vmatpush1.msra.mxu0 %v3853
        %4783 = vmatprep.subr.mxu0 %v3858
        %4784 = vmatpush1.msra.mxu0 %v3857
        %4785 = vmatprep.subr.mxu0 %v3862
        %4786 = vmatpush1.msra.mxu0 %v3861
        %4787 = vmatprep.subr.mxu0 %v3866
        %4788 = vmatpush1.msra.mxu0 %v3865
        %4789 = vmatprep.subr.mxu0 %v3870
        %4790 = vmatpush1.msra.mxu0 %v3869
        %4791 = vmatprep.subr.mxu0 %v3874
        %4792 = vmatpush1.msra.mxu0 %v3873
        %4793 = vmatprep.subr.mxu0 %v3878
        %4794 = vmatpush1.msra.mxu0 %v3877
        %4795 = vmatprep.subr.mxu0 %v3882
        %4796 = vmatpush1.msra.mxu0 %v3881
        %4797 = vmatprep.subr.mxu0 %v3886
        %4798 = vmatpush1.msra.mxu0 %v3885
        %4799 = vmatprep.subr.mxu0 %v3890
        %4800 = vmatpush1.msra.mxu0 %v3889
        %4801 = vmatprep.subr.mxu0 %v3894
        %4802 = vmatpush1.msra.mxu0 %v3893
        %4803 = vmatprep.subr.mxu0 %v3898
        %4804 = vmatpush1.msra.mxu0 %v3897
        %4805 = vmatprep.subr.mxu0 %v4634
        %4806 = vmatpush1.msra.mxu0 %v4631
        %4807 = vmatprep.subr.mxu0 0.0
        %4808 = vmatpush1.msra.mxu0 0.0
        %4809 = vmatprep.subr.mxu0 0.0
        %4810 = vmatpush1.msra.mxu0 0.0
        %4811 = vmatprep.subr.mxu0 0.0
        %4812 = vmatpush1.msra.mxu0 0.0
        %4813 = vmatprep.subr.mxu0 0.0
        %4814 = vmatpush1.msra.mxu0 0.0
        %4815 = vmatprep.subr.mxu0 0.0
        %4816 = vmatpush1.msra.mxu0 0.0
        %4817 = vmatprep.subr.mxu0 0.0
        %4818 = vmatpush1.msra.mxu0 0.0
        %4819 = vmatprep.mubr.f32.mxu0 %v4628
        %4820 = vmatmul.mubr.f32.gmra.mrb[0].mxu0 %v3627
        %v4821 = vpop.f32.mrb[0].mxu0
        %v4822 = vadd.f32 %v4709, %v4821
        %v4823 = vpop.f32.mrb[0].mxu0
        %v4824 = vadd.f32 %v4711, %v4823
        %4825 = vmatprep.mubr.f32.mxu0 %v4140
        %4826 = vmatmul.mubr.f32.gmra.mrb[0].mxu0 %v3631
        %v4827 = vpop.f32.mrb[0].mxu0
        %v4828 = vadd.f32 %v4715, %v4827
        %v4829 = vpop.f32.mrb[0].mxu0
        %v4830 = vadd.f32 %v4717, %v4829
        %4831 = vmatprep.mubr.f32.mxu0 %v4143
        %4832 = vmatmul.mubr.f32.gmra.mrb[0].mxu0 %v3635
        %v4833 = vpop.f32.mrb[0].mxu0
        %v4834 = vadd.f32 %v4721, %v4833
        %v4835 = vpop.f32.mrb[0].mxu0
        %v4836 = vadd.f32 %v4723, %v4835
        %4837 = vmatprep.mubr.f32.mxu0 %v4146
        %4838 = vmatmul.mubr.f32.gmra.mrb[0].mxu0 %v3639
        %v4839 = vpop.f32.mrb[0].mxu0
        %v4840 = vadd.f32 %v4727, %v4839
        %v4841 = vpop.f32.mrb[0].mxu0
        %v4842 = vadd.f32 %v4729, %v4841
        %4843 = vmatprep.mubr.f32.mxu0 %v4149
        %4844 = vmatmul.mubr.f32.gmra.mrb[0].mxu0 %v3643
        %v4845 = vpop.f32.mrb[0].mxu0
        %v4846 = vadd.f32 %v4733, %v4845
        %v4847 = vpop.f32.mrb[0].mxu0
        %v4848 = vadd.f32 %v4735, %v4847
        %4849 = vmatprep.mubr.f32.mxu0 %v4152
        %4850 = vmatmul.mubr.f32.gmra.mrb[0].mxu0 %v3647
        %v4851 = vpop.f32.mrb[0].mxu0
        %v4852 = vadd.f32 %v4739, %v4851
        %v4853 = vpop.f32.mrb[0].mxu0
        %v4854 = vadd.f32 %v4741, %v4853
        %4855 = vmatprep.mubr.f32.mxu0 %v4155
        %4856 = vmatmul.mubr.f32.gmra.mrb[0].mxu0 %v3651
        %v4857 = vpop.f32.mrb[0].mxu0
        %v4858 = vadd.f32 %v4745, %v4857
        %v4859 = vpop.f32.mrb[0].mxu0
        %v4860 = vadd.f32 %v4747, %v4859
        %4861 = vmatprep.mubr.f32.mxu0 %v4158
        %4862 = vmatmul.mubr.f32.gmra.mrb[0].mxu0 %v3655
        %v4863 = vpop.f32.mrb[0].mxu0
        %v4864 = vadd.f32 %v4751, %v4863
        %v4865 = vpop.f32.mrb[0].mxu0
        %v4866 = vadd.f32 %v4753, %v4865
        %4867 = vdwg.mxu0
        %4868 = vmatprep.subr.mxu0 %v3676
        %4869 = vmatpush1.msra.mxu0 %v3675
        %4870 = vmatprep.subr.mxu0 %v3680
        %4871 = vmatpush1.msra.mxu0 %v3679
        %4872 = vmatprep.subr.mxu0 %v3684
        %4873 = vmatpush1.msra.mxu0 %v3683
        %4874 = vmatprep.subr.mxu0 %v3688
        %4875 = vmatpush1.msra.mxu0 %v3687
        %4876 = vmatprep.subr.mxu0 %v3692
        %4877 = vmatpush1.msra.mxu0 %v3691
        %4878 = vmatprep.subr.mxu0 %v3696
        %4879 = vmatpush1.msra.mxu0 %v3695
        %4880 = vmatprep.subr.mxu0 %v3700
        %4881 = vmatpush1.msra.mxu0 %v3699
        %4882 = vmatprep.subr.mxu0 %v3704
        %4883 = vmatpush1.msra.mxu0 %v3703
        %4884 = vmatprep.subr.mxu0 %v3708
        %4885 = vmatpush1.msra.mxu0 %v3707
        %4886 = vmatprep.subr.mxu0 %v3712
        %4887 = vmatpush1.msra.mxu0 %v3711
        %4888 = vmatprep.subr.mxu0 %v3716
        %4889 = vmatpush1.msra.mxu0 %v3715
        %4890 = vmatprep.subr.mxu0 %v3720
        %4891 = vmatpush1.msra.mxu0 %v3719
        %4892 = vmatprep.subr.mxu0 %v3724
        %4893 = vmatpush1.msra.mxu0 %v3723
        %4894 = vmatprep.subr.mxu0 %v3728
        %4895 = vmatpush1.msra.mxu0 %v3727
        %4896 = vmatprep.subr.mxu0 %v3732
        %4897 = vmatpush1.msra.mxu0 %v3731
        %4898 = vmatprep.subr.mxu0 %v3736
        %4899 = vmatpush1.msra.mxu0 %v3735
        %4900 = vmatprep.subr.mxu0 %v3740
        %4901 = vmatpush1.msra.mxu0 %v3739
        %4902 = vmatprep.subr.mxu0 %v3744
        %4903 = vmatpush1.msra.mxu0 %v3743
        %4904 = vmatprep.subr.mxu0 %v3748
        %4905 = vmatpush1.msra.mxu0 %v3747
        %4906 = vmatprep.subr.mxu0 %v3752
        %4907 = vmatpush1.msra.mxu0 %v3751
        %4908 = vmatprep.subr.mxu0 %v3756
        %4909 = vmatpush1.msra.mxu0 %v3755
        %4910 = vmatprep.subr.mxu0 %v3760
        %4911 = vmatpush1.msra.mxu0 %v3759
        %4912 = vmatprep.subr.mxu0 %v3764
        %4913 = vmatpush1.msra.mxu0 %v3763
        %4914 = vmatprep.subr.mxu0 %v3768
        %4915 = vmatpush1.msra.mxu0 %v3767
        %4916 = vmatprep.subr.mxu0 %v3772
        %4917 = vmatpush1.msra.mxu0 %v3771
        %4918 = vmatprep.subr.mxu0 %v3776
        %4919 = vmatpush1.msra.mxu0 %v3775
        %4920 = vmatprep.subr.mxu0 %v3780
        %4921 = vmatpush1.msra.mxu0 %v3779
        %4922 = vmatprep.subr.mxu0 %v3784
        %4923 = vmatpush1.msra.mxu0 %v3783
        %4924 = vmatprep.subr.mxu0 %v3788
        %4925 = vmatpush1.msra.mxu0 %v3787
        %4926 = vmatprep.subr.mxu0 %v3792
        %4927 = vmatpush1.msra.mxu0 %v3791
        %4928 = vmatprep.subr.mxu0 %v3796
        %4929 = vmatpush1.msra.mxu0 %v3795
        %4930 = vmatprep.subr.mxu0 %v3800
        %4931 = vmatpush1.msra.mxu0 %v3799
        %4932 = vmatprep.mubr.f32.mxu0 %v3626
        %4933 = vmatmul.mubr.f32.gmra.mrb[0].mxu0 %v3625
        %v4934 = vpop.f32.mrb[0].mxu0
        %v4935 = vadd.f32 %v4581, %v4934
        %v4936 = vpop.f32.mrb[0].mxu0
        %v4937 = vadd.f32 %v4583, %v4936
        %4938 = vmatprep.mubr.f32.mxu0 %v3630
        %4939 = vmatmul.mubr.f32.gmra.mrb[0].mxu0 %v3629
        %v4940 = vpop.f32.mrb[0].mxu0
        %v4941 = vadd.f32 %v4587, %v4940
        %v4942 = vpop.f32.mrb[0].mxu0
        %v4943 = vadd.f32 %v4589, %v4942
        %4944 = vmatprep.mubr.f32.mxu0 %v3634
        %4945 = vmatmul.mubr.f32.gmra.mrb[0].mxu0 %v3633
        %v4946 = vpop.f32.mrb[0].mxu0
        %v4947 = vadd.f32 %v4593, %v4946
        %v4948 = vpop.f32.mrb[0].mxu0
        %v4949 = vadd.f32 %v4595, %v4948
        %4950 = vmatprep.mubr.f32.mxu0 %v3638
        %4951 = vmatmul.mubr.f32.gmra.mrb[0].mxu0 %v3637
        %v4952 = vpop.f32.mrb[0].mxu0
        %v4953 = vadd.f32 %v4599, %v4952
        %v4954 = vpop.f32.mrb[0].mxu0
        %v4955 = vadd.f32 %v4601, %v4954
        %4956 = vmatprep.mubr.f32.mxu0 %v3642
        %4957 = vmatmul.mubr.f32.gmra.mrb[0].mxu0 %v3641
        %v4958 = vpop.f32.mrb[0].mxu0
        %v4959 = vadd.f32 %v4605, %v4958
        %v4960 = vpop.f32.mrb[0].mxu0
        %v4961 = vadd.f32 %v4607, %v4960
        %4962 = vmatprep.mubr.f32.mxu0 %v3646
        %4963 = vmatmul.mubr.f32.gmra.mrb[0].mxu0 %v3645
        %v4964 = vpop.f32.mrb[0].mxu0
        %v4965 = vadd.f32 %v4611, %v4964
        %v4966 = vpop.f32.mrb[0].mxu0
        %v4967 = vadd.f32 %v4613, %v4966
        %4968 = vmatprep.mubr.f32.mxu0 %v3650
        %4969 = vmatmul.mubr.f32.gmra.mrb[0].mxu0 %v3649
        %v4970 = vpop.f32.mrb[0].mxu0
        %v4971 = vadd.f32 %v4617, %v4970
        %v4972 = vpop.f32.mrb[0].mxu0
        %v4973 = vadd.f32 %v4619, %v4972
        %4974 = vmatprep.mubr.f32.mxu0 %v3654
        %4975 = vmatmul.mubr.f32.gmra.mrb[0].mxu0 %v3653
        %v4976 = vpop.f32.mrb[0].mxu0
        %v4977 = vadd.f32 %v4623, %v4976
        %v4978 = vpop.f32.mrb[0].mxu0
        %v4979 = vadd.f32 %v4625, %v4978
        %4980 = vdwg.mxu0
        %4981 = vmatprep.subr.mxu0 %v3804
        %4982 = vmatpush1.msra.mxu0 %v3803
        %4983 = vmatprep.subr.mxu0 %v3808
        %4984 = vmatpush1.msra.mxu0 %v3807
        %4985 = vmatprep.subr.mxu0 %v3812
        %4986 = vmatpush1.msra.mxu0 %v3811
        %4987 = vmatprep.subr.mxu0 %v3816
        %4988 = vmatpush1.msra.mxu0 %v3815
        %4989 = vmatprep.subr.mxu0 %v3820
        %4990 = vmatpush1.msra.mxu0 %v3819
        %4991 = vmatprep.subr.mxu0 %v3824
        %4992 = vmatpush1.msra.mxu0 %v3823
        %4993 = vmatprep.subr.mxu0 %v3828
        %4994 = vmatpush1.msra.mxu0 %v3827
        %4995 = vmatprep.subr.mxu0 %v3832
        %4996 = vmatpush1.msra.mxu0 %v3831
        %4997 = vmatprep.subr.mxu0 %v3836
        %4998 = vmatpush1.msra.mxu0 %v3835
        %4999 = vmatprep.subr.mxu0 %v3840
        %5000 = vmatpush1.msra.mxu0 %v3839
        %5001 = vmatprep.subr.mxu0 %v3844
        %5002 = vmatpush1.msra.mxu0 %v3843
        %5003 = vmatprep.subr.mxu0 %v3848
        %5004 = vmatpush1.msra.mxu0 %v3847
        %5005 = vmatprep.subr.mxu0 %v3852
        %5006 = vmatpush1.msra.mxu0 %v3851
        %5007 = vmatprep.subr.mxu0 %v3856
        %5008 = vmatpush1.msra.mxu0 %v3855
        %5009 = vmatprep.subr.mxu0 %v3860
        %5010 = vmatpush1.msra.mxu0 %v3859
        %5011 = vmatprep.subr.mxu0 %v3864
        %5012 = vmatpush1.msra.mxu0 %v3863
        %5013 = vmatprep.subr.mxu0 %v3868
        %5014 = vmatpush1.msra.mxu0 %v3867
        %5015 = vmatprep.subr.mxu0 %v3872
        %5016 = vmatpush1.msra.mxu0 %v3871
        %5017 = vmatprep.subr.mxu0 %v3876
        %5018 = vmatpush1.msra.mxu0 %v3875
        %5019 = vmatprep.subr.mxu0 %v3880
        %5020 = vmatpush1.msra.mxu0 %v3879
        %5021 = vmatprep.subr.mxu0 %v3884
        %5022 = vmatpush1.msra.mxu0 %v3883
        %5023 = vmatprep.subr.mxu0 %v3888
        %5024 = vmatpush1.msra.mxu0 %v3887
        %5025 = vmatprep.subr.mxu0 %v3892
        %5026 = vmatpush1.msra.mxu0 %v3891
        %5027 = vmatprep.subr.mxu0 %v3896
        %5028 = vmatpush1.msra.mxu0 %v3895
        %5029 = vmatprep.subr.mxu0 %v3900
        %5030 = vmatpush1.msra.mxu0 %v3899
        %5031 = vmatprep.subr.mxu0 %v4640
        %5032 = vmatpush1.msra.mxu0 %v4637
        %5033 = vmatprep.subr.mxu0 0.0
        %5034 = vmatpush1.msra.mxu0 0.0
        %5035 = vmatprep.subr.mxu0 0.0
        %5036 = vmatpush1.msra.mxu0 0.0
        %5037 = vmatprep.subr.mxu0 0.0
        %5038 = vmatpush1.msra.mxu0 0.0
        %5039 = vmatprep.subr.mxu0 0.0
        %5040 = vmatpush1.msra.mxu0 0.0
        %5041 = vmatprep.subr.mxu0 0.0
        %5042 = vmatpush1.msra.mxu0 0.0
        %5043 = vmatprep.subr.mxu0 0.0
        %5044 = vmatpush1.msra.mxu0 0.0
        %5045 = vmatprep.mubr.f32.mxu0 %v4628
        %5046 = vmatmul.mubr.f32.gmra.mrb[0].mxu0 %v3627
        %v5047 = vpop.f32.mrb[0].mxu0
        %v5048 = vadd.f32 %v4935, %v5047
        %v5049 = vpop.f32.mrb[0].mxu0
        %v5050 = vadd.f32 %v4937, %v5049
        %5051 = vmatprep.mubr.f32.mxu0 %v4140
        %5052 = vmatmul.mubr.f32.gmra.mrb[0].mxu0 %v3631
        %v5053 = vpop.f32.mrb[0].mxu0
        %v5054 = vadd.f32 %v4941, %v5053
        %v5055 = vpop.f32.mrb[0].mxu0
        %v5056 = vadd.f32 %v4943, %v5055
        %5057 = vmatprep.mubr.f32.mxu0 %v4143
        %5058 = vmatmul.mubr.f32.gmra.mrb[0].mxu0 %v3635
        %v5059 = vpop.f32.mrb[0].mxu0
        %v5060 = vadd.f32 %v4947, %v5059
        %v5061 = vpop.f32.mrb[0].mxu0
        %v5062 = vadd.f32 %v4949, %v5061
        %5063 = vmatprep.mubr.f32.mxu0 %v4146
        %5064 = vmatmul.mubr.f32.gmra.mrb[0].mxu0 %v3639
        %v5065 = vpop.f32.mrb[0].mxu0
        %v5066 = vadd.f32 %v4953, %v5065
        %v5067 = vpop.f32.mrb[0].mxu0
        %v5068 = vadd.f32 %v4955, %v5067
        %5069 = vmatprep.mubr.f32.mxu0 %v4149
        %5070 = vmatmul.mubr.f32.gmra.mrb[0].mxu0 %v3643
        %v5071 = vpop.f32.mrb[0].mxu0
        %v5072 = vadd.f32 %v4959, %v5071
        %v5073 = vpop.f32.mrb[0].mxu0
        %v5074 = vadd.f32 %v4961, %v5073
        %5075 = vmatprep.mubr.f32.mxu0 %v4152
        %5076 = vmatmul.mubr.f32.gmra.mrb[0].mxu0 %v3647
        %v5077 = vpop.f32.mrb[0].mxu0
        %v5078 = vadd.f32 %v4965, %v5077
        %v5079 = vpop.f32.mrb[0].mxu0
        %v5080 = vadd.f32 %v4967, %v5079
        %5081 = vmatprep.mubr.f32.mxu0 %v4155
        %5082 = vmatmul.mubr.f32.gmra.mrb[0].mxu0 %v3651
        %v5083 = vpop.f32.mrb[0].mxu0
        %v5084 = vadd.f32 %v4971, %v5083
        %v5085 = vpop.f32.mrb[0].mxu0
        %v5086 = vadd.f32 %v4973, %v5085
        %5087 = vmatprep.mubr.f32.mxu0 %v4158
        %5088 = vmatmul.mubr.f32.gmra.mrb[0].mxu0 %v3655
        %v5089 = vpop.f32.mrb[0].mxu0
        %v5090 = vadd.f32 %v4977, %v5089
        %v5091 = vpop.f32.mrb[0].mxu0
        %v5092 = vadd.f32 %v4979, %v5091
        %5093 = vdwg.mxu0
        %s5094 = scalar_lea.vmem %s3, 3712
        %v5095 = vld [vmem:[%s5094] sm:$0xff]
        %v5096 = vld [vmem:[%s5094 + $0x8] sm:$0xff]
        %v5097 = vld [vmem:[%s5094 + $0x10] sm:$0xff]
        %v5098 = vld [vmem:[%s5094 + $0x18] sm:$0xff]
        %v5099 = vld [vmem:[%s5094 + $0x20] sm:$0xff]
        %v5100 = vld [vmem:[%s5094 + $0x28] sm:$0xff]
        %v5101 = vld [vmem:[%s5094 + $0x30] sm:$0xff]
        %v5102 = vld [vmem:[%s5094 + $0x38] sm:$0xff]
        %v5103 = vld [vmem:[%s5094 + $0x40] sm:$0xff]
        %v5104 = vld [vmem:[%s5094 + $0x48] sm:$0xff]
        %v5105 = vld [vmem:[%s5094 + $0x50] sm:$0xff]
        %v5106 = vld [vmem:[%s5094 + $0x58] sm:$0xff]
        %v5107 = vld [vmem:[%s5094 + $0x60] sm:$0xff]
        %v5108 = vld [vmem:[%s5094 + $0x68] sm:$0xff]
        %v5109 = vld [vmem:[%s5094 + $0x70] sm:$0xff]
        %v5110 = vld [vmem:[%s5094 + $0x78] sm:$0xff]
        %v5111 = vld [vmem:[%s5094 + $0x80] sm:$0xff]
        %v5112 = vld [vmem:[%s5094 + $0x88] sm:$0xff]
        %v5113 = vld [vmem:[%s5094 + $0x90] sm:$0xff]
        %v5114 = vld [vmem:[%s5094 + $0x98] sm:$0xff]
        %v5115 = vld [vmem:[%s5094 + $0xa0] sm:$0xff]
        %v5116 = vld [vmem:[%s5094 + $0xa8] sm:$0xff]
        %v5117 = vld [vmem:[%s5094 + $0xb0] sm:$0xff]
        %v5118 = vld [vmem:[%s5094 + $0xb8] sm:$0xff]
        %v5119 = vld [vmem:[%s5094 + $0xc0] sm:$0xff]
        %v5120 = vld [vmem:[%s5094 + $0xc8] sm:$0xff]
        %v5121 = vld [vmem:[%s5094 + $0xd0] sm:$0xff]
        %v5122 = vld [vmem:[%s5094 + $0xd8] sm:$0xff]
        %v5123 = vld [vmem:[%s5094 + $0xe0] sm:$0xff]
        %v5124 = vld [vmem:[%s5094 + $0xe8] sm:$0xff]
        %v5125 = vld [vmem:[%s5094 + $0xf0] sm:$0xff]
        %v5126 = vld [vmem:[%s5094 + $0xf8] sm:$0xff]
        %v5127 = vld [vmem:[%s5094 + $0x100] sm:$0xff]
        %v5128 = vld [vmem:[%s5094 + $0x108] sm:$0xff]
        %v5129 = vld [vmem:[%s5094 + $0x110] sm:$0xff]
        %v5130 = vld [vmem:[%s5094 + $0x118] sm:$0xff]
        %v5131 = vld [vmem:[%s5094 + $0x120] sm:$0xff]
        %v5132 = vld [vmem:[%s5094 + $0x128] sm:$0xff]
        %v5133 = vld [vmem:[%s5094 + $0x130] sm:$0xff]
        %v5134 = vld [vmem:[%s5094 + $0x138] sm:$0xff]
        %v5135 = vld [vmem:[%s5094 + $0x140] sm:$0xff]
        %v5136 = vld [vmem:[%s5094 + $0x148] sm:$0xff]
        %v5137 = vld [vmem:[%s5094 + $0x150] sm:$0xff]
        %v5138 = vld [vmem:[%s5094 + $0x158] sm:$0xff]
        %v5139 = vld [vmem:[%s5094 + $0x160] sm:$0xff]
        %v5140 = vld [vmem:[%s5094 + $0x168] sm:$0xff]
        %v5141 = vld [vmem:[%s5094 + $0x170] sm:$0xff]
        %v5142 = vld [vmem:[%s5094 + $0x178] sm:$0xff]
        %v5143 = vld [vmem:[%s5094 + $0x180] sm:$0xff]
        %v5144 = vld [vmem:[%s5094 + $0x188] sm:$0xff]
        %v5145 = vld [vmem:[%s5094 + $0x190] sm:$0xff]
        %v5146 = vld [vmem:[%s5094 + $0x198] sm:$0xff]
        %v5147 = vld [vmem:[%s5094 + $0x1a0] sm:$0xff]
        %v5148 = vld [vmem:[%s5094 + $0x1a8] sm:$0xff]
        %v5149 = vld [vmem:[%s5094 + $0x1b0] sm:$0xff]
        %v5150 = vld [vmem:[%s5094 + $0x1b8] sm:$0xff]
        %v5151 = vld [vmem:[%s5094 + $0x1c0] sm:$0xff]
        %v5152 = vld [vmem:[%s5094 + $0x1c8] sm:$0xff]
        %v5153 = vld [vmem:[%s5094 + $0x1d0] sm:$0xff]
        %v5154 = vld [vmem:[%s5094 + $0x1d8] sm:$0xff]
        %v5155 = vld [vmem:[%s5094 + $0x1e0] sm:$0xff]
        %v5156 = vld [vmem:[%s5094 + $0x1e8] sm:$0xff]
        %v5157 = vld [vmem:[%s5094 + $0x1f0] sm:$0xff]
        %v5158 = vld [vmem:[%s5094 + $0x1f8] sm:$0xff]
        %v5159 = vld [vmem:[%s5094 + $0x200] sm:$0xff]
        %v5160 = vld [vmem:[%s5094 + $0x208] sm:$0xff]
        %v5161 = vld [vmem:[%s5094 + $0x210] sm:$0xff]
        %v5162 = vld [vmem:[%s5094 + $0x218] sm:$0xff]
        %v5163 = vld [vmem:[%s5094 + $0x220] sm:$0xff]
        %v5164 = vld [vmem:[%s5094 + $0x228] sm:$0xff]
        %v5165 = vld [vmem:[%s5094 + $0x230] sm:$0xff]
        %v5166 = vld [vmem:[%s5094 + $0x238] sm:$0xff]
        %v5167 = vld [vmem:[%s5094 + $0x240] sm:$0xff]
        %v5168 = vld [vmem:[%s5094 + $0x248] sm:$0xff]
        %v5169 = vld [vmem:[%s5094 + $0x250] sm:$0xff]
        %v5170 = vld [vmem:[%s5094 + $0x258] sm:$0xff]
        %v5171 = vld [vmem:[%s5094 + $0x260] sm:$0xff]
        %v5172 = vld [vmem:[%s5094 + $0x268] sm:$0xff]
        %v5173 = vld [vmem:[%s5094 + $0x270] sm:$0xff]
        %v5174 = vld [vmem:[%s5094 + $0x278] sm:$0xff]
        %v5175 = vld [vmem:[%s5094 + $0x280] sm:$0xff]
        %v5176 = vld [vmem:[%s5094 + $0x288] sm:$0xff]
        %v5177 = vld [vmem:[%s5094 + $0x290] sm:$0xff]
        %v5178 = vld [vmem:[%s5094 + $0x298] sm:$0xff]
        %v5179 = vld [vmem:[%s5094 + $0x2a0] sm:$0xff]
        %v5180 = vld [vmem:[%s5094 + $0x2a8] sm:$0xff]
        %v5181 = vld [vmem:[%s5094 + $0x2b0] sm:$0xff]
        %v5182 = vld [vmem:[%s5094 + $0x2b8] sm:$0xff]
        %v5183 = vld [vmem:[%s5094 + $0x2c0] sm:$0xff]
        %v5184 = vld [vmem:[%s5094 + $0x2c8] sm:$0xff]
        %v5185 = vld [vmem:[%s5094 + $0x2d0] sm:$0xff]
        %v5186 = vld [vmem:[%s5094 + $0x2d8] sm:$0xff]
        %v5187 = vld [vmem:[%s5094 + $0x2e0] sm:$0xff]
        %v5188 = vld [vmem:[%s5094 + $0x2e8] sm:$0xff]
        %v5189 = vld [vmem:[%s5094 + $0x2f0] sm:$0xff]
        %v5190 = vld [vmem:[%s5094 + $0x2f8] sm:$0xff]
        %v5191 = vld [vmem:[%s5094 + $0x300] sm:$0xff]
        %v5192 = vld [vmem:[%s5094 + $0x308] sm:$0xff]
        %v5193 = vld [vmem:[%s5094 + $0x310] sm:$0xff]
        %v5194 = vld [vmem:[%s5094 + $0x318] sm:$0xff]
        %v5195 = vld [vmem:[%s5094 + $0x320] sm:$0xff]
        %v5196 = vld [vmem:[%s5094 + $0x328] sm:$0xff]
        %v5197 = vld [vmem:[%s5094 + $0x330] sm:$0xff]
        %v5198 = vld [vmem:[%s5094 + $0x338] sm:$0xff]
        %v5199 = vld [vmem:[%s5094 + $0x340] sm:$0xff]
        %v5200 = vld [vmem:[%s5094 + $0x348] sm:$0xff]
        %v5201 = vld [vmem:[%s5094 + $0x350] sm:$0xff]
        %v5202 = vld [vmem:[%s5094 + $0x358] sm:$0xff]
        %v5203 = vld [vmem:[%s5094 + $0x360] sm:$0xff]
        %v5204 = vld [vmem:[%s5094 + $0x368] sm:$0xff]
        %v5205 = vld [vmem:[%s5094 + $0x370] sm:$0xff]
        %v5206 = vld [vmem:[%s5094 + $0x378] sm:$0xff]
        %v5207 = vld [vmem:[%s5094 + $0x380] sm:$0xff]
        %v5208 = vld [vmem:[%s5094 + $0x388] sm:$0xff]
        %v5209 = vld [vmem:[%s5094 + $0x390] sm:$0xff]
        %v5210 = vld [vmem:[%s5094 + $0x398] sm:$0xff]
        %v5211 = vld [vmem:[%s5094 + $0x3a0] sm:$0xff]
        %v5212 = vld [vmem:[%s5094 + $0x3a8] sm:$0xff]
        %v5213 = vld [vmem:[%s5094 + $0x3b0] sm:$0xff]
        %v5214 = vld [vmem:[%s5094 + $0x3b8] sm:$0xff]
        %v5215 = vld [vmem:[%s5094 + $0x3c0] sm:$0xff]
        %v5216 = vld [vmem:[%s5094 + $0x3c8] sm:$0xff]
        %v5217 = vld [vmem:[%s5094 + $0x3d0] sm:$0xff]
        %v5218 = vld [vmem:[%s5094 + $0x3d8] sm:$0xff]
        %v5219 = vld [vmem:[%s5094 + $0x3e0] sm:$0xff]
        %v5220 = vld [vmem:[%s5094 + $0x3e8] sm:$0xff]
        %v5221 = vld [vmem:[%s5094 + $0x3f0] sm:$0xff]
        %v5222 = vld [vmem:[%s5094 + $0x3f8] sm:$0xff]
        %v5223 = vld [vmem:[%s5094 + $0x400] sm:$0xff]
        %v5224 = vld [vmem:[%s5094 + $0x408] sm:$0xff]
        %v5225 = vld [vmem:[%s5094 + $0x410] sm:$0xff]
        %v5226 = vld [vmem:[%s5094 + $0x418] sm:$0xff]
        %v5227 = vld [vmem:[%s5094 + $0x420] sm:$0xff]
        %v5228 = vld [vmem:[%s5094 + $0x428] sm:$0xff]
        %v5229 = vld [vmem:[%s5094 + $0x430] sm:$0xff]
        %v5230 = vld [vmem:[%s5094 + $0x438] sm:$0xff]
        %v5231 = vld [vmem:[%s5094 + $0x440] sm:$0xff]
        %v5232 = vld [vmem:[%s5094 + $0x448] sm:$0xff]
        %v5233 = vld [vmem:[%s5094 + $0x450] sm:$0xff]
        %v5234 = vld [vmem:[%s5094 + $0x458] sm:$0xff]
        %v5235 = vld [vmem:[%s5094 + $0x460] sm:$0xff]
        %v5236 = vld [vmem:[%s5094 + $0x468] sm:$0xff]
        %v5237 = vld [vmem:[%s5094 + $0x470] sm:$0xff]
        %v5238 = vld [vmem:[%s5094 + $0x478] sm:$0xff]
        %v5239 = vld [vmem:[%s5094 + $0x480] sm:$0xff]
        %v5240 = vld [vmem:[%s5094 + $0x488] sm:$0xff]
        %v5241 = vld [vmem:[%s5094 + $0x490] sm:$0xff]
        %v5242 = vld [vmem:[%s5094 + $0x498] sm:$0xff]
        %v5243 = vld [vmem:[%s5094 + $0x4a0] sm:$0xff]
        %v5244 = vld [vmem:[%s5094 + $0x4a8] sm:$0xff]
        %v5245 = vld [vmem:[%s5094 + $0x4b0] sm:$0xff]
        %v5246 = vld [vmem:[%s5094 + $0x4b8] sm:$0xff]
        %v5247 = vld [vmem:[%s5094 + $0x4c0] sm:$0xff]
        %v5248 = vld [vmem:[%s5094 + $0x4c8] sm:$0xff]
        %v5249 = vld [vmem:[%s5094 + $0x4d0] sm:$0xff]
        %v5250 = vld [vmem:[%s5094 + $0x4d8] sm:$0xff]
        %v5251 = vld [vmem:[%s5094 + $0x4e0] sm:$0xff]
        %v5252 = vld [vmem:[%s5094 + $0x4e8] sm:$0xff]
        %v5253 = vld [vmem:[%s5094 + $0x4f0] sm:$0xff]
        %v5254 = vld [vmem:[%s5094 + $0x4f8] sm:$0xff]
        %v5255 = vld [vmem:[%s5094 + $0x500] sm:$0xff]
        %v5256 = vld [vmem:[%s5094 + $0x508] sm:$0xff]
        %v5257 = vld [vmem:[%s5094 + $0x510] sm:$0xff]
        %v5258 = vld [vmem:[%s5094 + $0x518] sm:$0xff]
        %v5259 = vld [vmem:[%s5094 + $0x520] sm:$0xff]
        %v5260 = vld [vmem:[%s5094 + $0x528] sm:$0xff]
        %v5261 = vld [vmem:[%s5094 + $0x530] sm:$0xff]
        %v5262 = vld [vmem:[%s5094 + $0x538] sm:$0xff]
        %v5263 = vld [vmem:[%s5094 + $0x540] sm:$0xff]
        %v5264 = vld [vmem:[%s5094 + $0x548] sm:$0xff]
        %v5265 = vld [vmem:[%s5094 + $0x550] sm:$0xff]
        %v5266 = vld [vmem:[%s5094 + $0x558] sm:$0xff]
        %v5267 = vld [vmem:[%s5094 + $0x560] sm:$0xff]
        %v5268 = vld [vmem:[%s5094 + $0x568] sm:$0xff]
        %v5269 = vld [vmem:[%s5094 + $0x570] sm:$0xff]
        %v5270 = vld [vmem:[%s5094 + $0x578] sm:$0xff]
        %v5271 = vld [vmem:[%s5094 + $0x580] sm:$0xff]
        %v5272 = vld [vmem:[%s5094 + $0x588] sm:$0xff]
        %v5273 = vld [vmem:[%s5094 + $0x590] sm:$0xff]
        %v5274 = vld [vmem:[%s5094 + $0x598] sm:$0xff]
        %v5275 = vld [vmem:[%s5094 + $0x5a0] sm:$0xff]
        %v5276 = vld [vmem:[%s5094 + $0x5a8] sm:$0xff]
        %v5277 = vld [vmem:[%s5094 + $0x5b0] sm:$0xff]
        %v5278 = vld [vmem:[%s5094 + $0x5b8] sm:$0xff]
        %v5279 = vld [vmem:[%s5094 + $0x5c0] sm:$0xff]
        %v5280 = vld [vmem:[%s5094 + $0x5c8] sm:$0xff]
        %v5281 = vld [vmem:[%s5094 + $0x5d0] sm:$0xff]
        %v5282 = vld [vmem:[%s5094 + $0x5d8] sm:$0xff]
        %v5283 = vld [vmem:[%s5094 + $0x5e0] sm:$0xff]
        %v5284 = vld [vmem:[%s5094 + $0x5e8] sm:$0xff]
        %v5285 = vld [vmem:[%s5094 + $0x5f0] sm:$0xff]
        %v5286 = vld [vmem:[%s5094 + $0x5f8] sm:$0xff]
        %v5287 = vld [vmem:[%s5094 + $0x600] sm:$0xff]
        %v5288 = vld [vmem:[%s5094 + $0x608] sm:$0xff]
        %v5289 = vld [vmem:[%s5094 + $0x610] sm:$0xff]
        %v5290 = vld [vmem:[%s5094 + $0x618] sm:$0xff]
        %v5291 = vld [vmem:[%s5094 + $0x620] sm:$0xff]
        %v5292 = vld [vmem:[%s5094 + $0x628] sm:$0xff]
        %v5293 = vld [vmem:[%s5094 + $0x630] sm:$0xff]
        %v5294 = vld [vmem:[%s5094 + $0x638] sm:$0xff]
        %v5295 = vld [vmem:[%s5094 + $0x640] sm:$0xff]
        %v5296 = vld [vmem:[%s5094 + $0x648] sm:$0xff]
        %v5297 = vld [vmem:[%s5094 + $0x650] sm:$0xff]
        %v5298 = vld [vmem:[%s5094 + $0x658] sm:$0xff]
        %v5299 = vld [vmem:[%s5094 + $0x660] sm:$0xff]
        %v5300 = vld [vmem:[%s5094 + $0x668] sm:$0xff]
        %v5301 = vld [vmem:[%s5094 + $0x670] sm:$0xff]
        %v5302 = vld [vmem:[%s5094 + $0x678] sm:$0xff]
        %v5303 = vld [vmem:[%s5094 + $0x680] sm:$0xff]
        %v5304 = vld [vmem:[%s5094 + $0x688] sm:$0xff]
        %v5305 = vld [vmem:[%s5094 + $0x690] sm:$0xff]
        %v5306 = vld [vmem:[%s5094 + $0x698] sm:$0xff]
        %v5307 = vld [vmem:[%s5094 + $0x6a0] sm:$0xff]
        %v5308 = vld [vmem:[%s5094 + $0x6a8] sm:$0xff]
        %v5309 = vld [vmem:[%s5094 + $0x6b0] sm:$0xff]
        %v5310 = vld [vmem:[%s5094 + $0x6b8] sm:$0xff]
        %v5311 = vld [vmem:[%s5094 + $0x6c0] sm:$0xff]
        %v5312 = vld [vmem:[%s5094 + $0x6c8] sm:$0xff]
        %v5313 = vld [vmem:[%s5094 + $0x6d0] sm:$0xff]
        %v5314 = vld [vmem:[%s5094 + $0x6d8] sm:$0xff]
        %v5315 = vld [vmem:[%s5094 + $0x6e0] sm:$0xff]
        %v5316 = vld [vmem:[%s5094 + $0x6e8] sm:$0xff]
        %v5317 = vld [vmem:[%s5094 + $0x6f0] sm:$0xff]
        %v5318 = vld [vmem:[%s5094 + $0x6f8] sm:$0xff]
        %v5319 = vld [vmem:[%s5094 + $0x700] sm:$0xff]
        %v5320 = vld [vmem:[%s5094 + $0x708] sm:$0xff]
        %v5321 = vld [vmem:[%s5094 + $0x710] sm:$0xff]
        %v5322 = vld [vmem:[%s5094 + $0x718] sm:$0xff]
        %v5323 = vld [vmem:[%s5094 + $0x720] sm:$0xf]
        %v5324 = vld [vmem:[%s5094 + $0x728] sm:$0xf]
        %v5325 = vld [vmem:[%s5094 + $0x730] sm:$0xf]
        %v5326 = vld [vmem:[%s5094 + $0x738] sm:$0xf]
        %v5328 = vsel %vm4138, %v3664, 0
        %v5331 = vsel %vm607, %v5323, 0
        %v5334 = vsel %vm607, %v5324, 0
        %v5337 = vsel %vm607, %v5325, 0
        %v5340 = vsel %vm607, %v5326, 0
        %5342 = vmatprep.subr.mxu0 %v5096
        %5343 = vmatpush1.msra.mxu0 %v5095
        %5344 = vmatprep.subr.mxu0 %v5100
        %5345 = vmatpush1.msra.mxu0 %v5099
        %5346 = vmatprep.subr.mxu0 %v5104
        %5347 = vmatpush1.msra.mxu0 %v5103
        %5348 = vmatprep.subr.mxu0 %v5108
        %5349 = vmatpush1.msra.mxu0 %v5107
        %5350 = vmatprep.subr.mxu0 %v5112
        %5351 = vmatpush1.msra.mxu0 %v5111
        %5352 = vmatprep.subr.mxu0 %v5116
        %5353 = vmatpush1.msra.mxu0 %v5115
        %5354 = vmatprep.subr.mxu0 %v5120
        %5355 = vmatpush1.msra.mxu0 %v5119
        %5356 = vmatprep.subr.mxu0 %v5124
        %5357 = vmatpush1.msra.mxu0 %v5123
        %5358 = vmatprep.subr.mxu0 %v5128
        %5359 = vmatpush1.msra.mxu0 %v5127
        %5360 = vmatprep.subr.mxu0 %v5132
        %5361 = vmatpush1.msra.mxu0 %v5131
        %5362 = vmatprep.subr.mxu0 %v5136
        %5363 = vmatpush1.msra.mxu0 %v5135
        %5364 = vmatprep.subr.mxu0 %v5140
        %5365 = vmatpush1.msra.mxu0 %v5139
        %5366 = vmatprep.subr.mxu0 %v5144
        %5367 = vmatpush1.msra.mxu0 %v5143
        %5368 = vmatprep.subr.mxu0 %v5148
        %5369 = vmatpush1.msra.mxu0 %v5147
        %5370 = vmatprep.subr.mxu0 %v5152
        %5371 = vmatpush1.msra.mxu0 %v5151
        %5372 = vmatprep.subr.mxu0 %v5156
        %5373 = vmatpush1.msra.mxu0 %v5155
        %5374 = vmatprep.subr.mxu0 %v5160
        %5375 = vmatpush1.msra.mxu0 %v5159
        %5376 = vmatprep.subr.mxu0 %v5164
        %5377 = vmatpush1.msra.mxu0 %v5163
        %5378 = vmatprep.subr.mxu0 %v5168
        %5379 = vmatpush1.msra.mxu0 %v5167
        %5380 = vmatprep.subr.mxu0 %v5172
        %5381 = vmatpush1.msra.mxu0 %v5171
        %5382 = vmatprep.subr.mxu0 %v5176
        %5383 = vmatpush1.msra.mxu0 %v5175
        %5384 = vmatprep.subr.mxu0 %v5180
        %5385 = vmatpush1.msra.mxu0 %v5179
        %5386 = vmatprep.subr.mxu0 %v5184
        %5387 = vmatpush1.msra.mxu0 %v5183
        %5388 = vmatprep.subr.mxu0 %v5188
        %5389 = vmatpush1.msra.mxu0 %v5187
        %5390 = vmatprep.subr.mxu0 %v5192
        %5391 = vmatpush1.msra.mxu0 %v5191
        %5392 = vmatprep.subr.mxu0 %v5196
        %5393 = vmatpush1.msra.mxu0 %v5195
        %5394 = vmatprep.subr.mxu0 %v5200
        %5395 = vmatpush1.msra.mxu0 %v5199
        %5396 = vmatprep.subr.mxu0 %v5204
        %5397 = vmatpush1.msra.mxu0 %v5203
        %5398 = vmatprep.subr.mxu0 %v5208
        %5399 = vmatpush1.msra.mxu0 %v5207
        %5400 = vmatprep.subr.mxu0 %v5212
        %5401 = vmatpush1.msra.mxu0 %v5211
        %5402 = vmatprep.subr.mxu0 %v5216
        %5403 = vmatpush1.msra.mxu0 %v5215
        %5404 = vmatprep.subr.mxu0 %v5220
        %5405 = vmatpush1.msra.mxu0 %v5219
        %5406 = vmatprep.mubr.f32.mxu0 %v3634
        %5407 = vmatmul.mubr.f32.gmra.mrb[0].mxu0 %v3633
        %v5408 = vpop.f32.mrb[0].mxu0
        %v5409 = vadd.f32 0.0, %v5408
        %v5410 = vpop.f32.mrb[0].mxu0
        %v5411 = vadd.f32 0.0, %v5410
        %5412 = vmatprep.mubr.f32.mxu0 %v3638
        %5413 = vmatmul.mubr.f32.gmra.mrb[0].mxu0 %v3637
        %v5414 = vpop.f32.mrb[0].mxu0
        %v5415 = vadd.f32 0.0, %v5414
        %v5416 = vpop.f32.mrb[0].mxu0
        %v5417 = vadd.f32 0.0, %v5416
        %5418 = vmatprep.mubr.f32.mxu0 %v3642
        %5419 = vmatmul.mubr.f32.gmra.mrb[0].mxu0 %v3641
        %v5420 = vpop.f32.mrb[0].mxu0
        %v5421 = vadd.f32 0.0, %v5420
        %v5422 = vpop.f32.mrb[0].mxu0
        %v5423 = vadd.f32 0.0, %v5422
        %5424 = vmatprep.mubr.f32.mxu0 %v3646
        %5425 = vmatmul.mubr.f32.gmra.mrb[0].mxu0 %v3645
        %v5426 = vpop.f32.mrb[0].mxu0
        %v5427 = vadd.f32 0.0, %v5426
        %v5428 = vpop.f32.mrb[0].mxu0
        %v5429 = vadd.f32 0.0, %v5428
        %5430 = vmatprep.mubr.f32.mxu0 %v3650
        %5431 = vmatmul.mubr.f32.gmra.mrb[0].mxu0 %v3649
        %v5432 = vpop.f32.mrb[0].mxu0
        %v5433 = vadd.f32 0.0, %v5432
        %v5434 = vpop.f32.mrb[0].mxu0
        %v5435 = vadd.f32 0.0, %v5434
        %5436 = vmatprep.mubr.f32.mxu0 %v3654
        %5437 = vmatmul.mubr.f32.gmra.mrb[0].mxu0 %v3653
        %v5438 = vpop.f32.mrb[0].mxu0
        %v5439 = vadd.f32 0.0, %v5438
        %v5440 = vpop.f32.mrb[0].mxu0
        %v5441 = vadd.f32 0.0, %v5440
        %5442 = vmatprep.mubr.f32.mxu0 %v3658
        %5443 = vmatmul.mubr.f32.gmra.mrb[0].mxu0 %v3657
        %v5444 = vpop.f32.mrb[0].mxu0
        %v5445 = vadd.f32 0.0, %v5444
        %v5446 = vpop.f32.mrb[0].mxu0
        %v5447 = vadd.f32 0.0, %v5446
        %5448 = vmatprep.mubr.f32.mxu0 %v3662
        %5449 = vmatmul.mubr.f32.gmra.mrb[0].mxu0 %v3661
        %v5450 = vpop.f32.mrb[0].mxu0
        %v5451 = vadd.f32 0.0, %v5450
        %v5452 = vpop.f32.mrb[0].mxu0
        %v5453 = vadd.f32 0.0, %v5452
        %5454 = vdwg.mxu0
        %5455 = vmatprep.subr.mxu0 %v5224
        %5456 = vmatpush1.msra.mxu0 %v5223
        %5457 = vmatprep.subr.mxu0 %v5228
        %5458 = vmatpush1.msra.mxu0 %v5227
        %5459 = vmatprep.subr.mxu0 %v5232
        %5460 = vmatpush1.msra.mxu0 %v5231
        %5461 = vmatprep.subr.mxu0 %v5236
        %5462 = vmatpush1.msra.mxu0 %v5235
        %5463 = vmatprep.subr.mxu0 %v5240
        %5464 = vmatpush1.msra.mxu0 %v5239
        %5465 = vmatprep.subr.mxu0 %v5244
        %5466 = vmatpush1.msra.mxu0 %v5243
        %5467 = vmatprep.subr.mxu0 %v5248
        %5468 = vmatpush1.msra.mxu0 %v5247
        %5469 = vmatprep.subr.mxu0 %v5252
        %5470 = vmatpush1.msra.mxu0 %v5251
        %5471 = vmatprep.subr.mxu0 %v5256
        %5472 = vmatpush1.msra.mxu0 %v5255
        %5473 = vmatprep.subr.mxu0 %v5260
        %5474 = vmatpush1.msra.mxu0 %v5259
        %5475 = vmatprep.subr.mxu0 %v5264
        %5476 = vmatpush1.msra.mxu0 %v5263
        %5477 = vmatprep.subr.mxu0 %v5268
        %5478 = vmatpush1.msra.mxu0 %v5267
        %5479 = vmatprep.subr.mxu0 %v5272
        %5480 = vmatpush1.msra.mxu0 %v5271
        %5481 = vmatprep.subr.mxu0 %v5276
        %5482 = vmatpush1.msra.mxu0 %v5275
        %5483 = vmatprep.subr.mxu0 %v5280
        %5484 = vmatpush1.msra.mxu0 %v5279
        %5485 = vmatprep.subr.mxu0 %v5284
        %5486 = vmatpush1.msra.mxu0 %v5283
        %5487 = vmatprep.subr.mxu0 %v5288
        %5488 = vmatpush1.msra.mxu0 %v5287
        %5489 = vmatprep.subr.mxu0 %v5292
        %5490 = vmatpush1.msra.mxu0 %v5291
        %5491 = vmatprep.subr.mxu0 %v5296
        %5492 = vmatpush1.msra.mxu0 %v5295
        %5493 = vmatprep.subr.mxu0 %v5300
        %5494 = vmatpush1.msra.mxu0 %v5299
        %5495 = vmatprep.subr.mxu0 %v5304
        %5496 = vmatpush1.msra.mxu0 %v5303
        %5497 = vmatprep.subr.mxu0 %v5308
        %5498 = vmatpush1.msra.mxu0 %v5307
        %5499 = vmatprep.subr.mxu0 %v5312
        %5500 = vmatpush1.msra.mxu0 %v5311
        %5501 = vmatprep.subr.mxu0 %v5316
        %5502 = vmatpush1.msra.mxu0 %v5315
        %5503 = vmatprep.subr.mxu0 %v5320
        %5504 = vmatpush1.msra.mxu0 %v5319
        %5505 = vmatprep.subr.mxu0 %v5334
        %5506 = vmatpush1.msra.mxu0 %v5331
        %5507 = vmatprep.subr.mxu0 0.0
        %5508 = vmatpush1.msra.mxu0 0.0
        %5509 = vmatprep.subr.mxu0 0.0
        %5510 = vmatpush1.msra.mxu0 0.0
        %5511 = vmatprep.subr.mxu0 0.0
        %5512 = vmatpush1.msra.mxu0 0.0
        %5513 = vmatprep.subr.mxu0 0.0
        %5514 = vmatpush1.msra.mxu0 0.0
        %5515 = vmatprep.subr.mxu0 0.0
        %5516 = vmatpush1.msra.mxu0 0.0
        %5517 = vmatprep.subr.mxu0 0.0
        %5518 = vmatpush1.msra.mxu0 0.0
        %5519 = vmatprep.mubr.f32.mxu0 %v4143
        %5520 = vmatmul.mubr.f32.gmra.mrb[0].mxu0 %v3635
        %v5521 = vpop.f32.mrb[0].mxu0
        %v5522 = vadd.f32 %v5409, %v5521
        %v5523 = vpop.f32.mrb[0].mxu0
        %v5524 = vadd.f32 %v5411, %v5523
        %5525 = vmatprep.mubr.f32.mxu0 %v4146
        %5526 = vmatmul.mubr.f32.gmra.mrb[0].mxu0 %v3639
        %v5527 = vpop.f32.mrb[0].mxu0
        %v5528 = vadd.f32 %v5415, %v5527
        %v5529 = vpop.f32.mrb[0].mxu0
        %v5530 = vadd.f32 %v5417, %v5529
        %5531 = vmatprep.mubr.f32.mxu0 %v4149
        %5532 = vmatmul.mubr.f32.gmra.mrb[0].mxu0 %v3643
        %v5533 = vpop.f32.mrb[0].mxu0
        %v5534 = vadd.f32 %v5421, %v5533
        %v5535 = vpop.f32.mrb[0].mxu0
        %v5536 = vadd.f32 %v5423, %v5535
        %5537 = vmatprep.mubr.f32.mxu0 %v4152
        %5538 = vmatmul.mubr.f32.gmra.mrb[0].mxu0 %v3647
        %v5539 = vpop.f32.mrb[0].mxu0
        %v5540 = vadd.f32 %v5427, %v5539
        %v5541 = vpop.f32.mrb[0].mxu0
        %v5542 = vadd.f32 %v5429, %v5541
        %5543 = vmatprep.mubr.f32.mxu0 %v4155
        %5544 = vmatmul.mubr.f32.gmra.mrb[0].mxu0 %v3651
        %v5545 = vpop.f32.mrb[0].mxu0
        %v5546 = vadd.f32 %v5433, %v5545
        %v5547 = vpop.f32.mrb[0].mxu0
        %v5548 = vadd.f32 %v5435, %v5547
        %5549 = vmatprep.mubr.f32.mxu0 %v4158
        %5550 = vmatmul.mubr.f32.gmra.mrb[0].mxu0 %v3655
        %v5551 = vpop.f32.mrb[0].mxu0
        %v5552 = vadd.f32 %v5439, %v5551
        %v5553 = vpop.f32.mrb[0].mxu0
        %v5554 = vadd.f32 %v5441, %v5553
        %5555 = vmatprep.mubr.f32.mxu0 %v4161
        %5556 = vmatmul.mubr.f32.gmra.mrb[0].mxu0 %v3659
        %v5557 = vpop.f32.mrb[0].mxu0
        %v5558 = vadd.f32 %v5445, %v5557
        %v5559 = vpop.f32.mrb[0].mxu0
        %v5560 = vadd.f32 %v5447, %v5559
        %5561 = vmatprep.mubr.f32.mxu0 %v5328
        %5562 = vmatmul.mubr.f32.gmra.mrb[0].mxu0 %v3663
        %v5563 = vpop.f32.mrb[0].mxu0
        %v5564 = vadd.f32 %v5451, %v5563
        %v5565 = vpop.f32.mrb[0].mxu0
        %v5566 = vadd.f32 %v5453, %v5565
        %5567 = vdwg.mxu0
        %5568 = vmatprep.subr.mxu0 %v5098
        %5569 = vmatpush1.msra.mxu0 %v5097
        %5570 = vmatprep.subr.mxu0 %v5102
        %5571 = vmatpush1.msra.mxu0 %v5101
        %5572 = vmatprep.subr.mxu0 %v5106
        %5573 = vmatpush1.msra.mxu0 %v5105
        %5574 = vmatprep.subr.mxu0 %v5110
        %5575 = vmatpush1.msra.mxu0 %v5109
        %5576 = vmatprep.subr.mxu0 %v5114
        %5577 = vmatpush1.msra.mxu0 %v5113
        %5578 = vmatprep.subr.mxu0 %v5118
        %5579 = vmatpush1.msra.mxu0 %v5117
        %5580 = vmatprep.subr.mxu0 %v5122
        %5581 = vmatpush1.msra.mxu0 %v5121
        %5582 = vmatprep.subr.mxu0 %v5126
        %5583 = vmatpush1.msra.mxu0 %v5125
        %5584 = vmatprep.subr.mxu0 %v5130
        %5585 = vmatpush1.msra.mxu0 %v5129
        %5586 = vmatprep.subr.mxu0 %v5134
        %5587 = vmatpush1.msra.mxu0 %v5133
        %5588 = vmatprep.subr.mxu0 %v5138
        %5589 = vmatpush1.msra.mxu0 %v5137
        %5590 = vmatprep.subr.mxu0 %v5142
        %5591 = vmatpush1.msra.mxu0 %v5141
        %5592 = vmatprep.subr.mxu0 %v5146
        %5593 = vmatpush1.msra.mxu0 %v5145
        %5594 = vmatprep.subr.mxu0 %v5150
        %5595 = vmatpush1.msra.mxu0 %v5149
        %5596 = vmatprep.subr.mxu0 %v5154
        %5597 = vmatpush1.msra.mxu0 %v5153
        %5598 = vmatprep.subr.mxu0 %v5158
        %5599 = vmatpush1.msra.mxu0 %v5157
        %5600 = vmatprep.subr.mxu0 %v5162
        %5601 = vmatpush1.msra.mxu0 %v5161
        %5602 = vmatprep.subr.mxu0 %v5166
        %5603 = vmatpush1.msra.mxu0 %v5165
        %5604 = vmatprep.subr.mxu0 %v5170
        %5605 = vmatpush1.msra.mxu0 %v5169
        %5606 = vmatprep.subr.mxu0 %v5174
        %5607 = vmatpush1.msra.mxu0 %v5173
        %5608 = vmatprep.subr.mxu0 %v5178
        %5609 = vmatpush1.msra.mxu0 %v5177
        %5610 = vmatprep.subr.mxu0 %v5182
        %5611 = vmatpush1.msra.mxu0 %v5181
        %5612 = vmatprep.subr.mxu0 %v5186
        %5613 = vmatpush1.msra.mxu0 %v5185
        %5614 = vmatprep.subr.mxu0 %v5190
        %5615 = vmatpush1.msra.mxu0 %v5189
        %5616 = vmatprep.subr.mxu0 %v5194
        %5617 = vmatpush1.msra.mxu0 %v5193
        %5618 = vmatprep.subr.mxu0 %v5198
        %5619 = vmatpush1.msra.mxu0 %v5197
        %5620 = vmatprep.subr.mxu0 %v5202
        %5621 = vmatpush1.msra.mxu0 %v5201
        %5622 = vmatprep.subr.mxu0 %v5206
        %5623 = vmatpush1.msra.mxu0 %v5205
        %5624 = vmatprep.subr.mxu0 %v5210
        %5625 = vmatpush1.msra.mxu0 %v5209
        %5626 = vmatprep.subr.mxu0 %v5214
        %5627 = vmatpush1.msra.mxu0 %v5213
        %5628 = vmatprep.subr.mxu0 %v5218
        %5629 = vmatpush1.msra.mxu0 %v5217
        %5630 = vmatprep.subr.mxu0 %v5222
        %5631 = vmatpush1.msra.mxu0 %v5221
        %5632 = vmatprep.mubr.f32.mxu0 %v3634
        %5633 = vmatmul.mubr.f32.gmra.mrb[0].mxu0 %v3633
        %v5634 = vpop.f32.mrb[0].mxu0
        %v5635 = vadd.f32 0.0, %v5634
        %v5636 = vpop.f32.mrb[0].mxu0
        %v5637 = vadd.f32 0.0, %v5636
        %5638 = vmatprep.mubr.f32.mxu0 %v3638
        %5639 = vmatmul.mubr.f32.gmra.mrb[0].mxu0 %v3637
        %v5640 = vpop.f32.mrb[0].mxu0
        %v5641 = vadd.f32 0.0, %v5640
        %v5642 = vpop.f32.mrb[0].mxu0
        %v5643 = vadd.f32 0.0, %v5642
        %5644 = vmatprep.mubr.f32.mxu0 %v3642
        %5645 = vmatmul.mubr.f32.gmra.mrb[0].mxu0 %v3641
        %v5646 = vpop.f32.mrb[0].mxu0
        %v5647 = vadd.f32 0.0, %v5646
        %v5648 = vpop.f32.mrb[0].mxu0
        %v5649 = vadd.f32 0.0, %v5648
        %5650 = vmatprep.mubr.f32.mxu0 %v3646
        %5651 = vmatmul.mubr.f32.gmra.mrb[0].mxu0 %v3645
        %v5652 = vpop.f32.mrb[0].mxu0
        %v5653 = vadd.f32 0.0, %v5652
        %v5654 = vpop.f32.mrb[0].mxu0
        %v5655 = vadd.f32 0.0, %v5654
        %5656 = vmatprep.mubr.f32.mxu0 %v3650
        %5657 = vmatmul.mubr.f32.gmra.mrb[0].mxu0 %v3649
        %v5658 = vpop.f32.mrb[0].mxu0
        %v5659 = vadd.f32 0.0, %v5658
        %v5660 = vpop.f32.mrb[0].mxu0
        %v5661 = vadd.f32 0.0, %v5660
        %5662 = vmatprep.mubr.f32.mxu0 %v3654
        %5663 = vmatmul.mubr.f32.gmra.mrb[0].mxu0 %v3653
        %v5664 = vpop.f32.mrb[0].mxu0
        %v5665 = vadd.f32 0.0, %v5664
        %v5666 = vpop.f32.mrb[0].mxu0
        %v5667 = vadd.f32 0.0, %v5666
        %5668 = vmatprep.mubr.f32.mxu0 %v3658
        %5669 = vmatmul.mubr.f32.gmra.mrb[0].mxu0 %v3657
        %v5670 = vpop.f32.mrb[0].mxu0
        %v5671 = vadd.f32 0.0, %v5670
        %v5672 = vpop.f32.mrb[0].mxu0
        %v5673 = vadd.f32 0.0, %v5672
        %5674 = vmatprep.mubr.f32.mxu0 %v3662
        %5675 = vmatmul.mubr.f32.gmra.mrb[0].mxu0 %v3661
        %v5676 = vpop.f32.mrb[0].mxu0
        %v5677 = vadd.f32 0.0, %v5676
        %v5678 = vpop.f32.mrb[0].mxu0
        %v5679 = vadd.f32 0.0, %v5678
        %5680 = vdwg.mxu0
        %5681 = vmatprep.subr.mxu0 %v5226
        %5682 = vmatpush1.msra.mxu0 %v5225
        %5683 = vmatprep.subr.mxu0 %v5230
        %5684 = vmatpush1.msra.mxu0 %v5229
        %5685 = vmatprep.subr.mxu0 %v5234
        %5686 = vmatpush1.msra.mxu0 %v5233
        %5687 = vmatprep.subr.mxu0 %v5238
        %5688 = vmatpush1.msra.mxu0 %v5237
        %5689 = vmatprep.subr.mxu0 %v5242
        %5690 = vmatpush1.msra.mxu0 %v5241
        %5691 = vmatprep.subr.mxu0 %v5246
        %5692 = vmatpush1.msra.mxu0 %v5245
        %5693 = vmatprep.subr.mxu0 %v5250
        %5694 = vmatpush1.msra.mxu0 %v5249
        %5695 = vmatprep.subr.mxu0 %v5254
        %5696 = vmatpush1.msra.mxu0 %v5253
        %5697 = vmatprep.subr.mxu0 %v5258
        %5698 = vmatpush1.msra.mxu0 %v5257
        %5699 = vmatprep.subr.mxu0 %v5262
        %5700 = vmatpush1.msra.mxu0 %v5261
        %5701 = vmatprep.subr.mxu0 %v5266
        %5702 = vmatpush1.msra.mxu0 %v5265
        %5703 = vmatprep.subr.mxu0 %v5270
        %5704 = vmatpush1.msra.mxu0 %v5269
        %5705 = vmatprep.subr.mxu0 %v5274
        %5706 = vmatpush1.msra.mxu0 %v5273
        %5707 = vmatprep.subr.mxu0 %v5278
        %5708 = vmatpush1.msra.mxu0 %v5277
        %5709 = vmatprep.subr.mxu0 %v5282
        %5710 = vmatpush1.msra.mxu0 %v5281
        %5711 = vmatprep.subr.mxu0 %v5286
        %5712 = vmatpush1.msra.mxu0 %v5285
        %5713 = vmatprep.subr.mxu0 %v5290
        %5714 = vmatpush1.msra.mxu0 %v5289
        %5715 = vmatprep.subr.mxu0 %v5294
        %5716 = vmatpush1.msra.mxu0 %v5293
        %5717 = vmatprep.subr.mxu0 %v5298
        %5718 = vmatpush1.msra.mxu0 %v5297
        %5719 = vmatprep.subr.mxu0 %v5302
        %5720 = vmatpush1.msra.mxu0 %v5301
        %5721 = vmatprep.subr.mxu0 %v5306
        %5722 = vmatpush1.msra.mxu0 %v5305
        %5723 = vmatprep.subr.mxu0 %v5310
        %5724 = vmatpush1.msra.mxu0 %v5309
        %5725 = vmatprep.subr.mxu0 %v5314
        %5726 = vmatpush1.msra.mxu0 %v5313
        %5727 = vmatprep.subr.mxu0 %v5318
        %5728 = vmatpush1.msra.mxu0 %v5317
        %5729 = vmatprep.subr.mxu0 %v5322
        %5730 = vmatpush1.msra.mxu0 %v5321
        %5731 = vmatprep.subr.mxu0 %v5340
        %5732 = vmatpush1.msra.mxu0 %v5337
        %5733 = vmatprep.subr.mxu0 0.0
        %5734 = vmatpush1.msra.mxu0 0.0
        %5735 = vmatprep.subr.mxu0 0.0
        %5736 = vmatpush1.msra.mxu0 0.0
        %5737 = vmatprep.subr.mxu0 0.0
        %5738 = vmatpush1.msra.mxu0 0.0
        %5739 = vmatprep.subr.mxu0 0.0
        %5740 = vmatpush1.msra.mxu0 0.0
        %5741 = vmatprep.subr.mxu0 0.0
        %5742 = vmatpush1.msra.mxu0 0.0
        %5743 = vmatprep.subr.mxu0 0.0
        %5744 = vmatpush1.msra.mxu0 0.0
        %5745 = vmatprep.mubr.f32.mxu0 %v4143
        %5746 = vmatmul.mubr.f32.gmra.mrb[0].mxu0 %v3635
        %v5747 = vpop.f32.mrb[0].mxu0
        %v5748 = vadd.f32 %v5635, %v5747
        %v5749 = vpop.f32.mrb[0].mxu0
        %v5750 = vadd.f32 %v5637, %v5749
        %5751 = vmatprep.mubr.f32.mxu0 %v4146
        %5752 = vmatmul.mubr.f32.gmra.mrb[0].mxu0 %v3639
        %v5753 = vpop.f32.mrb[0].mxu0
        %v5754 = vadd.f32 %v5641, %v5753
        %v5755 = vpop.f32.mrb[0].mxu0
        %v5756 = vadd.f32 %v5643, %v5755
        %5757 = vmatprep.mubr.f32.mxu0 %v4149
        %5758 = vmatmul.mubr.f32.gmra.mrb[0].mxu0 %v3643
        %v5759 = vpop.f32.mrb[0].mxu0
        %v5760 = vadd.f32 %v5647, %v5759
        %v5761 = vpop.f32.mrb[0].mxu0
        %v5762 = vadd.f32 %v5649, %v5761
        %5763 = vmatprep.mubr.f32.mxu0 %v4152
        %5764 = vmatmul.mubr.f32.gmra.mrb[0].mxu0 %v3647
        %v5765 = vpop.f32.mrb[0].mxu0
        %v5766 = vadd.f32 %v5653, %v5765
        %v5767 = vpop.f32.mrb[0].mxu0
        %v5768 = vadd.f32 %v5655, %v5767
        %5769 = vmatprep.mubr.f32.mxu0 %v4155
        %5770 = vmatmul.mubr.f32.gmra.mrb[0].mxu0 %v3651
        %v5771 = vpop.f32.mrb[0].mxu0
        %v5772 = vadd.f32 %v5659, %v5771
        %v5773 = vpop.f32.mrb[0].mxu0
        %v5774 = vadd.f32 %v5661, %v5773
        %5775 = vmatprep.mubr.f32.mxu0 %v4158
        %5776 = vmatmul.mubr.f32.gmra.mrb[0].mxu0 %v3655
        %v5777 = vpop.f32.mrb[0].mxu0
        %v5778 = vadd.f32 %v5665, %v5777
        %v5779 = vpop.f32.mrb[0].mxu0
        %v5780 = vadd.f32 %v5667, %v5779
        %5781 = vmatprep.mubr.f32.mxu0 %v4161
        %5782 = vmatmul.mubr.f32.gmra.mrb[0].mxu0 %v3659
        %v5783 = vpop.f32.mrb[0].mxu0
        %v5784 = vadd.f32 %v5671, %v5783
        %v5785 = vpop.f32.mrb[0].mxu0
        %v5786 = vadd.f32 %v5673, %v5785
        %5787 = vmatprep.mubr.f32.mxu0 %v5328
        %5788 = vmatmul.mubr.f32.gmra.mrb[0].mxu0 %v3663
        %v5789 = vpop.f32.mrb[0].mxu0
        %v5790 = vadd.f32 %v5677, %v5789
        %v5791 = vpop.f32.mrb[0].mxu0
        %v5792 = vadd.f32 %v5679, %v5791
        %5793 = vdwg.mxu0
        %v5794 = vadd.f32 %v4822, %v5522
        %v5795 = vadd.f32 %v4824, %v5524
        %v5796 = vadd.f32 %v5048, %v5748
        %v5797 = vadd.f32 %v5050, %v5750
        %v5798 = vadd.f32 %v4828, %v5528
        %v5799 = vadd.f32 %v4830, %v5530
        %v5800 = vadd.f32 %v5054, %v5754
        %v5801 = vadd.f32 %v5056, %v5756
        %v5802 = vadd.f32 %v4834, %v5534
        %v5803 = vadd.f32 %v4836, %v5536
        %v5804 = vadd.f32 %v5060, %v5760
        %v5805 = vadd.f32 %v5062, %v5762
        %v5806 = vadd.f32 %v4840, %v5540
        %v5807 = vadd.f32 %v4842, %v5542
        %v5808 = vadd.f32 %v5066, %v5766
        %v5809 = vadd.f32 %v5068, %v5768
        %v5810 = vadd.f32 %v4846, %v5546
        %v5811 = vadd.f32 %v4848, %v5548
        %v5812 = vadd.f32 %v5072, %v5772
        %v5813 = vadd.f32 %v5074, %v5774
        %v5814 = vadd.f32 %v4852, %v5552
        %v5815 = vadd.f32 %v4854, %v5554
        %v5816 = vadd.f32 %v5078, %v5778
        %v5817 = vadd.f32 %v5080, %v5780
        %v5818 = vadd.f32 %v4858, %v5558
        %v5819 = vadd.f32 %v4860, %v5560
        %v5820 = vadd.f32 %v5084, %v5784
        %v5821 = vadd.f32 %v5086, %v5786
        %v5822 = vadd.f32 %v4864, %v5564
        %v5823 = vadd.f32 %v4866, %v5566
        %v5824 = vadd.f32 %v5090, %v5790
        %v5825 = vadd.f32 %v5092, %v5792
        %s5826 = scalar_lea.vmem %s3, 5568
        %v5827 = vld [vmem:[%s5826] sm:$0xff]
        %v5828 = vld [vmem:[%s5826 + $0x8] sm:$0xff]
        %v5829 = vld [vmem:[%s5826 + $0x10] sm:$0xff]
        %v5830 = vld [vmem:[%s5826 + $0x18] sm:$0xff]
        %v5831 = vld [vmem:[%s5826 + $0x20] sm:$0xff]
        %v5832 = vld [vmem:[%s5826 + $0x28] sm:$0xff]
        %v5833 = vld [vmem:[%s5826 + $0x30] sm:$0xff]
        %v5834 = vld [vmem:[%s5826 + $0x38] sm:$0xff]
        %v5835 = vld [vmem:[%s5826 + $0x40] sm:$0xff]
        %v5836 = vld [vmem:[%s5826 + $0x48] sm:$0xff]
        %v5837 = vld [vmem:[%s5826 + $0x50] sm:$0xff]
        %v5838 = vld [vmem:[%s5826 + $0x58] sm:$0xff]
        %v5839 = vld [vmem:[%s5826 + $0x60] sm:$0xff]
        %v5840 = vld [vmem:[%s5826 + $0x68] sm:$0xff]
        %v5841 = vld [vmem:[%s5826 + $0x70] sm:$0xff]
        %v5842 = vld [vmem:[%s5826 + $0x78] sm:$0xff]
        %v5843 = vld [vmem:[%s5826 + $0x80] sm:$0xff]
        %v5844 = vld [vmem:[%s5826 + $0x88] sm:$0xff]
        %v5845 = vld [vmem:[%s5826 + $0x90] sm:$0xff]
        %v5846 = vld [vmem:[%s5826 + $0x98] sm:$0xff]
        %v5847 = vld [vmem:[%s5826 + $0xa0] sm:$0xff]
        %v5848 = vld [vmem:[%s5826 + $0xa8] sm:$0xff]
        %v5849 = vld [vmem:[%s5826 + $0xb0] sm:$0xff]
        %v5850 = vld [vmem:[%s5826 + $0xb8] sm:$0xff]
        %v5851 = vld [vmem:[%s5826 + $0xc0] sm:$0xff]
        %v5852 = vld [vmem:[%s5826 + $0xc8] sm:$0xff]
        %v5853 = vld [vmem:[%s5826 + $0xd0] sm:$0xff]
        %v5854 = vld [vmem:[%s5826 + $0xd8] sm:$0xff]
        %v5855 = vld [vmem:[%s5826 + $0xe0] sm:$0xff]
        %v5856 = vld [vmem:[%s5826 + $0xe8] sm:$0xff]
        %v5857 = vld [vmem:[%s5826 + $0xf0] sm:$0xff]
        %v5858 = vld [vmem:[%s5826 + $0xf8] sm:$0xff]
        %v5859 = vld [vmem:[%s5826 + $0x100] sm:$0xff]
        %v5860 = vld [vmem:[%s5826 + $0x108] sm:$0xff]
        %v5861 = vld [vmem:[%s5826 + $0x110] sm:$0xff]
        %v5862 = vld [vmem:[%s5826 + $0x118] sm:$0xff]
        %v5863 = vld [vmem:[%s5826 + $0x120] sm:$0xff]
        %v5864 = vld [vmem:[%s5826 + $0x128] sm:$0xff]
        %v5865 = vld [vmem:[%s5826 + $0x130] sm:$0xff]
        %v5866 = vld [vmem:[%s5826 + $0x138] sm:$0xff]
        %v5867 = vld [vmem:[%s5826 + $0x140] sm:$0xff]
        %v5868 = vld [vmem:[%s5826 + $0x148] sm:$0xff]
        %v5869 = vld [vmem:[%s5826 + $0x150] sm:$0xff]
        %v5870 = vld [vmem:[%s5826 + $0x158] sm:$0xff]
        %v5871 = vld [vmem:[%s5826 + $0x160] sm:$0xff]
        %v5872 = vld [vmem:[%s5826 + $0x168] sm:$0xff]
        %v5873 = vld [vmem:[%s5826 + $0x170] sm:$0xff]
        %v5874 = vld [vmem:[%s5826 + $0x178] sm:$0xff]
        %v5875 = vld [vmem:[%s5826 + $0x180] sm:$0xff]
        %v5876 = vld [vmem:[%s5826 + $0x188] sm:$0xff]
        %v5877 = vld [vmem:[%s5826 + $0x190] sm:$0xff]
        %v5878 = vld [vmem:[%s5826 + $0x198] sm:$0xff]
        %v5879 = vld [vmem:[%s5826 + $0x1a0] sm:$0xff]
        %v5880 = vld [vmem:[%s5826 + $0x1a8] sm:$0xff]
        %v5881 = vld [vmem:[%s5826 + $0x1b0] sm:$0xff]
        %v5882 = vld [vmem:[%s5826 + $0x1b8] sm:$0xff]
        %v5883 = vld [vmem:[%s5826 + $0x1c0] sm:$0xff]
        %v5884 = vld [vmem:[%s5826 + $0x1c8] sm:$0xff]
        %v5885 = vld [vmem:[%s5826 + $0x1d0] sm:$0xff]
        %v5886 = vld [vmem:[%s5826 + $0x1d8] sm:$0xff]
        %v5887 = vld [vmem:[%s5826 + $0x1e0] sm:$0xff]
        %v5888 = vld [vmem:[%s5826 + $0x1e8] sm:$0xff]
        %v5889 = vld [vmem:[%s5826 + $0x1f0] sm:$0xff]
        %v5890 = vld [vmem:[%s5826 + $0x1f8] sm:$0xff]
        %v5891 = vld [vmem:[%s5826 + $0x200] sm:$0xff]
        %v5892 = vld [vmem:[%s5826 + $0x208] sm:$0xff]
        %v5893 = vld [vmem:[%s5826 + $0x210] sm:$0xff]
        %v5894 = vld [vmem:[%s5826 + $0x218] sm:$0xff]
        %v5895 = vld [vmem:[%s5826 + $0x220] sm:$0xff]
        %v5896 = vld [vmem:[%s5826 + $0x228] sm:$0xff]
        %v5897 = vld [vmem:[%s5826 + $0x230] sm:$0xff]
        %v5898 = vld [vmem:[%s5826 + $0x238] sm:$0xff]
        %v5899 = vld [vmem:[%s5826 + $0x240] sm:$0xff]
        %v5900 = vld [vmem:[%s5826 + $0x248] sm:$0xff]
        %v5901 = vld [vmem:[%s5826 + $0x250] sm:$0xff]
        %v5902 = vld [vmem:[%s5826 + $0x258] sm:$0xff]
        %v5903 = vld [vmem:[%s5826 + $0x260] sm:$0xff]
        %v5904 = vld [vmem:[%s5826 + $0x268] sm:$0xff]
        %v5905 = vld [vmem:[%s5826 + $0x270] sm:$0xff]
        %v5906 = vld [vmem:[%s5826 + $0x278] sm:$0xff]
        %v5907 = vld [vmem:[%s5826 + $0x280] sm:$0xff]
        %v5908 = vld [vmem:[%s5826 + $0x288] sm:$0xff]
        %v5909 = vld [vmem:[%s5826 + $0x290] sm:$0xff]
        %v5910 = vld [vmem:[%s5826 + $0x298] sm:$0xff]
        %v5911 = vld [vmem:[%s5826 + $0x2a0] sm:$0xff]
        %v5912 = vld [vmem:[%s5826 + $0x2a8] sm:$0xff]
        %v5913 = vld [vmem:[%s5826 + $0x2b0] sm:$0xff]
        %v5914 = vld [vmem:[%s5826 + $0x2b8] sm:$0xff]
        %v5915 = vld [vmem:[%s5826 + $0x2c0] sm:$0xff]
        %v5916 = vld [vmem:[%s5826 + $0x2c8] sm:$0xff]
        %v5917 = vld [vmem:[%s5826 + $0x2d0] sm:$0xff]
        %v5918 = vld [vmem:[%s5826 + $0x2d8] sm:$0xff]
        %v5919 = vld [vmem:[%s5826 + $0x2e0] sm:$0xff]
        %v5920 = vld [vmem:[%s5826 + $0x2e8] sm:$0xff]
        %v5921 = vld [vmem:[%s5826 + $0x2f0] sm:$0xff]
        %v5922 = vld [vmem:[%s5826 + $0x2f8] sm:$0xff]
        %v5923 = vld [vmem:[%s5826 + $0x300] sm:$0xff]
        %v5924 = vld [vmem:[%s5826 + $0x308] sm:$0xff]
        %v5925 = vld [vmem:[%s5826 + $0x310] sm:$0xff]
        %v5926 = vld [vmem:[%s5826 + $0x318] sm:$0xff]
        %v5927 = vld [vmem:[%s5826 + $0x320] sm:$0xff]
        %v5928 = vld [vmem:[%s5826 + $0x328] sm:$0xff]
        %v5929 = vld [vmem:[%s5826 + $0x330] sm:$0xff]
        %v5930 = vld [vmem:[%s5826 + $0x338] sm:$0xff]
        %v5931 = vld [vmem:[%s5826 + $0x340] sm:$0xff]
        %v5932 = vld [vmem:[%s5826 + $0x348] sm:$0xff]
        %v5933 = vld [vmem:[%s5826 + $0x350] sm:$0xff]
        %v5934 = vld [vmem:[%s5826 + $0x358] sm:$0xff]
        %v5935 = vld [vmem:[%s5826 + $0x360] sm:$0xff]
        %v5936 = vld [vmem:[%s5826 + $0x368] sm:$0xff]
        %v5937 = vld [vmem:[%s5826 + $0x370] sm:$0xff]
        %v5938 = vld [vmem:[%s5826 + $0x378] sm:$0xff]
        %v5939 = vld [vmem:[%s5826 + $0x380] sm:$0xff]
        %v5940 = vld [vmem:[%s5826 + $0x388] sm:$0xff]
        %v5941 = vld [vmem:[%s5826 + $0x390] sm:$0xff]
        %v5942 = vld [vmem:[%s5826 + $0x398] sm:$0xff]
        %v5943 = vld [vmem:[%s5826 + $0x3a0] sm:$0xff]
        %v5944 = vld [vmem:[%s5826 + $0x3a8] sm:$0xff]
        %v5945 = vld [vmem:[%s5826 + $0x3b0] sm:$0xff]
        %v5946 = vld [vmem:[%s5826 + $0x3b8] sm:$0xff]
        %v5947 = vld [vmem:[%s5826 + $0x3c0] sm:$0xff]
        %v5948 = vld [vmem:[%s5826 + $0x3c8] sm:$0xff]
        %v5949 = vld [vmem:[%s5826 + $0x3d0] sm:$0xff]
        %v5950 = vld [vmem:[%s5826 + $0x3d8] sm:$0xff]
        %v5951 = vld [vmem:[%s5826 + $0x3e0] sm:$0xff]
        %v5952 = vld [vmem:[%s5826 + $0x3e8] sm:$0xff]
        %v5953 = vld [vmem:[%s5826 + $0x3f0] sm:$0xff]
        %v5954 = vld [vmem:[%s5826 + $0x3f8] sm:$0xff]
        %v5955 = vld [vmem:[%s5826 + $0x400] sm:$0xff]
        %v5956 = vld [vmem:[%s5826 + $0x408] sm:$0xff]
        %v5957 = vld [vmem:[%s5826 + $0x410] sm:$0xff]
        %v5958 = vld [vmem:[%s5826 + $0x418] sm:$0xff]
        %v5959 = vld [vmem:[%s5826 + $0x420] sm:$0xff]
        %v5960 = vld [vmem:[%s5826 + $0x428] sm:$0xff]
        %v5961 = vld [vmem:[%s5826 + $0x430] sm:$0xff]
        %v5962 = vld [vmem:[%s5826 + $0x438] sm:$0xff]
        %v5963 = vld [vmem:[%s5826 + $0x440] sm:$0xff]
        %v5964 = vld [vmem:[%s5826 + $0x448] sm:$0xff]
        %v5965 = vld [vmem:[%s5826 + $0x450] sm:$0xff]
        %v5966 = vld [vmem:[%s5826 + $0x458] sm:$0xff]
        %v5967 = vld [vmem:[%s5826 + $0x460] sm:$0xff]
        %v5968 = vld [vmem:[%s5826 + $0x468] sm:$0xff]
        %v5969 = vld [vmem:[%s5826 + $0x470] sm:$0xff]
        %v5970 = vld [vmem:[%s5826 + $0x478] sm:$0xff]
        %v5971 = vld [vmem:[%s5826 + $0x480] sm:$0xff]
        %v5972 = vld [vmem:[%s5826 + $0x488] sm:$0xff]
        %v5973 = vld [vmem:[%s5826 + $0x490] sm:$0xff]
        %v5974 = vld [vmem:[%s5826 + $0x498] sm:$0xff]
        %v5975 = vld [vmem:[%s5826 + $0x4a0] sm:$0xff]
        %v5976 = vld [vmem:[%s5826 + $0x4a8] sm:$0xff]
        %v5977 = vld [vmem:[%s5826 + $0x4b0] sm:$0xff]
        %v5978 = vld [vmem:[%s5826 + $0x4b8] sm:$0xff]
        %v5979 = vld [vmem:[%s5826 + $0x4c0] sm:$0xff]
        %v5980 = vld [vmem:[%s5826 + $0x4c8] sm:$0xff]
        %v5981 = vld [vmem:[%s5826 + $0x4d0] sm:$0xff]
        %v5982 = vld [vmem:[%s5826 + $0x4d8] sm:$0xff]
        %v5983 = vld [vmem:[%s5826 + $0x4e0] sm:$0xff]
        %v5984 = vld [vmem:[%s5826 + $0x4e8] sm:$0xff]
        %v5985 = vld [vmem:[%s5826 + $0x4f0] sm:$0xff]
        %v5986 = vld [vmem:[%s5826 + $0x4f8] sm:$0xff]
        %v5987 = vld [vmem:[%s5826 + $0x500] sm:$0xff]
        %v5988 = vld [vmem:[%s5826 + $0x508] sm:$0xff]
        %v5989 = vld [vmem:[%s5826 + $0x510] sm:$0xff]
        %v5990 = vld [vmem:[%s5826 + $0x518] sm:$0xff]
        %v5991 = vld [vmem:[%s5826 + $0x520] sm:$0xff]
        %v5992 = vld [vmem:[%s5826 + $0x528] sm:$0xff]
        %v5993 = vld [vmem:[%s5826 + $0x530] sm:$0xff]
        %v5994 = vld [vmem:[%s5826 + $0x538] sm:$0xff]
        %v5995 = vld [vmem:[%s5826 + $0x540] sm:$0xff]
        %v5996 = vld [vmem:[%s5826 + $0x548] sm:$0xff]
        %v5997 = vld [vmem:[%s5826 + $0x550] sm:$0xff]
        %v5998 = vld [vmem:[%s5826 + $0x558] sm:$0xff]
        %v5999 = vld [vmem:[%s5826 + $0x560] sm:$0xff]
        %v6000 = vld [vmem:[%s5826 + $0x568] sm:$0xff]
        %v6001 = vld [vmem:[%s5826 + $0x570] sm:$0xff]
        %v6002 = vld [vmem:[%s5826 + $0x578] sm:$0xff]
        %v6003 = vld [vmem:[%s5826 + $0x580] sm:$0xff]
        %v6004 = vld [vmem:[%s5826 + $0x588] sm:$0xff]
        %v6005 = vld [vmem:[%s5826 + $0x590] sm:$0xff]
        %v6006 = vld [vmem:[%s5826 + $0x598] sm:$0xff]
        %v6007 = vld [vmem:[%s5826 + $0x5a0] sm:$0xff]
        %v6008 = vld [vmem:[%s5826 + $0x5a8] sm:$0xff]
        %v6009 = vld [vmem:[%s5826 + $0x5b0] sm:$0xff]
        %v6010 = vld [vmem:[%s5826 + $0x5b8] sm:$0xff]
        %v6011 = vld [vmem:[%s5826 + $0x5c0] sm:$0xff]
        %v6012 = vld [vmem:[%s5826 + $0x5c8] sm:$0xff]
        %v6013 = vld [vmem:[%s5826 + $0x5d0] sm:$0xff]
        %v6014 = vld [vmem:[%s5826 + $0x5d8] sm:$0xff]
        %v6015 = vld [vmem:[%s5826 + $0x5e0] sm:$0xff]
        %v6016 = vld [vmem:[%s5826 + $0x5e8] sm:$0xff]
        %v6017 = vld [vmem:[%s5826 + $0x5f0] sm:$0xff]
        %v6018 = vld [vmem:[%s5826 + $0x5f8] sm:$0xff]
        %v6019 = vld [vmem:[%s5826 + $0x600] sm:$0xff]
        %v6020 = vld [vmem:[%s5826 + $0x608] sm:$0xff]
        %v6021 = vld [vmem:[%s5826 + $0x610] sm:$0xff]
        %v6022 = vld [vmem:[%s5826 + $0x618] sm:$0xff]
        %v6023 = vld [vmem:[%s5826 + $0x620] sm:$0xff]
        %v6024 = vld [vmem:[%s5826 + $0x628] sm:$0xff]
        %v6025 = vld [vmem:[%s5826 + $0x630] sm:$0xff]
        %v6026 = vld [vmem:[%s5826 + $0x638] sm:$0xff]
        %v6027 = vld [vmem:[%s5826 + $0x640] sm:$0xff]
        %v6028 = vld [vmem:[%s5826 + $0x648] sm:$0xff]
        %v6029 = vld [vmem:[%s5826 + $0x650] sm:$0xff]
        %v6030 = vld [vmem:[%s5826 + $0x658] sm:$0xff]
        %v6031 = vld [vmem:[%s5826 + $0x660] sm:$0xff]
        %v6032 = vld [vmem:[%s5826 + $0x668] sm:$0xff]
        %v6033 = vld [vmem:[%s5826 + $0x670] sm:$0xff]
        %v6034 = vld [vmem:[%s5826 + $0x678] sm:$0xff]
        %v6035 = vld [vmem:[%s5826 + $0x680] sm:$0xff]
        %v6036 = vld [vmem:[%s5826 + $0x688] sm:$0xff]
        %v6037 = vld [vmem:[%s5826 + $0x690] sm:$0xff]
        %v6038 = vld [vmem:[%s5826 + $0x698] sm:$0xff]
        %v6039 = vld [vmem:[%s5826 + $0x6a0] sm:$0xff]
        %v6040 = vld [vmem:[%s5826 + $0x6a8] sm:$0xff]
        %v6041 = vld [vmem:[%s5826 + $0x6b0] sm:$0xff]
        %v6042 = vld [vmem:[%s5826 + $0x6b8] sm:$0xff]
        %v6043 = vld [vmem:[%s5826 + $0x6c0] sm:$0xff]
        %v6044 = vld [vmem:[%s5826 + $0x6c8] sm:$0xff]
        %v6045 = vld [vmem:[%s5826 + $0x6d0] sm:$0xff]
        %v6046 = vld [vmem:[%s5826 + $0x6d8] sm:$0xff]
        %v6047 = vld [vmem:[%s5826 + $0x6e0] sm:$0xff]
        %v6048 = vld [vmem:[%s5826 + $0x6e8] sm:$0xff]
        %v6049 = vld [vmem:[%s5826 + $0x6f0] sm:$0xff]
        %v6050 = vld [vmem:[%s5826 + $0x6f8] sm:$0xff]
        %v6051 = vld [vmem:[%s5826 + $0x700] sm:$0xff]
        %v6052 = vld [vmem:[%s5826 + $0x708] sm:$0xff]
        %v6053 = vld [vmem:[%s5826 + $0x710] sm:$0xff]
        %v6054 = vld [vmem:[%s5826 + $0x718] sm:$0xff]
        %v6055 = vld [vmem:[%s5826 + $0x720] sm:$0xf]
        %v6056 = vld [vmem:[%s5826 + $0x728] sm:$0xf]
        %v6057 = vld [vmem:[%s5826 + $0x730] sm:$0xf]
        %v6058 = vld [vmem:[%s5826 + $0x738] sm:$0xf]
        %v6060 = vsel %vm4138, %v3668, 0
        %v6063 = vsel %vm607, %v6055, 0
        %v6066 = vsel %vm607, %v6056, 0
        %v6069 = vsel %vm607, %v6057, 0
        %v6072 = vsel %vm607, %v6058, 0
        %6074 = vmatprep.subr.mxu0 %v5828
        %6075 = vmatpush1.msra.mxu0 %v5827
        %6076 = vmatprep.subr.mxu0 %v5832
        %6077 = vmatpush1.msra.mxu0 %v5831
        %6078 = vmatprep.subr.mxu0 %v5836
        %6079 = vmatpush1.msra.mxu0 %v5835
        %6080 = vmatprep.subr.mxu0 %v5840
        %6081 = vmatpush1.msra.mxu0 %v5839
        %6082 = vmatprep.subr.mxu0 %v5844
        %6083 = vmatpush1.msra.mxu0 %v5843
        %6084 = vmatprep.subr.mxu0 %v5848
        %6085 = vmatpush1.msra.mxu0 %v5847
        %6086 = vmatprep.subr.mxu0 %v5852
        %6087 = vmatpush1.msra.mxu0 %v5851
        %6088 = vmatprep.subr.mxu0 %v5856
        %6089 = vmatpush1.msra.mxu0 %v5855
        %6090 = vmatprep.subr.mxu0 %v5860
        %6091 = vmatpush1.msra.mxu0 %v5859
        %6092 = vmatprep.subr.mxu0 %v5864
        %6093 = vmatpush1.msra.mxu0 %v5863
        %6094 = vmatprep.subr.mxu0 %v5868
        %6095 = vmatpush1.msra.mxu0 %v5867
        %6096 = vmatprep.subr.mxu0 %v5872
        %6097 = vmatpush1.msra.mxu0 %v5871
        %6098 = vmatprep.subr.mxu0 %v5876
        %6099 = vmatpush1.msra.mxu0 %v5875
        %6100 = vmatprep.subr.mxu0 %v5880
        %6101 = vmatpush1.msra.mxu0 %v5879
        %6102 = vmatprep.subr.mxu0 %v5884
        %6103 = vmatpush1.msra.mxu0 %v5883
        %6104 = vmatprep.subr.mxu0 %v5888
        %6105 = vmatpush1.msra.mxu0 %v5887
        %6106 = vmatprep.subr.mxu0 %v5892
        %6107 = vmatpush1.msra.mxu0 %v5891
        %6108 = vmatprep.subr.mxu0 %v5896
        %6109 = vmatpush1.msra.mxu0 %v5895
        %6110 = vmatprep.subr.mxu0 %v5900
        %6111 = vmatpush1.msra.mxu0 %v5899
        %6112 = vmatprep.subr.mxu0 %v5904
        %6113 = vmatpush1.msra.mxu0 %v5903
        %6114 = vmatprep.subr.mxu0 %v5908
        %6115 = vmatpush1.msra.mxu0 %v5907
        %6116 = vmatprep.subr.mxu0 %v5912
        %6117 = vmatpush1.msra.mxu0 %v5911
        %6118 = vmatprep.subr.mxu0 %v5916
        %6119 = vmatpush1.msra.mxu0 %v5915
        %6120 = vmatprep.subr.mxu0 %v5920
        %6121 = vmatpush1.msra.mxu0 %v5919
        %6122 = vmatprep.subr.mxu0 %v5924
        %6123 = vmatpush1.msra.mxu0 %v5923
        %6124 = vmatprep.subr.mxu0 %v5928
        %6125 = vmatpush1.msra.mxu0 %v5927
        %6126 = vmatprep.subr.mxu0 %v5932
        %6127 = vmatpush1.msra.mxu0 %v5931
        %6128 = vmatprep.subr.mxu0 %v5936
        %6129 = vmatpush1.msra.mxu0 %v5935
        %6130 = vmatprep.subr.mxu0 %v5940
        %6131 = vmatpush1.msra.mxu0 %v5939
        %6132 = vmatprep.subr.mxu0 %v5944
        %6133 = vmatpush1.msra.mxu0 %v5943
        %6134 = vmatprep.subr.mxu0 %v5948
        %6135 = vmatpush1.msra.mxu0 %v5947
        %6136 = vmatprep.subr.mxu0 %v5952
        %6137 = vmatpush1.msra.mxu0 %v5951
        %6138 = vmatprep.mubr.f32.mxu0 %v3638
        %6139 = vmatmul.mubr.f32.gmra.mrb[0].mxu0 %v3637
        %v6140 = vpop.f32.mrb[0].mxu0
        %v6141 = vadd.f32 0.0, %v6140
        %v6142 = vpop.f32.mrb[0].mxu0
        %v6143 = vadd.f32 0.0, %v6142
        %6144 = vmatprep.mubr.f32.mxu0 %v3642
        %6145 = vmatmul.mubr.f32.gmra.mrb[0].mxu0 %v3641
        %v6146 = vpop.f32.mrb[0].mxu0
        %v6147 = vadd.f32 0.0, %v6146
        %v6148 = vpop.f32.mrb[0].mxu0
        %v6149 = vadd.f32 0.0, %v6148
        %6150 = vmatprep.mubr.f32.mxu0 %v3646
        %6151 = vmatmul.mubr.f32.gmra.mrb[0].mxu0 %v3645
        %v6152 = vpop.f32.mrb[0].mxu0
        %v6153 = vadd.f32 0.0, %v6152
        %v6154 = vpop.f32.mrb[0].mxu0
        %v6155 = vadd.f32 0.0, %v6154
        %6156 = vmatprep.mubr.f32.mxu0 %v3650
        %6157 = vmatmul.mubr.f32.gmra.mrb[0].mxu0 %v3649
        %v6158 = vpop.f32.mrb[0].mxu0
        %v6159 = vadd.f32 0.0, %v6158
        %v6160 = vpop.f32.mrb[0].mxu0
        %v6161 = vadd.f32 0.0, %v6160
        %6162 = vmatprep.mubr.f32.mxu0 %v3654
        %6163 = vmatmul.mubr.f32.gmra.mrb[0].mxu0 %v3653
        %v6164 = vpop.f32.mrb[0].mxu0
        %v6165 = vadd.f32 0.0, %v6164
        %v6166 = vpop.f32.mrb[0].mxu0
        %v6167 = vadd.f32 0.0, %v6166
        %6168 = vmatprep.mubr.f32.mxu0 %v3658
        %6169 = vmatmul.mubr.f32.gmra.mrb[0].mxu0 %v3657
        %v6170 = vpop.f32.mrb[0].mxu0
        %v6171 = vadd.f32 0.0, %v6170
        %v6172 = vpop.f32.mrb[0].mxu0
        %v6173 = vadd.f32 0.0, %v6172
        %6174 = vmatprep.mubr.f32.mxu0 %v3662
        %6175 = vmatmul.mubr.f32.gmra.mrb[0].mxu0 %v3661
        %v6176 = vpop.f32.mrb[0].mxu0
        %v6177 = vadd.f32 0.0, %v6176
        %v6178 = vpop.f32.mrb[0].mxu0
        %v6179 = vadd.f32 0.0, %v6178
        %6180 = vmatprep.mubr.f32.mxu0 %v3666
        %6181 = vmatmul.mubr.f32.gmra.mrb[0].mxu0 %v3665
        %v6182 = vpop.f32.mrb[0].mxu0
        %v6183 = vadd.f32 0.0, %v6182
        %v6184 = vpop.f32.mrb[0].mxu0
        %v6185 = vadd.f32 0.0, %v6184
        %6186 = vdwg.mxu0
        %6187 = vmatprep.subr.mxu0 %v5956
        %6188 = vmatpush1.msra.mxu0 %v5955
        %6189 = vmatprep.subr.mxu0 %v5960
        %6190 = vmatpush1.msra.mxu0 %v5959
        %6191 = vmatprep.subr.mxu0 %v5964
        %6192 = vmatpush1.msra.mxu0 %v5963
        %6193 = vmatprep.subr.mxu0 %v5968
        %6194 = vmatpush1.msra.mxu0 %v5967
        %6195 = vmatprep.subr.mxu0 %v5972
        %6196 = vmatpush1.msra.mxu0 %v5971
        %6197 = vmatprep.subr.mxu0 %v5976
        %6198 = vmatpush1.msra.mxu0 %v5975
        %6199 = vmatprep.subr.mxu0 %v5980
        %6200 = vmatpush1.msra.mxu0 %v5979
        %6201 = vmatprep.subr.mxu0 %v5984
        %6202 = vmatpush1.msra.mxu0 %v5983
        %6203 = vmatprep.subr.mxu0 %v5988
        %6204 = vmatpush1.msra.mxu0 %v5987
        %6205 = vmatprep.subr.mxu0 %v5992
        %6206 = vmatpush1.msra.mxu0 %v5991
        %6207 = vmatprep.subr.mxu0 %v5996
        %6208 = vmatpush1.msra.mxu0 %v5995
        %6209 = vmatprep.subr.mxu0 %v6000
        %6210 = vmatpush1.msra.mxu0 %v5999
        %6211 = vmatprep.subr.mxu0 %v6004
        %6212 = vmatpush1.msra.mxu0 %v6003
        %6213 = vmatprep.subr.mxu0 %v6008
        %6214 = vmatpush1.msra.mxu0 %v6007
        %6215 = vmatprep.subr.mxu0 %v6012
        %6216 = vmatpush1.msra.mxu0 %v6011
        %6217 = vmatprep.subr.mxu0 %v6016
        %6218 = vmatpush1.msra.mxu0 %v6015
        %6219 = vmatprep.subr.mxu0 %v6020
        %6220 = vmatpush1.msra.mxu0 %v6019
        %6221 = vmatprep.subr.mxu0 %v6024
        %6222 = vmatpush1.msra.mxu0 %v6023
        %6223 = vmatprep.subr.mxu0 %v6028
        %6224 = vmatpush1.msra.mxu0 %v6027
        %6225 = vmatprep.subr.mxu0 %v6032
        %6226 = vmatpush1.msra.mxu0 %v6031
        %6227 = vmatprep.subr.mxu0 %v6036
        %6228 = vmatpush1.msra.mxu0 %v6035
        %6229 = vmatprep.subr.mxu0 %v6040
        %6230 = vmatpush1.msra.mxu0 %v6039
        %6231 = vmatprep.subr.mxu0 %v6044
        %6232 = vmatpush1.msra.mxu0 %v6043
        %6233 = vmatprep.subr.mxu0 %v6048
        %6234 = vmatpush1.msra.mxu0 %v6047
        %6235 = vmatprep.subr.mxu0 %v6052
        %6236 = vmatpush1.msra.mxu0 %v6051
        %6237 = vmatprep.subr.mxu0 %v6066
        %6238 = vmatpush1.msra.mxu0 %v6063
        %6239 = vmatprep.subr.mxu0 0.0
        %6240 = vmatpush1.msra.mxu0 0.0
        %6241 = vmatprep.subr.mxu0 0.0
        %6242 = vmatpush1.msra.mxu0 0.0
        %6243 = vmatprep.subr.mxu0 0.0
        %6244 = vmatpush1.msra.mxu0 0.0
        %6245 = vmatprep.subr.mxu0 0.0
        %6246 = vmatpush1.msra.mxu0 0.0
        %6247 = vmatprep.subr.mxu0 0.0
        %6248 = vmatpush1.msra.mxu0 0.0
        %6249 = vmatprep.subr.mxu0 0.0
        %6250 = vmatpush1.msra.mxu0 0.0
        %6251 = vmatprep.mubr.f32.mxu0 %v4146
        %6252 = vmatmul.mubr.f32.gmra.mrb[0].mxu0 %v3639
        %v6253 = vpop.f32.mrb[0].mxu0
        %v6254 = vadd.f32 %v6141, %v6253
        %v6255 = vpop.f32.mrb[0].mxu0
        %v6256 = vadd.f32 %v6143, %v6255
        %6257 = vmatprep.mubr.f32.mxu0 %v4149
        %6258 = vmatmul.mubr.f32.gmra.mrb[0].mxu0 %v3643
        %v6259 = vpop.f32.mrb[0].mxu0
        %v6260 = vadd.f32 %v6147, %v6259
        %v6261 = vpop.f32.mrb[0].mxu0
        %v6262 = vadd.f32 %v6149, %v6261
        %6263 = vmatprep.mubr.f32.mxu0 %v4152
        %6264 = vmatmul.mubr.f32.gmra.mrb[0].mxu0 %v3647
        %v6265 = vpop.f32.mrb[0].mxu0
        %v6266 = vadd.f32 %v6153, %v6265
        %v6267 = vpop.f32.mrb[0].mxu0
        %v6268 = vadd.f32 %v6155, %v6267
        %6269 = vmatprep.mubr.f32.mxu0 %v4155
        %6270 = vmatmul.mubr.f32.gmra.mrb[0].mxu0 %v3651
        %v6271 = vpop.f32.mrb[0].mxu0
        %v6272 = vadd.f32 %v6159, %v6271
        %v6273 = vpop.f32.mrb[0].mxu0
        %v6274 = vadd.f32 %v6161, %v6273
        %6275 = vmatprep.mubr.f32.mxu0 %v4158
        %6276 = vmatmul.mubr.f32.gmra.mrb[0].mxu0 %v3655
        %v6277 = vpop.f32.mrb[0].mxu0
        %v6278 = vadd.f32 %v6165, %v6277
        %v6279 = vpop.f32.mrb[0].mxu0
        %v6280 = vadd.f32 %v6167, %v6279
        %6281 = vmatprep.mubr.f32.mxu0 %v4161
        %6282 = vmatmul.mubr.f32.gmra.mrb[0].mxu0 %v3659
        %v6283 = vpop.f32.mrb[0].mxu0
        %v6284 = vadd.f32 %v6171, %v6283
        %v6285 = vpop.f32.mrb[0].mxu0
        %v6286 = vadd.f32 %v6173, %v6285
        %6287 = vmatprep.mubr.f32.mxu0 %v5328
        %6288 = vmatmul.mubr.f32.gmra.mrb[0].mxu0 %v3663
        %v6289 = vpop.f32.mrb[0].mxu0
        %v6290 = vadd.f32 %v6177, %v6289
        %v6291 = vpop.f32.mrb[0].mxu0
        %v6292 = vadd.f32 %v6179, %v6291
        %6293 = vmatprep.mubr.f32.mxu0 %v6060
        %6294 = vmatmul.mubr.f32.gmra.mrb[0].mxu0 %v3667
        %v6295 = vpop.f32.mrb[0].mxu0
        %v6296 = vadd.f32 %v6183, %v6295
        %v6297 = vpop.f32.mrb[0].mxu0
        %v6298 = vadd.f32 %v6185, %v6297
        %6299 = vdwg.mxu0
        %6300 = vmatprep.subr.mxu0 %v5830
        %6301 = vmatpush1.msra.mxu0 %v5829
        %6302 = vmatprep.subr.mxu0 %v5834
        %6303 = vmatpush1.msra.mxu0 %v5833
        %6304 = vmatprep.subr.mxu0 %v5838
        %6305 = vmatpush1.msra.mxu0 %v5837
        %6306 = vmatprep.subr.mxu0 %v5842
        %6307 = vmatpush1.msra.mxu0 %v5841
        %6308 = vmatprep.subr.mxu0 %v5846
        %6309 = vmatpush1.msra.mxu0 %v5845
        %6310 = vmatprep.subr.mxu0 %v5850
        %6311 = vmatpush1.msra.mxu0 %v5849
        %6312 = vmatprep.subr.mxu0 %v5854
        %6313 = vmatpush1.msra.mxu0 %v5853
        %6314 = vmatprep.subr.mxu0 %v5858
        %6315 = vmatpush1.msra.mxu0 %v5857
        %6316 = vmatprep.subr.mxu0 %v5862
        %6317 = vmatpush1.msra.mxu0 %v5861
        %6318 = vmatprep.subr.mxu0 %v5866
        %6319 = vmatpush1.msra.mxu0 %v5865
        %6320 = vmatprep.subr.mxu0 %v5870
        %6321 = vmatpush1.msra.mxu0 %v5869
        %6322 = vmatprep.subr.mxu0 %v5874
        %6323 = vmatpush1.msra.mxu0 %v5873
        %6324 = vmatprep.subr.mxu0 %v5878
        %6325 = vmatpush1.msra.mxu0 %v5877
        %6326 = vmatprep.subr.mxu0 %v5882
        %6327 = vmatpush1.msra.mxu0 %v5881
        %6328 = vmatprep.subr.mxu0 %v5886
        %6329 = vmatpush1.msra.mxu0 %v5885
        %6330 = vmatprep.subr.mxu0 %v5890
        %6331 = vmatpush1.msra.mxu0 %v5889
        %6332 = vmatprep.subr.mxu0 %v5894
        %6333 = vmatpush1.msra.mxu0 %v5893
        %6334 = vmatprep.subr.mxu0 %v5898
        %6335 = vmatpush1.msra.mxu0 %v5897
        %6336 = vmatprep.subr.mxu0 %v5902
        %6337 = vmatpush1.msra.mxu0 %v5901
        %6338 = vmatprep.subr.mxu0 %v5906
        %6339 = vmatpush1.msra.mxu0 %v5905
        %6340 = vmatprep.subr.mxu0 %v5910
        %6341 = vmatpush1.msra.mxu0 %v5909
        %6342 = vmatprep.subr.mxu0 %v5914
        %6343 = vmatpush1.msra.mxu0 %v5913
        %6344 = vmatprep.subr.mxu0 %v5918
        %6345 = vmatpush1.msra.mxu0 %v5917
        %6346 = vmatprep.subr.mxu0 %v5922
        %6347 = vmatpush1.msra.mxu0 %v5921
        %6348 = vmatprep.subr.mxu0 %v5926
        %6349 = vmatpush1.msra.mxu0 %v5925
        %6350 = vmatprep.subr.mxu0 %v5930
        %6351 = vmatpush1.msra.mxu0 %v5929
        %6352 = vmatprep.subr.mxu0 %v5934
        %6353 = vmatpush1.msra.mxu0 %v5933
        %6354 = vmatprep.subr.mxu0 %v5938
        %6355 = vmatpush1.msra.mxu0 %v5937
        %6356 = vmatprep.subr.mxu0 %v5942
        %6357 = vmatpush1.msra.mxu0 %v5941
        %6358 = vmatprep.subr.mxu0 %v5946
        %6359 = vmatpush1.msra.mxu0 %v5945
        %6360 = vmatprep.subr.mxu0 %v5950
        %6361 = vmatpush1.msra.mxu0 %v5949
        %6362 = vmatprep.subr.mxu0 %v5954
        %6363 = vmatpush1.msra.mxu0 %v5953
        %6364 = vmatprep.mubr.f32.mxu0 %v3638
        %6365 = vmatmul.mubr.f32.gmra.mrb[0].mxu0 %v3637
        %v6366 = vpop.f32.mrb[0].mxu0
        %v6367 = vadd.f32 0.0, %v6366
        %v6368 = vpop.f32.mrb[0].mxu0
        %v6369 = vadd.f32 0.0, %v6368
        %6370 = vmatprep.mubr.f32.mxu0 %v3642
        %6371 = vmatmul.mubr.f32.gmra.mrb[0].mxu0 %v3641
        %v6372 = vpop.f32.mrb[0].mxu0
        %v6373 = vadd.f32 0.0, %v6372
        %v6374 = vpop.f32.mrb[0].mxu0
        %v6375 = vadd.f32 0.0, %v6374
        %6376 = vmatprep.mubr.f32.mxu0 %v3646
        %6377 = vmatmul.mubr.f32.gmra.mrb[0].mxu0 %v3645
        %v6378 = vpop.f32.mrb[0].mxu0
        %v6379 = vadd.f32 0.0, %v6378
        %v6380 = vpop.f32.mrb[0].mxu0
        %v6381 = vadd.f32 0.0, %v6380
        %6382 = vmatprep.mubr.f32.mxu0 %v3650
        %6383 = vmatmul.mubr.f32.gmra.mrb[0].mxu0 %v3649
        %v6384 = vpop.f32.mrb[0].mxu0
        %v6385 = vadd.f32 0.0, %v6384
        %v6386 = vpop.f32.mrb[0].mxu0
        %v6387 = vadd.f32 0.0, %v6386
        %6388 = vmatprep.mubr.f32.mxu0 %v3654
        %6389 = vmatmul.mubr.f32.gmra.mrb[0].mxu0 %v3653
        %v6390 = vpop.f32.mrb[0].mxu0
        %v6391 = vadd.f32 0.0, %v6390
        %v6392 = vpop.f32.mrb[0].mxu0
        %v6393 = vadd.f32 0.0, %v6392
        %6394 = vmatprep.mubr.f32.mxu0 %v3658
        %6395 = vmatmul.mubr.f32.gmra.mrb[0].mxu0 %v3657
        %v6396 = vpop.f32.mrb[0].mxu0
        %v6397 = vadd.f32 0.0, %v6396
        %v6398 = vpop.f32.mrb[0].mxu0
        %v6399 = vadd.f32 0.0, %v6398
        %6400 = vmatprep.mubr.f32.mxu0 %v3662
        %6401 = vmatmul.mubr.f32.gmra.mrb[0].mxu0 %v3661
        %v6402 = vpop.f32.mrb[0].mxu0
        %v6403 = vadd.f32 0.0, %v6402
        %v6404 = vpop.f32.mrb[0].mxu0
        %v6405 = vadd.f32 0.0, %v6404
        %6406 = vmatprep.mubr.f32.mxu0 %v3666
        %6407 = vmatmul.mubr.f32.gmra.mrb[0].mxu0 %v3665
        %v6408 = vpop.f32.mrb[0].mxu0
        %v6409 = vadd.f32 0.0, %v6408
        %v6410 = vpop.f32.mrb[0].mxu0
        %v6411 = vadd.f32 0.0, %v6410
        %6412 = vdwg.mxu0
        %6413 = vmatprep.subr.mxu0 %v5958
        %6414 = vmatpush1.msra.mxu0 %v5957
        %6415 = vmatprep.subr.mxu0 %v5962
        %6416 = vmatpush1.msra.mxu0 %v5961
        %6417 = vmatprep.subr.mxu0 %v5966
        %6418 = vmatpush1.msra.mxu0 %v5965
        %6419 = vmatprep.subr.mxu0 %v5970
        %6420 = vmatpush1.msra.mxu0 %v5969
        %6421 = vmatprep.subr.mxu0 %v5974
        %6422 = vmatpush1.msra.mxu0 %v5973
        %6423 = vmatprep.subr.mxu0 %v5978
        %6424 = vmatpush1.msra.mxu0 %v5977
        %6425 = vmatprep.subr.mxu0 %v5982
        %6426 = vmatpush1.msra.mxu0 %v5981
        %6427 = vmatprep.subr.mxu0 %v5986
        %6428 = vmatpush1.msra.mxu0 %v5985
        %6429 = vmatprep.subr.mxu0 %v5990
        %6430 = vmatpush1.msra.mxu0 %v5989
        %6431 = vmatprep.subr.mxu0 %v5994
        %6432 = vmatpush1.msra.mxu0 %v5993
        %6433 = vmatprep.subr.mxu0 %v5998
        %6434 = vmatpush1.msra.mxu0 %v5997
        %6435 = vmatprep.subr.mxu0 %v6002
        %6436 = vmatpush1.msra.mxu0 %v6001
        %6437 = vmatprep.subr.mxu0 %v6006
        %6438 = vmatpush1.msra.mxu0 %v6005
        %6439 = vmatprep.subr.mxu0 %v6010
        %6440 = vmatpush1.msra.mxu0 %v6009
        %6441 = vmatprep.subr.mxu0 %v6014
        %6442 = vmatpush1.msra.mxu0 %v6013
        %6443 = vmatprep.subr.mxu0 %v6018
        %6444 = vmatpush1.msra.mxu0 %v6017
        %6445 = vmatprep.subr.mxu0 %v6022
        %6446 = vmatpush1.msra.mxu0 %v6021
        %6447 = vmatprep.subr.mxu0 %v6026
        %6448 = vmatpush1.msra.mxu0 %v6025
        %6449 = vmatprep.subr.mxu0 %v6030
        %6450 = vmatpush1.msra.mxu0 %v6029
        %6451 = vmatprep.subr.mxu0 %v6034
        %6452 = vmatpush1.msra.mxu0 %v6033
        %6453 = vmatprep.subr.mxu0 %v6038
        %6454 = vmatpush1.msra.mxu0 %v6037
        %6455 = vmatprep.subr.mxu0 %v6042
        %6456 = vmatpush1.msra.mxu0 %v6041
        %6457 = vmatprep.subr.mxu0 %v6046
        %6458 = vmatpush1.msra.mxu0 %v6045
        %6459 = vmatprep.subr.mxu0 %v6050
        %6460 = vmatpush1.msra.mxu0 %v6049
        %6461 = vmatprep.subr.mxu0 %v6054
        %6462 = vmatpush1.msra.mxu0 %v6053
        %6463 = vmatprep.subr.mxu0 %v6072
        %6464 = vmatpush1.msra.mxu0 %v6069
        %6465 = vmatprep.subr.mxu0 0.0
        %6466 = vmatpush1.msra.mxu0 0.0
        %6467 = vmatprep.subr.mxu0 0.0
        %6468 = vmatpush1.msra.mxu0 0.0
        %6469 = vmatprep.subr.mxu0 0.0
        %6470 = vmatpush1.msra.mxu0 0.0
        %6471 = vmatprep.subr.mxu0 0.0
        %6472 = vmatpush1.msra.mxu0 0.0
        %6473 = vmatprep.subr.mxu0 0.0
        %6474 = vmatpush1.msra.mxu0 0.0
        %6475 = vmatprep.subr.mxu0 0.0
        %6476 = vmatpush1.msra.mxu0 0.0
        %6477 = vmatprep.mubr.f32.mxu0 %v4146
        %6478 = vmatmul.mubr.f32.gmra.mrb[0].mxu0 %v3639
        %v6479 = vpop.f32.mrb[0].mxu0
        %v6480 = vadd.f32 %v6367, %v6479
        %v6481 = vpop.f32.mrb[0].mxu0
        %v6482 = vadd.f32 %v6369, %v6481
        %6483 = vmatprep.mubr.f32.mxu0 %v4149
        %6484 = vmatmul.mubr.f32.gmra.mrb[0].mxu0 %v3643
        %v6485 = vpop.f32.mrb[0].mxu0
        %v6486 = vadd.f32 %v6373, %v6485
        %v6487 = vpop.f32.mrb[0].mxu0
        %v6488 = vadd.f32 %v6375, %v6487
        %6489 = vmatprep.mubr.f32.mxu0 %v4152
        %6490 = vmatmul.mubr.f32.gmra.mrb[0].mxu0 %v3647
        %v6491 = vpop.f32.mrb[0].mxu0
        %v6492 = vadd.f32 %v6379, %v6491
        %v6493 = vpop.f32.mrb[0].mxu0
        %v6494 = vadd.f32 %v6381, %v6493
        %6495 = vmatprep.mubr.f32.mxu0 %v4155
        %6496 = vmatmul.mubr.f32.gmra.mrb[0].mxu0 %v3651
        %v6497 = vpop.f32.mrb[0].mxu0
        %v6498 = vadd.f32 %v6385, %v6497
        %v6499 = vpop.f32.mrb[0].mxu0
        %v6500 = vadd.f32 %v6387, %v6499
        %6501 = vmatprep.mubr.f32.mxu0 %v4158
        %6502 = vmatmul.mubr.f32.gmra.mrb[0].mxu0 %v3655
        %v6503 = vpop.f32.mrb[0].mxu0
        %v6504 = vadd.f32 %v6391, %v6503
        %v6505 = vpop.f32.mrb[0].mxu0
        %v6506 = vadd.f32 %v6393, %v6505
        %6507 = vmatprep.mubr.f32.mxu0 %v4161
        %6508 = vmatmul.mubr.f32.gmra.mrb[0].mxu0 %v3659
        %v6509 = vpop.f32.mrb[0].mxu0
        %v6510 = vadd.f32 %v6397, %v6509
        %v6511 = vpop.f32.mrb[0].mxu0
        %v6512 = vadd.f32 %v6399, %v6511
        %6513 = vmatprep.mubr.f32.mxu0 %v5328
        %6514 = vmatmul.mubr.f32.gmra.mrb[0].mxu0 %v3663
        %v6515 = vpop.f32.mrb[0].mxu0
        %v6516 = vadd.f32 %v6403, %v6515
        %v6517 = vpop.f32.mrb[0].mxu0
        %v6518 = vadd.f32 %v6405, %v6517
        %6519 = vmatprep.mubr.f32.mxu0 %v6060
        %6520 = vmatmul.mubr.f32.gmra.mrb[0].mxu0 %v3667
        %v6521 = vpop.f32.mrb[0].mxu0
        %v6522 = vadd.f32 %v6409, %v6521
        %v6523 = vpop.f32.mrb[0].mxu0
        %v6524 = vadd.f32 %v6411, %v6523
        %6525 = vdwg.mxu0
        %v6526 = vadd.f32 %v5794, %v6254
        %v6527 = vadd.f32 %v5795, %v6256
        %v6528 = vadd.f32 %v5796, %v6480
        %v6529 = vadd.f32 %v5797, %v6482
        %v6530 = vadd.f32 %v5798, %v6260
        %v6531 = vadd.f32 %v5799, %v6262
        %v6532 = vadd.f32 %v5800, %v6486
        %v6533 = vadd.f32 %v5801, %v6488
        %v6534 = vadd.f32 %v5802, %v6266
        %v6535 = vadd.f32 %v5803, %v6268
        %v6536 = vadd.f32 %v5804, %v6492
        %v6537 = vadd.f32 %v5805, %v6494
        %v6538 = vadd.f32 %v5806, %v6272
        %v6539 = vadd.f32 %v5807, %v6274
        %v6540 = vadd.f32 %v5808, %v6498
        %v6541 = vadd.f32 %v5809, %v6500
        %v6542 = vadd.f32 %v5810, %v6278
        %v6543 = vadd.f32 %v5811, %v6280
        %v6544 = vadd.f32 %v5812, %v6504
        %v6545 = vadd.f32 %v5813, %v6506
        %v6546 = vadd.f32 %v5814, %v6284
        %v6547 = vadd.f32 %v5815, %v6286
        %v6548 = vadd.f32 %v5816, %v6510
        %v6549 = vadd.f32 %v5817, %v6512
        %v6550 = vadd.f32 %v5818, %v6290
        %v6551 = vadd.f32 %v5819, %v6292
        %v6552 = vadd.f32 %v5820, %v6516
        %v6553 = vadd.f32 %v5821, %v6518
        %v6554 = vadd.f32 %v5822, %v6296
        %v6555 = vadd.f32 %v5823, %v6298
        %v6556 = vadd.f32 %v5824, %v6522
        %v6557 = vadd.f32 %v5825, %v6524
        %s6558 = scalar_lea.vmem %s3, 7424
        %v6559 = vld [vmem:[%s6558] sm:$0xff]
        %v6560 = vld [vmem:[%s6558 + $0x8] sm:$0xff]
        %v6561 = vld [vmem:[%s6558 + $0x10] sm:$0xff]
        %v6562 = vld [vmem:[%s6558 + $0x18] sm:$0xff]
        %v6563 = vld [vmem:[%s6558 + $0x20] sm:$0xff]
        %v6564 = vld [vmem:[%s6558 + $0x28] sm:$0xff]
        %v6565 = vld [vmem:[%s6558 + $0x30] sm:$0xff]
        %v6566 = vld [vmem:[%s6558 + $0x38] sm:$0xff]
        %v6567 = vld [vmem:[%s6558 + $0x40] sm:$0xff]
        %v6568 = vld [vmem:[%s6558 + $0x48] sm:$0xff]
        %v6569 = vld [vmem:[%s6558 + $0x50] sm:$0xff]
        %v6570 = vld [vmem:[%s6558 + $0x58] sm:$0xff]
        %v6571 = vld [vmem:[%s6558 + $0x60] sm:$0xff]
        %v6572 = vld [vmem:[%s6558 + $0x68] sm:$0xff]
        %v6573 = vld [vmem:[%s6558 + $0x70] sm:$0xff]
        %v6574 = vld [vmem:[%s6558 + $0x78] sm:$0xff]
        %v6575 = vld [vmem:[%s6558 + $0x80] sm:$0xff]
        %v6576 = vld [vmem:[%s6558 + $0x88] sm:$0xff]
        %v6577 = vld [vmem:[%s6558 + $0x90] sm:$0xff]
        %v6578 = vld [vmem:[%s6558 + $0x98] sm:$0xff]
        %v6579 = vld [vmem:[%s6558 + $0xa0] sm:$0xff]
        %v6580 = vld [vmem:[%s6558 + $0xa8] sm:$0xff]
        %v6581 = vld [vmem:[%s6558 + $0xb0] sm:$0xff]
        %v6582 = vld [vmem:[%s6558 + $0xb8] sm:$0xff]
        %v6583 = vld [vmem:[%s6558 + $0xc0] sm:$0xff]
        %v6584 = vld [vmem:[%s6558 + $0xc8] sm:$0xff]
        %v6585 = vld [vmem:[%s6558 + $0xd0] sm:$0xff]
        %v6586 = vld [vmem:[%s6558 + $0xd8] sm:$0xff]
        %v6587 = vld [vmem:[%s6558 + $0xe0] sm:$0xff]
        %v6588 = vld [vmem:[%s6558 + $0xe8] sm:$0xff]
        %v6589 = vld [vmem:[%s6558 + $0xf0] sm:$0xff]
        %v6590 = vld [vmem:[%s6558 + $0xf8] sm:$0xff]
        %v6591 = vld [vmem:[%s6558 + $0x100] sm:$0xff]
        %v6592 = vld [vmem:[%s6558 + $0x108] sm:$0xff]
        %v6593 = vld [vmem:[%s6558 + $0x110] sm:$0xff]
        %v6594 = vld [vmem:[%s6558 + $0x118] sm:$0xff]
        %v6595 = vld [vmem:[%s6558 + $0x120] sm:$0xff]
        %v6596 = vld [vmem:[%s6558 + $0x128] sm:$0xff]
        %v6597 = vld [vmem:[%s6558 + $0x130] sm:$0xff]
        %v6598 = vld [vmem:[%s6558 + $0x138] sm:$0xff]
        %v6599 = vld [vmem:[%s6558 + $0x140] sm:$0xff]
        %v6600 = vld [vmem:[%s6558 + $0x148] sm:$0xff]
        %v6601 = vld [vmem:[%s6558 + $0x150] sm:$0xff]
        %v6602 = vld [vmem:[%s6558 + $0x158] sm:$0xff]
        %v6603 = vld [vmem:[%s6558 + $0x160] sm:$0xff]
        %v6604 = vld [vmem:[%s6558 + $0x168] sm:$0xff]
        %v6605 = vld [vmem:[%s6558 + $0x170] sm:$0xff]
        %v6606 = vld [vmem:[%s6558 + $0x178] sm:$0xff]
        %v6607 = vld [vmem:[%s6558 + $0x180] sm:$0xff]
        %v6608 = vld [vmem:[%s6558 + $0x188] sm:$0xff]
        %v6609 = vld [vmem:[%s6558 + $0x190] sm:$0xff]
        %v6610 = vld [vmem:[%s6558 + $0x198] sm:$0xff]
        %v6611 = vld [vmem:[%s6558 + $0x1a0] sm:$0xff]
        %v6612 = vld [vmem:[%s6558 + $0x1a8] sm:$0xff]
        %v6613 = vld [vmem:[%s6558 + $0x1b0] sm:$0xff]
        %v6614 = vld [vmem:[%s6558 + $0x1b8] sm:$0xff]
        %v6615 = vld [vmem:[%s6558 + $0x1c0] sm:$0xff]
        %v6616 = vld [vmem:[%s6558 + $0x1c8] sm:$0xff]
        %v6617 = vld [vmem:[%s6558 + $0x1d0] sm:$0xff]
        %v6618 = vld [vmem:[%s6558 + $0x1d8] sm:$0xff]
        %v6619 = vld [vmem:[%s6558 + $0x1e0] sm:$0xff]
        %v6620 = vld [vmem:[%s6558 + $0x1e8] sm:$0xff]
        %v6621 = vld [vmem:[%s6558 + $0x1f0] sm:$0xff]
        %v6622 = vld [vmem:[%s6558 + $0x1f8] sm:$0xff]
        %v6623 = vld [vmem:[%s6558 + $0x200] sm:$0xff]
        %v6624 = vld [vmem:[%s6558 + $0x208] sm:$0xff]
        %v6625 = vld [vmem:[%s6558 + $0x210] sm:$0xff]
        %v6626 = vld [vmem:[%s6558 + $0x218] sm:$0xff]
        %v6627 = vld [vmem:[%s6558 + $0x220] sm:$0xff]
        %v6628 = vld [vmem:[%s6558 + $0x228] sm:$0xff]
        %v6629 = vld [vmem:[%s6558 + $0x230] sm:$0xff]
        %v6630 = vld [vmem:[%s6558 + $0x238] sm:$0xff]
        %v6631 = vld [vmem:[%s6558 + $0x240] sm:$0xff]
        %v6632 = vld [vmem:[%s6558 + $0x248] sm:$0xff]
        %v6633 = vld [vmem:[%s6558 + $0x250] sm:$0xff]
        %v6634 = vld [vmem:[%s6558 + $0x258] sm:$0xff]
        %v6635 = vld [vmem:[%s6558 + $0x260] sm:$0xff]
        %v6636 = vld [vmem:[%s6558 + $0x268] sm:$0xff]
        %v6637 = vld [vmem:[%s6558 + $0x270] sm:$0xff]
        %v6638 = vld [vmem:[%s6558 + $0x278] sm:$0xff]
        %v6639 = vld [vmem:[%s6558 + $0x280] sm:$0xff]
        %v6640 = vld [vmem:[%s6558 + $0x288] sm:$0xff]
        %v6641 = vld [vmem:[%s6558 + $0x290] sm:$0xff]
        %v6642 = vld [vmem:[%s6558 + $0x298] sm:$0xff]
        %v6643 = vld [vmem:[%s6558 + $0x2a0] sm:$0xff]
        %v6644 = vld [vmem:[%s6558 + $0x2a8] sm:$0xff]
        %v6645 = vld [vmem:[%s6558 + $0x2b0] sm:$0xff]
        %v6646 = vld [vmem:[%s6558 + $0x2b8] sm:$0xff]
        %v6647 = vld [vmem:[%s6558 + $0x2c0] sm:$0xff]
        %v6648 = vld [vmem:[%s6558 + $0x2c8] sm:$0xff]
        %v6649 = vld [vmem:[%s6558 + $0x2d0] sm:$0xff]
        %v6650 = vld [vmem:[%s6558 + $0x2d8] sm:$0xff]
        %v6651 = vld [vmem:[%s6558 + $0x2e0] sm:$0xff]
        %v6652 = vld [vmem:[%s6558 + $0x2e8] sm:$0xff]
        %v6653 = vld [vmem:[%s6558 + $0x2f0] sm:$0xff]
        %v6654 = vld [vmem:[%s6558 + $0x2f8] sm:$0xff]
        %v6655 = vld [vmem:[%s6558 + $0x300] sm:$0xff]
        %v6656 = vld [vmem:[%s6558 + $0x308] sm:$0xff]
        %v6657 = vld [vmem:[%s6558 + $0x310] sm:$0xff]
        %v6658 = vld [vmem:[%s6558 + $0x318] sm:$0xff]
        %v6659 = vld [vmem:[%s6558 + $0x320] sm:$0xff]
        %v6660 = vld [vmem:[%s6558 + $0x328] sm:$0xff]
        %v6661 = vld [vmem:[%s6558 + $0x330] sm:$0xff]
        %v6662 = vld [vmem:[%s6558 + $0x338] sm:$0xff]
        %v6663 = vld [vmem:[%s6558 + $0x340] sm:$0xff]
        %v6664 = vld [vmem:[%s6558 + $0x348] sm:$0xff]
        %v6665 = vld [vmem:[%s6558 + $0x350] sm:$0xff]
        %v6666 = vld [vmem:[%s6558 + $0x358] sm:$0xff]
        %v6667 = vld [vmem:[%s6558 + $0x360] sm:$0xff]
        %v6668 = vld [vmem:[%s6558 + $0x368] sm:$0xff]
        %v6669 = vld [vmem:[%s6558 + $0x370] sm:$0xff]
        %v6670 = vld [vmem:[%s6558 + $0x378] sm:$0xff]
        %v6671 = vld [vmem:[%s6558 + $0x380] sm:$0xff]
        %v6672 = vld [vmem:[%s6558 + $0x388] sm:$0xff]
        %v6673 = vld [vmem:[%s6558 + $0x390] sm:$0xff]
        %v6674 = vld [vmem:[%s6558 + $0x398] sm:$0xff]
        %v6675 = vld [vmem:[%s6558 + $0x3a0] sm:$0xff]
        %v6676 = vld [vmem:[%s6558 + $0x3a8] sm:$0xff]
        %v6677 = vld [vmem:[%s6558 + $0x3b0] sm:$0xff]
        %v6678 = vld [vmem:[%s6558 + $0x3b8] sm:$0xff]
        %v6679 = vld [vmem:[%s6558 + $0x3c0] sm:$0xff]
        %v6680 = vld [vmem:[%s6558 + $0x3c8] sm:$0xff]
        %v6681 = vld [vmem:[%s6558 + $0x3d0] sm:$0xff]
        %v6682 = vld [vmem:[%s6558 + $0x3d8] sm:$0xff]
        %v6683 = vld [vmem:[%s6558 + $0x3e0] sm:$0xff]
        %v6684 = vld [vmem:[%s6558 + $0x3e8] sm:$0xff]
        %v6685 = vld [vmem:[%s6558 + $0x3f0] sm:$0xff]
        %v6686 = vld [vmem:[%s6558 + $0x3f8] sm:$0xff]
        %v6687 = vld [vmem:[%s6558 + $0x400] sm:$0xff]
        %v6688 = vld [vmem:[%s6558 + $0x408] sm:$0xff]
        %v6689 = vld [vmem:[%s6558 + $0x410] sm:$0xff]
        %v6690 = vld [vmem:[%s6558 + $0x418] sm:$0xff]
        %v6691 = vld [vmem:[%s6558 + $0x420] sm:$0xff]
        %v6692 = vld [vmem:[%s6558 + $0x428] sm:$0xff]
        %v6693 = vld [vmem:[%s6558 + $0x430] sm:$0xff]
        %v6694 = vld [vmem:[%s6558 + $0x438] sm:$0xff]
        %v6695 = vld [vmem:[%s6558 + $0x440] sm:$0xff]
        %v6696 = vld [vmem:[%s6558 + $0x448] sm:$0xff]
        %v6697 = vld [vmem:[%s6558 + $0x450] sm:$0xff]
        %v6698 = vld [vmem:[%s6558 + $0x458] sm:$0xff]
        %v6699 = vld [vmem:[%s6558 + $0x460] sm:$0xff]
        %v6700 = vld [vmem:[%s6558 + $0x468] sm:$0xff]
        %v6701 = vld [vmem:[%s6558 + $0x470] sm:$0xff]
        %v6702 = vld [vmem:[%s6558 + $0x478] sm:$0xff]
        %v6703 = vld [vmem:[%s6558 + $0x480] sm:$0xff]
        %v6704 = vld [vmem:[%s6558 + $0x488] sm:$0xff]
        %v6705 = vld [vmem:[%s6558 + $0x490] sm:$0xff]
        %v6706 = vld [vmem:[%s6558 + $0x498] sm:$0xff]
        %v6707 = vld [vmem:[%s6558 + $0x4a0] sm:$0xff]
        %v6708 = vld [vmem:[%s6558 + $0x4a8] sm:$0xff]
        %v6709 = vld [vmem:[%s6558 + $0x4b0] sm:$0xff]
        %v6710 = vld [vmem:[%s6558 + $0x4b8] sm:$0xff]
        %v6711 = vld [vmem:[%s6558 + $0x4c0] sm:$0xff]
        %v6712 = vld [vmem:[%s6558 + $0x4c8] sm:$0xff]
        %v6713 = vld [vmem:[%s6558 + $0x4d0] sm:$0xff]
        %v6714 = vld [vmem:[%s6558 + $0x4d8] sm:$0xff]
        %v6715 = vld [vmem:[%s6558 + $0x4e0] sm:$0xff]
        %v6716 = vld [vmem:[%s6558 + $0x4e8] sm:$0xff]
        %v6717 = vld [vmem:[%s6558 + $0x4f0] sm:$0xff]
        %v6718 = vld [vmem:[%s6558 + $0x4f8] sm:$0xff]
        %v6719 = vld [vmem:[%s6558 + $0x500] sm:$0xff]
        %v6720 = vld [vmem:[%s6558 + $0x508] sm:$0xff]
        %v6721 = vld [vmem:[%s6558 + $0x510] sm:$0xff]
        %v6722 = vld [vmem:[%s6558 + $0x518] sm:$0xff]
        %v6723 = vld [vmem:[%s6558 + $0x520] sm:$0xff]
        %v6724 = vld [vmem:[%s6558 + $0x528] sm:$0xff]
        %v6725 = vld [vmem:[%s6558 + $0x530] sm:$0xff]
        %v6726 = vld [vmem:[%s6558 + $0x538] sm:$0xff]
        %v6727 = vld [vmem:[%s6558 + $0x540] sm:$0xff]
        %v6728 = vld [vmem:[%s6558 + $0x548] sm:$0xff]
        %v6729 = vld [vmem:[%s6558 + $0x550] sm:$0xff]
        %v6730 = vld [vmem:[%s6558 + $0x558] sm:$0xff]
        %v6731 = vld [vmem:[%s6558 + $0x560] sm:$0xff]
        %v6732 = vld [vmem:[%s6558 + $0x568] sm:$0xff]
        %v6733 = vld [vmem:[%s6558 + $0x570] sm:$0xff]
        %v6734 = vld [vmem:[%s6558 + $0x578] sm:$0xff]
        %v6735 = vld [vmem:[%s6558 + $0x580] sm:$0xff]
        %v6736 = vld [vmem:[%s6558 + $0x588] sm:$0xff]
        %v6737 = vld [vmem:[%s6558 + $0x590] sm:$0xff]
        %v6738 = vld [vmem:[%s6558 + $0x598] sm:$0xff]
        %v6739 = vld [vmem:[%s6558 + $0x5a0] sm:$0xff]
        %v6740 = vld [vmem:[%s6558 + $0x5a8] sm:$0xff]
        %v6741 = vld [vmem:[%s6558 + $0x5b0] sm:$0xff]
        %v6742 = vld [vmem:[%s6558 + $0x5b8] sm:$0xff]
        %v6743 = vld [vmem:[%s6558 + $0x5c0] sm:$0xff]
        %v6744 = vld [vmem:[%s6558 + $0x5c8] sm:$0xff]
        %v6745 = vld [vmem:[%s6558 + $0x5d0] sm:$0xff]
        %v6746 = vld [vmem:[%s6558 + $0x5d8] sm:$0xff]
        %v6747 = vld [vmem:[%s6558 + $0x5e0] sm:$0xff]
        %v6748 = vld [vmem:[%s6558 + $0x5e8] sm:$0xff]
        %v6749 = vld [vmem:[%s6558 + $0x5f0] sm:$0xff]
        %v6750 = vld [vmem:[%s6558 + $0x5f8] sm:$0xff]
        %v6751 = vld [vmem:[%s6558 + $0x600] sm:$0xff]
        %v6752 = vld [vmem:[%s6558 + $0x608] sm:$0xff]
        %v6753 = vld [vmem:[%s6558 + $0x610] sm:$0xff]
        %v6754 = vld [vmem:[%s6558 + $0x618] sm:$0xff]
        %v6755 = vld [vmem:[%s6558 + $0x620] sm:$0xff]
        %v6756 = vld [vmem:[%s6558 + $0x628] sm:$0xff]
        %v6757 = vld [vmem:[%s6558 + $0x630] sm:$0xff]
        %v6758 = vld [vmem:[%s6558 + $0x638] sm:$0xff]
        %v6759 = vld [vmem:[%s6558 + $0x640] sm:$0xff]
        %v6760 = vld [vmem:[%s6558 + $0x648] sm:$0xff]
        %v6761 = vld [vmem:[%s6558 + $0x650] sm:$0xff]
        %v6762 = vld [vmem:[%s6558 + $0x658] sm:$0xff]
        %v6763 = vld [vmem:[%s6558 + $0x660] sm:$0xff]
        %v6764 = vld [vmem:[%s6558 + $0x668] sm:$0xff]
        %v6765 = vld [vmem:[%s6558 + $0x670] sm:$0xff]
        %v6766 = vld [vmem:[%s6558 + $0x678] sm:$0xff]
        %v6767 = vld [vmem:[%s6558 + $0x680] sm:$0xff]
        %v6768 = vld [vmem:[%s6558 + $0x688] sm:$0xff]
        %v6769 = vld [vmem:[%s6558 + $0x690] sm:$0xff]
        %v6770 = vld [vmem:[%s6558 + $0x698] sm:$0xff]
        %v6771 = vld [vmem:[%s6558 + $0x6a0] sm:$0xff]
        %v6772 = vld [vmem:[%s6558 + $0x6a8] sm:$0xff]
        %v6773 = vld [vmem:[%s6558 + $0x6b0] sm:$0xff]
        %v6774 = vld [vmem:[%s6558 + $0x6b8] sm:$0xff]
        %v6775 = vld [vmem:[%s6558 + $0x6c0] sm:$0xff]
        %v6776 = vld [vmem:[%s6558 + $0x6c8] sm:$0xff]
        %v6777 = vld [vmem:[%s6558 + $0x6d0] sm:$0xff]
        %v6778 = vld [vmem:[%s6558 + $0x6d8] sm:$0xff]
        %v6779 = vld [vmem:[%s6558 + $0x6e0] sm:$0xff]
        %v6780 = vld [vmem:[%s6558 + $0x6e8] sm:$0xff]
        %v6781 = vld [vmem:[%s6558 + $0x6f0] sm:$0xff]
        %v6782 = vld [vmem:[%s6558 + $0x6f8] sm:$0xff]
        %v6783 = vld [vmem:[%s6558 + $0x700] sm:$0xff]
        %v6784 = vld [vmem:[%s6558 + $0x708] sm:$0xff]
        %v6785 = vld [vmem:[%s6558 + $0x710] sm:$0xff]
        %v6786 = vld [vmem:[%s6558 + $0x718] sm:$0xff]
        %v6787 = vld [vmem:[%s6558 + $0x720] sm:$0xf]
        %v6788 = vld [vmem:[%s6558 + $0x728] sm:$0xf]
        %v6789 = vld [vmem:[%s6558 + $0x730] sm:$0xf]
        %v6790 = vld [vmem:[%s6558 + $0x738] sm:$0xf]
        %v6792 = vsel %vm4138, %v3672, 0
        %v6795 = vsel %vm607, %v6787, 0
        %v6798 = vsel %vm607, %v6788, 0
        %v6801 = vsel %vm607, %v6789, 0
        %v6804 = vsel %vm607, %v6790, 0
        %6806 = vmatprep.subr.mxu0 %v6560
        %6807 = vmatpush1.msra.mxu0 %v6559
        %6808 = vmatprep.subr.mxu0 %v6564
        %6809 = vmatpush1.msra.mxu0 %v6563
        %6810 = vmatprep.subr.mxu0 %v6568
        %6811 = vmatpush1.msra.mxu0 %v6567
        %6812 = vmatprep.subr.mxu0 %v6572
        %6813 = vmatpush1.msra.mxu0 %v6571
        %6814 = vmatprep.subr.mxu0 %v6576
        %6815 = vmatpush1.msra.mxu0 %v6575
        %6816 = vmatprep.subr.mxu0 %v6580
        %6817 = vmatpush1.msra.mxu0 %v6579
        %6818 = vmatprep.subr.mxu0 %v6584
        %6819 = vmatpush1.msra.mxu0 %v6583
        %6820 = vmatprep.subr.mxu0 %v6588
        %6821 = vmatpush1.msra.mxu0 %v6587
        %6822 = vmatprep.subr.mxu0 %v6592
        %6823 = vmatpush1.msra.mxu0 %v6591
        %6824 = vmatprep.subr.mxu0 %v6596
        %6825 = vmatpush1.msra.mxu0 %v6595
        %6826 = vmatprep.subr.mxu0 %v6600
        %6827 = vmatpush1.msra.mxu0 %v6599
        %6828 = vmatprep.subr.mxu0 %v6604
        %6829 = vmatpush1.msra.mxu0 %v6603
        %6830 = vmatprep.subr.mxu0 %v6608
        %6831 = vmatpush1.msra.mxu0 %v6607
        %6832 = vmatprep.subr.mxu0 %v6612
        %6833 = vmatpush1.msra.mxu0 %v6611
        %6834 = vmatprep.subr.mxu0 %v6616
        %6835 = vmatpush1.msra.mxu0 %v6615
        %6836 = vmatprep.subr.mxu0 %v6620
        %6837 = vmatpush1.msra.mxu0 %v6619
        %6838 = vmatprep.subr.mxu0 %v6624
        %6839 = vmatpush1.msra.mxu0 %v6623
        %6840 = vmatprep.subr.mxu0 %v6628
        %6841 = vmatpush1.msra.mxu0 %v6627
        %6842 = vmatprep.subr.mxu0 %v6632
        %6843 = vmatpush1.msra.mxu0 %v6631
        %6844 = vmatprep.subr.mxu0 %v6636
        %6845 = vmatpush1.msra.mxu0 %v6635
        %6846 = vmatprep.subr.mxu0 %v6640
        %6847 = vmatpush1.msra.mxu0 %v6639
        %6848 = vmatprep.subr.mxu0 %v6644
        %6849 = vmatpush1.msra.mxu0 %v6643
        %6850 = vmatprep.subr.mxu0 %v6648
        %6851 = vmatpush1.msra.mxu0 %v6647
        %6852 = vmatprep.subr.mxu0 %v6652
        %6853 = vmatpush1.msra.mxu0 %v6651
        %6854 = vmatprep.subr.mxu0 %v6656
        %6855 = vmatpush1.msra.mxu0 %v6655
        %6856 = vmatprep.subr.mxu0 %v6660
        %6857 = vmatpush1.msra.mxu0 %v6659
        %6858 = vmatprep.subr.mxu0 %v6664
        %6859 = vmatpush1.msra.mxu0 %v6663
        %6860 = vmatprep.subr.mxu0 %v6668
        %6861 = vmatpush1.msra.mxu0 %v6667
        %6862 = vmatprep.subr.mxu0 %v6672
        %6863 = vmatpush1.msra.mxu0 %v6671
        %6864 = vmatprep.subr.mxu0 %v6676
        %6865 = vmatpush1.msra.mxu0 %v6675
        %6866 = vmatprep.subr.mxu0 %v6680
        %6867 = vmatpush1.msra.mxu0 %v6679
        %6868 = vmatprep.subr.mxu0 %v6684
        %6869 = vmatpush1.msra.mxu0 %v6683
        %6870 = vmatprep.mubr.f32.mxu0 %v3642
        %6871 = vmatmul.mubr.f32.gmra.mrb[0].mxu0 %v3641
        %v6872 = vpop.f32.mrb[0].mxu0
        %v6873 = vadd.f32 0.0, %v6872
        %v6874 = vpop.f32.mrb[0].mxu0
        %v6875 = vadd.f32 0.0, %v6874
        %6876 = vmatprep.mubr.f32.mxu0 %v3646
        %6877 = vmatmul.mubr.f32.gmra.mrb[0].mxu0 %v3645
        %v6878 = vpop.f32.mrb[0].mxu0
        %v6879 = vadd.f32 0.0, %v6878
        %v6880 = vpop.f32.mrb[0].mxu0
        %v6881 = vadd.f32 0.0, %v6880
        %6882 = vmatprep.mubr.f32.mxu0 %v3650
        %6883 = vmatmul.mubr.f32.gmra.mrb[0].mxu0 %v3649
        %v6884 = vpop.f32.mrb[0].mxu0
        %v6885 = vadd.f32 0.0, %v6884
        %v6886 = vpop.f32.mrb[0].mxu0
        %v6887 = vadd.f32 0.0, %v6886
        %6888 = vmatprep.mubr.f32.mxu0 %v3654
        %6889 = vmatmul.mubr.f32.gmra.mrb[0].mxu0 %v3653
        %v6890 = vpop.f32.mrb[0].mxu0
        %v6891 = vadd.f32 0.0, %v6890
        %v6892 = vpop.f32.mrb[0].mxu0
        %v6893 = vadd.f32 0.0, %v6892
        %6894 = vmatprep.mubr.f32.mxu0 %v3658
        %6895 = vmatmul.mubr.f32.gmra.mrb[0].mxu0 %v3657
        %v6896 = vpop.f32.mrb[0].mxu0
        %v6897 = vadd.f32 0.0, %v6896
        %v6898 = vpop.f32.mrb[0].mxu0
        %v6899 = vadd.f32 0.0, %v6898
        %6900 = vmatprep.mubr.f32.mxu0 %v3662
        %6901 = vmatmul.mubr.f32.gmra.mrb[0].mxu0 %v3661
        %v6902 = vpop.f32.mrb[0].mxu0
        %v6903 = vadd.f32 0.0, %v6902
        %v6904 = vpop.f32.mrb[0].mxu0
        %v6905 = vadd.f32 0.0, %v6904
        %6906 = vmatprep.mubr.f32.mxu0 %v3666
        %6907 = vmatmul.mubr.f32.gmra.mrb[0].mxu0 %v3665
        %v6908 = vpop.f32.mrb[0].mxu0
        %v6909 = vadd.f32 0.0, %v6908
        %v6910 = vpop.f32.mrb[0].mxu0
        %v6911 = vadd.f32 0.0, %v6910
        %6912 = vmatprep.mubr.f32.mxu0 %v3670
        %6913 = vmatmul.mubr.f32.gmra.mrb[0].mxu0 %v3669
        %v6914 = vpop.f32.mrb[0].mxu0
        %v6915 = vadd.f32 0.0, %v6914
        %v6916 = vpop.f32.mrb[0].mxu0
        %v6917 = vadd.f32 0.0, %v6916
        %6918 = vdwg.mxu0
        %6919 = vmatprep.subr.mxu0 %v6688
        %6920 = vmatpush1.msra.mxu0 %v6687
        %6921 = vmatprep.subr.mxu0 %v6692
        %6922 = vmatpush1.msra.mxu0 %v6691
        %6923 = vmatprep.subr.mxu0 %v6696
        %6924 = vmatpush1.msra.mxu0 %v6695
        %6925 = vmatprep.subr.mxu0 %v6700
        %6926 = vmatpush1.msra.mxu0 %v6699
        %6927 = vmatprep.subr.mxu0 %v6704
        %6928 = vmatpush1.msra.mxu0 %v6703
        %6929 = vmatprep.subr.mxu0 %v6708
        %6930 = vmatpush1.msra.mxu0 %v6707
        %6931 = vmatprep.subr.mxu0 %v6712
        %6932 = vmatpush1.msra.mxu0 %v6711
        %6933 = vmatprep.subr.mxu0 %v6716
        %6934 = vmatpush1.msra.mxu0 %v6715
        %6935 = vmatprep.subr.mxu0 %v6720
        %6936 = vmatpush1.msra.mxu0 %v6719
        %6937 = vmatprep.subr.mxu0 %v6724
        %6938 = vmatpush1.msra.mxu0 %v6723
        %6939 = vmatprep.subr.mxu0 %v6728
        %6940 = vmatpush1.msra.mxu0 %v6727
        %6941 = vmatprep.subr.mxu0 %v6732
        %6942 = vmatpush1.msra.mxu0 %v6731
        %6943 = vmatprep.subr.mxu0 %v6736
        %6944 = vmatpush1.msra.mxu0 %v6735
        %6945 = vmatprep.subr.mxu0 %v6740
        %6946 = vmatpush1.msra.mxu0 %v6739
        %6947 = vmatprep.subr.mxu0 %v6744
        %6948 = vmatpush1.msra.mxu0 %v6743
        %6949 = vmatprep.subr.mxu0 %v6748
        %6950 = vmatpush1.msra.mxu0 %v6747
        %6951 = vmatprep.subr.mxu0 %v6752
        %6952 = vmatpush1.msra.mxu0 %v6751
        %6953 = vmatprep.subr.mxu0 %v6756
        %6954 = vmatpush1.msra.mxu0 %v6755
        %6955 = vmatprep.subr.mxu0 %v6760
        %6956 = vmatpush1.msra.mxu0 %v6759
        %6957 = vmatprep.subr.mxu0 %v6764
        %6958 = vmatpush1.msra.mxu0 %v6763
        %6959 = vmatprep.subr.mxu0 %v6768
        %6960 = vmatpush1.msra.mxu0 %v6767
        %6961 = vmatprep.subr.mxu0 %v6772
        %6962 = vmatpush1.msra.mxu0 %v6771
        %6963 = vmatprep.subr.mxu0 %v6776
        %6964 = vmatpush1.msra.mxu0 %v6775
        %6965 = vmatprep.subr.mxu0 %v6780
        %6966 = vmatpush1.msra.mxu0 %v6779
        %6967 = vmatprep.subr.mxu0 %v6784
        %6968 = vmatpush1.msra.mxu0 %v6783
        %6969 = vmatprep.subr.mxu0 %v6798
        %6970 = vmatpush1.msra.mxu0 %v6795
        %6971 = vmatprep.subr.mxu0 0.0
        %6972 = vmatpush1.msra.mxu0 0.0
        %6973 = vmatprep.subr.mxu0 0.0
        %6974 = vmatpush1.msra.mxu0 0.0
        %6975 = vmatprep.subr.mxu0 0.0
        %6976 = vmatpush1.msra.mxu0 0.0
        %6977 = vmatprep.subr.mxu0 0.0
        %6978 = vmatpush1.msra.mxu0 0.0
        %6979 = vmatprep.subr.mxu0 0.0
        %6980 = vmatpush1.msra.mxu0 0.0
        %6981 = vmatprep.subr.mxu0 0.0
        %6982 = vmatpush1.msra.mxu0 0.0
        %6983 = vmatprep.mubr.f32.mxu0 %v4149
        %6984 = vmatmul.mubr.f32.gmra.mrb[0].mxu0 %v3643
        %v6985 = vpop.f32.mrb[0].mxu0
        %v6986 = vadd.f32 %v6873, %v6985
        %v6987 = vpop.f32.mrb[0].mxu0
        %v6988 = vadd.f32 %v6875, %v6987
        %6989 = vmatprep.mubr.f32.mxu0 %v4152
        %6990 = vmatmul.mubr.f32.gmra.mrb[0].mxu0 %v3647
        %v6991 = vpop.f32.mrb[0].mxu0
        %v6992 = vadd.f32 %v6879, %v6991
        %v6993 = vpop.f32.mrb[0].mxu0
        %v6994 = vadd.f32 %v6881, %v6993
        %6995 = vmatprep.mubr.f32.mxu0 %v4155
        %6996 = vmatmul.mubr.f32.gmra.mrb[0].mxu0 %v3651
        %v6997 = vpop.f32.mrb[0].mxu0
        %v6998 = vadd.f32 %v6885, %v6997
        %v6999 = vpop.f32.mrb[0].mxu0
        %v7000 = vadd.f32 %v6887, %v6999
        %7001 = vmatprep.mubr.f32.mxu0 %v4158
        %7002 = vmatmul.mubr.f32.gmra.mrb[0].mxu0 %v3655
        %v7003 = vpop.f32.mrb[0].mxu0
        %v7004 = vadd.f32 %v6891, %v7003
        %v7005 = vpop.f32.mrb[0].mxu0
        %v7006 = vadd.f32 %v6893, %v7005
        %7007 = vmatprep.mubr.f32.mxu0 %v4161
        %7008 = vmatmul.mubr.f32.gmra.mrb[0].mxu0 %v3659
        %v7009 = vpop.f32.mrb[0].mxu0
        %v7010 = vadd.f32 %v6897, %v7009
        %v7011 = vpop.f32.mrb[0].mxu0
        %v7012 = vadd.f32 %v6899, %v7011
        %7013 = vmatprep.mubr.f32.mxu0 %v5328
        %7014 = vmatmul.mubr.f32.gmra.mrb[0].mxu0 %v3663
        %v7015 = vpop.f32.mrb[0].mxu0
        %v7016 = vadd.f32 %v6903, %v7015
        %v7017 = vpop.f32.mrb[0].mxu0
        %v7018 = vadd.f32 %v6905, %v7017
        %7019 = vmatprep.mubr.f32.mxu0 %v6060
        %7020 = vmatmul.mubr.f32.gmra.mrb[0].mxu0 %v3667
        %v7021 = vpop.f32.mrb[0].mxu0
        %v7022 = vadd.f32 %v6909, %v7021
        %v7023 = vpop.f32.mrb[0].mxu0
        %v7024 = vadd.f32 %v6911, %v7023
        %7025 = vmatprep.mubr.f32.mxu0 %v6792
        %7026 = vmatmul.mubr.f32.gmra.mrb[0].mxu0 %v3671
        %v7027 = vpop.f32.mrb[0].mxu0
        %v7028 = vadd.f32 %v6915, %v7027
        %v7029 = vpop.f32.mrb[0].mxu0
        %v7030 = vadd.f32 %v6917, %v7029
        %7031 = vdwg.mxu0
        %7032 = vmatprep.subr.mxu0 %v6562
        %7033 = vmatpush1.msra.mxu0 %v6561
        %7034 = vmatprep.subr.mxu0 %v6566
        %7035 = vmatpush1.msra.mxu0 %v6565
        %7036 = vmatprep.subr.mxu0 %v6570
        %7037 = vmatpush1.msra.mxu0 %v6569
        %7038 = vmatprep.subr.mxu0 %v6574
        %7039 = vmatpush1.msra.mxu0 %v6573
        %7040 = vmatprep.subr.mxu0 %v6578
        %7041 = vmatpush1.msra.mxu0 %v6577
        %7042 = vmatprep.subr.mxu0 %v6582
        %7043 = vmatpush1.msra.mxu0 %v6581
        %7044 = vmatprep.subr.mxu0 %v6586
        %7045 = vmatpush1.msra.mxu0 %v6585
        %7046 = vmatprep.subr.mxu0 %v6590
        %7047 = vmatpush1.msra.mxu0 %v6589
        %7048 = vmatprep.subr.mxu0 %v6594
        %7049 = vmatpush1.msra.mxu0 %v6593
        %7050 = vmatprep.subr.mxu0 %v6598
        %7051 = vmatpush1.msra.mxu0 %v6597
        %7052 = vmatprep.subr.mxu0 %v6602
        %7053 = vmatpush1.msra.mxu0 %v6601
        %7054 = vmatprep.subr.mxu0 %v6606
        %7055 = vmatpush1.msra.mxu0 %v6605
        %7056 = vmatprep.subr.mxu0 %v6610
        %7057 = vmatpush1.msra.mxu0 %v6609
        %7058 = vmatprep.subr.mxu0 %v6614
        %7059 = vmatpush1.msra.mxu0 %v6613
        %7060 = vmatprep.subr.mxu0 %v6618
        %7061 = vmatpush1.msra.mxu0 %v6617
        %7062 = vmatprep.subr.mxu0 %v6622
        %7063 = vmatpush1.msra.mxu0 %v6621
        %7064 = vmatprep.subr.mxu0 %v6626
        %7065 = vmatpush1.msra.mxu0 %v6625
        %7066 = vmatprep.subr.mxu0 %v6630
        %7067 = vmatpush1.msra.mxu0 %v6629
        %7068 = vmatprep.subr.mxu0 %v6634
        %7069 = vmatpush1.msra.mxu0 %v6633
        %7070 = vmatprep.subr.mxu0 %v6638
        %7071 = vmatpush1.msra.mxu0 %v6637
        %7072 = vmatprep.subr.mxu0 %v6642
        %7073 = vmatpush1.msra.mxu0 %v6641
        %7074 = vmatprep.subr.mxu0 %v6646
        %7075 = vmatpush1.msra.mxu0 %v6645
        %7076 = vmatprep.subr.mxu0 %v6650
        %7077 = vmatpush1.msra.mxu0 %v6649
        %7078 = vmatprep.subr.mxu0 %v6654
        %7079 = vmatpush1.msra.mxu0 %v6653
        %7080 = vmatprep.subr.mxu0 %v6658
        %7081 = vmatpush1.msra.mxu0 %v6657
        %7082 = vmatprep.subr.mxu0 %v6662
        %7083 = vmatpush1.msra.mxu0 %v6661
        %7084 = vmatprep.subr.mxu0 %v6666
        %7085 = vmatpush1.msra.mxu0 %v6665
        %7086 = vmatprep.subr.mxu0 %v6670
        %7087 = vmatpush1.msra.mxu0 %v6669
        %7088 = vmatprep.subr.mxu0 %v6674
        %7089 = vmatpush1.msra.mxu0 %v6673
        %7090 = vmatprep.subr.mxu0 %v6678
        %7091 = vmatpush1.msra.mxu0 %v6677
        %7092 = vmatprep.subr.mxu0 %v6682
        %7093 = vmatpush1.msra.mxu0 %v6681
        %7094 = vmatprep.subr.mxu0 %v6686
        %7095 = vmatpush1.msra.mxu0 %v6685
        %7096 = vmatprep.mubr.f32.mxu0 %v3642
        %7097 = vmatmul.mubr.f32.gmra.mrb[0].mxu0 %v3641
        %v7098 = vpop.f32.mrb[0].mxu0
        %v7099 = vadd.f32 0.0, %v7098
        %v7100 = vpop.f32.mrb[0].mxu0
        %v7101 = vadd.f32 0.0, %v7100
        %7102 = vmatprep.mubr.f32.mxu0 %v3646
        %7103 = vmatmul.mubr.f32.gmra.mrb[0].mxu0 %v3645
        %v7104 = vpop.f32.mrb[0].mxu0
        %v7105 = vadd.f32 0.0, %v7104
        %v7106 = vpop.f32.mrb[0].mxu0
        %v7107 = vadd.f32 0.0, %v7106
        %7108 = vmatprep.mubr.f32.mxu0 %v3650
        %7109 = vmatmul.mubr.f32.gmra.mrb[0].mxu0 %v3649
        %v7110 = vpop.f32.mrb[0].mxu0
        %v7111 = vadd.f32 0.0, %v7110
        %v7112 = vpop.f32.mrb[0].mxu0
        %v7113 = vadd.f32 0.0, %v7112
        %7114 = vmatprep.mubr.f32.mxu0 %v3654
        %7115 = vmatmul.mubr.f32.gmra.mrb[0].mxu0 %v3653
        %v7116 = vpop.f32.mrb[0].mxu0
        %v7117 = vadd.f32 0.0, %v7116
        %v7118 = vpop.f32.mrb[0].mxu0
        %v7119 = vadd.f32 0.0, %v7118
        %7120 = vmatprep.mubr.f32.mxu0 %v3658
        %7121 = vmatmul.mubr.f32.gmra.mrb[0].mxu0 %v3657
        %v7122 = vpop.f32.mrb[0].mxu0
        %v7123 = vadd.f32 0.0, %v7122
        %v7124 = vpop.f32.mrb[0].mxu0
        %v7125 = vadd.f32 0.0, %v7124
        %7126 = vmatprep.mubr.f32.mxu0 %v3662
        %7127 = vmatmul.mubr.f32.gmra.mrb[0].mxu0 %v3661
        %v7128 = vpop.f32.mrb[0].mxu0
        %v7129 = vadd.f32 0.0, %v7128
        %v7130 = vpop.f32.mrb[0].mxu0
        %v7131 = vadd.f32 0.0, %v7130
        %7132 = vmatprep.mubr.f32.mxu0 %v3666
        %7133 = vmatmul.mubr.f32.gmra.mrb[0].mxu0 %v3665
        %v7134 = vpop.f32.mrb[0].mxu0
        %v7135 = vadd.f32 0.0, %v7134
        %v7136 = vpop.f32.mrb[0].mxu0
        %v7137 = vadd.f32 0.0, %v7136
        %7138 = vmatprep.mubr.f32.mxu0 %v3670
        %7139 = vmatmul.mubr.f32.gmra.mrb[0].mxu0 %v3669
        %v7140 = vpop.f32.mrb[0].mxu0
        %v7141 = vadd.f32 0.0, %v7140
        %v7142 = vpop.f32.mrb[0].mxu0
        %v7143 = vadd.f32 0.0, %v7142
        %7144 = vdwg.mxu0
        %7145 = vmatprep.subr.mxu0 %v6690
        %7146 = vmatpush1.msra.mxu0 %v6689
        %7147 = vmatprep.subr.mxu0 %v6694
        %7148 = vmatpush1.msra.mxu0 %v6693
        %7149 = vmatprep.subr.mxu0 %v6698
        %7150 = vmatpush1.msra.mxu0 %v6697
        %7151 = vmatprep.subr.mxu0 %v6702
        %7152 = vmatpush1.msra.mxu0 %v6701
        %7153 = vmatprep.subr.mxu0 %v6706
        %7154 = vmatpush1.msra.mxu0 %v6705
        %7155 = vmatprep.subr.mxu0 %v6710
        %7156 = vmatpush1.msra.mxu0 %v6709
        %7157 = vmatprep.subr.mxu0 %v6714
        %7158 = vmatpush1.msra.mxu0 %v6713
        %7159 = vmatprep.subr.mxu0 %v6718
        %7160 = vmatpush1.msra.mxu0 %v6717
        %7161 = vmatprep.subr.mxu0 %v6722
        %7162 = vmatpush1.msra.mxu0 %v6721
        %7163 = vmatprep.subr.mxu0 %v6726
        %7164 = vmatpush1.msra.mxu0 %v6725
        %7165 = vmatprep.subr.mxu0 %v6730
        %7166 = vmatpush1.msra.mxu0 %v6729
        %7167 = vmatprep.subr.mxu0 %v6734
        %7168 = vmatpush1.msra.mxu0 %v6733
        %7169 = vmatprep.subr.mxu0 %v6738
        %7170 = vmatpush1.msra.mxu0 %v6737
        %7171 = vmatprep.subr.mxu0 %v6742
        %7172 = vmatpush1.msra.mxu0 %v6741
        %7173 = vmatprep.subr.mxu0 %v6746
        %7174 = vmatpush1.msra.mxu0 %v6745
        %7175 = vmatprep.subr.mxu0 %v6750
        %7176 = vmatpush1.msra.mxu0 %v6749
        %7177 = vmatprep.subr.mxu0 %v6754
        %7178 = vmatpush1.msra.mxu0 %v6753
        %7179 = vmatprep.subr.mxu0 %v6758
        %7180 = vmatpush1.msra.mxu0 %v6757
        %7181 = vmatprep.subr.mxu0 %v6762
        %7182 = vmatpush1.msra.mxu0 %v6761
        %7183 = vmatprep.subr.mxu0 %v6766
        %7184 = vmatpush1.msra.mxu0 %v6765
        %7185 = vmatprep.subr.mxu0 %v6770
        %7186 = vmatpush1.msra.mxu0 %v6769
        %7187 = vmatprep.subr.mxu0 %v6774
        %7188 = vmatpush1.msra.mxu0 %v6773
        %7189 = vmatprep.subr.mxu0 %v6778
        %7190 = vmatpush1.msra.mxu0 %v6777
        %7191 = vmatprep.subr.mxu0 %v6782
        %7192 = vmatpush1.msra.mxu0 %v6781
        %7193 = vmatprep.subr.mxu0 %v6786
        %7194 = vmatpush1.msra.mxu0 %v6785
        %7195 = vmatprep.subr.mxu0 %v6804
        %7196 = vmatpush1.msra.mxu0 %v6801
        %7197 = vmatprep.subr.mxu0 0.0
        %7198 = vmatpush1.msra.mxu0 0.0
        %7199 = vmatprep.subr.mxu0 0.0
        %7200 = vmatpush1.msra.mxu0 0.0
        %7201 = vmatprep.subr.mxu0 0.0
        %7202 = vmatpush1.msra.mxu0 0.0
        %7203 = vmatprep.subr.mxu0 0.0
        %7204 = vmatpush1.msra.mxu0 0.0
        %7205 = vmatprep.subr.mxu0 0.0
        %7206 = vmatpush1.msra.mxu0 0.0
        %7207 = vmatprep.subr.mxu0 0.0
        %7208 = vmatpush1.msra.mxu0 0.0
        %7209 = vmatprep.mubr.f32.mxu0 %v4149
        %7210 = vmatmul.mubr.f32.gmra.mrb[0].mxu0 %v3643
        %v7211 = vpop.f32.mrb[0].mxu0
        %v7212 = vadd.f32 %v7099, %v7211
        %v7213 = vpop.f32.mrb[0].mxu0
        %v7214 = vadd.f32 %v7101, %v7213
        %7215 = vmatprep.mubr.f32.mxu0 %v4152
        %7216 = vmatmul.mubr.f32.gmra.mrb[0].mxu0 %v3647
        %v7217 = vpop.f32.mrb[0].mxu0
        %v7218 = vadd.f32 %v7105, %v7217
        %v7219 = vpop.f32.mrb[0].mxu0
        %v7220 = vadd.f32 %v7107, %v7219
        %7221 = vmatprep.mubr.f32.mxu0 %v4155
        %7222 = vmatmul.mubr.f32.gmra.mrb[0].mxu0 %v3651
        %v7223 = vpop.f32.mrb[0].mxu0
        %v7224 = vadd.f32 %v7111, %v7223
        %v7225 = vpop.f32.mrb[0].mxu0
        %v7226 = vadd.f32 %v7113, %v7225
        %7227 = vmatprep.mubr.f32.mxu0 %v4158
        %7228 = vmatmul.mubr.f32.gmra.mrb[0].mxu0 %v3655
        %v7229 = vpop.f32.mrb[0].mxu0
        %v7230 = vadd.f32 %v7117, %v7229
        %v7231 = vpop.f32.mrb[0].mxu0
        %v7232 = vadd.f32 %v7119, %v7231
        %7233 = vmatprep.mubr.f32.mxu0 %v4161
        %7234 = vmatmul.mubr.f32.gmra.mrb[0].mxu0 %v3659
        %v7235 = vpop.f32.mrb[0].mxu0
        %v7236 = vadd.f32 %v7123, %v7235
        %v7237 = vpop.f32.mrb[0].mxu0
        %v7238 = vadd.f32 %v7125, %v7237
        %7239 = vmatprep.mubr.f32.mxu0 %v5328
        %7240 = vmatmul.mubr.f32.gmra.mrb[0].mxu0 %v3663
        %v7241 = vpop.f32.mrb[0].mxu0
        %v7242 = vadd.f32 %v7129, %v7241
        %v7243 = vpop.f32.mrb[0].mxu0
        %v7244 = vadd.f32 %v7131, %v7243
        %7245 = vmatprep.mubr.f32.mxu0 %v6060
        %7246 = vmatmul.mubr.f32.gmra.mrb[0].mxu0 %v3667
        %v7247 = vpop.f32.mrb[0].mxu0
        %v7248 = vadd.f32 %v7135, %v7247
        %v7249 = vpop.f32.mrb[0].mxu0
        %v7250 = vadd.f32 %v7137, %v7249
        %7251 = vmatprep.mubr.f32.mxu0 %v6792
        %7252 = vmatmul.mubr.f32.gmra.mrb[0].mxu0 %v3671
        %v7253 = vpop.f32.mrb[0].mxu0
        %v7254 = vadd.f32 %v7141, %v7253
        %v7255 = vpop.f32.mrb[0].mxu0
        %v7256 = vadd.f32 %v7143, %v7255
        %7257 = vdwg.mxu0
        %v7258 = vadd.f32 %v6526, %v6986
        %v7259 = vadd.f32 %v6527, %v6988
        %v7260 = vadd.f32 %v6528, %v7212
        %v7261 = vadd.f32 %v6529, %v7214
        %v7262 = vadd.f32 %v6530, %v6992
        %v7263 = vadd.f32 %v6531, %v6994
        %v7264 = vadd.f32 %v6532, %v7218
        %v7265 = vadd.f32 %v6533, %v7220
        %v7266 = vadd.f32 %v6534, %v6998
        %v7267 = vadd.f32 %v6535, %v7000
        %v7268 = vadd.f32 %v6536, %v7224
        %v7269 = vadd.f32 %v6537, %v7226
        %v7270 = vadd.f32 %v6538, %v7004
        %v7271 = vadd.f32 %v6539, %v7006
        %v7272 = vadd.f32 %v6540, %v7230
        %v7273 = vadd.f32 %v6541, %v7232
        %v7274 = vadd.f32 %v6542, %v7010
        %v7275 = vadd.f32 %v6543, %v7012
        %v7276 = vadd.f32 %v6544, %v7236
        %v7277 = vadd.f32 %v6545, %v7238
        %v7278 = vadd.f32 %v6546, %v7016
        %v7279 = vadd.f32 %v6547, %v7018
        %v7280 = vadd.f32 %v6548, %v7242
        %v7281 = vadd.f32 %v6549, %v7244
        %v7282 = vadd.f32 %v6550, %v7022
        %v7283 = vadd.f32 %v6551, %v7024
        %v7284 = vadd.f32 %v6552, %v7248
        %v7285 = vadd.f32 %v6553, %v7250
        %v7286 = vadd.f32 %v6554, %v7028
        %v7287 = vadd.f32 %v6555, %v7030
        %v7288 = vadd.f32 %v6556, %v7254
        %v7289 = vadd.f32 %v6557, %v7256
        %v7290 = vld [vmem:[%s4] sm:$0xf]
        %v7292 = vlaneseq
        %v7293 = vshrl.u32 %v7292, 7
        %v7294 = vsub.s32 0, %v7293
        %v7295 = vrot.slane %v7290, %v7294
        %v7296 = vlaneseq
        %v7297 = vshrl.u32 %v7296, 7
        %v7298 = vsub.s32 1, %v7297
        %v7299 = vrot.slane %v7290, %v7298
        %v7300 = vlaneseq
        %v7301 = vshrl.u32 %v7300, 7
        %v7302 = vsub.s32 2, %v7301
        %v7303 = vrot.slane %v7290, %v7302
        %v7304 = vlaneseq
        %v7305 = vshrl.u32 %v7304, 7
        %v7306 = vsub.s32 3, %v7305
        %v7307 = vrot.slane %v7290, %v7306
        %v7312 = vadd.f32 %v7258, %v7295
        %v7313 = vadd.f32 %v7259, %v7299
        %v7314 = vadd.f32 %v7260, %v7303
        %v7315 = vadd.f32 %v7261, %v7307
        %v7316 = vadd.f32 %v7262, %v7295
        %v7317 = vadd.f32 %v7263, %v7299
        %v7318 = vadd.f32 %v7264, %v7303
        %v7319 = vadd.f32 %v7265, %v7307
        %v7320 = vadd.f32 %v7266, %v7295
        %v7321 = vadd.f32 %v7267, %v7299
        %v7322 = vadd.f32 %v7268, %v7303
        %v7323 = vadd.f32 %v7269, %v7307
        %v7324 = vadd.f32 %v7270, %v7295
        %v7325 = vadd.f32 %v7271, %v7299
        %v7326 = vadd.f32 %v7272, %v7303
        %v7327 = vadd.f32 %v7273, %v7307
        %v7328 = vadd.f32 %v7274, %v7295
        %v7329 = vadd.f32 %v7275, %v7299
        %v7330 = vadd.f32 %v7276, %v7303
        %v7331 = vadd.f32 %v7277, %v7307
        %v7332 = vadd.f32 %v7278, %v7295
        %v7333 = vadd.f32 %v7279, %v7299
        %v7334 = vadd.f32 %v7280, %v7303
        %v7335 = vadd.f32 %v7281, %v7307
        %v7336 = vadd.f32 %v7282, %v7295
        %v7337 = vadd.f32 %v7283, %v7299
        %v7338 = vadd.f32 %v7284, %v7303
        %v7339 = vadd.f32 %v7285, %v7307
        %v7340 = vadd.f32 %v7286, %v7295
        %v7341 = vadd.f32 %v7287, %v7299
        %v7342 = vadd.f32 %v7288, %v7303
        %v7343 = vadd.f32 %v7289, %v7307
        %v7344 = vmax.f32 %v7312, 0.0
        %v7345 = vmax.f32 %v7313, 0.0
        %v7346 = vmax.f32 %v7314, 0.0
        %v7347 = vmax.f32 %v7315, 0.0
        %v7348 = vmax.f32 %v7316, 0.0
        %v7349 = vmax.f32 %v7317, 0.0
        %v7350 = vmax.f32 %v7318, 0.0
        %v7351 = vmax.f32 %v7319, 0.0
        %v7352 = vmax.f32 %v7320, 0.0
        %v7353 = vmax.f32 %v7321, 0.0
        %v7354 = vmax.f32 %v7322, 0.0
        %v7355 = vmax.f32 %v7323, 0.0
        %v7356 = vmax.f32 %v7324, 0.0
        %v7357 = vmax.f32 %v7325, 0.0
        %v7358 = vmax.f32 %v7326, 0.0
        %v7359 = vmax.f32 %v7327, 0.0
        %v7360 = vmax.f32 %v7328, 0.0
        %v7361 = vmax.f32 %v7329, 0.0
        %v7362 = vmax.f32 %v7330, 0.0
        %v7363 = vmax.f32 %v7331, 0.0
        %v7364 = vmax.f32 %v7332, 0.0
        %v7365 = vmax.f32 %v7333, 0.0
        %v7366 = vmax.f32 %v7334, 0.0
        %v7367 = vmax.f32 %v7335, 0.0
        %v7368 = vmax.f32 %v7336, 0.0
        %v7369 = vmax.f32 %v7337, 0.0
        %v7370 = vmax.f32 %v7338, 0.0
        %v7371 = vmax.f32 %v7339, 0.0
        %v7372 = vmax.f32 %v7340, 0.0
        %v7373 = vmax.f32 %v7341, 0.0
        %v7374 = vmax.f32 %v7342, 0.0
        %v7375 = vmax.f32 %v7343, 0.0
        %v7376 = vmax.f32 %v7344, %v7348
        %v7377 = vmax.f32 %v7345, %v7349
        %v7378 = vmax.f32 %v7346, %v7350
        %vm7379 = vcmask 130048
        %v7380 = vsel %vm7379, %v7347, -inf
        %v7381 = vsel %vm7379, %v7351, -inf
        %v7382 = vmax.f32 %v7380, %v7381
        %v7383 = vmax.f32 %v7352, %v7356
        %v7384 = vmax.f32 %v7353, %v7357
        %v7385 = vmax.f32 %v7354, %v7358
        %v7386 = vsel %vm7379, %v7355, -inf
        %v7387 = vsel %vm7379, %v7359, -inf
        %v7388 = vmax.f32 %v7386, %v7387
        %v7389 = vmax.f32 %v7360, %v7364
        %v7390 = vmax.f32 %v7361, %v7365
        %v7391 = vmax.f32 %v7362, %v7366
        %v7392 = vsel %vm7379, %v7363, -inf
        %v7393 = vsel %vm7379, %v7367, -inf
        %v7394 = vmax.f32 %v7392, %v7393
        %v7395 = vmax.f32 %v7368, %v7372
        %v7396 = vmax.f32 %v7369, %v7373
        %v7397 = vmax.f32 %v7370, %v7374
        %v7398 = vsel %vm7379, %v7371, -inf
        %v7399 = vsel %vm7379, %v7375, -inf
        %v7400 = vmax.f32 %v7398, %v7399
        %7417 = vrot.lane.b32.xlu0 %v7376, 78
        %v7418 = vpop.permute.xlu0 %7417
        %7419 = vrot.lane.b32.xlu0 %v7377, 78
        %v7420 = vpop.permute.xlu0 %7419
        %7421 = vrot.lane.b32.xlu0 %v7378, 78
        %v7422 = vpop.permute.xlu0 %7421
        %7423 = vrot.lane.b32.xlu0 %v7382, 78
        %v7424 = vpop.permute.xlu0 %7423
        %7425 = vrot.lane.b32.xlu0 %v7383, 78
        %v7426 = vpop.permute.xlu0 %7425
        %7427 = vrot.lane.b32.xlu0 %v7384, 78
        %v7428 = vpop.permute.xlu0 %7427
        %7429 = vrot.lane.b32.xlu0 %v7385, 78
        %v7430 = vpop.permute.xlu0 %7429
        %7431 = vrot.lane.b32.xlu0 %v7388, 78
        %v7432 = vpop.permute.xlu0 %7431
        %7433 = vrot.lane.b32.xlu0 %v7389, 78
        %v7434 = vpop.permute.xlu0 %7433
        %7435 = vrot.lane.b32.xlu0 %v7390, 78
        %v7436 = vpop.permute.xlu0 %7435
        %7437 = vrot.lane.b32.xlu0 %v7391, 78
        %v7438 = vpop.permute.xlu0 %7437
        %7439 = vrot.lane.b32.xlu0 %v7394, 78
        %v7440 = vpop.permute.xlu0 %7439
        %7441 = vrot.lane.b32.xlu0 %v7395, 78
        %v7442 = vpop.permute.xlu0 %7441
        %7443 = vrot.lane.b32.xlu0 %v7396, 78
        %v7444 = vpop.permute.xlu0 %7443
        %7445 = vrot.lane.b32.xlu0 %v7397, 78
        %v7446 = vpop.permute.xlu0 %7445
        %7447 = vrot.lane.b32.xlu0 %v7400, 78
        %v7448 = vpop.permute.xlu0 %7447
        %vm7449 = vcmask 637952
        %v7450 = vsel %vm7449, %v7418, %v7420
        %v7451 = vsel %vm7449, %v7420, %v7422
        %v7452 = vsel %vm7449, %v7422, %v7424
        %v7453 = vsel %vm7449, %v7426, %v7428
        %v7454 = vsel %vm7449, %v7428, %v7430
        %v7455 = vsel %vm7449, %v7430, %v7432
        %v7456 = vsel %vm7449, %v7434, %v7436
        %v7457 = vsel %vm7449, %v7436, %v7438
        %v7458 = vsel %vm7449, %v7438, %v7440
        %v7459 = vsel %vm7449, %v7442, %v7444
        %v7460 = vsel %vm7449, %v7444, %v7446
        %v7461 = vsel %vm7449, %v7446, %v7448
        %v7474 = vmax.f32 %v7376, %v7450
        %v7475 = vmax.f32 %v7377, %v7451
        %v7476 = vmax.f32 %v7378, %v7452
        %v7477 = vmax.f32 %v7383, %v7453
        %v7478 = vmax.f32 %v7384, %v7454
        %v7479 = vmax.f32 %v7385, %v7455
        %v7480 = vmax.f32 %v7389, %v7456
        %v7481 = vmax.f32 %v7390, %v7457
        %v7482 = vmax.f32 %v7391, %v7458
        %v7483 = vmax.f32 %v7395, %v7459
        %v7484 = vmax.f32 %v7396, %v7460
        %v7485 = vmax.f32 %v7397, %v7461
        %v7486 = vld [vmem:[%s5] sm:$0xff]
        %v7487 = vld [vmem:[%s5 + $0x8] sm:$0xff]
        %v7488 = vld [vmem:[%s5 + $0x10] sm:$0xff]
        %v7489 = vld [vmem:[%s5 + $0x18] sm:$0xff]
        %v7490 = vld [vmem:[%s5 + $0x20] sm:$0xff]
        %v7491 = vld [vmem:[%s5 + $0x28] sm:$0xff]
        %v7492 = vld [vmem:[%s5 + $0x30] sm:$0xff]
        %v7493 = vld [vmem:[%s5 + $0x38] sm:$0xff]
        %v7494 = vld [vmem:[%s5 + $0x40] sm:$0xff]
        %v7495 = vld [vmem:[%s5 + $0x48] sm:$0xff]
        %v7496 = vld [vmem:[%s5 + $0x50] sm:$0xff]
        %v7497 = vld [vmem:[%s5 + $0x58] sm:$0xff]
        %v7498 = vld [vmem:[%s5 + $0x60] sm:$0xff]
        %v7499 = vld [vmem:[%s5 + $0x68] sm:$0xff]
        %v7500 = vld [vmem:[%s5 + $0x70] sm:$0xff]
        %v7501 = vld [vmem:[%s5 + $0x78] sm:$0xff]
        %v7502 = vld [vmem:[%s5 + $0x80] sm:$0xff]
        %v7503 = vld [vmem:[%s5 + $0x88] sm:$0xff]
        %v7504 = vld [vmem:[%s5 + $0x90] sm:$0xff]
        %v7505 = vld [vmem:[%s5 + $0x98] sm:$0xff]
        %v7506 = vld [vmem:[%s5 + $0xa0] sm:$0xff]
        %v7507 = vld [vmem:[%s5 + $0xa8] sm:$0xff]
        %v7508 = vld [vmem:[%s5 + $0xb0] sm:$0xff]
        %v7509 = vld [vmem:[%s5 + $0xb8] sm:$0xff]
        %v7510 = vld [vmem:[%s5 + $0xc0] sm:$0xff]
        %v7511 = vld [vmem:[%s5 + $0xc8] sm:$0xff]
        %v7512 = vld [vmem:[%s5 + $0xd0] sm:$0xff]
        %v7513 = vld [vmem:[%s5 + $0xd8] sm:$0xff]
        %v7514 = vld [vmem:[%s5 + $0xe0] sm:$0xff]
        %v7515 = vld [vmem:[%s5 + $0xe8] sm:$0xff]
        %v7516 = vld [vmem:[%s5 + $0xf0] sm:$0xff]
        %v7517 = vld [vmem:[%s5 + $0xf8] sm:$0xff]
        %v7518 = vld [vmem:[%s5 + $0x100] sm:$0xff]
        %v7519 = vld [vmem:[%s5 + $0x108] sm:$0xff]
        %v7520 = vld [vmem:[%s5 + $0x110] sm:$0xff]
        %v7521 = vld [vmem:[%s5 + $0x118] sm:$0xff]
        %v7522 = vld [vmem:[%s5 + $0x120] sm:$0xff]
        %v7523 = vld [vmem:[%s5 + $0x128] sm:$0xff]
        %v7524 = vld [vmem:[%s5 + $0x130] sm:$0xff]
        %v7525 = vld [vmem:[%s5 + $0x138] sm:$0xff]
        %v7526 = vld [vmem:[%s5 + $0x140] sm:$0xff]
        %v7527 = vld [vmem:[%s5 + $0x148] sm:$0xff]
        %v7528 = vld [vmem:[%s5 + $0x150] sm:$0xff]
        %v7529 = vld [vmem:[%s5 + $0x158] sm:$0xff]
        %v7530 = vld [vmem:[%s5 + $0x160] sm:$0xff]
        %v7531 = vld [vmem:[%s5 + $0x168] sm:$0xff]
        %v7532 = vld [vmem:[%s5 + $0x170] sm:$0xff]
        %v7533 = vld [vmem:[%s5 + $0x178] sm:$0xff]
        %v7534 = vld [vmem:[%s5 + $0x180] sm:$0xff]
        %v7535 = vld [vmem:[%s5 + $0x188] sm:$0xff]
        %v7536 = vld [vmem:[%s5 + $0x190] sm:$0xff]
        %v7537 = vld [vmem:[%s5 + $0x198] sm:$0xff]
        %v7538 = vld [vmem:[%s5 + $0x1a0] sm:$0xff]
        %v7539 = vld [vmem:[%s5 + $0x1a8] sm:$0xff]
        %v7540 = vld [vmem:[%s5 + $0x1b0] sm:$0xff]
        %v7541 = vld [vmem:[%s5 + $0x1b8] sm:$0xff]
        %v7542 = vld [vmem:[%s5 + $0x1c0] sm:$0xff]
        %v7543 = vld [vmem:[%s5 + $0x1c8] sm:$0xff]
        %v7544 = vld [vmem:[%s5 + $0x1d0] sm:$0xff]
        %v7545 = vld [vmem:[%s5 + $0x1d8] sm:$0xff]
        %v7546 = vld [vmem:[%s5 + $0x1e0] sm:$0xff]
        %v7547 = vld [vmem:[%s5 + $0x1e8] sm:$0xff]
        %v7548 = vld [vmem:[%s5 + $0x1f0] sm:$0xff]
        %v7549 = vld [vmem:[%s5 + $0x1f8] sm:$0xff]
        %v7550 = vld [vmem:[%s5 + $0x200] sm:$0xff]
        %v7551 = vld [vmem:[%s5 + $0x208] sm:$0xff]
        %v7552 = vld [vmem:[%s5 + $0x210] sm:$0xff]
        %v7553 = vld [vmem:[%s5 + $0x218] sm:$0xff]
        %v7554 = vld [vmem:[%s5 + $0x220] sm:$0xff]
        %v7555 = vld [vmem:[%s5 + $0x228] sm:$0xff]
        %v7556 = vld [vmem:[%s5 + $0x230] sm:$0xff]
        %v7557 = vld [vmem:[%s5 + $0x238] sm:$0xff]
        %v7558 = vld [vmem:[%s5 + $0x240] sm:$0xff]
        %v7559 = vld [vmem:[%s5 + $0x248] sm:$0xff]
        %v7560 = vld [vmem:[%s5 + $0x250] sm:$0xff]
        %v7561 = vld [vmem:[%s5 + $0x258] sm:$0xff]
        %v7562 = vld [vmem:[%s5 + $0x260] sm:$0xff]
        %v7563 = vld [vmem:[%s5 + $0x268] sm:$0xff]
        %v7564 = vld [vmem:[%s5 + $0x270] sm:$0xff]
        %v7565 = vld [vmem:[%s5 + $0x278] sm:$0xff]
        %v7566 = vld [vmem:[%s5 + $0x280] sm:$0xff]
        %v7567 = vld [vmem:[%s5 + $0x288] sm:$0xff]
        %v7568 = vld [vmem:[%s5 + $0x290] sm:$0xff]
        %v7569 = vld [vmem:[%s5 + $0x298] sm:$0xff]
        %v7570 = vld [vmem:[%s5 + $0x2a0] sm:$0xff]
        %v7571 = vld [vmem:[%s5 + $0x2a8] sm:$0xff]
        %v7572 = vld [vmem:[%s5 + $0x2b0] sm:$0xff]
        %v7573 = vld [vmem:[%s5 + $0x2b8] sm:$0xff]
        %v7574 = vld [vmem:[%s5 + $0x2c0] sm:$0xff]
        %v7575 = vld [vmem:[%s5 + $0x2c8] sm:$0xff]
        %v7576 = vld [vmem:[%s5 + $0x2d0] sm:$0xff]
        %v7577 = vld [vmem:[%s5 + $0x2d8] sm:$0xff]
        %v7578 = vld [vmem:[%s5 + $0x2e0] sm:$0xff]
        %v7579 = vld [vmem:[%s5 + $0x2e8] sm:$0xff]
        %v7580 = vld [vmem:[%s5 + $0x2f0] sm:$0xff]
        %v7581 = vld [vmem:[%s5 + $0x2f8] sm:$0xff]
        %v7582 = vld [vmem:[%s5 + $0x300] sm:$0xff]
        %v7583 = vld [vmem:[%s5 + $0x308] sm:$0xff]
        %v7584 = vld [vmem:[%s5 + $0x310] sm:$0xff]
        %v7585 = vld [vmem:[%s5 + $0x318] sm:$0xff]
        %v7586 = vld [vmem:[%s5 + $0x320] sm:$0xff]
        %v7587 = vld [vmem:[%s5 + $0x328] sm:$0xff]
        %v7588 = vld [vmem:[%s5 + $0x330] sm:$0xff]
        %v7589 = vld [vmem:[%s5 + $0x338] sm:$0xff]
        %v7590 = vld [vmem:[%s5 + $0x340] sm:$0xff]
        %v7591 = vld [vmem:[%s5 + $0x348] sm:$0xff]
        %v7592 = vld [vmem:[%s5 + $0x350] sm:$0xff]
        %v7593 = vld [vmem:[%s5 + $0x358] sm:$0xff]
        %v7594 = vld [vmem:[%s5 + $0x360] sm:$0xff]
        %v7595 = vld [vmem:[%s5 + $0x368] sm:$0xff]
        %v7596 = vld [vmem:[%s5 + $0x370] sm:$0xff]
        %v7597 = vld [vmem:[%s5 + $0x378] sm:$0xff]
        %v7598 = vld [vmem:[%s5 + $0x380] sm:$0xff]
        %v7599 = vld [vmem:[%s5 + $0x388] sm:$0xff]
        %v7600 = vld [vmem:[%s5 + $0x390] sm:$0xff]
        %v7601 = vld [vmem:[%s5 + $0x398] sm:$0xff]
        %v7602 = vld [vmem:[%s5 + $0x3a0] sm:$0xff]
        %v7603 = vld [vmem:[%s5 + $0x3a8] sm:$0xff]
        %v7604 = vld [vmem:[%s5 + $0x3b0] sm:$0xff]
        %v7605 = vld [vmem:[%s5 + $0x3b8] sm:$0xff]
        %v7606 = vld [vmem:[%s5 + $0x3c0] sm:$0xff]
        %v7607 = vld [vmem:[%s5 + $0x3c8] sm:$0xff]
        %v7608 = vld [vmem:[%s5 + $0x3d0] sm:$0xff]
        %v7609 = vld [vmem:[%s5 + $0x3d8] sm:$0xff]
        %v7610 = vld [vmem:[%s5 + $0x3e0] sm:$0xff]
        %v7611 = vld [vmem:[%s5 + $0x3e8] sm:$0xff]
        %v7612 = vld [vmem:[%s5 + $0x3f0] sm:$0xff]
        %v7613 = vld [vmem:[%s5 + $0x3f8] sm:$0xff]
        %v7614 = vld [vmem:[%s5 + $0x400] sm:$0xff]
        %v7615 = vld [vmem:[%s5 + $0x408] sm:$0xff]
        %v7616 = vld [vmem:[%s5 + $0x410] sm:$0xff]
        %v7617 = vld [vmem:[%s5 + $0x418] sm:$0xff]
        %v7618 = vld [vmem:[%s5 + $0x420] sm:$0xff]
        %v7619 = vld [vmem:[%s5 + $0x428] sm:$0xff]
        %v7620 = vld [vmem:[%s5 + $0x430] sm:$0xff]
        %v7621 = vld [vmem:[%s5 + $0x438] sm:$0xff]
        %v7622 = vld [vmem:[%s5 + $0x440] sm:$0xff]
        %v7623 = vld [vmem:[%s5 + $0x448] sm:$0xff]
        %v7624 = vld [vmem:[%s5 + $0x450] sm:$0xff]
        %v7625 = vld [vmem:[%s5 + $0x458] sm:$0xff]
        %v7626 = vld [vmem:[%s5 + $0x460] sm:$0xff]
        %v7627 = vld [vmem:[%s5 + $0x468] sm:$0xff]
        %v7628 = vld [vmem:[%s5 + $0x470] sm:$0xff]
        %v7629 = vld [vmem:[%s5 + $0x478] sm:$0xff]
        %v7630 = vld [vmem:[%s5 + $0x480] sm:$0xff]
        %v7631 = vld [vmem:[%s5 + $0x488] sm:$0xff]
        %v7632 = vld [vmem:[%s5 + $0x490] sm:$0xff]
        %v7633 = vld [vmem:[%s5 + $0x498] sm:$0xff]
        %v7634 = vld [vmem:[%s5 + $0x4a0] sm:$0xff]
        %v7635 = vld [vmem:[%s5 + $0x4a8] sm:$0xff]
        %v7636 = vld [vmem:[%s5 + $0x4b0] sm:$0xff]
        %v7637 = vld [vmem:[%s5 + $0x4b8] sm:$0xff]
        %v7638 = vld [vmem:[%s5 + $0x4c0] sm:$0xff]
        %v7639 = vld [vmem:[%s5 + $0x4c8] sm:$0xff]
        %v7640 = vld [vmem:[%s5 + $0x4d0] sm:$0xff]
        %v7641 = vld [vmem:[%s5 + $0x4d8] sm:$0xff]
        %v7642 = vld [vmem:[%s5 + $0x4e0] sm:$0xff]
        %v7643 = vld [vmem:[%s5 + $0x4e8] sm:$0xff]
        %v7644 = vld [vmem:[%s5 + $0x4f0] sm:$0xff]
        %v7645 = vld [vmem:[%s5 + $0x4f8] sm:$0xff]
        %v7646 = vld [vmem:[%s5 + $0x500] sm:$0xff]
        %v7647 = vld [vmem:[%s5 + $0x508] sm:$0xff]
        %v7648 = vld [vmem:[%s5 + $0x510] sm:$0xff]
        %v7649 = vld [vmem:[%s5 + $0x518] sm:$0xff]
        %v7650 = vld [vmem:[%s5 + $0x520] sm:$0xff]
        %v7651 = vld [vmem:[%s5 + $0x528] sm:$0xff]
        %v7652 = vld [vmem:[%s5 + $0x530] sm:$0xff]
        %v7653 = vld [vmem:[%s5 + $0x538] sm:$0xff]
        %v7654 = vld [vmem:[%s5 + $0x540] sm:$0xff]
        %v7655 = vld [vmem:[%s5 + $0x548] sm:$0xff]
        %v7656 = vld [vmem:[%s5 + $0x550] sm:$0xff]
        %v7657 = vld [vmem:[%s5 + $0x558] sm:$0xff]
        %v7658 = vld [vmem:[%s5 + $0x560] sm:$0x3f]
        %v7659 = vld [vmem:[%s5 + $0x568] sm:$0x3f]
        %v7660 = vld [vmem:[%s5 + $0x570] sm:$0x3f]
        %v7661 = vld [vmem:[%s5 + $0x578] sm:$0x3f]
        %s7662 = scalar_lea.vmem %s5, 1408
        %v7663 = vld [vmem:[%s7662] sm:$0xff]
        %v7664 = vld [vmem:[%s7662 + $0x8] sm:$0xff]
        %v7665 = vld [vmem:[%s7662 + $0x10] sm:$0xff]
        %v7666 = vld [vmem:[%s7662 + $0x18] sm:$0xff]
        %v7667 = vld [vmem:[%s7662 + $0x20] sm:$0xff]
        %v7668 = vld [vmem:[%s7662 + $0x28] sm:$0xff]
        %v7669 = vld [vmem:[%s7662 + $0x30] sm:$0xff]
        %v7670 = vld [vmem:[%s7662 + $0x38] sm:$0xff]
        %v7671 = vld [vmem:[%s7662 + $0x40] sm:$0xff]
        %v7672 = vld [vmem:[%s7662 + $0x48] sm:$0xff]
        %v7673 = vld [vmem:[%s7662 + $0x50] sm:$0xff]
        %v7674 = vld [vmem:[%s7662 + $0x58] sm:$0xff]
        %v7675 = vld [vmem:[%s7662 + $0x60] sm:$0xff]
        %v7676 = vld [vmem:[%s7662 + $0x68] sm:$0xff]
        %v7677 = vld [vmem:[%s7662 + $0x70] sm:$0xff]
        %v7678 = vld [vmem:[%s7662 + $0x78] sm:$0xff]
        %v7679 = vld [vmem:[%s7662 + $0x80] sm:$0xff]
        %v7680 = vld [vmem:[%s7662 + $0x88] sm:$0xff]
        %v7681 = vld [vmem:[%s7662 + $0x90] sm:$0xff]
        %v7682 = vld [vmem:[%s7662 + $0x98] sm:$0xff]
        %v7683 = vld [vmem:[%s7662 + $0xa0] sm:$0xff]
        %v7684 = vld [vmem:[%s7662 + $0xa8] sm:$0xff]
        %v7685 = vld [vmem:[%s7662 + $0xb0] sm:$0xff]
        %v7686 = vld [vmem:[%s7662 + $0xb8] sm:$0xff]
        %v7687 = vld [vmem:[%s7662 + $0xc0] sm:$0xff]
        %v7688 = vld [vmem:[%s7662 + $0xc8] sm:$0xff]
        %v7689 = vld [vmem:[%s7662 + $0xd0] sm:$0xff]
        %v7690 = vld [vmem:[%s7662 + $0xd8] sm:$0xff]
        %v7691 = vld [vmem:[%s7662 + $0xe0] sm:$0xff]
        %v7692 = vld [vmem:[%s7662 + $0xe8] sm:$0xff]
        %v7693 = vld [vmem:[%s7662 + $0xf0] sm:$0xff]
        %v7694 = vld [vmem:[%s7662 + $0xf8] sm:$0xff]
        %v7695 = vld [vmem:[%s7662 + $0x100] sm:$0xff]
        %v7696 = vld [vmem:[%s7662 + $0x108] sm:$0xff]
        %v7697 = vld [vmem:[%s7662 + $0x110] sm:$0xff]
        %v7698 = vld [vmem:[%s7662 + $0x118] sm:$0xff]
        %v7699 = vld [vmem:[%s7662 + $0x120] sm:$0xff]
        %v7700 = vld [vmem:[%s7662 + $0x128] sm:$0xff]
        %v7701 = vld [vmem:[%s7662 + $0x130] sm:$0xff]
        %v7702 = vld [vmem:[%s7662 + $0x138] sm:$0xff]
        %v7703 = vld [vmem:[%s7662 + $0x140] sm:$0xff]
        %v7704 = vld [vmem:[%s7662 + $0x148] sm:$0xff]
        %v7705 = vld [vmem:[%s7662 + $0x150] sm:$0xff]
        %v7706 = vld [vmem:[%s7662 + $0x158] sm:$0xff]
        %v7707 = vld [vmem:[%s7662 + $0x160] sm:$0xff]
        %v7708 = vld [vmem:[%s7662 + $0x168] sm:$0xff]
        %v7709 = vld [vmem:[%s7662 + $0x170] sm:$0xff]
        %v7710 = vld [vmem:[%s7662 + $0x178] sm:$0xff]
        %v7711 = vld [vmem:[%s7662 + $0x180] sm:$0xff]
        %v7712 = vld [vmem:[%s7662 + $0x188] sm:$0xff]
        %v7713 = vld [vmem:[%s7662 + $0x190] sm:$0xff]
        %v7714 = vld [vmem:[%s7662 + $0x198] sm:$0xff]
        %v7715 = vld [vmem:[%s7662 + $0x1a0] sm:$0xff]
        %v7716 = vld [vmem:[%s7662 + $0x1a8] sm:$0xff]
        %v7717 = vld [vmem:[%s7662 + $0x1b0] sm:$0xff]
        %v7718 = vld [vmem:[%s7662 + $0x1b8] sm:$0xff]
        %v7719 = vld [vmem:[%s7662 + $0x1c0] sm:$0xff]
        %v7720 = vld [vmem:[%s7662 + $0x1c8] sm:$0xff]
        %v7721 = vld [vmem:[%s7662 + $0x1d0] sm:$0xff]
        %v7722 = vld [vmem:[%s7662 + $0x1d8] sm:$0xff]
        %v7723 = vld [vmem:[%s7662 + $0x1e0] sm:$0xff]
        %v7724 = vld [vmem:[%s7662 + $0x1e8] sm:$0xff]
        %v7725 = vld [vmem:[%s7662 + $0x1f0] sm:$0xff]
        %v7726 = vld [vmem:[%s7662 + $0x1f8] sm:$0xff]
        %v7727 = vld [vmem:[%s7662 + $0x200] sm:$0xff]
        %v7728 = vld [vmem:[%s7662 + $0x208] sm:$0xff]
        %v7729 = vld [vmem:[%s7662 + $0x210] sm:$0xff]
        %v7730 = vld [vmem:[%s7662 + $0x218] sm:$0xff]
        %v7731 = vld [vmem:[%s7662 + $0x220] sm:$0xff]
        %v7732 = vld [vmem:[%s7662 + $0x228] sm:$0xff]
        %v7733 = vld [vmem:[%s7662 + $0x230] sm:$0xff]
        %v7734 = vld [vmem:[%s7662 + $0x238] sm:$0xff]
        %v7735 = vld [vmem:[%s7662 + $0x240] sm:$0xff]
        %v7736 = vld [vmem:[%s7662 + $0x248] sm:$0xff]
        %v7737 = vld [vmem:[%s7662 + $0x250] sm:$0xff]
        %v7738 = vld [vmem:[%s7662 + $0x258] sm:$0xff]
        %v7739 = vld [vmem:[%s7662 + $0x260] sm:$0xff]
        %v7740 = vld [vmem:[%s7662 + $0x268] sm:$0xff]
        %v7741 = vld [vmem:[%s7662 + $0x270] sm:$0xff]
        %v7742 = vld [vmem:[%s7662 + $0x278] sm:$0xff]
        %v7743 = vld [vmem:[%s7662 + $0x280] sm:$0xff]
        %v7744 = vld [vmem:[%s7662 + $0x288] sm:$0xff]
        %v7745 = vld [vmem:[%s7662 + $0x290] sm:$0xff]
        %v7746 = vld [vmem:[%s7662 + $0x298] sm:$0xff]
        %v7747 = vld [vmem:[%s7662 + $0x2a0] sm:$0xff]
        %v7748 = vld [vmem:[%s7662 + $0x2a8] sm:$0xff]
        %v7749 = vld [vmem:[%s7662 + $0x2b0] sm:$0xff]
        %v7750 = vld [vmem:[%s7662 + $0x2b8] sm:$0xff]
        %v7751 = vld [vmem:[%s7662 + $0x2c0] sm:$0xff]
        %v7752 = vld [vmem:[%s7662 + $0x2c8] sm:$0xff]
        %v7753 = vld [vmem:[%s7662 + $0x2d0] sm:$0xff]
        %v7754 = vld [vmem:[%s7662 + $0x2d8] sm:$0xff]
        %v7755 = vld [vmem:[%s7662 + $0x2e0] sm:$0xff]
        %v7756 = vld [vmem:[%s7662 + $0x2e8] sm:$0xff]
        %v7757 = vld [vmem:[%s7662 + $0x2f0] sm:$0xff]
        %v7758 = vld [vmem:[%s7662 + $0x2f8] sm:$0xff]
        %v7759 = vld [vmem:[%s7662 + $0x300] sm:$0xff]
        %v7760 = vld [vmem:[%s7662 + $0x308] sm:$0xff]
        %v7761 = vld [vmem:[%s7662 + $0x310] sm:$0xff]
        %v7762 = vld [vmem:[%s7662 + $0x318] sm:$0xff]
        %v7763 = vld [vmem:[%s7662 + $0x320] sm:$0xff]
        %v7764 = vld [vmem:[%s7662 + $0x328] sm:$0xff]
        %v7765 = vld [vmem:[%s7662 + $0x330] sm:$0xff]
        %v7766 = vld [vmem:[%s7662 + $0x338] sm:$0xff]
        %v7767 = vld [vmem:[%s7662 + $0x340] sm:$0xff]
        %v7768 = vld [vmem:[%s7662 + $0x348] sm:$0xff]
        %v7769 = vld [vmem:[%s7662 + $0x350] sm:$0xff]
        %v7770 = vld [vmem:[%s7662 + $0x358] sm:$0xff]
        %v7771 = vld [vmem:[%s7662 + $0x360] sm:$0xff]
        %v7772 = vld [vmem:[%s7662 + $0x368] sm:$0xff]
        %v7773 = vld [vmem:[%s7662 + $0x370] sm:$0xff]
        %v7774 = vld [vmem:[%s7662 + $0x378] sm:$0xff]
        %v7775 = vld [vmem:[%s7662 + $0x380] sm:$0xff]
        %v7776 = vld [vmem:[%s7662 + $0x388] sm:$0xff]
        %v7777 = vld [vmem:[%s7662 + $0x390] sm:$0xff]
        %v7778 = vld [vmem:[%s7662 + $0x398] sm:$0xff]
        %v7779 = vld [vmem:[%s7662 + $0x3a0] sm:$0xff]
        %v7780 = vld [vmem:[%s7662 + $0x3a8] sm:$0xff]
        %v7781 = vld [vmem:[%s7662 + $0x3b0] sm:$0xff]
        %v7782 = vld [vmem:[%s7662 + $0x3b8] sm:$0xff]
        %v7783 = vld [vmem:[%s7662 + $0x3c0] sm:$0xff]
        %v7784 = vld [vmem:[%s7662 + $0x3c8] sm:$0xff]
        %v7785 = vld [vmem:[%s7662 + $0x3d0] sm:$0xff]
        %v7786 = vld [vmem:[%s7662 + $0x3d8] sm:$0xff]
        %v7787 = vld [vmem:[%s7662 + $0x3e0] sm:$0xff]
        %v7788 = vld [vmem:[%s7662 + $0x3e8] sm:$0xff]
        %v7789 = vld [vmem:[%s7662 + $0x3f0] sm:$0xff]
        %v7790 = vld [vmem:[%s7662 + $0x3f8] sm:$0xff]
        %v7791 = vld [vmem:[%s7662 + $0x400] sm:$0xff]
        %v7792 = vld [vmem:[%s7662 + $0x408] sm:$0xff]
        %v7793 = vld [vmem:[%s7662 + $0x410] sm:$0xff]
        %v7794 = vld [vmem:[%s7662 + $0x418] sm:$0xff]
        %v7795 = vld [vmem:[%s7662 + $0x420] sm:$0xff]
        %v7796 = vld [vmem:[%s7662 + $0x428] sm:$0xff]
        %v7797 = vld [vmem:[%s7662 + $0x430] sm:$0xff]
        %v7798 = vld [vmem:[%s7662 + $0x438] sm:$0xff]
        %v7799 = vld [vmem:[%s7662 + $0x440] sm:$0xff]
        %v7800 = vld [vmem:[%s7662 + $0x448] sm:$0xff]
        %v7801 = vld [vmem:[%s7662 + $0x450] sm:$0xff]
        %v7802 = vld [vmem:[%s7662 + $0x458] sm:$0xff]
        %v7803 = vld [vmem:[%s7662 + $0x460] sm:$0xff]
        %v7804 = vld [vmem:[%s7662 + $0x468] sm:$0xff]
        %v7805 = vld [vmem:[%s7662 + $0x470] sm:$0xff]
        %v7806 = vld [vmem:[%s7662 + $0x478] sm:$0xff]
        %v7807 = vld [vmem:[%s7662 + $0x480] sm:$0xff]
        %v7808 = vld [vmem:[%s7662 + $0x488] sm:$0xff]
        %v7809 = vld [vmem:[%s7662 + $0x490] sm:$0xff]
        %v7810 = vld [vmem:[%s7662 + $0x498] sm:$0xff]
        %v7811 = vld [vmem:[%s7662 + $0x4a0] sm:$0xff]
        %v7812 = vld [vmem:[%s7662 + $0x4a8] sm:$0xff]
        %v7813 = vld [vmem:[%s7662 + $0x4b0] sm:$0xff]
        %v7814 = vld [vmem:[%s7662 + $0x4b8] sm:$0xff]
        %v7815 = vld [vmem:[%s7662 + $0x4c0] sm:$0xff]
        %v7816 = vld [vmem:[%s7662 + $0x4c8] sm:$0xff]
        %v7817 = vld [vmem:[%s7662 + $0x4d0] sm:$0xff]
        %v7818 = vld [vmem:[%s7662 + $0x4d8] sm:$0xff]
        %v7819 = vld [vmem:[%s7662 + $0x4e0] sm:$0xff]
        %v7820 = vld [vmem:[%s7662 + $0x4e8] sm:$0xff]
        %v7821 = vld [vmem:[%s7662 + $0x4f0] sm:$0xff]
        %v7822 = vld [vmem:[%s7662 + $0x4f8] sm:$0xff]
        %v7823 = vld [vmem:[%s7662 + $0x500] sm:$0xff]
        %v7824 = vld [vmem:[%s7662 + $0x508] sm:$0xff]
        %v7825 = vld [vmem:[%s7662 + $0x510] sm:$0xff]
        %v7826 = vld [vmem:[%s7662 + $0x518] sm:$0xff]
        %v7827 = vld [vmem:[%s7662 + $0x520] sm:$0xff]
        %v7828 = vld [vmem:[%s7662 + $0x528] sm:$0xff]
        %v7829 = vld [vmem:[%s7662 + $0x530] sm:$0xff]
        %v7830 = vld [vmem:[%s7662 + $0x538] sm:$0xff]
        %v7831 = vld [vmem:[%s7662 + $0x540] sm:$0xff]
        %v7832 = vld [vmem:[%s7662 + $0x548] sm:$0xff]
        %v7833 = vld [vmem:[%s7662 + $0x550] sm:$0xff]
        %v7834 = vld [vmem:[%s7662 + $0x558] sm:$0xff]
        %v7835 = vld [vmem:[%s7662 + $0x560] sm:$0x3f]
        %v7836 = vld [vmem:[%s7662 + $0x568] sm:$0x3f]
        %v7837 = vld [vmem:[%s7662 + $0x570] sm:$0x3f]
        %v7838 = vld [vmem:[%s7662 + $0x578] sm:$0x3f]
        %vm7839 = vcmask 769024
        %v7841 = vsel %vm7839, %v7479, 0
        %vm7843 = vcmask 1045504
        %v7845 = vsel %vm7843, %v7835, 0
        %v7848 = vsel %vm7843, %v7836, 0
        %v7851 = vsel %vm7843, %v7837, 0
        %v7854 = vsel %vm7843, %v7838, 0
        %7856 = vmatprep.subr.mxu0 %v7664
        %7857 = vmatpush1.msra.mxu0 %v7663
        %7858 = vmatprep.subr.mxu0 %v7668
        %7859 = vmatpush1.msra.mxu0 %v7667
        %7860 = vmatprep.subr.mxu0 %v7672
        %7861 = vmatpush1.msra.mxu0 %v7671
        %7862 = vmatprep.subr.mxu0 %v7676
        %7863 = vmatpush1.msra.mxu0 %v7675
        %7864 = vmatprep.subr.mxu0 %v7680
        %7865 = vmatpush1.msra.mxu0 %v7679
        %7866 = vmatprep.subr.mxu0 %v7684
        %7867 = vmatpush1.msra.mxu0 %v7683
        %7868 = vmatprep.subr.mxu0 %v7688
        %7869 = vmatpush1.msra.mxu0 %v7687
        %7870 = vmatprep.subr.mxu0 %v7692
        %7871 = vmatpush1.msra.mxu0 %v7691
        %7872 = vmatprep.subr.mxu0 %v7696
        %7873 = vmatpush1.msra.mxu0 %v7695
        %7874 = vmatprep.subr.mxu0 %v7700
        %7875 = vmatpush1.msra.mxu0 %v7699
        %7876 = vmatprep.subr.mxu0 %v7704
        %7877 = vmatpush1.msra.mxu0 %v7703
        %7878 = vmatprep.subr.mxu0 %v7708
        %7879 = vmatpush1.msra.mxu0 %v7707
        %7880 = vmatprep.subr.mxu0 %v7712
        %7881 = vmatpush1.msra.mxu0 %v7711
        %7882 = vmatprep.subr.mxu0 %v7716
        %7883 = vmatpush1.msra.mxu0 %v7715
        %7884 = vmatprep.subr.mxu0 %v7720
        %7885 = vmatpush1.msra.mxu0 %v7719
        %7886 = vmatprep.subr.mxu0 %v7724
        %7887 = vmatpush1.msra.mxu0 %v7723
        %7888 = vmatprep.subr.mxu0 %v7728
        %7889 = vmatpush1.msra.mxu0 %v7727
        %7890 = vmatprep.subr.mxu0 %v7732
        %7891 = vmatpush1.msra.mxu0 %v7731
        %7892 = vmatprep.subr.mxu0 %v7736
        %7893 = vmatpush1.msra.mxu0 %v7735
        %7894 = vmatprep.subr.mxu0 %v7740
        %7895 = vmatpush1.msra.mxu0 %v7739
        %7896 = vmatprep.subr.mxu0 %v7744
        %7897 = vmatpush1.msra.mxu0 %v7743
        %7898 = vmatprep.subr.mxu0 %v7748
        %7899 = vmatpush1.msra.mxu0 %v7747
        %7900 = vmatprep.subr.mxu0 %v7752
        %7901 = vmatpush1.msra.mxu0 %v7751
        %7902 = vmatprep.subr.mxu0 %v7756
        %7903 = vmatpush1.msra.mxu0 %v7755
        %7904 = vmatprep.subr.mxu0 %v7760
        %7905 = vmatpush1.msra.mxu0 %v7759
        %7906 = vmatprep.subr.mxu0 %v7764
        %7907 = vmatpush1.msra.mxu0 %v7763
        %7908 = vmatprep.subr.mxu0 %v7768
        %7909 = vmatpush1.msra.mxu0 %v7767
        %7910 = vmatprep.subr.mxu0 %v7772
        %7911 = vmatpush1.msra.mxu0 %v7771
        %7912 = vmatprep.subr.mxu0 %v7776
        %7913 = vmatpush1.msra.mxu0 %v7775
        %7914 = vmatprep.subr.mxu0 %v7780
        %7915 = vmatpush1.msra.mxu0 %v7779
        %7916 = vmatprep.subr.mxu0 %v7784
        %7917 = vmatpush1.msra.mxu0 %v7783
        %7918 = vmatprep.subr.mxu0 %v7788
        %7919 = vmatpush1.msra.mxu0 %v7787
        %7920 = vmatprep.mubr.f32.mxu0 %v7478
        %7921 = vmatmul.mubr.f32.gmra.mrb[0].mxu0 %v7477
        %v7922 = vpop.f32.mrb[0].mxu0
        %v7923 = vadd.f32 0.0, %v7922
        %v7924 = vpop.f32.mrb[0].mxu0
        %v7925 = vadd.f32 0.0, %v7924
        %7926 = vdwg.mxu0
        %7927 = vmatprep.subr.mxu0 %v7792
        %7928 = vmatpush1.msra.mxu0 %v7791
        %7929 = vmatprep.subr.mxu0 %v7796
        %7930 = vmatpush1.msra.mxu0 %v7795
        %7931 = vmatprep.subr.mxu0 %v7800
        %7932 = vmatpush1.msra.mxu0 %v7799
        %7933 = vmatprep.subr.mxu0 %v7804
        %7934 = vmatpush1.msra.mxu0 %v7803
        %7935 = vmatprep.subr.mxu0 %v7808
        %7936 = vmatpush1.msra.mxu0 %v7807
        %7937 = vmatprep.subr.mxu0 %v7812
        %7938 = vmatpush1.msra.mxu0 %v7811
        %7939 = vmatprep.subr.mxu0 %v7816
        %7940 = vmatpush1.msra.mxu0 %v7815
        %7941 = vmatprep.subr.mxu0 %v7820
        %7942 = vmatpush1.msra.mxu0 %v7819
        %7943 = vmatprep.subr.mxu0 %v7824
        %7944 = vmatpush1.msra.mxu0 %v7823
        %7945 = vmatprep.subr.mxu0 %v7828
        %7946 = vmatpush1.msra.mxu0 %v7827
        %7947 = vmatprep.subr.mxu0 %v7832
        %7948 = vmatpush1.msra.mxu0 %v7831
        %7949 = vmatprep.subr.mxu0 %v7848
        %7950 = vmatpush1.msra.mxu0 %v7845
        %7951 = vmatprep.subr.mxu0 0.0
        %7952 = vmatpush1.msra.mxu0 0.0
        %7953 = vmatprep.subr.mxu0 0.0
        %7954 = vmatpush1.msra.mxu0 0.0
        %7955 = vmatprep.subr.mxu0 0.0
        %7956 = vmatpush1.msra.mxu0 0.0
        %7957 = vmatprep.subr.mxu0 0.0
        %7958 = vmatpush1.msra.mxu0 0.0
        %7959 = vmatprep.subr.mxu0 0.0
        %7960 = vmatpush1.msra.mxu0 0.0
        %7961 = vmatprep.subr.mxu0 0.0
        %7962 = vmatpush1.msra.mxu0 0.0
        %7963 = vmatprep.subr.mxu0 0.0
        %7964 = vmatpush1.msra.mxu0 0.0
        %7965 = vmatprep.subr.mxu0 0.0
        %7966 = vmatpush1.msra.mxu0 0.0
        %7967 = vmatprep.subr.mxu0 0.0
        %7968 = vmatpush1.msra.mxu0 0.0
        %7969 = vmatprep.subr.mxu0 0.0
        %7970 = vmatpush1.msra.mxu0 0.0
        %7971 = vmatprep.subr.mxu0 0.0
        %7972 = vmatpush1.msra.mxu0 0.0
        %7973 = vmatprep.subr.mxu0 0.0
        %7974 = vmatpush1.msra.mxu0 0.0
        %7975 = vmatprep.subr.mxu0 0.0
        %7976 = vmatpush1.msra.mxu0 0.0
        %7977 = vmatprep.subr.mxu0 0.0
        %7978 = vmatpush1.msra.mxu0 0.0
        %7979 = vmatprep.subr.mxu0 0.0
        %7980 = vmatpush1.msra.mxu0 0.0
        %7981 = vmatprep.subr.mxu0 0.0
        %7982 = vmatpush1.msra.mxu0 0.0
        %7983 = vmatprep.subr.mxu0 0.0
        %7984 = vmatpush1.msra.mxu0 0.0
        %7985 = vmatprep.subr.mxu0 0.0
        %7986 = vmatpush1.msra.mxu0 0.0
        %7987 = vmatprep.subr.mxu0 0.0
        %7988 = vmatpush1.msra.mxu0 0.0
        %7989 = vmatprep.subr.mxu0 0.0
        %7990 = vmatpush1.msra.mxu0 0.0
        %7991 = vmatprep.mubr.f32.mxu0 0.0
        %7992 = vmatmul.mubr.f32.gmra.mrb[0].mxu0 %v7841
        %v7993 = vpop.f32.mrb[0].mxu0
        %v7994 = vadd.f32 %v7923, %v7993
        %v7995 = vpop.f32.mrb[0].mxu0
        %v7996 = vadd.f32 %v7925, %v7995
        %7997 = vdwg.mxu0
        %7998 = vmatprep.subr.mxu0 %v7666
        %7999 = vmatpush1.msra.mxu0 %v7665
        %8000 = vmatprep.subr.mxu0 %v7670
        %8001 = vmatpush1.msra.mxu0 %v7669
        %8002 = vmatprep.subr.mxu0 %v7674
        %8003 = vmatpush1.msra.mxu0 %v7673
        %8004 = vmatprep.subr.mxu0 %v7678
        %8005 = vmatpush1.msra.mxu0 %v7677
        %8006 = vmatprep.subr.mxu0 %v7682
        %8007 = vmatpush1.msra.mxu0 %v7681
        %8008 = vmatprep.subr.mxu0 %v7686
        %8009 = vmatpush1.msra.mxu0 %v7685
        %8010 = vmatprep.subr.mxu0 %v7690
        %8011 = vmatpush1.msra.mxu0 %v7689
        %8012 = vmatprep.subr.mxu0 %v7694
        %8013 = vmatpush1.msra.mxu0 %v7693
        %8014 = vmatprep.subr.mxu0 %v7698
        %8015 = vmatpush1.msra.mxu0 %v7697
        %8016 = vmatprep.subr.mxu0 %v7702
        %8017 = vmatpush1.msra.mxu0 %v7701
        %8018 = vmatprep.subr.mxu0 %v7706
        %8019 = vmatpush1.msra.mxu0 %v7705
        %8020 = vmatprep.subr.mxu0 %v7710
        %8021 = vmatpush1.msra.mxu0 %v7709
        %8022 = vmatprep.subr.mxu0 %v7714
        %8023 = vmatpush1.msra.mxu0 %v7713
        %8024 = vmatprep.subr.mxu0 %v7718
        %8025 = vmatpush1.msra.mxu0 %v7717
        %8026 = vmatprep.subr.mxu0 %v7722
        %8027 = vmatpush1.msra.mxu0 %v7721
        %8028 = vmatprep.subr.mxu0 %v7726
        %8029 = vmatpush1.msra.mxu0 %v7725
        %8030 = vmatprep.subr.mxu0 %v7730
        %8031 = vmatpush1.msra.mxu0 %v7729
        %8032 = vmatprep.subr.mxu0 %v7734
        %8033 = vmatpush1.msra.mxu0 %v7733
        %8034 = vmatprep.subr.mxu0 %v7738
        %8035 = vmatpush1.msra.mxu0 %v7737
        %8036 = vmatprep.subr.mxu0 %v7742
        %8037 = vmatpush1.msra.mxu0 %v7741
        %8038 = vmatprep.subr.mxu0 %v7746
        %8039 = vmatpush1.msra.mxu0 %v7745
        %8040 = vmatprep.subr.mxu0 %v7750
        %8041 = vmatpush1.msra.mxu0 %v7749
        %8042 = vmatprep.subr.mxu0 %v7754
        %8043 = vmatpush1.msra.mxu0 %v7753
        %8044 = vmatprep.subr.mxu0 %v7758
        %8045 = vmatpush1.msra.mxu0 %v7757
        %8046 = vmatprep.subr.mxu0 %v7762
        %8047 = vmatpush1.msra.mxu0 %v7761
        %8048 = vmatprep.subr.mxu0 %v7766
        %8049 = vmatpush1.msra.mxu0 %v7765
        %8050 = vmatprep.subr.mxu0 %v7770
        %8051 = vmatpush1.msra.mxu0 %v7769
        %8052 = vmatprep.subr.mxu0 %v7774
        %8053 = vmatpush1.msra.mxu0 %v7773
        %8054 = vmatprep.subr.mxu0 %v7778
        %8055 = vmatpush1.msra.mxu0 %v7777
        %8056 = vmatprep.subr.mxu0 %v7782
        %8057 = vmatpush1.msra.mxu0 %v7781
        %8058 = vmatprep.subr.mxu0 %v7786
        %8059 = vmatpush1.msra.mxu0 %v7785
        %8060 = vmatprep.subr.mxu0 %v7790
        %8061 = vmatpush1.msra.mxu0 %v7789
        %8062 = vmatprep.mubr.f32.mxu0 %v7478
        %8063 = vmatmul.mubr.f32.gmra.mrb[0].mxu0 %v7477
        %v8064 = vpop.f32.mrb[0].mxu0
        %v8065 = vadd.f32 0.0, %v8064
        %v8066 = vpop.f32.mrb[0].mxu0
        %v8067 = vadd.f32 0.0, %v8066
        %8068 = vdwg.mxu0
        %8069 = vmatprep.subr.mxu0 %v7794
        %8070 = vmatpush1.msra.mxu0 %v7793
        %8071 = vmatprep.subr.mxu0 %v7798
        %8072 = vmatpush1.msra.mxu0 %v7797
        %8073 = vmatprep.subr.mxu0 %v7802
        %8074 = vmatpush1.msra.mxu0 %v7801
        %8075 = vmatprep.subr.mxu0 %v7806
        %8076 = vmatpush1.msra.mxu0 %v7805
        %8077 = vmatprep.subr.mxu0 %v7810
        %8078 = vmatpush1.msra.mxu0 %v7809
        %8079 = vmatprep.subr.mxu0 %v7814
        %8080 = vmatpush1.msra.mxu0 %v7813
        %8081 = vmatprep.subr.mxu0 %v7818
        %8082 = vmatpush1.msra.mxu0 %v7817
        %8083 = vmatprep.subr.mxu0 %v7822
        %8084 = vmatpush1.msra.mxu0 %v7821
        %8085 = vmatprep.subr.mxu0 %v7826
        %8086 = vmatpush1.msra.mxu0 %v7825
        %8087 = vmatprep.subr.mxu0 %v7830
        %8088 = vmatpush1.msra.mxu0 %v7829
        %8089 = vmatprep.subr.mxu0 %v7834
        %8090 = vmatpush1.msra.mxu0 %v7833
        %8091 = vmatprep.subr.mxu0 %v7854
        %8092 = vmatpush1.msra.mxu0 %v7851
        %8093 = vmatprep.subr.mxu0 0.0
        %8094 = vmatpush1.msra.mxu0 0.0
        %8095 = vmatprep.subr.mxu0 0.0
        %8096 = vmatpush1.msra.mxu0 0.0
        %8097 = vmatprep.subr.mxu0 0.0
        %8098 = vmatpush1.msra.mxu0 0.0
        %8099 = vmatprep.subr.mxu0 0.0
        %8100 = vmatpush1.msra.mxu0 0.0
        %8101 = vmatprep.subr.mxu0 0.0
        %8102 = vmatpush1.msra.mxu0 0.0
        %8103 = vmatprep.subr.mxu0 0.0
        %8104 = vmatpush1.msra.mxu0 0.0
        %8105 = vmatprep.subr.mxu0 0.0
        %8106 = vmatpush1.msra.mxu0 0.0
        %8107 = vmatprep.subr.mxu0 0.0
        %8108 = vmatpush1.msra.mxu0 0.0
        %8109 = vmatprep.subr.mxu0 0.0
        %8110 = vmatpush1.msra.mxu0 0.0
        %8111 = vmatprep.subr.mxu0 0.0
        %8112 = vmatpush1.msra.mxu0 0.0
        %8113 = vmatprep.subr.mxu0 0.0
        %8114 = vmatpush1.msra.mxu0 0.0
        %8115 = vmatprep.subr.mxu0 0.0
        %8116 = vmatpush1.msra.mxu0 0.0
        %8117 = vmatprep.subr.mxu0 0.0
        %8118 = vmatpush1.msra.mxu0 0.0
        %8119 = vmatprep.subr.mxu0 0.0
        %8120 = vmatpush1.msra.mxu0 0.0
        %8121 = vmatprep.subr.mxu0 0.0
        %8122 = vmatpush1.msra.mxu0 0.0
        %8123 = vmatprep.subr.mxu0 0.0
        %8124 = vmatpush1.msra.mxu0 0.0
        %8125 = vmatprep.subr.mxu0 0.0
        %8126 = vmatpush1.msra.mxu0 0.0
        %8127 = vmatprep.subr.mxu0 0.0
        %8128 = vmatpush1.msra.mxu0 0.0
        %8129 = vmatprep.subr.mxu0 0.0
        %8130 = vmatpush1.msra.mxu0 0.0
        %8131 = vmatprep.subr.mxu0 0.0
        %8132 = vmatpush1.msra.mxu0 0.0
        %8133 = vmatprep.mubr.f32.mxu0 0.0
        %8134 = vmatmul.mubr.f32.gmra.mrb[0].mxu0 %v7841
        %v8135 = vpop.f32.mrb[0].mxu0
        %v8136 = vadd.f32 %v8065, %v8135
        %v8137 = vpop.f32.mrb[0].mxu0
        %v8138 = vadd.f32 %v8067, %v8137
        %8139 = vdwg.mxu0
        %v8141 = vsel %vm7839, %v7476, 0
        %v8144 = vsel %vm7843, %v7658, 0
        %v8147 = vsel %vm7843, %v7659, 0
        %v8150 = vsel %vm7843, %v7660, 0
        %v8153 = vsel %vm7843, %v7661, 0
        %8155 = vmatprep.subr.mxu0 %v7487
        %8156 = vmatpush1.msra.mxu0 %v7486
        %8157 = vmatprep.subr.mxu0 %v7491
        %8158 = vmatpush1.msra.mxu0 %v7490
        %8159 = vmatprep.subr.mxu0 %v7495
        %8160 = vmatpush1.msra.mxu0 %v7494
        %8161 = vmatprep.subr.mxu0 %v7499
        %8162 = vmatpush1.msra.mxu0 %v7498
        %8163 = vmatprep.subr.mxu0 %v7503
        %8164 = vmatpush1.msra.mxu0 %v7502
        %8165 = vmatprep.subr.mxu0 %v7507
        %8166 = vmatpush1.msra.mxu0 %v7506
        %8167 = vmatprep.subr.mxu0 %v7511
        %8168 = vmatpush1.msra.mxu0 %v7510
        %8169 = vmatprep.subr.mxu0 %v7515
        %8170 = vmatpush1.msra.mxu0 %v7514
        %8171 = vmatprep.subr.mxu0 %v7519
        %8172 = vmatpush1.msra.mxu0 %v7518
        %8173 = vmatprep.subr.mxu0 %v7523
        %8174 = vmatpush1.msra.mxu0 %v7522
        %8175 = vmatprep.subr.mxu0 %v7527
        %8176 = vmatpush1.msra.mxu0 %v7526
        %8177 = vmatprep.subr.mxu0 %v7531
        %8178 = vmatpush1.msra.mxu0 %v7530
        %8179 = vmatprep.subr.mxu0 %v7535
        %8180 = vmatpush1.msra.mxu0 %v7534
        %8181 = vmatprep.subr.mxu0 %v7539
        %8182 = vmatpush1.msra.mxu0 %v7538
        %8183 = vmatprep.subr.mxu0 %v7543
        %8184 = vmatpush1.msra.mxu0 %v7542
        %8185 = vmatprep.subr.mxu0 %v7547
        %8186 = vmatpush1.msra.mxu0 %v7546
        %8187 = vmatprep.subr.mxu0 %v7551
        %8188 = vmatpush1.msra.mxu0 %v7550
        %8189 = vmatprep.subr.mxu0 %v7555
        %8190 = vmatpush1.msra.mxu0 %v7554
        %8191 = vmatprep.subr.mxu0 %v7559
        %8192 = vmatpush1.msra.mxu0 %v7558
        %8193 = vmatprep.subr.mxu0 %v7563
        %8194 = vmatpush1.msra.mxu0 %v7562
        %8195 = vmatprep.subr.mxu0 %v7567
        %8196 = vmatpush1.msra.mxu0 %v7566
        %8197 = vmatprep.subr.mxu0 %v7571
        %8198 = vmatpush1.msra.mxu0 %v7570
        %8199 = vmatprep.subr.mxu0 %v7575
        %8200 = vmatpush1.msra.mxu0 %v7574
        %8201 = vmatprep.subr.mxu0 %v7579
        %8202 = vmatpush1.msra.mxu0 %v7578
        %8203 = vmatprep.subr.mxu0 %v7583
        %8204 = vmatpush1.msra.mxu0 %v7582
        %8205 = vmatprep.subr.mxu0 %v7587
        %8206 = vmatpush1.msra.mxu0 %v7586
        %8207 = vmatprep.subr.mxu0 %v7591
        %8208 = vmatpush1.msra.mxu0 %v7590
        %8209 = vmatprep.subr.mxu0 %v7595
        %8210 = vmatpush1.msra.mxu0 %v7594
        %8211 = vmatprep.subr.mxu0 %v7599
        %8212 = vmatpush1.msra.mxu0 %v7598
        %8213 = vmatprep.subr.mxu0 %v7603
        %8214 = vmatpush1.msra.mxu0 %v7602
        %8215 = vmatprep.subr.mxu0 %v7607
        %8216 = vmatpush1.msra.mxu0 %v7606
        %8217 = vmatprep.subr.mxu0 %v7611
        %8218 = vmatpush1.msra.mxu0 %v7610
        %8219 = vmatprep.mubr.f32.mxu0 %v7475
        %8220 = vmatmul.mubr.f32.gmra.mrb[0].mxu0 %v7474
        %v8221 = vpop.f32.mrb[0].mxu0
        %v8222 = vadd.f32 %v7994, %v8221
        %v8223 = vpop.f32.mrb[0].mxu0
        %v8224 = vadd.f32 %v7996, %v8223
        %8225 = vdwg.mxu0
        %8226 = vmatprep.subr.mxu0 %v7615
        %8227 = vmatpush1.msra.mxu0 %v7614
        %8228 = vmatprep.subr.mxu0 %v7619
        %8229 = vmatpush1.msra.mxu0 %v7618
        %8230 = vmatprep.subr.mxu0 %v7623
        %8231 = vmatpush1.msra.mxu0 %v7622
        %8232 = vmatprep.subr.mxu0 %v7627
        %8233 = vmatpush1.msra.mxu0 %v7626
        %8234 = vmatprep.subr.mxu0 %v7631
        %8235 = vmatpush1.msra.mxu0 %v7630
        %8236 = vmatprep.subr.mxu0 %v7635
        %8237 = vmatpush1.msra.mxu0 %v7634
        %8238 = vmatprep.subr.mxu0 %v7639
        %8239 = vmatpush1.msra.mxu0 %v7638
        %8240 = vmatprep.subr.mxu0 %v7643
        %8241 = vmatpush1.msra.mxu0 %v7642
        %8242 = vmatprep.subr.mxu0 %v7647
        %8243 = vmatpush1.msra.mxu0 %v7646
        %8244 = vmatprep.subr.mxu0 %v7651
        %8245 = vmatpush1.msra.mxu0 %v7650
        %8246 = vmatprep.subr.mxu0 %v7655
        %8247 = vmatpush1.msra.mxu0 %v7654
        %8248 = vmatprep.subr.mxu0 %v8147
        %8249 = vmatpush1.msra.mxu0 %v8144
        %8250 = vmatprep.subr.mxu0 0.0
        %8251 = vmatpush1.msra.mxu0 0.0
        %8252 = vmatprep.subr.mxu0 0.0
        %8253 = vmatpush1.msra.mxu0 0.0
        %8254 = vmatprep.subr.mxu0 0.0
        %8255 = vmatpush1.msra.mxu0 0.0
        %8256 = vmatprep.subr.mxu0 0.0
        %8257 = vmatpush1.msra.mxu0 0.0
        %8258 = vmatprep.subr.mxu0 0.0
        %8259 = vmatpush1.msra.mxu0 0.0
        %8260 = vmatprep.subr.mxu0 0.0
        %8261 = vmatpush1.msra.mxu0 0.0
        %8262 = vmatprep.subr.mxu0 0.0
        %8263 = vmatpush1.msra.mxu0 0.0
        %8264 = vmatprep.subr.mxu0 0.0
        %8265 = vmatpush1.msra.mxu0 0.0
        %8266 = vmatprep.subr.mxu0 0.0
        %8267 = vmatpush1.msra.mxu0 0.0
        %8268 = vmatprep.subr.mxu0 0.0
        %8269 = vmatpush1.msra.mxu0 0.0
        %8270 = vmatprep.subr.mxu0 0.0
        %8271 = vmatpush1.msra.mxu0 0.0
        %8272 = vmatprep.subr.mxu0 0.0
        %8273 = vmatpush1.msra.mxu0 0.0
        %8274 = vmatprep.subr.mxu0 0.0
        %8275 = vmatpush1.msra.mxu0 0.0
        %8276 = vmatprep.subr.mxu0 0.0
        %8277 = vmatpush1.msra.mxu0 0.0
        %8278 = vmatprep.subr.mxu0 0.0
        %8279 = vmatpush1.msra.mxu0 0.0
        %8280 = vmatprep.subr.mxu0 0.0
        %8281 = vmatpush1.msra.mxu0 0.0
        %8282 = vmatprep.subr.mxu0 0.0
        %8283 = vmatpush1.msra.mxu0 0.0
        %8284 = vmatprep.subr.mxu0 0.0
        %8285 = vmatpush1.msra.mxu0 0.0
        %8286 = vmatprep.subr.mxu0 0.0
        %8287 = vmatpush1.msra.mxu0 0.0
        %8288 = vmatprep.subr.mxu0 0.0
        %8289 = vmatpush1.msra.mxu0 0.0
        %8290 = vmatprep.mubr.f32.mxu0 0.0
        %8291 = vmatmul.mubr.f32.gmra.mrb[0].mxu0 %v8141
        %v8292 = vpop.f32.mrb[0].mxu0
        %v8293 = vadd.f32 %v8222, %v8292
        %v8294 = vpop.f32.mrb[0].mxu0
        %v8295 = vadd.f32 %v8224, %v8294
        %8296 = vdwg.mxu0
        %8297 = vmatprep.subr.mxu0 %v7489
        %8298 = vmatpush1.msra.mxu0 %v7488
        %8299 = vmatprep.subr.mxu0 %v7493
        %8300 = vmatpush1.msra.mxu0 %v7492
        %8301 = vmatprep.subr.mxu0 %v7497
        %8302 = vmatpush1.msra.mxu0 %v7496
        %8303 = vmatprep.subr.mxu0 %v7501
        %8304 = vmatpush1.msra.mxu0 %v7500
        %8305 = vmatprep.subr.mxu0 %v7505
        %8306 = vmatpush1.msra.mxu0 %v7504
        %8307 = vmatprep.subr.mxu0 %v7509
        %8308 = vmatpush1.msra.mxu0 %v7508
        %8309 = vmatprep.subr.mxu0 %v7513
        %8310 = vmatpush1.msra.mxu0 %v7512
        %8311 = vmatprep.subr.mxu0 %v7517
        %8312 = vmatpush1.msra.mxu0 %v7516
        %8313 = vmatprep.subr.mxu0 %v7521
        %8314 = vmatpush1.msra.mxu0 %v7520
        %8315 = vmatprep.subr.mxu0 %v7525
        %8316 = vmatpush1.msra.mxu0 %v7524
        %8317 = vmatprep.subr.mxu0 %v7529
        %8318 = vmatpush1.msra.mxu0 %v7528
        %8319 = vmatprep.subr.mxu0 %v7533
        %8320 = vmatpush1.msra.mxu0 %v7532
        %8321 = vmatprep.subr.mxu0 %v7537
        %8322 = vmatpush1.msra.mxu0 %v7536
        %8323 = vmatprep.subr.mxu0 %v7541
        %8324 = vmatpush1.msra.mxu0 %v7540
        %8325 = vmatprep.subr.mxu0 %v7545
        %8326 = vmatpush1.msra.mxu0 %v7544
        %8327 = vmatprep.subr.mxu0 %v7549
        %8328 = vmatpush1.msra.mxu0 %v7548
        %8329 = vmatprep.subr.mxu0 %v7553
        %8330 = vmatpush1.msra.mxu0 %v7552
        %8331 = vmatprep.subr.mxu0 %v7557
        %8332 = vmatpush1.msra.mxu0 %v7556
        %8333 = vmatprep.subr.mxu0 %v7561
        %8334 = vmatpush1.msra.mxu0 %v7560
        %8335 = vmatprep.subr.mxu0 %v7565
        %8336 = vmatpush1.msra.mxu0 %v7564
        %8337 = vmatprep.subr.mxu0 %v7569
        %8338 = vmatpush1.msra.mxu0 %v7568
        %8339 = vmatprep.subr.mxu0 %v7573
        %8340 = vmatpush1.msra.mxu0 %v7572
        %8341 = vmatprep.subr.mxu0 %v7577
        %8342 = vmatpush1.msra.mxu0 %v7576
        %8343 = vmatprep.subr.mxu0 %v7581
        %8344 = vmatpush1.msra.mxu0 %v7580
        %8345 = vmatprep.subr.mxu0 %v7585
        %8346 = vmatpush1.msra.mxu0 %v7584
        %8347 = vmatprep.subr.mxu0 %v7589
        %8348 = vmatpush1.msra.mxu0 %v7588
        %8349 = vmatprep.subr.mxu0 %v7593
        %8350 = vmatpush1.msra.mxu0 %v7592
        %8351 = vmatprep.subr.mxu0 %v7597
        %8352 = vmatpush1.msra.mxu0 %v7596
        %8353 = vmatprep.subr.mxu0 %v7601
        %8354 = vmatpush1.msra.mxu0 %v7600
        %8355 = vmatprep.subr.mxu0 %v7605
        %8356 = vmatpush1.msra.mxu0 %v7604
        %8357 = vmatprep.subr.mxu0 %v7609
        %8358 = vmatpush1.msra.mxu0 %v7608
        %8359 = vmatprep.subr.mxu0 %v7613
        %8360 = vmatpush1.msra.mxu0 %v7612
        %8361 = vmatprep.mubr.f32.mxu0 %v7475
        %8362 = vmatmul.mubr.f32.gmra.mrb[0].mxu0 %v7474
        %v8363 = vpop.f32.mrb[0].mxu0
        %v8364 = vadd.f32 %v8136, %v8363
        %v8365 = vpop.f32.mrb[0].mxu0
        %v8366 = vadd.f32 %v8138, %v8365
        %8367 = vdwg.mxu0
        %8368 = vmatprep.subr.mxu0 %v7617
        %8369 = vmatpush1.msra.mxu0 %v7616
        %8370 = vmatprep.subr.mxu0 %v7621
        %8371 = vmatpush1.msra.mxu0 %v7620
        %8372 = vmatprep.subr.mxu0 %v7625
        %8373 = vmatpush1.msra.mxu0 %v7624
        %8374 = vmatprep.subr.mxu0 %v7629
        %8375 = vmatpush1.msra.mxu0 %v7628
        %8376 = vmatprep.subr.mxu0 %v7633
        %8377 = vmatpush1.msra.mxu0 %v7632
        %8378 = vmatprep.subr.mxu0 %v7637
        %8379 = vmatpush1.msra.mxu0 %v7636
        %8380 = vmatprep.subr.mxu0 %v7641
        %8381 = vmatpush1.msra.mxu0 %v7640
        %8382 = vmatprep.subr.mxu0 %v7645
        %8383 = vmatpush1.msra.mxu0 %v7644
        %8384 = vmatprep.subr.mxu0 %v7649
        %8385 = vmatpush1.msra.mxu0 %v7648
        %8386 = vmatprep.subr.mxu0 %v7653
        %8387 = vmatpush1.msra.mxu0 %v7652
        %8388 = vmatprep.subr.mxu0 %v7657
        %8389 = vmatpush1.msra.mxu0 %v7656
        %8390 = vmatprep.subr.mxu0 %v8153
        %8391 = vmatpush1.msra.mxu0 %v8150
        %8392 = vmatprep.subr.mxu0 0.0
        %8393 = vmatpush1.msra.mxu0 0.0
        %8394 = vmatprep.subr.mxu0 0.0
        %8395 = vmatpush1.msra.mxu0 0.0
        %8396 = vmatprep.subr.mxu0 0.0
        %8397 = vmatpush1.msra.mxu0 0.0
        %8398 = vmatprep.subr.mxu0 0.0
        %8399 = vmatpush1.msra.mxu0 0.0
        %8400 = vmatprep.subr.mxu0 0.0
        %8401 = vmatpush1.msra.mxu0 0.0
        %8402 = vmatprep.subr.mxu0 0.0
        %8403 = vmatpush1.msra.mxu0 0.0
        %8404 = vmatprep.subr.mxu0 0.0
        %8405 = vmatpush1.msra.mxu0 0.0
        %8406 = vmatprep.subr.mxu0 0.0
        %8407 = vmatpush1.msra.mxu0 0.0
        %8408 = vmatprep.subr.mxu0 0.0
        %8409 = vmatpush1.msra.mxu0 0.0
        %8410 = vmatprep.subr.mxu0 0.0
        %8411 = vmatpush1.msra.mxu0 0.0
        %8412 = vmatprep.subr.mxu0 0.0
        %8413 = vmatpush1.msra.mxu0 0.0
        %8414 = vmatprep.subr.mxu0 0.0
        %8415 = vmatpush1.msra.mxu0 0.0
        %8416 = vmatprep.subr.mxu0 0.0
        %8417 = vmatpush1.msra.mxu0 0.0
        %8418 = vmatprep.subr.mxu0 0.0
        %8419 = vmatpush1.msra.mxu0 0.0
        %8420 = vmatprep.subr.mxu0 0.0
        %8421 = vmatpush1.msra.mxu0 0.0
        %8422 = vmatprep.subr.mxu0 0.0
        %8423 = vmatpush1.msra.mxu0 0.0
        %8424 = vmatprep.subr.mxu0 0.0
        %8425 = vmatpush1.msra.mxu0 0.0
        %8426 = vmatprep.subr.mxu0 0.0
        %8427 = vmatpush1.msra.mxu0 0.0
        %8428 = vmatprep.subr.mxu0 0.0
        %8429 = vmatpush1.msra.mxu0 0.0
        %8430 = vmatprep.subr.mxu0 0.0
        %8431 = vmatpush1.msra.mxu0 0.0
        %8432 = vmatprep.mubr.f32.mxu0 0.0
        %8433 = vmatmul.mubr.f32.gmra.mrb[0].mxu0 %v8141
        %v8434 = vpop.f32.mrb[0].mxu0
        %v8435 = vadd.f32 %v8364, %v8434
        %v8436 = vpop.f32.mrb[0].mxu0
        %v8437 = vadd.f32 %v8366, %v8436
        %8438 = vdwg.mxu0
        %s8439 = scalar_lea.vmem %s5, 2816
        %v8440 = vld [vmem:[%s8439] sm:$0xff]
        %v8441 = vld [vmem:[%s8439 + $0x8] sm:$0xff]
        %v8442 = vld [vmem:[%s8439 + $0x10] sm:$0xff]
        %v8443 = vld [vmem:[%s8439 + $0x18] sm:$0xff]
        %v8444 = vld [vmem:[%s8439 + $0x20] sm:$0xff]
        %v8445 = vld [vmem:[%s8439 + $0x28] sm:$0xff]
        %v8446 = vld [vmem:[%s8439 + $0x30] sm:$0xff]
        %v8447 = vld [vmem:[%s8439 + $0x38] sm:$0xff]
        %v8448 = vld [vmem:[%s8439 + $0x40] sm:$0xff]
        %v8449 = vld [vmem:[%s8439 + $0x48] sm:$0xff]
        %v8450 = vld [vmem:[%s8439 + $0x50] sm:$0xff]
        %v8451 = vld [vmem:[%s8439 + $0x58] sm:$0xff]
        %v8452 = vld [vmem:[%s8439 + $0x60] sm:$0xff]
        %v8453 = vld [vmem:[%s8439 + $0x68] sm:$0xff]
        %v8454 = vld [vmem:[%s8439 + $0x70] sm:$0xff]
        %v8455 = vld [vmem:[%s8439 + $0x78] sm:$0xff]
        %v8456 = vld [vmem:[%s8439 + $0x80] sm:$0xff]
        %v8457 = vld [vmem:[%s8439 + $0x88] sm:$0xff]
        %v8458 = vld [vmem:[%s8439 + $0x90] sm:$0xff]
        %v8459 = vld [vmem:[%s8439 + $0x98] sm:$0xff]
        %v8460 = vld [vmem:[%s8439 + $0xa0] sm:$0xff]
        %v8461 = vld [vmem:[%s8439 + $0xa8] sm:$0xff]
        %v8462 = vld [vmem:[%s8439 + $0xb0] sm:$0xff]
        %v8463 = vld [vmem:[%s8439 + $0xb8] sm:$0xff]
        %v8464 = vld [vmem:[%s8439 + $0xc0] sm:$0xff]
        %v8465 = vld [vmem:[%s8439 + $0xc8] sm:$0xff]
        %v8466 = vld [vmem:[%s8439 + $0xd0] sm:$0xff]
        %v8467 = vld [vmem:[%s8439 + $0xd8] sm:$0xff]
        %v8468 = vld [vmem:[%s8439 + $0xe0] sm:$0xff]
        %v8469 = vld [vmem:[%s8439 + $0xe8] sm:$0xff]
        %v8470 = vld [vmem:[%s8439 + $0xf0] sm:$0xff]
        %v8471 = vld [vmem:[%s8439 + $0xf8] sm:$0xff]
        %v8472 = vld [vmem:[%s8439 + $0x100] sm:$0xff]
        %v8473 = vld [vmem:[%s8439 + $0x108] sm:$0xff]
        %v8474 = vld [vmem:[%s8439 + $0x110] sm:$0xff]
        %v8475 = vld [vmem:[%s8439 + $0x118] sm:$0xff]
        %v8476 = vld [vmem:[%s8439 + $0x120] sm:$0xff]
        %v8477 = vld [vmem:[%s8439 + $0x128] sm:$0xff]
        %v8478 = vld [vmem:[%s8439 + $0x130] sm:$0xff]
        %v8479 = vld [vmem:[%s8439 + $0x138] sm:$0xff]
        %v8480 = vld [vmem:[%s8439 + $0x140] sm:$0xff]
        %v8481 = vld [vmem:[%s8439 + $0x148] sm:$0xff]
        %v8482 = vld [vmem:[%s8439 + $0x150] sm:$0xff]
        %v8483 = vld [vmem:[%s8439 + $0x158] sm:$0xff]
        %v8484 = vld [vmem:[%s8439 + $0x160] sm:$0xff]
        %v8485 = vld [vmem:[%s8439 + $0x168] sm:$0xff]
        %v8486 = vld [vmem:[%s8439 + $0x170] sm:$0xff]
        %v8487 = vld [vmem:[%s8439 + $0x178] sm:$0xff]
        %v8488 = vld [vmem:[%s8439 + $0x180] sm:$0xff]
        %v8489 = vld [vmem:[%s8439 + $0x188] sm:$0xff]
        %v8490 = vld [vmem:[%s8439 + $0x190] sm:$0xff]
        %v8491 = vld [vmem:[%s8439 + $0x198] sm:$0xff]
        %v8492 = vld [vmem:[%s8439 + $0x1a0] sm:$0xff]
        %v8493 = vld [vmem:[%s8439 + $0x1a8] sm:$0xff]
        %v8494 = vld [vmem:[%s8439 + $0x1b0] sm:$0xff]
        %v8495 = vld [vmem:[%s8439 + $0x1b8] sm:$0xff]
        %v8496 = vld [vmem:[%s8439 + $0x1c0] sm:$0xff]
        %v8497 = vld [vmem:[%s8439 + $0x1c8] sm:$0xff]
        %v8498 = vld [vmem:[%s8439 + $0x1d0] sm:$0xff]
        %v8499 = vld [vmem:[%s8439 + $0x1d8] sm:$0xff]
        %v8500 = vld [vmem:[%s8439 + $0x1e0] sm:$0xff]
        %v8501 = vld [vmem:[%s8439 + $0x1e8] sm:$0xff]
        %v8502 = vld [vmem:[%s8439 + $0x1f0] sm:$0xff]
        %v8503 = vld [vmem:[%s8439 + $0x1f8] sm:$0xff]
        %v8504 = vld [vmem:[%s8439 + $0x200] sm:$0xff]
        %v8505 = vld [vmem:[%s8439 + $0x208] sm:$0xff]
        %v8506 = vld [vmem:[%s8439 + $0x210] sm:$0xff]
        %v8507 = vld [vmem:[%s8439 + $0x218] sm:$0xff]
        %v8508 = vld [vmem:[%s8439 + $0x220] sm:$0xff]
        %v8509 = vld [vmem:[%s8439 + $0x228] sm:$0xff]
        %v8510 = vld [vmem:[%s8439 + $0x230] sm:$0xff]
        %v8511 = vld [vmem:[%s8439 + $0x238] sm:$0xff]
        %v8512 = vld [vmem:[%s8439 + $0x240] sm:$0xff]
        %v8513 = vld [vmem:[%s8439 + $0x248] sm:$0xff]
        %v8514 = vld [vmem:[%s8439 + $0x250] sm:$0xff]
        %v8515 = vld [vmem:[%s8439 + $0x258] sm:$0xff]
        %v8516 = vld [vmem:[%s8439 + $0x260] sm:$0xff]
        %v8517 = vld [vmem:[%s8439 + $0x268] sm:$0xff]
        %v8518 = vld [vmem:[%s8439 + $0x270] sm:$0xff]
        %v8519 = vld [vmem:[%s8439 + $0x278] sm:$0xff]
        %v8520 = vld [vmem:[%s8439 + $0x280] sm:$0xff]
        %v8521 = vld [vmem:[%s8439 + $0x288] sm:$0xff]
        %v8522 = vld [vmem:[%s8439 + $0x290] sm:$0xff]
        %v8523 = vld [vmem:[%s8439 + $0x298] sm:$0xff]
        %v8524 = vld [vmem:[%s8439 + $0x2a0] sm:$0xff]
        %v8525 = vld [vmem:[%s8439 + $0x2a8] sm:$0xff]
        %v8526 = vld [vmem:[%s8439 + $0x2b0] sm:$0xff]
        %v8527 = vld [vmem:[%s8439 + $0x2b8] sm:$0xff]
        %v8528 = vld [vmem:[%s8439 + $0x2c0] sm:$0xff]
        %v8529 = vld [vmem:[%s8439 + $0x2c8] sm:$0xff]
        %v8530 = vld [vmem:[%s8439 + $0x2d0] sm:$0xff]
        %v8531 = vld [vmem:[%s8439 + $0x2d8] sm:$0xff]
        %v8532 = vld [vmem:[%s8439 + $0x2e0] sm:$0xff]
        %v8533 = vld [vmem:[%s8439 + $0x2e8] sm:$0xff]
        %v8534 = vld [vmem:[%s8439 + $0x2f0] sm:$0xff]
        %v8535 = vld [vmem:[%s8439 + $0x2f8] sm:$0xff]
        %v8536 = vld [vmem:[%s8439 + $0x300] sm:$0xff]
        %v8537 = vld [vmem:[%s8439 + $0x308] sm:$0xff]
        %v8538 = vld [vmem:[%s8439 + $0x310] sm:$0xff]
        %v8539 = vld [vmem:[%s8439 + $0x318] sm:$0xff]
        %v8540 = vld [vmem:[%s8439 + $0x320] sm:$0xff]
        %v8541 = vld [vmem:[%s8439 + $0x328] sm:$0xff]
        %v8542 = vld [vmem:[%s8439 + $0x330] sm:$0xff]
        %v8543 = vld [vmem:[%s8439 + $0x338] sm:$0xff]
        %v8544 = vld [vmem:[%s8439 + $0x340] sm:$0xff]
        %v8545 = vld [vmem:[%s8439 + $0x348] sm:$0xff]
        %v8546 = vld [vmem:[%s8439 + $0x350] sm:$0xff]
        %v8547 = vld [vmem:[%s8439 + $0x358] sm:$0xff]
        %v8548 = vld [vmem:[%s8439 + $0x360] sm:$0xff]
        %v8549 = vld [vmem:[%s8439 + $0x368] sm:$0xff]
        %v8550 = vld [vmem:[%s8439 + $0x370] sm:$0xff]
        %v8551 = vld [vmem:[%s8439 + $0x378] sm:$0xff]
        %v8552 = vld [vmem:[%s8439 + $0x380] sm:$0xff]
        %v8553 = vld [vmem:[%s8439 + $0x388] sm:$0xff]
        %v8554 = vld [vmem:[%s8439 + $0x390] sm:$0xff]
        %v8555 = vld [vmem:[%s8439 + $0x398] sm:$0xff]
        %v8556 = vld [vmem:[%s8439 + $0x3a0] sm:$0xff]
        %v8557 = vld [vmem:[%s8439 + $0x3a8] sm:$0xff]
        %v8558 = vld [vmem:[%s8439 + $0x3b0] sm:$0xff]
        %v8559 = vld [vmem:[%s8439 + $0x3b8] sm:$0xff]
        %v8560 = vld [vmem:[%s8439 + $0x3c0] sm:$0xff]
        %v8561 = vld [vmem:[%s8439 + $0x3c8] sm:$0xff]
        %v8562 = vld [vmem:[%s8439 + $0x3d0] sm:$0xff]
        %v8563 = vld [vmem:[%s8439 + $0x3d8] sm:$0xff]
        %v8564 = vld [vmem:[%s8439 + $0x3e0] sm:$0xff]
        %v8565 = vld [vmem:[%s8439 + $0x3e8] sm:$0xff]
        %v8566 = vld [vmem:[%s8439 + $0x3f0] sm:$0xff]
        %v8567 = vld [vmem:[%s8439 + $0x3f8] sm:$0xff]
        %v8568 = vld [vmem:[%s8439 + $0x400] sm:$0xff]
        %v8569 = vld [vmem:[%s8439 + $0x408] sm:$0xff]
        %v8570 = vld [vmem:[%s8439 + $0x410] sm:$0xff]
        %v8571 = vld [vmem:[%s8439 + $0x418] sm:$0xff]
        %v8572 = vld [vmem:[%s8439 + $0x420] sm:$0xff]
        %v8573 = vld [vmem:[%s8439 + $0x428] sm:$0xff]
        %v8574 = vld [vmem:[%s8439 + $0x430] sm:$0xff]
        %v8575 = vld [vmem:[%s8439 + $0x438] sm:$0xff]
        %v8576 = vld [vmem:[%s8439 + $0x440] sm:$0xff]
        %v8577 = vld [vmem:[%s8439 + $0x448] sm:$0xff]
        %v8578 = vld [vmem:[%s8439 + $0x450] sm:$0xff]
        %v8579 = vld [vmem:[%s8439 + $0x458] sm:$0xff]
        %v8580 = vld [vmem:[%s8439 + $0x460] sm:$0xff]
        %v8581 = vld [vmem:[%s8439 + $0x468] sm:$0xff]
        %v8582 = vld [vmem:[%s8439 + $0x470] sm:$0xff]
        %v8583 = vld [vmem:[%s8439 + $0x478] sm:$0xff]
        %v8584 = vld [vmem:[%s8439 + $0x480] sm:$0xff]
        %v8585 = vld [vmem:[%s8439 + $0x488] sm:$0xff]
        %v8586 = vld [vmem:[%s8439 + $0x490] sm:$0xff]
        %v8587 = vld [vmem:[%s8439 + $0x498] sm:$0xff]
        %v8588 = vld [vmem:[%s8439 + $0x4a0] sm:$0xff]
        %v8589 = vld [vmem:[%s8439 + $0x4a8] sm:$0xff]
        %v8590 = vld [vmem:[%s8439 + $0x4b0] sm:$0xff]
        %v8591 = vld [vmem:[%s8439 + $0x4b8] sm:$0xff]
        %v8592 = vld [vmem:[%s8439 + $0x4c0] sm:$0xff]
        %v8593 = vld [vmem:[%s8439 + $0x4c8] sm:$0xff]
        %v8594 = vld [vmem:[%s8439 + $0x4d0] sm:$0xff]
        %v8595 = vld [vmem:[%s8439 + $0x4d8] sm:$0xff]
        %v8596 = vld [vmem:[%s8439 + $0x4e0] sm:$0xff]
        %v8597 = vld [vmem:[%s8439 + $0x4e8] sm:$0xff]
        %v8598 = vld [vmem:[%s8439 + $0x4f0] sm:$0xff]
        %v8599 = vld [vmem:[%s8439 + $0x4f8] sm:$0xff]
        %v8600 = vld [vmem:[%s8439 + $0x500] sm:$0xff]
        %v8601 = vld [vmem:[%s8439 + $0x508] sm:$0xff]
        %v8602 = vld [vmem:[%s8439 + $0x510] sm:$0xff]
        %v8603 = vld [vmem:[%s8439 + $0x518] sm:$0xff]
        %v8604 = vld [vmem:[%s8439 + $0x520] sm:$0xff]
        %v8605 = vld [vmem:[%s8439 + $0x528] sm:$0xff]
        %v8606 = vld [vmem:[%s8439 + $0x530] sm:$0xff]
        %v8607 = vld [vmem:[%s8439 + $0x538] sm:$0xff]
        %v8608 = vld [vmem:[%s8439 + $0x540] sm:$0xff]
        %v8609 = vld [vmem:[%s8439 + $0x548] sm:$0xff]
        %v8610 = vld [vmem:[%s8439 + $0x550] sm:$0xff]
        %v8611 = vld [vmem:[%s8439 + $0x558] sm:$0xff]
        %v8612 = vld [vmem:[%s8439 + $0x560] sm:$0x3f]
        %v8613 = vld [vmem:[%s8439 + $0x568] sm:$0x3f]
        %v8614 = vld [vmem:[%s8439 + $0x570] sm:$0x3f]
        %v8615 = vld [vmem:[%s8439 + $0x578] sm:$0x3f]
        %v8617 = vsel %vm7839, %v7482, 0
        %v8620 = vsel %vm7843, %v8612, 0
        %v8623 = vsel %vm7843, %v8613, 0
        %v8626 = vsel %vm7843, %v8614, 0
        %v8629 = vsel %vm7843, %v8615, 0
        %8631 = vmatprep.subr.mxu0 %v8441
        %8632 = vmatpush1.msra.mxu0 %v8440
        %8633 = vmatprep.subr.mxu0 %v8445
        %8634 = vmatpush1.msra.mxu0 %v8444
        %8635 = vmatprep.subr.mxu0 %v8449
        %8636 = vmatpush1.msra.mxu0 %v8448
        %8637 = vmatprep.subr.mxu0 %v8453
        %8638 = vmatpush1.msra.mxu0 %v8452
        %8639 = vmatprep.subr.mxu0 %v8457
        %8640 = vmatpush1.msra.mxu0 %v8456
        %8641 = vmatprep.subr.mxu0 %v8461
        %8642 = vmatpush1.msra.mxu0 %v8460
        %8643 = vmatprep.subr.mxu0 %v8465
        %8644 = vmatpush1.msra.mxu0 %v8464
        %8645 = vmatprep.subr.mxu0 %v8469
        %8646 = vmatpush1.msra.mxu0 %v8468
        %8647 = vmatprep.subr.mxu0 %v8473
        %8648 = vmatpush1.msra.mxu0 %v8472
        %8649 = vmatprep.subr.mxu0 %v8477
        %8650 = vmatpush1.msra.mxu0 %v8476
        %8651 = vmatprep.subr.mxu0 %v8481
        %8652 = vmatpush1.msra.mxu0 %v8480
        %8653 = vmatprep.subr.mxu0 %v8485
        %8654 = vmatpush1.msra.mxu0 %v8484
        %8655 = vmatprep.subr.mxu0 %v8489
        %8656 = vmatpush1.msra.mxu0 %v8488
        %8657 = vmatprep.subr.mxu0 %v8493
        %8658 = vmatpush1.msra.mxu0 %v8492
        %8659 = vmatprep.subr.mxu0 %v8497
        %8660 = vmatpush1.msra.mxu0 %v8496
        %8661 = vmatprep.subr.mxu0 %v8501
        %8662 = vmatpush1.msra.mxu0 %v8500
        %8663 = vmatprep.subr.mxu0 %v8505
        %8664 = vmatpush1.msra.mxu0 %v8504
        %8665 = vmatprep.subr.mxu0 %v8509
        %8666 = vmatpush1.msra.mxu0 %v8508
        %8667 = vmatprep.subr.mxu0 %v8513
        %8668 = vmatpush1.msra.mxu0 %v8512
        %8669 = vmatprep.subr.mxu0 %v8517
        %8670 = vmatpush1.msra.mxu0 %v8516
        %8671 = vmatprep.subr.mxu0 %v8521
        %8672 = vmatpush1.msra.mxu0 %v8520
        %8673 = vmatprep.subr.mxu0 %v8525
        %8674 = vmatpush1.msra.mxu0 %v8524
        %8675 = vmatprep.subr.mxu0 %v8529
        %8676 = vmatpush1.msra.mxu0 %v8528
        %8677 = vmatprep.subr.mxu0 %v8533
        %8678 = vmatpush1.msra.mxu0 %v8532
        %8679 = vmatprep.subr.mxu0 %v8537
        %8680 = vmatpush1.msra.mxu0 %v8536
        %8681 = vmatprep.subr.mxu0 %v8541
        %8682 = vmatpush1.msra.mxu0 %v8540
        %8683 = vmatprep.subr.mxu0 %v8545
        %8684 = vmatpush1.msra.mxu0 %v8544
        %8685 = vmatprep.subr.mxu0 %v8549
        %8686 = vmatpush1.msra.mxu0 %v8548
        %8687 = vmatprep.subr.mxu0 %v8553
        %8688 = vmatpush1.msra.mxu0 %v8552
        %8689 = vmatprep.subr.mxu0 %v8557
        %8690 = vmatpush1.msra.mxu0 %v8556
        %8691 = vmatprep.subr.mxu0 %v8561
        %8692 = vmatpush1.msra.mxu0 %v8560
        %8693 = vmatprep.subr.mxu0 %v8565
        %8694 = vmatpush1.msra.mxu0 %v8564
        %8695 = vmatprep.mubr.f32.mxu0 %v7481
        %8696 = vmatmul.mubr.f32.gmra.mrb[0].mxu0 %v7480
        %v8697 = vpop.f32.mrb[0].mxu0
        %v8698 = vadd.f32 0.0, %v8697
        %v8699 = vpop.f32.mrb[0].mxu0
        %v8700 = vadd.f32 0.0, %v8699
        %8701 = vdwg.mxu0
        %8702 = vmatprep.subr.mxu0 %v8569
        %8703 = vmatpush1.msra.mxu0 %v8568
        %8704 = vmatprep.subr.mxu0 %v8573
        %8705 = vmatpush1.msra.mxu0 %v8572
        %8706 = vmatprep.subr.mxu0 %v8577
        %8707 = vmatpush1.msra.mxu0 %v8576
        %8708 = vmatprep.subr.mxu0 %v8581
        %8709 = vmatpush1.msra.mxu0 %v8580
        %8710 = vmatprep.subr.mxu0 %v8585
        %8711 = vmatpush1.msra.mxu0 %v8584
        %8712 = vmatprep.subr.mxu0 %v8589
        %8713 = vmatpush1.msra.mxu0 %v8588
        %8714 = vmatprep.subr.mxu0 %v8593
        %8715 = vmatpush1.msra.mxu0 %v8592
        %8716 = vmatprep.subr.mxu0 %v8597
        %8717 = vmatpush1.msra.mxu0 %v8596
        %8718 = vmatprep.subr.mxu0 %v8601
        %8719 = vmatpush1.msra.mxu0 %v8600
        %8720 = vmatprep.subr.mxu0 %v8605
        %8721 = vmatpush1.msra.mxu0 %v8604
        %8722 = vmatprep.subr.mxu0 %v8609
        %8723 = vmatpush1.msra.mxu0 %v8608
        %8724 = vmatprep.subr.mxu0 %v8623
        %8725 = vmatpush1.msra.mxu0 %v8620
        %8726 = vmatprep.subr.mxu0 0.0
        %8727 = vmatpush1.msra.mxu0 0.0
        %8728 = vmatprep.subr.mxu0 0.0
        %8729 = vmatpush1.msra.mxu0 0.0
        %8730 = vmatprep.subr.mxu0 0.0
        %8731 = vmatpush1.msra.mxu0 0.0
        %8732 = vmatprep.subr.mxu0 0.0
        %8733 = vmatpush1.msra.mxu0 0.0
        %8734 = vmatprep.subr.mxu0 0.0
        %8735 = vmatpush1.msra.mxu0 0.0
        %8736 = vmatprep.subr.mxu0 0.0
        %8737 = vmatpush1.msra.mxu0 0.0
        %8738 = vmatprep.subr.mxu0 0.0
        %8739 = vmatpush1.msra.mxu0 0.0
        %8740 = vmatprep.subr.mxu0 0.0
        %8741 = vmatpush1.msra.mxu0 0.0
        %8742 = vmatprep.subr.mxu0 0.0
        %8743 = vmatpush1.msra.mxu0 0.0
        %8744 = vmatprep.subr.mxu0 0.0
        %8745 = vmatpush1.msra.mxu0 0.0
        %8746 = vmatprep.subr.mxu0 0.0
        %8747 = vmatpush1.msra.mxu0 0.0
        %8748 = vmatprep.subr.mxu0 0.0
        %8749 = vmatpush1.msra.mxu0 0.0
        %8750 = vmatprep.subr.mxu0 0.0
        %8751 = vmatpush1.msra.mxu0 0.0
        %8752 = vmatprep.subr.mxu0 0.0
        %8753 = vmatpush1.msra.mxu0 0.0
        %8754 = vmatprep.subr.mxu0 0.0
        %8755 = vmatpush1.msra.mxu0 0.0
        %8756 = vmatprep.subr.mxu0 0.0
        %8757 = vmatpush1.msra.mxu0 0.0
        %8758 = vmatprep.subr.mxu0 0.0
        %8759 = vmatpush1.msra.mxu0 0.0
        %8760 = vmatprep.subr.mxu0 0.0
        %8761 = vmatpush1.msra.mxu0 0.0
        %8762 = vmatprep.subr.mxu0 0.0
        %8763 = vmatpush1.msra.mxu0 0.0
        %8764 = vmatprep.subr.mxu0 0.0
        %8765 = vmatpush1.msra.mxu0 0.0
        %8766 = vmatprep.mubr.f32.mxu0 0.0
        %8767 = vmatmul.mubr.f32.gmra.mrb[0].mxu0 %v8617
        %v8768 = vpop.f32.mrb[0].mxu0
        %v8769 = vadd.f32 %v8698, %v8768
        %v8770 = vpop.f32.mrb[0].mxu0
        %v8771 = vadd.f32 %v8700, %v8770
        %8772 = vdwg.mxu0
        %8773 = vmatprep.subr.mxu0 %v8443
        %8774 = vmatpush1.msra.mxu0 %v8442
        %8775 = vmatprep.subr.mxu0 %v8447
        %8776 = vmatpush1.msra.mxu0 %v8446
        %8777 = vmatprep.subr.mxu0 %v8451
        %8778 = vmatpush1.msra.mxu0 %v8450
        %8779 = vmatprep.subr.mxu0 %v8455
        %8780 = vmatpush1.msra.mxu0 %v8454
        %8781 = vmatprep.subr.mxu0 %v8459
        %8782 = vmatpush1.msra.mxu0 %v8458
        %8783 = vmatprep.subr.mxu0 %v8463
        %8784 = vmatpush1.msra.mxu0 %v8462
        %8785 = vmatprep.subr.mxu0 %v8467
        %8786 = vmatpush1.msra.mxu0 %v8466
        %8787 = vmatprep.subr.mxu0 %v8471
        %8788 = vmatpush1.msra.mxu0 %v8470
        %8789 = vmatprep.subr.mxu0 %v8475
        %8790 = vmatpush1.msra.mxu0 %v8474
        %8791 = vmatprep.subr.mxu0 %v8479
        %8792 = vmatpush1.msra.mxu0 %v8478
        %8793 = vmatprep.subr.mxu0 %v8483
        %8794 = vmatpush1.msra.mxu0 %v8482
        %8795 = vmatprep.subr.mxu0 %v8487
        %8796 = vmatpush1.msra.mxu0 %v8486
        %8797 = vmatprep.subr.mxu0 %v8491
        %8798 = vmatpush1.msra.mxu0 %v8490
        %8799 = vmatprep.subr.mxu0 %v8495
        %8800 = vmatpush1.msra.mxu0 %v8494
        %8801 = vmatprep.subr.mxu0 %v8499
        %8802 = vmatpush1.msra.mxu0 %v8498
        %8803 = vmatprep.subr.mxu0 %v8503
        %8804 = vmatpush1.msra.mxu0 %v8502
        %8805 = vmatprep.subr.mxu0 %v8507
        %8806 = vmatpush1.msra.mxu0 %v8506
        %8807 = vmatprep.subr.mxu0 %v8511
        %8808 = vmatpush1.msra.mxu0 %v8510
        %8809 = vmatprep.subr.mxu0 %v8515
        %8810 = vmatpush1.msra.mxu0 %v8514
        %8811 = vmatprep.subr.mxu0 %v8519
        %8812 = vmatpush1.msra.mxu0 %v8518
        %8813 = vmatprep.subr.mxu0 %v8523
        %8814 = vmatpush1.msra.mxu0 %v8522
        %8815 = vmatprep.subr.mxu0 %v8527
        %8816 = vmatpush1.msra.mxu0 %v8526
        %8817 = vmatprep.subr.mxu0 %v8531
        %8818 = vmatpush1.msra.mxu0 %v8530
        %8819 = vmatprep.subr.mxu0 %v8535
        %8820 = vmatpush1.msra.mxu0 %v8534
        %8821 = vmatprep.subr.mxu0 %v8539
        %8822 = vmatpush1.msra.mxu0 %v8538
        %8823 = vmatprep.subr.mxu0 %v8543
        %8824 = vmatpush1.msra.mxu0 %v8542
        %8825 = vmatprep.subr.mxu0 %v8547
        %8826 = vmatpush1.msra.mxu0 %v8546
        %8827 = vmatprep.subr.mxu0 %v8551
        %8828 = vmatpush1.msra.mxu0 %v8550
        %8829 = vmatprep.subr.mxu0 %v8555
        %8830 = vmatpush1.msra.mxu0 %v8554
        %8831 = vmatprep.subr.mxu0 %v8559
        %8832 = vmatpush1.msra.mxu0 %v8558
        %8833 = vmatprep.subr.mxu0 %v8563
        %8834 = vmatpush1.msra.mxu0 %v8562
        %8835 = vmatprep.subr.mxu0 %v8567
        %8836 = vmatpush1.msra.mxu0 %v8566
        %8837 = vmatprep.mubr.f32.mxu0 %v7481
        %8838 = vmatmul.mubr.f32.gmra.mrb[0].mxu0 %v7480
        %v8839 = vpop.f32.mrb[0].mxu0
        %v8840 = vadd.f32 0.0, %v8839
        %v8841 = vpop.f32.mrb[0].mxu0
        %v8842 = vadd.f32 0.0, %v8841
        %8843 = vdwg.mxu0
        %8844 = vmatprep.subr.mxu0 %v8571
        %8845 = vmatpush1.msra.mxu0 %v8570
        %8846 = vmatprep.subr.mxu0 %v8575
        %8847 = vmatpush1.msra.mxu0 %v8574
        %8848 = vmatprep.subr.mxu0 %v8579
        %8849 = vmatpush1.msra.mxu0 %v8578
        %8850 = vmatprep.subr.mxu0 %v8583
        %8851 = vmatpush1.msra.mxu0 %v8582
        %8852 = vmatprep.subr.mxu0 %v8587
        %8853 = vmatpush1.msra.mxu0 %v8586
        %8854 = vmatprep.subr.mxu0 %v8591
        %8855 = vmatpush1.msra.mxu0 %v8590
        %8856 = vmatprep.subr.mxu0 %v8595
        %8857 = vmatpush1.msra.mxu0 %v8594
        %8858 = vmatprep.subr.mxu0 %v8599
        %8859 = vmatpush1.msra.mxu0 %v8598
        %8860 = vmatprep.subr.mxu0 %v8603
        %8861 = vmatpush1.msra.mxu0 %v8602
        %8862 = vmatprep.subr.mxu0 %v8607
        %8863 = vmatpush1.msra.mxu0 %v8606
        %8864 = vmatprep.subr.mxu0 %v8611
        %8865 = vmatpush1.msra.mxu0 %v8610
        %8866 = vmatprep.subr.mxu0 %v8629
        %8867 = vmatpush1.msra.mxu0 %v8626
        %8868 = vmatprep.subr.mxu0 0.0
        %8869 = vmatpush1.msra.mxu0 0.0
        %8870 = vmatprep.subr.mxu0 0.0
        %8871 = vmatpush1.msra.mxu0 0.0
        %8872 = vmatprep.subr.mxu0 0.0
        %8873 = vmatpush1.msra.mxu0 0.0
        %8874 = vmatprep.subr.mxu0 0.0
        %8875 = vmatpush1.msra.mxu0 0.0
        %8876 = vmatprep.subr.mxu0 0.0
        %8877 = vmatpush1.msra.mxu0 0.0
        %8878 = vmatprep.subr.mxu0 0.0
        %8879 = vmatpush1.msra.mxu0 0.0
        %8880 = vmatprep.subr.mxu0 0.0
        %8881 = vmatpush1.msra.mxu0 0.0
        %8882 = vmatprep.subr.mxu0 0.0
        %8883 = vmatpush1.msra.mxu0 0.0
        %8884 = vmatprep.subr.mxu0 0.0
        %8885 = vmatpush1.msra.mxu0 0.0
        %8886 = vmatprep.subr.mxu0 0.0
        %8887 = vmatpush1.msra.mxu0 0.0
        %8888 = vmatprep.subr.mxu0 0.0
        %8889 = vmatpush1.msra.mxu0 0.0
        %8890 = vmatprep.subr.mxu0 0.0
        %8891 = vmatpush1.msra.mxu0 0.0
        %8892 = vmatprep.subr.mxu0 0.0
        %8893 = vmatpush1.msra.mxu0 0.0
        %8894 = vmatprep.subr.mxu0 0.0
        %8895 = vmatpush1.msra.mxu0 0.0
        %8896 = vmatprep.subr.mxu0 0.0
        %8897 = vmatpush1.msra.mxu0 0.0
        %8898 = vmatprep.subr.mxu0 0.0
        %8899 = vmatpush1.msra.mxu0 0.0
        %8900 = vmatprep.subr.mxu0 0.0
        %8901 = vmatpush1.msra.mxu0 0.0
        %8902 = vmatprep.subr.mxu0 0.0
        %8903 = vmatpush1.msra.mxu0 0.0
        %8904 = vmatprep.subr.mxu0 0.0
        %8905 = vmatpush1.msra.mxu0 0.0
        %8906 = vmatprep.subr.mxu0 0.0
        %8907 = vmatpush1.msra.mxu0 0.0
        %8908 = vmatprep.mubr.f32.mxu0 0.0
        %8909 = vmatmul.mubr.f32.gmra.mrb[0].mxu0 %v8617
        %v8910 = vpop.f32.mrb[0].mxu0
        %v8911 = vadd.f32 %v8840, %v8910
        %v8912 = vpop.f32.mrb[0].mxu0
        %v8913 = vadd.f32 %v8842, %v8912
        %8914 = vdwg.mxu0
        %v8915 = vadd.f32 %v8293, %v8769
        %v8916 = vadd.f32 %v8295, %v8771
        %v8917 = vadd.f32 %v8435, %v8911
        %v8918 = vadd.f32 %v8437, %v8913
        %s8919 = scalar_lea.vmem %s5, 4224
        %v8920 = vld [vmem:[%s8919] sm:$0xff]
        %v8921 = vld [vmem:[%s8919 + $0x8] sm:$0xff]
        %v8922 = vld [vmem:[%s8919 + $0x10] sm:$0xff]
        %v8923 = vld [vmem:[%s8919 + $0x18] sm:$0xff]
        %v8924 = vld [vmem:[%s8919 + $0x20] sm:$0xff]
        %v8925 = vld [vmem:[%s8919 + $0x28] sm:$0xff]
        %v8926 = vld [vmem:[%s8919 + $0x30] sm:$0xff]
        %v8927 = vld [vmem:[%s8919 + $0x38] sm:$0xff]
        %v8928 = vld [vmem:[%s8919 + $0x40] sm:$0xff]
        %v8929 = vld [vmem:[%s8919 + $0x48] sm:$0xff]
        %v8930 = vld [vmem:[%s8919 + $0x50] sm:$0xff]
        %v8931 = vld [vmem:[%s8919 + $0x58] sm:$0xff]
        %v8932 = vld [vmem:[%s8919 + $0x60] sm:$0xff]
        %v8933 = vld [vmem:[%s8919 + $0x68] sm:$0xff]
        %v8934 = vld [vmem:[%s8919 + $0x70] sm:$0xff]
        %v8935 = vld [vmem:[%s8919 + $0x78] sm:$0xff]
        %v8936 = vld [vmem:[%s8919 + $0x80] sm:$0xff]
        %v8937 = vld [vmem:[%s8919 + $0x88] sm:$0xff]
        %v8938 = vld [vmem:[%s8919 + $0x90] sm:$0xff]
        %v8939 = vld [vmem:[%s8919 + $0x98] sm:$0xff]
        %v8940 = vld [vmem:[%s8919 + $0xa0] sm:$0xff]
        %v8941 = vld [vmem:[%s8919 + $0xa8] sm:$0xff]
        %v8942 = vld [vmem:[%s8919 + $0xb0] sm:$0xff]
        %v8943 = vld [vmem:[%s8919 + $0xb8] sm:$0xff]
        %v8944 = vld [vmem:[%s8919 + $0xc0] sm:$0xff]
        %v8945 = vld [vmem:[%s8919 + $0xc8] sm:$0xff]
        %v8946 = vld [vmem:[%s8919 + $0xd0] sm:$0xff]
        %v8947 = vld [vmem:[%s8919 + $0xd8] sm:$0xff]
        %v8948 = vld [vmem:[%s8919 + $0xe0] sm:$0xff]
        %v8949 = vld [vmem:[%s8919 + $0xe8] sm:$0xff]
        %v8950 = vld [vmem:[%s8919 + $0xf0] sm:$0xff]
        %v8951 = vld [vmem:[%s8919 + $0xf8] sm:$0xff]
        %v8952 = vld [vmem:[%s8919 + $0x100] sm:$0xff]
        %v8953 = vld [vmem:[%s8919 + $0x108] sm:$0xff]
        %v8954 = vld [vmem:[%s8919 + $0x110] sm:$0xff]
        %v8955 = vld [vmem:[%s8919 + $0x118] sm:$0xff]
        %v8956 = vld [vmem:[%s8919 + $0x120] sm:$0xff]
        %v8957 = vld [vmem:[%s8919 + $0x128] sm:$0xff]
        %v8958 = vld [vmem:[%s8919 + $0x130] sm:$0xff]
        %v8959 = vld [vmem:[%s8919 + $0x138] sm:$0xff]
        %v8960 = vld [vmem:[%s8919 + $0x140] sm:$0xff]
        %v8961 = vld [vmem:[%s8919 + $0x148] sm:$0xff]
        %v8962 = vld [vmem:[%s8919 + $0x150] sm:$0xff]
        %v8963 = vld [vmem:[%s8919 + $0x158] sm:$0xff]
        %v8964 = vld [vmem:[%s8919 + $0x160] sm:$0xff]
        %v8965 = vld [vmem:[%s8919 + $0x168] sm:$0xff]
        %v8966 = vld [vmem:[%s8919 + $0x170] sm:$0xff]
        %v8967 = vld [vmem:[%s8919 + $0x178] sm:$0xff]
        %v8968 = vld [vmem:[%s8919 + $0x180] sm:$0xff]
        %v8969 = vld [vmem:[%s8919 + $0x188] sm:$0xff]
        %v8970 = vld [vmem:[%s8919 + $0x190] sm:$0xff]
        %v8971 = vld [vmem:[%s8919 + $0x198] sm:$0xff]
        %v8972 = vld [vmem:[%s8919 + $0x1a0] sm:$0xff]
        %v8973 = vld [vmem:[%s8919 + $0x1a8] sm:$0xff]
        %v8974 = vld [vmem:[%s8919 + $0x1b0] sm:$0xff]
        %v8975 = vld [vmem:[%s8919 + $0x1b8] sm:$0xff]
        %v8976 = vld [vmem:[%s8919 + $0x1c0] sm:$0xff]
        %v8977 = vld [vmem:[%s8919 + $0x1c8] sm:$0xff]
        %v8978 = vld [vmem:[%s8919 + $0x1d0] sm:$0xff]
        %v8979 = vld [vmem:[%s8919 + $0x1d8] sm:$0xff]
        %v8980 = vld [vmem:[%s8919 + $0x1e0] sm:$0xff]
        %v8981 = vld [vmem:[%s8919 + $0x1e8] sm:$0xff]
        %v8982 = vld [vmem:[%s8919 + $0x1f0] sm:$0xff]
        %v8983 = vld [vmem:[%s8919 + $0x1f8] sm:$0xff]
        %v8984 = vld [vmem:[%s8919 + $0x200] sm:$0xff]
        %v8985 = vld [vmem:[%s8919 + $0x208] sm:$0xff]
        %v8986 = vld [vmem:[%s8919 + $0x210] sm:$0xff]
        %v8987 = vld [vmem:[%s8919 + $0x218] sm:$0xff]
        %v8988 = vld [vmem:[%s8919 + $0x220] sm:$0xff]
        %v8989 = vld [vmem:[%s8919 + $0x228] sm:$0xff]
        %v8990 = vld [vmem:[%s8919 + $0x230] sm:$0xff]
        %v8991 = vld [vmem:[%s8919 + $0x238] sm:$0xff]
        %v8992 = vld [vmem:[%s8919 + $0x240] sm:$0xff]
        %v8993 = vld [vmem:[%s8919 + $0x248] sm:$0xff]
        %v8994 = vld [vmem:[%s8919 + $0x250] sm:$0xff]
        %v8995 = vld [vmem:[%s8919 + $0x258] sm:$0xff]
        %v8996 = vld [vmem:[%s8919 + $0x260] sm:$0xff]
        %v8997 = vld [vmem:[%s8919 + $0x268] sm:$0xff]
        %v8998 = vld [vmem:[%s8919 + $0x270] sm:$0xff]
        %v8999 = vld [vmem:[%s8919 + $0x278] sm:$0xff]
        %v9000 = vld [vmem:[%s8919 + $0x280] sm:$0xff]
        %v9001 = vld [vmem:[%s8919 + $0x288] sm:$0xff]
        %v9002 = vld [vmem:[%s8919 + $0x290] sm:$0xff]
        %v9003 = vld [vmem:[%s8919 + $0x298] sm:$0xff]
        %v9004 = vld [vmem:[%s8919 + $0x2a0] sm:$0xff]
        %v9005 = vld [vmem:[%s8919 + $0x2a8] sm:$0xff]
        %v9006 = vld [vmem:[%s8919 + $0x2b0] sm:$0xff]
        %v9007 = vld [vmem:[%s8919 + $0x2b8] sm:$0xff]
        %v9008 = vld [vmem:[%s8919 + $0x2c0] sm:$0xff]
        %v9009 = vld [vmem:[%s8919 + $0x2c8] sm:$0xff]
        %v9010 = vld [vmem:[%s8919 + $0x2d0] sm:$0xff]
        %v9011 = vld [vmem:[%s8919 + $0x2d8] sm:$0xff]
        %v9012 = vld [vmem:[%s8919 + $0x2e0] sm:$0xff]
        %v9013 = vld [vmem:[%s8919 + $0x2e8] sm:$0xff]
        %v9014 = vld [vmem:[%s8919 + $0x2f0] sm:$0xff]
        %v9015 = vld [vmem:[%s8919 + $0x2f8] sm:$0xff]
        %v9016 = vld [vmem:[%s8919 + $0x300] sm:$0xff]
        %v9017 = vld [vmem:[%s8919 + $0x308] sm:$0xff]
        %v9018 = vld [vmem:[%s8919 + $0x310] sm:$0xff]
        %v9019 = vld [vmem:[%s8919 + $0x318] sm:$0xff]
        %v9020 = vld [vmem:[%s8919 + $0x320] sm:$0xff]
        %v9021 = vld [vmem:[%s8919 + $0x328] sm:$0xff]
        %v9022 = vld [vmem:[%s8919 + $0x330] sm:$0xff]
        %v9023 = vld [vmem:[%s8919 + $0x338] sm:$0xff]
        %v9024 = vld [vmem:[%s8919 + $0x340] sm:$0xff]
        %v9025 = vld [vmem:[%s8919 + $0x348] sm:$0xff]
        %v9026 = vld [vmem:[%s8919 + $0x350] sm:$0xff]
        %v9027 = vld [vmem:[%s8919 + $0x358] sm:$0xff]
        %v9028 = vld [vmem:[%s8919 + $0x360] sm:$0xff]
        %v9029 = vld [vmem:[%s8919 + $0x368] sm:$0xff]
        %v9030 = vld [vmem:[%s8919 + $0x370] sm:$0xff]
        %v9031 = vld [vmem:[%s8919 + $0x378] sm:$0xff]
        %v9032 = vld [vmem:[%s8919 + $0x380] sm:$0xff]
        %v9033 = vld [vmem:[%s8919 + $0x388] sm:$0xff]
        %v9034 = vld [vmem:[%s8919 + $0x390] sm:$0xff]
        %v9035 = vld [vmem:[%s8919 + $0x398] sm:$0xff]
        %v9036 = vld [vmem:[%s8919 + $0x3a0] sm:$0xff]
        %v9037 = vld [vmem:[%s8919 + $0x3a8] sm:$0xff]
        %v9038 = vld [vmem:[%s8919 + $0x3b0] sm:$0xff]
        %v9039 = vld [vmem:[%s8919 + $0x3b8] sm:$0xff]
        %v9040 = vld [vmem:[%s8919 + $0x3c0] sm:$0xff]
        %v9041 = vld [vmem:[%s8919 + $0x3c8] sm:$0xff]
        %v9042 = vld [vmem:[%s8919 + $0x3d0] sm:$0xff]
        %v9043 = vld [vmem:[%s8919 + $0x3d8] sm:$0xff]
        %v9044 = vld [vmem:[%s8919 + $0x3e0] sm:$0xff]
        %v9045 = vld [vmem:[%s8919 + $0x3e8] sm:$0xff]
        %v9046 = vld [vmem:[%s8919 + $0x3f0] sm:$0xff]
        %v9047 = vld [vmem:[%s8919 + $0x3f8] sm:$0xff]
        %v9048 = vld [vmem:[%s8919 + $0x400] sm:$0xff]
        %v9049 = vld [vmem:[%s8919 + $0x408] sm:$0xff]
        %v9050 = vld [vmem:[%s8919 + $0x410] sm:$0xff]
        %v9051 = vld [vmem:[%s8919 + $0x418] sm:$0xff]
        %v9052 = vld [vmem:[%s8919 + $0x420] sm:$0xff]
        %v9053 = vld [vmem:[%s8919 + $0x428] sm:$0xff]
        %v9054 = vld [vmem:[%s8919 + $0x430] sm:$0xff]
        %v9055 = vld [vmem:[%s8919 + $0x438] sm:$0xff]
        %v9056 = vld [vmem:[%s8919 + $0x440] sm:$0xff]
        %v9057 = vld [vmem:[%s8919 + $0x448] sm:$0xff]
        %v9058 = vld [vmem:[%s8919 + $0x450] sm:$0xff]
        %v9059 = vld [vmem:[%s8919 + $0x458] sm:$0xff]
        %v9060 = vld [vmem:[%s8919 + $0x460] sm:$0xff]
        %v9061 = vld [vmem:[%s8919 + $0x468] sm:$0xff]
        %v9062 = vld [vmem:[%s8919 + $0x470] sm:$0xff]
        %v9063 = vld [vmem:[%s8919 + $0x478] sm:$0xff]
        %v9064 = vld [vmem:[%s8919 + $0x480] sm:$0xff]
        %v9065 = vld [vmem:[%s8919 + $0x488] sm:$0xff]
        %v9066 = vld [vmem:[%s8919 + $0x490] sm:$0xff]
        %v9067 = vld [vmem:[%s8919 + $0x498] sm:$0xff]
        %v9068 = vld [vmem:[%s8919 + $0x4a0] sm:$0xff]
        %v9069 = vld [vmem:[%s8919 + $0x4a8] sm:$0xff]
        %v9070 = vld [vmem:[%s8919 + $0x4b0] sm:$0xff]
        %v9071 = vld [vmem:[%s8919 + $0x4b8] sm:$0xff]
        %v9072 = vld [vmem:[%s8919 + $0x4c0] sm:$0xff]
        %v9073 = vld [vmem:[%s8919 + $0x4c8] sm:$0xff]
        %v9074 = vld [vmem:[%s8919 + $0x4d0] sm:$0xff]
        %v9075 = vld [vmem:[%s8919 + $0x4d8] sm:$0xff]
        %v9076 = vld [vmem:[%s8919 + $0x4e0] sm:$0xff]
        %v9077 = vld [vmem:[%s8919 + $0x4e8] sm:$0xff]
        %v9078 = vld [vmem:[%s8919 + $0x4f0] sm:$0xff]
        %v9079 = vld [vmem:[%s8919 + $0x4f8] sm:$0xff]
        %v9080 = vld [vmem:[%s8919 + $0x500] sm:$0xff]
        %v9081 = vld [vmem:[%s8919 + $0x508] sm:$0xff]
        %v9082 = vld [vmem:[%s8919 + $0x510] sm:$0xff]
        %v9083 = vld [vmem:[%s8919 + $0x518] sm:$0xff]
        %v9084 = vld [vmem:[%s8919 + $0x520] sm:$0xff]
        %v9085 = vld [vmem:[%s8919 + $0x528] sm:$0xff]
        %v9086 = vld [vmem:[%s8919 + $0x530] sm:$0xff]
        %v9087 = vld [vmem:[%s8919 + $0x538] sm:$0xff]
        %v9088 = vld [vmem:[%s8919 + $0x540] sm:$0xff]
        %v9089 = vld [vmem:[%s8919 + $0x548] sm:$0xff]
        %v9090 = vld [vmem:[%s8919 + $0x550] sm:$0xff]
        %v9091 = vld [vmem:[%s8919 + $0x558] sm:$0xff]
        %v9092 = vld [vmem:[%s8919 + $0x560] sm:$0x3f]
        %v9093 = vld [vmem:[%s8919 + $0x568] sm:$0x3f]
        %v9094 = vld [vmem:[%s8919 + $0x570] sm:$0x3f]
        %v9095 = vld [vmem:[%s8919 + $0x578] sm:$0x3f]
        %v9097 = vsel %vm7839, %v7485, 0
        %v9100 = vsel %vm7843, %v9092, 0
        %v9103 = vsel %vm7843, %v9093, 0
        %v9106 = vsel %vm7843, %v9094, 0
        %v9109 = vsel %vm7843, %v9095, 0
        %9111 = vmatprep.subr.mxu0 %v8921
        %9112 = vmatpush1.msra.mxu0 %v8920
        %9113 = vmatprep.subr.mxu0 %v8925
        %9114 = vmatpush1.msra.mxu0 %v8924
        %9115 = vmatprep.subr.mxu0 %v8929
        %9116 = vmatpush1.msra.mxu0 %v8928
        %9117 = vmatprep.subr.mxu0 %v8933
        %9118 = vmatpush1.msra.mxu0 %v8932
        %9119 = vmatprep.subr.mxu0 %v8937
        %9120 = vmatpush1.msra.mxu0 %v8936
        %9121 = vmatprep.subr.mxu0 %v8941
        %9122 = vmatpush1.msra.mxu0 %v8940
        %9123 = vmatprep.subr.mxu0 %v8945
        %9124 = vmatpush1.msra.mxu0 %v8944
        %9125 = vmatprep.subr.mxu0 %v8949
        %9126 = vmatpush1.msra.mxu0 %v8948
        %9127 = vmatprep.subr.mxu0 %v8953
        %9128 = vmatpush1.msra.mxu0 %v8952
        %9129 = vmatprep.subr.mxu0 %v8957
        %9130 = vmatpush1.msra.mxu0 %v8956
        %9131 = vmatprep.subr.mxu0 %v8961
        %9132 = vmatpush1.msra.mxu0 %v8960
        %9133 = vmatprep.subr.mxu0 %v8965
        %9134 = vmatpush1.msra.mxu0 %v8964
        %9135 = vmatprep.subr.mxu0 %v8969
        %9136 = vmatpush1.msra.mxu0 %v8968
        %9137 = vmatprep.subr.mxu0 %v8973
        %9138 = vmatpush1.msra.mxu0 %v8972
        %9139 = vmatprep.subr.mxu0 %v8977
        %9140 = vmatpush1.msra.mxu0 %v8976
        %9141 = vmatprep.subr.mxu0 %v8981
        %9142 = vmatpush1.msra.mxu0 %v8980
        %9143 = vmatprep.subr.mxu0 %v8985
        %9144 = vmatpush1.msra.mxu0 %v8984
        %9145 = vmatprep.subr.mxu0 %v8989
        %9146 = vmatpush1.msra.mxu0 %v8988
        %9147 = vmatprep.subr.mxu0 %v8993
        %9148 = vmatpush1.msra.mxu0 %v8992
        %9149 = vmatprep.subr.mxu0 %v8997
        %9150 = vmatpush1.msra.mxu0 %v8996
        %9151 = vmatprep.subr.mxu0 %v9001
        %9152 = vmatpush1.msra.mxu0 %v9000
        %9153 = vmatprep.subr.mxu0 %v9005
        %9154 = vmatpush1.msra.mxu0 %v9004
        %9155 = vmatprep.subr.mxu0 %v9009
        %9156 = vmatpush1.msra.mxu0 %v9008
        %9157 = vmatprep.subr.mxu0 %v9013
        %9158 = vmatpush1.msra.mxu0 %v9012
        %9159 = vmatprep.subr.mxu0 %v9017
        %9160 = vmatpush1.msra.mxu0 %v9016
        %9161 = vmatprep.subr.mxu0 %v9021
        %9162 = vmatpush1.msra.mxu0 %v9020
        %9163 = vmatprep.subr.mxu0 %v9025
        %9164 = vmatpush1.msra.mxu0 %v9024
        %9165 = vmatprep.subr.mxu0 %v9029
        %9166 = vmatpush1.msra.mxu0 %v9028
        %9167 = vmatprep.subr.mxu0 %v9033
        %9168 = vmatpush1.msra.mxu0 %v9032
        %9169 = vmatprep.subr.mxu0 %v9037
        %9170 = vmatpush1.msra.mxu0 %v9036
        %9171 = vmatprep.subr.mxu0 %v9041
        %9172 = vmatpush1.msra.mxu0 %v9040
        %9173 = vmatprep.subr.mxu0 %v9045
        %9174 = vmatpush1.msra.mxu0 %v9044
        %9175 = vmatprep.mubr.f32.mxu0 %v7484
        %9176 = vmatmul.mubr.f32.gmra.mrb[0].mxu0 %v7483
        %v9177 = vpop.f32.mrb[0].mxu0
        %v9178 = vadd.f32 0.0, %v9177
        %v9179 = vpop.f32.mrb[0].mxu0
        %v9180 = vadd.f32 0.0, %v9179
        %9181 = vdwg.mxu0
        %9182 = vmatprep.subr.mxu0 %v9049
        %9183 = vmatpush1.msra.mxu0 %v9048
        %9184 = vmatprep.subr.mxu0 %v9053
        %9185 = vmatpush1.msra.mxu0 %v9052
        %9186 = vmatprep.subr.mxu0 %v9057
        %9187 = vmatpush1.msra.mxu0 %v9056
        %9188 = vmatprep.subr.mxu0 %v9061
        %9189 = vmatpush1.msra.mxu0 %v9060
        %9190 = vmatprep.subr.mxu0 %v9065
        %9191 = vmatpush1.msra.mxu0 %v9064
        %9192 = vmatprep.subr.mxu0 %v9069
        %9193 = vmatpush1.msra.mxu0 %v9068
        %9194 = vmatprep.subr.mxu0 %v9073
        %9195 = vmatpush1.msra.mxu0 %v9072
        %9196 = vmatprep.subr.mxu0 %v9077
        %9197 = vmatpush1.msra.mxu0 %v9076
        %9198 = vmatprep.subr.mxu0 %v9081
        %9199 = vmatpush1.msra.mxu0 %v9080
        %9200 = vmatprep.subr.mxu0 %v9085
        %9201 = vmatpush1.msra.mxu0 %v9084
        %9202 = vmatprep.subr.mxu0 %v9089
        %9203 = vmatpush1.msra.mxu0 %v9088
        %9204 = vmatprep.subr.mxu0 %v9103
        %9205 = vmatpush1.msra.mxu0 %v9100
        %9206 = vmatprep.subr.mxu0 0.0
        %9207 = vmatpush1.msra.mxu0 0.0
        %9208 = vmatprep.subr.mxu0 0.0
        %9209 = vmatpush1.msra.mxu0 0.0
        %9210 = vmatprep.subr.mxu0 0.0
        %9211 = vmatpush1.msra.mxu0 0.0
        %9212 = vmatprep.subr.mxu0 0.0
        %9213 = vmatpush1.msra.mxu0 0.0
        %9214 = vmatprep.subr.mxu0 0.0
        %9215 = vmatpush1.msra.mxu0 0.0
        %9216 = vmatprep.subr.mxu0 0.0
        %9217 = vmatpush1.msra.mxu0 0.0
        %9218 = vmatprep.subr.mxu0 0.0
        %9219 = vmatpush1.msra.mxu0 0.0
        %9220 = vmatprep.subr.mxu0 0.0
        %9221 = vmatpush1.msra.mxu0 0.0
        %9222 = vmatprep.subr.mxu0 0.0
        %9223 = vmatpush1.msra.mxu0 0.0
        %9224 = vmatprep.subr.mxu0 0.0
        %9225 = vmatpush1.msra.mxu0 0.0
        %9226 = vmatprep.subr.mxu0 0.0
        %9227 = vmatpush1.msra.mxu0 0.0
        %9228 = vmatprep.subr.mxu0 0.0
        %9229 = vmatpush1.msra.mxu0 0.0
        %9230 = vmatprep.subr.mxu0 0.0
        %9231 = vmatpush1.msra.mxu0 0.0
        %9232 = vmatprep.subr.mxu0 0.0
        %9233 = vmatpush1.msra.mxu0 0.0
        %9234 = vmatprep.subr.mxu0 0.0
        %9235 = vmatpush1.msra.mxu0 0.0
        %9236 = vmatprep.subr.mxu0 0.0
        %9237 = vmatpush1.msra.mxu0 0.0
        %9238 = vmatprep.subr.mxu0 0.0
        %9239 = vmatpush1.msra.mxu0 0.0
        %9240 = vmatprep.subr.mxu0 0.0
        %9241 = vmatpush1.msra.mxu0 0.0
        %9242 = vmatprep.subr.mxu0 0.0
        %9243 = vmatpush1.msra.mxu0 0.0
        %9244 = vmatprep.subr.mxu0 0.0
        %9245 = vmatpush1.msra.mxu0 0.0
        %9246 = vmatprep.mubr.f32.mxu0 0.0
        %9247 = vmatmul.mubr.f32.gmra.mrb[0].mxu0 %v9097
        %v9248 = vpop.f32.mrb[0].mxu0
        %v9249 = vadd.f32 %v9178, %v9248
        %v9250 = vpop.f32.mrb[0].mxu0
        %v9251 = vadd.f32 %v9180, %v9250
        %9252 = vdwg.mxu0
        %9253 = vmatprep.subr.mxu0 %v8923
        %9254 = vmatpush1.msra.mxu0 %v8922
        %9255 = vmatprep.subr.mxu0 %v8927
        %9256 = vmatpush1.msra.mxu0 %v8926
        %9257 = vmatprep.subr.mxu0 %v8931
        %9258 = vmatpush1.msra.mxu0 %v8930
        %9259 = vmatprep.subr.mxu0 %v8935
        %9260 = vmatpush1.msra.mxu0 %v8934
        %9261 = vmatprep.subr.mxu0 %v8939
        %9262 = vmatpush1.msra.mxu0 %v8938
        %9263 = vmatprep.subr.mxu0 %v8943
        %9264 = vmatpush1.msra.mxu0 %v8942
        %9265 = vmatprep.subr.mxu0 %v8947
        %9266 = vmatpush1.msra.mxu0 %v8946
        %9267 = vmatprep.subr.mxu0 %v8951
        %9268 = vmatpush1.msra.mxu0 %v8950
        %9269 = vmatprep.subr.mxu0 %v8955
        %9270 = vmatpush1.msra.mxu0 %v8954
        %9271 = vmatprep.subr.mxu0 %v8959
        %9272 = vmatpush1.msra.mxu0 %v8958
        %9273 = vmatprep.subr.mxu0 %v8963
        %9274 = vmatpush1.msra.mxu0 %v8962
        %9275 = vmatprep.subr.mxu0 %v8967
        %9276 = vmatpush1.msra.mxu0 %v8966
        %9277 = vmatprep.subr.mxu0 %v8971
        %9278 = vmatpush1.msra.mxu0 %v8970
        %9279 = vmatprep.subr.mxu0 %v8975
        %9280 = vmatpush1.msra.mxu0 %v8974
        %9281 = vmatprep.subr.mxu0 %v8979
        %9282 = vmatpush1.msra.mxu0 %v8978
        %9283 = vmatprep.subr.mxu0 %v8983
        %9284 = vmatpush1.msra.mxu0 %v8982
        %9285 = vmatprep.subr.mxu0 %v8987
        %9286 = vmatpush1.msra.mxu0 %v8986
        %9287 = vmatprep.subr.mxu0 %v8991
        %9288 = vmatpush1.msra.mxu0 %v8990
        %9289 = vmatprep.subr.mxu0 %v8995
        %9290 = vmatpush1.msra.mxu0 %v8994
        %9291 = vmatprep.subr.mxu0 %v8999
        %9292 = vmatpush1.msra.mxu0 %v8998
        %9293 = vmatprep.subr.mxu0 %v9003
        %9294 = vmatpush1.msra.mxu0 %v9002
        %9295 = vmatprep.subr.mxu0 %v9007
        %9296 = vmatpush1.msra.mxu0 %v9006
        %9297 = vmatprep.subr.mxu0 %v9011
        %9298 = vmatpush1.msra.mxu0 %v9010
        %9299 = vmatprep.subr.mxu0 %v9015
        %9300 = vmatpush1.msra.mxu0 %v9014
        %9301 = vmatprep.subr.mxu0 %v9019
        %9302 = vmatpush1.msra.mxu0 %v9018
        %9303 = vmatprep.subr.mxu0 %v9023
        %9304 = vmatpush1.msra.mxu0 %v9022
        %9305 = vmatprep.subr.mxu0 %v9027
        %9306 = vmatpush1.msra.mxu0 %v9026
        %9307 = vmatprep.subr.mxu0 %v9031
        %9308 = vmatpush1.msra.mxu0 %v9030
        %9309 = vmatprep.subr.mxu0 %v9035
        %9310 = vmatpush1.msra.mxu0 %v9034
        %9311 = vmatprep.subr.mxu0 %v9039
        %9312 = vmatpush1.msra.mxu0 %v9038
        %9313 = vmatprep.subr.mxu0 %v9043
        %9314 = vmatpush1.msra.mxu0 %v9042
        %9315 = vmatprep.subr.mxu0 %v9047
        %9316 = vmatpush1.msra.mxu0 %v9046
        %9317 = vmatprep.mubr.f32.mxu0 %v7484
        %9318 = vmatmul.mubr.f32.gmra.mrb[0].mxu0 %v7483
        %v9319 = vpop.f32.mrb[0].mxu0
        %v9320 = vadd.f32 0.0, %v9319
        %v9321 = vpop.f32.mrb[0].mxu0
        %v9322 = vadd.f32 0.0, %v9321
        %9323 = vdwg.mxu0
        %9324 = vmatprep.subr.mxu0 %v9051
        %9325 = vmatpush1.msra.mxu0 %v9050
        %9326 = vmatprep.subr.mxu0 %v9055
        %9327 = vmatpush1.msra.mxu0 %v9054
        %9328 = vmatprep.subr.mxu0 %v9059
        %9329 = vmatpush1.msra.mxu0 %v9058
        %9330 = vmatprep.subr.mxu0 %v9063
        %9331 = vmatpush1.msra.mxu0 %v9062
        %9332 = vmatprep.subr.mxu0 %v9067
        %9333 = vmatpush1.msra.mxu0 %v9066
        %9334 = vmatprep.subr.mxu0 %v9071
        %9335 = vmatpush1.msra.mxu0 %v9070
        %9336 = vmatprep.subr.mxu0 %v9075
        %9337 = vmatpush1.msra.mxu0 %v9074
        %9338 = vmatprep.subr.mxu0 %v9079
        %9339 = vmatpush1.msra.mxu0 %v9078
        %9340 = vmatprep.subr.mxu0 %v9083
        %9341 = vmatpush1.msra.mxu0 %v9082
        %9342 = vmatprep.subr.mxu0 %v9087
        %9343 = vmatpush1.msra.mxu0 %v9086
        %9344 = vmatprep.subr.mxu0 %v9091
        %9345 = vmatpush1.msra.mxu0 %v9090
        %9346 = vmatprep.subr.mxu0 %v9109
        %9347 = vmatpush1.msra.mxu0 %v9106
        %9348 = vmatprep.subr.mxu0 0.0
        %9349 = vmatpush1.msra.mxu0 0.0
        %9350 = vmatprep.subr.mxu0 0.0
        %9351 = vmatpush1.msra.mxu0 0.0
        %9352 = vmatprep.subr.mxu0 0.0
        %9353 = vmatpush1.msra.mxu0 0.0
        %9354 = vmatprep.subr.mxu0 0.0
        %9355 = vmatpush1.msra.mxu0 0.0
        %9356 = vmatprep.subr.mxu0 0.0
        %9357 = vmatpush1.msra.mxu0 0.0
        %9358 = vmatprep.subr.mxu0 0.0
        %9359 = vmatpush1.msra.mxu0 0.0
        %9360 = vmatprep.subr.mxu0 0.0
        %9361 = vmatpush1.msra.mxu0 0.0
        %9362 = vmatprep.subr.mxu0 0.0
        %9363 = vmatpush1.msra.mxu0 0.0
        %9364 = vmatprep.subr.mxu0 0.0
        %9365 = vmatpush1.msra.mxu0 0.0
        %9366 = vmatprep.subr.mxu0 0.0
        %9367 = vmatpush1.msra.mxu0 0.0
        %9368 = vmatprep.subr.mxu0 0.0
        %9369 = vmatpush1.msra.mxu0 0.0
        %9370 = vmatprep.subr.mxu0 0.0
        %9371 = vmatpush1.msra.mxu0 0.0
        %9372 = vmatprep.subr.mxu0 0.0
        %9373 = vmatpush1.msra.mxu0 0.0
        %9374 = vmatprep.subr.mxu0 0.0
        %9375 = vmatpush1.msra.mxu0 0.0
        %9376 = vmatprep.subr.mxu0 0.0
        %9377 = vmatpush1.msra.mxu0 0.0
        %9378 = vmatprep.subr.mxu0 0.0
        %9379 = vmatpush1.msra.mxu0 0.0
        %9380 = vmatprep.subr.mxu0 0.0
        %9381 = vmatpush1.msra.mxu0 0.0
        %9382 = vmatprep.subr.mxu0 0.0
        %9383 = vmatpush1.msra.mxu0 0.0
        %9384 = vmatprep.subr.mxu0 0.0
        %9385 = vmatpush1.msra.mxu0 0.0
        %9386 = vmatprep.subr.mxu0 0.0
        %9387 = vmatpush1.msra.mxu0 0.0
        %9388 = vmatprep.mubr.f32.mxu0 0.0
        %9389 = vmatmul.mubr.f32.gmra.mrb[0].mxu0 %v9097
        %v9390 = vpop.f32.mrb[0].mxu0
        %v9391 = vadd.f32 %v9320, %v9390
        %v9392 = vpop.f32.mrb[0].mxu0
        %v9393 = vadd.f32 %v9322, %v9392
        %9394 = vdwg.mxu0
        %v9395 = vadd.f32 %v8915, %v9249
        %v9396 = vadd.f32 %v8916, %v9251
        %v9397 = vadd.f32 %v8917, %v9391
        %v9398 = vadd.f32 %v8918, %v9393
        %v9399 = vld [vmem:[%s6] sm:$0xf]
        %v9401 = vlaneseq
        %v9402 = vshrl.u32 %v9401, 7
        %v9403 = vsub.s32 0, %v9402
        %v9404 = vrot.slane %v9399, %v9403
        %v9405 = vlaneseq
        %v9406 = vshrl.u32 %v9405, 7
        %v9407 = vsub.s32 1, %v9406
        %v9408 = vrot.slane %v9399, %v9407
        %v9409 = vlaneseq
        %v9410 = vshrl.u32 %v9409, 7
        %v9411 = vsub.s32 2, %v9410
        %v9412 = vrot.slane %v9399, %v9411
        %v9413 = vlaneseq
        %v9414 = vshrl.u32 %v9413, 7
        %v9415 = vsub.s32 3, %v9414
        %v9416 = vrot.slane %v9399, %v9415
        %v9421 = vadd.f32 %v9395, %v9404
        %v9422 = vadd.f32 %v9396, %v9408
        %v9423 = vadd.f32 %v9397, %v9412
        %v9424 = vadd.f32 %v9398, %v9416
        %v9425 = vmax.f32 %v9421, 0.0
        %v9426 = vmax.f32 %v9422, 0.0
        %v9427 = vmax.f32 %v9423, 0.0
        %v9428 = vmax.f32 %v9424, 0.0
        %v9429 = vld [vmem:[%s7] sm:$0xff]
        %v9430 = vld [vmem:[%s7 + $0x8] sm:$0xff]
        %v9431 = vld [vmem:[%s7 + $0x10] sm:$0xff]
        %v9432 = vld [vmem:[%s7 + $0x18] sm:$0xff]
        %v9433 = vld [vmem:[%s7 + $0x20] sm:$0xff]
        %v9434 = vld [vmem:[%s7 + $0x28] sm:$0xff]
        %v9435 = vld [vmem:[%s7 + $0x30] sm:$0xff]
        %v9436 = vld [vmem:[%s7 + $0x38] sm:$0xff]
        %v9437 = vld [vmem:[%s7 + $0x40] sm:$0xff]
        %v9438 = vld [vmem:[%s7 + $0x48] sm:$0xff]
        %v9439 = vld [vmem:[%s7 + $0x50] sm:$0xff]
        %v9440 = vld [vmem:[%s7 + $0x58] sm:$0xff]
        %v9441 = vld [vmem:[%s7 + $0x60] sm:$0xff]
        %v9442 = vld [vmem:[%s7 + $0x68] sm:$0xff]
        %v9443 = vld [vmem:[%s7 + $0x70] sm:$0xff]
        %v9444 = vld [vmem:[%s7 + $0x78] sm:$0xff]
        %v9445 = vld [vmem:[%s7 + $0x80] sm:$0xff]
        %v9446 = vld [vmem:[%s7 + $0x88] sm:$0xff]
        %v9447 = vld [vmem:[%s7 + $0x90] sm:$0xff]
        %v9448 = vld [vmem:[%s7 + $0x98] sm:$0xff]
        %v9449 = vld [vmem:[%s7 + $0xa0] sm:$0xff]
        %v9450 = vld [vmem:[%s7 + $0xa8] sm:$0xff]
        %v9451 = vld [vmem:[%s7 + $0xb0] sm:$0xff]
        %v9452 = vld [vmem:[%s7 + $0xb8] sm:$0xff]
        %v9453 = vld [vmem:[%s7 + $0xc0] sm:$0xff]
        %v9454 = vld [vmem:[%s7 + $0xc8] sm:$0xff]
        %v9455 = vld [vmem:[%s7 + $0xd0] sm:$0xff]
        %v9456 = vld [vmem:[%s7 + $0xd8] sm:$0xff]
        %v9457 = vld [vmem:[%s7 + $0xe0] sm:$0xff]
        %v9458 = vld [vmem:[%s7 + $0xe8] sm:$0xff]
        %v9459 = vld [vmem:[%s7 + $0xf0] sm:$0xff]
        %v9460 = vld [vmem:[%s7 + $0xf8] sm:$0xff]
        %v9461 = vld [vmem:[%s7 + $0x100] sm:$0xff]
        %v9462 = vld [vmem:[%s7 + $0x108] sm:$0xff]
        %v9463 = vld [vmem:[%s7 + $0x110] sm:$0xff]
        %v9464 = vld [vmem:[%s7 + $0x118] sm:$0xff]
        %v9465 = vld [vmem:[%s7 + $0x120] sm:$0xff]
        %v9466 = vld [vmem:[%s7 + $0x128] sm:$0xff]
        %v9467 = vld [vmem:[%s7 + $0x130] sm:$0xff]
        %v9468 = vld [vmem:[%s7 + $0x138] sm:$0xff]
        %v9469 = vld [vmem:[%s7 + $0x140] sm:$0xff]
        %v9470 = vld [vmem:[%s7 + $0x148] sm:$0xff]
        %v9471 = vld [vmem:[%s7 + $0x150] sm:$0xff]
        %v9472 = vld [vmem:[%s7 + $0x158] sm:$0xff]
        %v9473 = vld [vmem:[%s7 + $0x160] sm:$0xff]
        %v9474 = vld [vmem:[%s7 + $0x168] sm:$0xff]
        %v9475 = vld [vmem:[%s7 + $0x170] sm:$0xff]
        %v9476 = vld [vmem:[%s7 + $0x178] sm:$0xff]
        %v9477 = vld [vmem:[%s7 + $0x180] sm:$0xff]
        %v9478 = vld [vmem:[%s7 + $0x188] sm:$0xff]
        %v9479 = vld [vmem:[%s7 + $0x190] sm:$0xff]
        %v9480 = vld [vmem:[%s7 + $0x198] sm:$0xff]
        %v9481 = vld [vmem:[%s7 + $0x1a0] sm:$0xff]
        %v9482 = vld [vmem:[%s7 + $0x1a8] sm:$0xff]
        %v9483 = vld [vmem:[%s7 + $0x1b0] sm:$0xff]
        %v9484 = vld [vmem:[%s7 + $0x1b8] sm:$0xff]
        %v9485 = vld [vmem:[%s7 + $0x1c0] sm:$0xff]
        %v9486 = vld [vmem:[%s7 + $0x1c8] sm:$0xff]
        %v9487 = vld [vmem:[%s7 + $0x1d0] sm:$0xff]
        %v9488 = vld [vmem:[%s7 + $0x1d8] sm:$0xff]
        %v9489 = vld [vmem:[%s7 + $0x1e0] sm:$0xff]
        %v9490 = vld [vmem:[%s7 + $0x1e8] sm:$0xff]
        %v9491 = vld [vmem:[%s7 + $0x1f0] sm:$0xf]
        %v9492 = vld [vmem:[%s8] sm:$0x1]
        %v9494 = vlaneseq
        %v9495 = vshrl.u32 %v9494, 7
        %v9496 = vsub.s32 0, %v9495
        %v9497 = vrot.slane %v9492, %v9496
        %vm9499 = vcmask 949248
        %v9501 = vsel %vm9499, %v9428, 0
        %v9504 = vsel %vm607, %v9491, 0
        %9506 = vmatprep.subr.mxu0 0.0
        %9507 = vmatpush1.msra.mxu0 %v9429
        %9508 = vmatprep.subr.mxu0 0.0
        %9509 = vmatpush1.msra.mxu0 %v9430
        %9510 = vmatprep.subr.mxu0 0.0
        %9511 = vmatpush1.msra.mxu0 %v9431
        %9512 = vmatprep.subr.mxu0 0.0
        %9513 = vmatpush1.msra.mxu0 %v9432
        %9514 = vmatprep.subr.mxu0 0.0
        %9515 = vmatpush1.msra.mxu0 %v9433
        %9516 = vmatprep.subr.mxu0 0.0
        %9517 = vmatpush1.msra.mxu0 %v9434
        %9518 = vmatprep.subr.mxu0 0.0
        %9519 = vmatpush1.msra.mxu0 %v9435
        %9520 = vmatprep.subr.mxu0 0.0
        %9521 = vmatpush1.msra.mxu0 %v9436
        %9522 = vmatprep.subr.mxu0 0.0
        %9523 = vmatpush1.msra.mxu0 %v9437
        %9524 = vmatprep.subr.mxu0 0.0
        %9525 = vmatpush1.msra.mxu0 %v9438
        %9526 = vmatprep.subr.mxu0 0.0
        %9527 = vmatpush1.msra.mxu0 %v9439
        %9528 = vmatprep.subr.mxu0 0.0
        %9529 = vmatpush1.msra.mxu0 %v9440
        %9530 = vmatprep.subr.mxu0 0.0
        %9531 = vmatpush1.msra.mxu0 %v9441
        %9532 = vmatprep.subr.mxu0 0.0
        %9533 = vmatpush1.msra.mxu0 %v9442
        %9534 = vmatprep.subr.mxu0 0.0
        %9535 = vmatpush1.msra.mxu0 %v9443
        %9536 = vmatprep.subr.mxu0 0.0
        %9537 = vmatpush1.msra.mxu0 %v9444
        %9538 = vmatprep.subr.mxu0 0.0
        %9539 = vmatpush1.msra.mxu0 %v9445
        %9540 = vmatprep.subr.mxu0 0.0
        %9541 = vmatpush1.msra.mxu0 %v9446
        %9542 = vmatprep.subr.mxu0 0.0
        %9543 = vmatpush1.msra.mxu0 %v9447
        %9544 = vmatprep.subr.mxu0 0.0
        %9545 = vmatpush1.msra.mxu0 %v9448
        %9546 = vmatprep.subr.mxu0 0.0
        %9547 = vmatpush1.msra.mxu0 %v9449
        %9548 = vmatprep.subr.mxu0 0.0
        %9549 = vmatpush1.msra.mxu0 %v9450
        %9550 = vmatprep.subr.mxu0 0.0
        %9551 = vmatpush1.msra.mxu0 %v9451
        %9552 = vmatprep.subr.mxu0 0.0
        %9553 = vmatpush1.msra.mxu0 %v9452
        %9554 = vmatprep.subr.mxu0 0.0
        %9555 = vmatpush1.msra.mxu0 %v9453
        %9556 = vmatprep.subr.mxu0 0.0
        %9557 = vmatpush1.msra.mxu0 %v9454
        %9558 = vmatprep.subr.mxu0 0.0
        %9559 = vmatpush1.msra.mxu0 %v9455
        %9560 = vmatprep.subr.mxu0 0.0
        %9561 = vmatpush1.msra.mxu0 %v9456
        %9562 = vmatprep.subr.mxu0 0.0
        %9563 = vmatpush1.msra.mxu0 %v9457
        %9564 = vmatprep.subr.mxu0 0.0
        %9565 = vmatpush1.msra.mxu0 %v9458
        %9566 = vmatprep.subr.mxu0 0.0
        %9567 = vmatpush1.msra.mxu0 %v9459
        %9568 = vmatprep.subr.mxu0 0.0
        %9569 = vmatpush1.msra.mxu0 %v9460
        %9570 = vmatprep.mubr.f32.mxu0 %v9426
        %9571 = vmatmul.mubr.f32.gmra.mrb[0].mxu0 %v9425
        %v9572 = vpop.f32.mrb[0].mxu0
        %v9573 = vadd.f32 %v9497, %v9572
        %v9574 = vpop.f32.mrb[0].mxu0
        %9575 = vdwg.mxu0
        %9576 = vmatprep.subr.mxu0 0.0
        %9577 = vmatpush1.msra.mxu0 %v9461
        %9578 = vmatprep.subr.mxu0 0.0
        %9579 = vmatpush1.msra.mxu0 %v9462
        %9580 = vmatprep.subr.mxu0 0.0
        %9581 = vmatpush1.msra.mxu0 %v9463
        %9582 = vmatprep.subr.mxu0 0.0
        %9583 = vmatpush1.msra.mxu0 %v9464
        %9584 = vmatprep.subr.mxu0 0.0
        %9585 = vmatpush1.msra.mxu0 %v9465
        %9586 = vmatprep.subr.mxu0 0.0
        %9587 = vmatpush1.msra.mxu0 %v9466
        %9588 = vmatprep.subr.mxu0 0.0
        %9589 = vmatpush1.msra.mxu0 %v9467
        %9590 = vmatprep.subr.mxu0 0.0
        %9591 = vmatpush1.msra.mxu0 %v9468
        %9592 = vmatprep.subr.mxu0 0.0
        %9593 = vmatpush1.msra.mxu0 %v9469
        %9594 = vmatprep.subr.mxu0 0.0
        %9595 = vmatpush1.msra.mxu0 %v9470
        %9596 = vmatprep.subr.mxu0 0.0
        %9597 = vmatpush1.msra.mxu0 %v9471
        %9598 = vmatprep.subr.mxu0 0.0
        %9599 = vmatpush1.msra.mxu0 %v9472
        %9600 = vmatprep.subr.mxu0 0.0
        %9601 = vmatpush1.msra.mxu0 %v9473
        %9602 = vmatprep.subr.mxu0 0.0
        %9603 = vmatpush1.msra.mxu0 %v9474
        %9604 = vmatprep.subr.mxu0 0.0
        %9605 = vmatpush1.msra.mxu0 %v9475
        %9606 = vmatprep.subr.mxu0 0.0
        %9607 = vmatpush1.msra.mxu0 %v9476
        %9608 = vmatprep.subr.mxu0 0.0
        %9609 = vmatpush1.msra.mxu0 %v9477
        %9610 = vmatprep.subr.mxu0 0.0
        %9611 = vmatpush1.msra.mxu0 %v9478
        %9612 = vmatprep.subr.mxu0 0.0
        %9613 = vmatpush1.msra.mxu0 %v9479
        %9614 = vmatprep.subr.mxu0 0.0
        %9615 = vmatpush1.msra.mxu0 %v9480
        %9616 = vmatprep.subr.mxu0 0.0
        %9617 = vmatpush1.msra.mxu0 %v9481
        %9618 = vmatprep.subr.mxu0 0.0
        %9619 = vmatpush1.msra.mxu0 %v9482
        %9620 = vmatprep.subr.mxu0 0.0
        %9621 = vmatpush1.msra.mxu0 %v9483
        %9622 = vmatprep.subr.mxu0 0.0
        %9623 = vmatpush1.msra.mxu0 %v9484
        %9624 = vmatprep.subr.mxu0 0.0
        %9625 = vmatpush1.msra.mxu0 %v9485
        %9626 = vmatprep.subr.mxu0 0.0
        %9627 = vmatpush1.msra.mxu0 %v9486
        %9628 = vmatprep.subr.mxu0 0.0
        %9629 = vmatpush1.msra.mxu0 %v9487
        %9630 = vmatprep.subr.mxu0 0.0
        %9631 = vmatpush1.msra.mxu0 %v9488
        %9632 = vmatprep.subr.mxu0 0.0
        %9633 = vmatpush1.msra.mxu0 %v9489
        %9634 = vmatprep.subr.mxu0 0.0
        %9635 = vmatpush1.msra.mxu0 %v9490
        %9636 = vmatprep.subr.mxu0 0.0
        %9637 = vmatpush1.msra.mxu0 %v9504
        %9638 = vmatprep.subr.mxu0 0.0
        %9639 = vmatpush1.msra.mxu0 0.0
        %9640 = vmatprep.mubr.f32.mxu0 %v9501
        %9641 = vmatmul.mubr.f32.gmra.mrb[0].mxu0 %v9427
        %v9642 = vpop.f32.mrb[0].mxu0
        %v9643 = vadd.f32 %v9573, %v9642
        %v9644 = vpop.f32.mrb[0].mxu0
        %9645 = vdwg.mxu0
        %vm9646 = vcmask 15360
        %v9647 = vsel %vm9646, %v9643, -inf
        %9648 = vmax.xlane.f32.xlu0 %v9647
        %v9649 = vpop.xlane.xlu0 %9648
        %v9650 = vsub.f32 %v9643, %v9649
        %v9651 = vmul.f32 %v9650, 1.442695
        %v9652 = vpow.pop %v9651
        %v9653 = vsel %vm9646, %v9652, 0.0
        %9654 = vadd.xlane.f32.xlu0 %v9653
        %v9655 = vpop.xlane.xlu0 %9654
        %v9656 = vlog2.pop %v9655
        %v9657 = vmul.f32 %v9656, 0.6931472
        %v9658 = vadd.f32 %v9649, %v9657
        %v9659 = vsub.f32 %v9643, %v9658
        %9660 = vst.msk [vmem:[%s472] sm:$0xff] %vm9646, %v9659
        %p9661 = scmp.lt.s32.totalorder %s20, 1
        %s9662 = scalar_select %p9661, %s20, 1
        %s9663 = smul.addr %s9662, 8
        %s9664 = scalar_lea.vmem %s9, %s9663
        // Predicated region
        $region95: #{two_layer_net.1} parent=89 // pred_check
          %p9665 = pneg %p232
        $region96: #{two_layer_net.1} parent=89 // pred_check_branch
          %9667 = sbr.rel (%p9665) target = $region98
        $region97: #{two_layer_net.1} parent=89 // pred_region
          _
        $region98: #{two_layer_net.1} parent=89 // pred_fallthru
          _
      $region90: #{two_layer_net.1} parent=5 // pred_fallthru
        _
      %p9668 = scmp.le.s32.totalorder 2, %s15
      // Predicated region
      $region99: #{two_layer_net.1} parent=5 // pred_check
        %p9669 = pneg %p9668
      $region100: #{two_layer_net.1} parent=5 // pred_check_branch
        %9671 = sbr.rel (%p9669) target = $region102
      $region101: #{two_layer_net.1} parent=5 // pred_region
        %s9672 = ssub.s32 %s15, 2
        // Predicated region
        $region103: #{two_layer_net.1} parent=101 // pred_check
          %p9673 = pneg %p238
        $region104: #{two_layer_net.1} parent=101 // pred_check_branch
          %9675 = sbr.rel (%p9673) target = $region106
        $region105: #{two_layer_net.1} parent=101 // pred_region
          %p9676 = scmp.lt.s32.totalorder %s21, 1
          %s9677 = scalar_select %p9676, %s21, 1
          %s9678 = smul.addr %s9677, 8
          %s9679 = scalar_lea.vmem %s9, %s9678
        $region106: #{two_layer_net.1} parent=101 // pred_fallthru
          _
      $region102: #{two_layer_net.1} parent=5 // pred_fallthru
        _
    $region6: #{two_layer_net.1} parent=1 // loop_footer
      %s19 = sadd.s32 1, %s15
    $region7: #{two_layer_net.1} parent=1 // loop_footer_branch
      %14 = sbr.rel target = $region3
    $region8: #{two_layer_net.1} parent=1 // loop_exit
      _

</llo_original>
